<compile_context>
chip_gen: v7x
topology: tpu7x:2x2x1
jax: 0.10.0
libtpu: 0.0.40
codegen_flags: <defaults>
</compile_context>

<pallas_src>
import functools

import numpy as np

import jax
import jax.numpy as jnp
from jax.experimental import pallas as pl
from jax.experimental.pallas import tpu as pltpu

NUM_CLASSES = 150
FPN_DIM = 32

_VMEM_LIMIT = 48 * 1024 * 1024  # <= v7x's 64 MiB per-TC VMEM; fine on v5e/v6e


def _round_up(v, m):
    return (v + m - 1) // m * m


# ----------------------------------------------------------------------------
# Pallas kernels
# ----------------------------------------------------------------------------
def _mm_bias_kernel(sel_ref, x_ref, w_ref, b_ref, o_ref, *, relu):
    """One (TM,K)@(K,N) MXU tile: dot + bias (+ReLU), f32 accumulate, bf16/f32
    lane-dense store.  No K axis, no scratch: K is a single resident tile."""
    del sel_ref  # only used by the index_maps (weight selection)
    acc = jnp.dot(x_ref[...], w_ref[...], preferred_element_type=jnp.float32)
    acc = acc + b_ref[...]
    if relu:
        acc = jnp.maximum(acc, 0.0)
    o_ref[...] = acc.astype(o_ref.dtype)


def _softmax_kernel(x_ref, o_ref):
    """Row-wise softmax over the (unpadded) class dim."""
    x = x_ref[...]
    m = jnp.max(x, axis=-1, keepdims=True)
    e = jnp.exp(x - m)
    s = jnp.sum(e, axis=-1, keepdims=True)
    inv = pl.reciprocal(s, approx=True)        # EUP slot (otherwise idle)
    inv = inv * (2.0 - s * inv)                # one Newton step -> ~f32 accuracy
    o_ref[...] = e * inv


# ----------------------------------------------------------------------------
# Grouped GEMM wrapper: several independent (M_i,K_i)@(K_i,N_i)+b_i GEMMs in a
# single pallas_call.  Inputs are concatenated along M; a scalar-prefetched
# int32 table maps each M tile to its weight/bias (resident (K_pad,N_pad)
# block).  A single GEMM is just a group of size 1.
# ----------------------------------------------------------------------------
def grouped_matmul_bias(xs, ws, bs, relu=False, out_dtype=jnp.bfloat16):
    G = len(xs)
    Ms = [int(x.shape[0]) for x in xs]
    Ks = [int(x.shape[1]) for x in xs]
    Ns = [int(w.shape[1]) for w in ws]

    K_pad = _round_up(max(Ks), 128)
    N_pad = _round_up(max(Ns), 128)           # <= 256 everywhere in this net
    TM = min(1024, _round_up(max(Ms), 8))     # large M tiles; v7x-safe VMEM

    seg_M = [_round_up(m, TM) for m in Ms]
    offs = np.cumsum([0] + seg_M)
    M_tot = int(offs[-1])
    num_tiles = M_tot // TM

    # per-M-tile weight selection table (scalar-prefetched into SMEM)
    wsel = np.zeros((num_tiles,), np.int32)
    for g in range(G):
        wsel[int(offs[g]) // TM:int(offs[g + 1]) // TM] = g
    wsel = jnp.asarray(wsel)

    # concat along M; zero padding of rows / K is exactly neutral
    x_cat = jnp.concatenate(
        [jnp.pad(x.astype(jnp.bfloat16),
                 ((0, seg_M[g] - Ms[g]), (0, K_pad - Ks[g])))
         for g, x in enumerate(xs)], axis=0)
    w_stk = jnp.stack(
        [jnp.pad(w.astype(jnp.bfloat16),
                 ((0, K_pad - w.shape[0]), (0, N_pad - w.shape[1])))
         for w in ws])
    b_stk = jnp.stack(
        [jnp.pad(b.astype(jnp.float32), (0, N_pad - b.shape[0])) for b in bs]
    ).reshape(G, 1, N_pad)

    kernel = functools.partial(_mm_bias_kernel, relu=relu)
    out_isz = jnp.dtype(out_dtype).itemsize
    flops = 2 * M_tot * K_pad * N_pad
    bytes_accessed = (M_tot * K_pad * 2 + G * K_pad * N_pad * 2
                      + G * N_pad * 4 + M_tot * N_pad * out_isz)

    out = pl.pallas_call(
        kernel,
        out_shape=jax.ShapeDtypeStruct((M_tot, N_pad), out_dtype),
        grid_spec=pltpu.PrefetchScalarGridSpec(
            num_scalar_prefetch=1,
            grid=(num_tiles,),
            in_specs=[
                # activation M tile (full K resident)
                pl.BlockSpec((TM, K_pad), lambda i, sel: (i, 0)),
                # whole weight / bias of the tile's group, VMEM resident,
                # re-DMAed only when the group changes (<= G times)
                pl.BlockSpec((None, K_pad, N_pad), lambda i, sel: (sel[i], 0, 0)),
                pl.BlockSpec((None, 1, N_pad), lambda i, sel: (sel[i], 0, 0)),
            ],
            out_specs=pl.BlockSpec((TM, N_pad), lambda i, sel: (i, 0)),
        ),
        compiler_params=pltpu.CompilerParams(
            dimension_semantics=("parallel",),   # M tiles shard across v7x TCs
            vmem_limit_bytes=_VMEM_LIMIT),
        cost_estimate=pl.CostEstimate(
            flops=flops, transcendentals=0, bytes_accessed=bytes_accessed),
    )(wsel, x_cat, w_stk, b_stk)

    return [out[int(offs[g]):int(offs[g]) + Ms[g], :Ns[g]] for g in range(G)]


def softmax_lastdim(x2d):
    """Row-wise softmax over the last (class) dimension, row-tiled Pallas kernel.

    The class dim is used at its real width (== full array dim, legal block
    shape); no pad-to-256 HBM materialization."""
    M, C = x2d.shape
    TM = min(2048, _round_up(M, 8))
    M_pad = _round_up(M, TM)

    xp = x2d.astype(jnp.float32)
    if M_pad > M:
        xp = jnp.pad(xp, ((0, M_pad - M), (0, 0)))

    out = pl.pallas_call(
        _softmax_kernel,
        out_shape=jax.ShapeDtypeStruct((M_pad, C), jnp.float32),
        grid=(M_pad // TM,),
        in_specs=[pl.BlockSpec((TM, C), lambda i: (i, 0))],
        out_specs=pl.BlockSpec((TM, C), lambda i: (i, 0)),
        compiler_params=pltpu.CompilerParams(
            dimension_semantics=("parallel",),
            vmem_limit_bytes=_VMEM_LIMIT),
        cost_estimate=pl.CostEstimate(
            flops=5 * M_pad * C, transcendentals=M_pad * C,
            bytes_accessed=2 * M_pad * C * 4),
    )(xp)
    return out[:M]


# ----------------------------------------------------------------------------
# Conv-as-matmul glue (im2col stays in plain JAX on bf16, GEMM runs in Pallas)
# ----------------------------------------------------------------------------
def _im2col(x, kh, kw, stride, pad):
    """x: (N,H,W,C) NHWC bf16 -> patches (N,Ho,Wo,kh*kw*C), ordering (kh,kw,C)."""
    N, H, W, C = x.shape
    xp = jnp.pad(x, ((0, 0), (pad, pad), (pad, pad), (0, 0)))
    Ho = (H + 2 * pad - kh) // stride + 1
    Wo = (W + 2 * pad - kw) // stride + 1
    cols = []
    for i in range(kh):
        for j in range(kw):
            cols.append(xp[:, i:i + stride * Ho:stride, j:j + stride * Wo:stride, :])
    return jnp.concatenate(cols, axis=-1), Ho, Wo


def conv2d(x, w, b, stride=1, relu=False, out_dtype=jnp.bfloat16):
    """NHWC conv with weight (kh,kw,Cin,Cout), 'same'-style padding = kh//2."""
    kh, kw, cin, cout = w.shape
    N = x.shape[0]
    if kh == 1 and kw == 1 and stride == 1:
        H, W = x.shape[1], x.shape[2]
        (out,) = grouped_matmul_bias([x.reshape(N * H * W, cin)],
                                     [w.reshape(cin, cout)], [b],
                                     relu=relu, out_dtype=out_dtype)
        return out.reshape(N, H, W, cout)
    pad = kh // 2
    cols, Ho, Wo = _im2col(x, kh, kw, stride, pad)
    (out,) = grouped_matmul_bias([cols.reshape(N * Ho * Wo, kh * kw * cin)],
                                 [w.reshape(kh * kw * cin, cout)], [b],
                                 relu=relu, out_dtype=out_dtype)
    return out.reshape(N, Ho, Wo, cout)


def batched_conv_1x1(inputs, params, relu=True):
    """Several independent 1x1 convs in a single pallas_call (concat along M)."""
    flats, shapes = [], []
    for x in inputs:
        n, h, w_, c = x.shape
        flats.append(x.reshape(n * h * w_, c))
        shapes.append((n, h, w_))
    wmats = [w.reshape(w.shape[2], w.shape[3]) for (w, _) in params]
    biases = [b for (_, b) in params]
    outs = grouped_matmul_bias(flats, wmats, biases, relu=relu)
    return [o.reshape(s[0], s[1], s[2], wm.shape[1])
            for o, s, wm in zip(outs, shapes, wmats)]


def batched_conv_3x3(inputs, params, relu=True):
    """Several independent stride-1 3x3 convs in a single pallas_call."""
    flats, shapes, wmats, biases = [], [], [], []
    for x, (w, b) in zip(inputs, params):
        kh, kw, cin, cout = w.shape
        cols, Ho, Wo = _im2col(x, kh, kw, 1, kh // 2)
        flats.append(cols.reshape(x.shape[0] * Ho * Wo, kh * kw * cin))
        shapes.append((x.shape[0], Ho, Wo))
        wmats.append(w.reshape(kh * kw * cin, cout))
        biases.append(b)
    outs = grouped_matmul_bias(flats, wmats, biases, relu=relu)
    return [o.reshape(s[0], s[1], s[2], wm.shape[1])
            for o, s, wm in zip(outs, shapes, wmats)]


def resize_bilinear(x, size, dtype=None):
    """Bilinear (half-pixel) resize, NHWC.  Left to XLA for now.
    TODO(synk): fuse the final full-resolution resize into the softmax kernel."""
    N, _, _, C = x.shape
    out = jax.image.resize(x.astype(jnp.float32), (N, size[0], size[1], C),
                           method="bilinear")
    return out.astype(dtype if dtype is not None else x.dtype)


# ----------------------------------------------------------------------------
# Parameter construction (deterministic, synthetic)
# ----------------------------------------------------------------------------
def _conv_params(key, kh, kw, cin, cout):
    kw_, kb_ = jax.random.split(key)
    scale = 0.3 / jnp.sqrt(jnp.float32(kh * kw * cin))
    w = jax.random.normal(kw_, (kh, kw, cin, cout), jnp.float32) * scale
    b = jax.random.normal(kb_, (cout,), jnp.float32) * 0.01
    return w, b


def make_params(key):
    keys = jax.random.split(key, 16)
    p = {}
    # Encoder (ResNet-style multi-scale feature extractor)
    p["enc1"] = _conv_params(keys[0], 3, 3, 3, 16)     # /2
    p["enc2"] = _conv_params(keys[1], 3, 3, 16, 32)    # /4
    p["enc3"] = _conv_params(keys[2], 3, 3, 32, 64)    # /8
    p["enc4"] = _conv_params(keys[3], 3, 3, 64, 128)   # /16
    # Decoder (UPerNet-style): PPM + FPN + fusion + classifier
    p["ppm_conv"] = _conv_params(keys[4], 1, 1, 128, FPN_DIM)
    p["ppm_last"] = _conv_params(keys[5], 3, 3, 128 + FPN_DIM, FPN_DIM)
    p["lat3"] = _conv_params(keys[6], 1, 1, 64, FPN_DIM)
    p["lat2"] = _conv_params(keys[7], 1, 1, 32, FPN_DIM)
    p["lat1"] = _conv_params(keys[8], 1, 1, 16, FPN_DIM)
    p["out3"] = _conv_params(keys[9], 3, 3, FPN_DIM, FPN_DIM)
    p["out2"] = _conv_params(keys[10], 3, 3, FPN_DIM, FPN_DIM)
    p["out1"] = _conv_params(keys[11], 3, 3, FPN_DIM, FPN_DIM)
    p["fusion"] = _conv_params(keys[12], 3, 3, 4 * FPN_DIM, FPN_DIM)
    p["cls"] = _conv_params(keys[13], 1, 1, FPN_DIM, NUM_CLASSES)
    return p


# ----------------------------------------------------------------------------
# Forward pass (semantics of SegmentationModule(..., segSize=HxW) inference)
# ----------------------------------------------------------------------------
def ade20k_segmenter_forward(params, x_nchw):
    """x_nchw: (N, 3, H, W) float32 -> (N, 150, H, W) softmax probabilities."""
    seg_size = x_nchw.shape[-2:]
    # all intermediate activations flow in bf16 (f32 accumulation inside GEMMs)
    x = jnp.transpose(x_nchw, (0, 2, 3, 1)).astype(jnp.bfloat16)  # NCHW -> NHWC

    # ---- encoder: multi-scale features (return_feature_maps=True) ----
    c1 = conv2d(x, *params["enc1"], stride=2, relu=True)
    c2 = conv2d(c1, *params["enc2"], stride=2, relu=True)
    c3 = conv2d(c2, *params["enc3"], stride=2, relu=True)
    c4 = conv2d(c3, *params["enc4"], stride=2, relu=True)

    # ---- decoder: PPM on deepest feature ----
    # TODO(synk): full UPerNet uses pool_scales=(1,2,3,6); spatial here is tiny,
    # so only the global (scale-1) pyramid branch is instantiated.
    gp = jnp.mean(c4.astype(jnp.float32), axis=(1, 2),
                  keepdims=True).astype(jnp.bfloat16)  # global pool

    # PPM 1x1 conv and the three FPN lateral 1x1 convs in ONE pallas_call
    # (concat-M with per-tile weight select; gp's padding is a single M tile).
    ppm, lat3, lat2, lat1 = batched_conv_1x1(
        [gp, c3, c2, c1],
        [params["ppm_conv"], params["lat3"], params["lat2"], params["lat1"]],
        relu=True)

    ppm = resize_bilinear(ppm, c4.shape[1:3])
    f4 = conv2d(jnp.concatenate([c4, ppm], axis=-1), *params["ppm_last"], relu=True)

    # ---- FPN top-down pathway ----
    p3 = lat3 + resize_bilinear(f4, lat3.shape[1:3])
    p2 = lat2 + resize_bilinear(p3, lat2.shape[1:3])
    p1 = lat1 + resize_bilinear(p2, lat1.shape[1:3])

    # the three 3x3 smoothing convs in ONE pallas_call (concat-M, shared K/N)
    o3, o2, o1 = batched_conv_3x3(
        [p3, p2, p1], [params["out3"], params["out2"], params["out1"]], relu=True)

    # ---- fuse all pyramid levels at the finest feature resolution ----
    tgt = o1.shape[1:3]
    fused = jnp.concatenate(
        [o1, resize_bilinear(o2, tgt), resize_bilinear(o3, tgt),
         resize_bilinear(f4, tgt)], axis=-1)
    fused = conv2d(fused, *params["fusion"], relu=True)
    # classifier keeps f32 output so the softmax input path stays f32
    logits = conv2d(fused, *params["cls"], relu=False,
                    out_dtype=jnp.float32)                          # (N,h,w,150)

    # ---- upsample to segSize, then softmax over classes (use_softmax=True) ----
    # TODO(synk): fuse this resize + the final transpose into the softmax kernel.
    logits = resize_bilinear(logits, seg_size)                       # (N,H,W,150)
    N, H, W, C = logits.shape
    probs = softmax_lastdim(logits.reshape(N * H * W, C)).reshape(N, H, W, C)

    return jnp.transpose(probs, (0, 3, 1, 2))                        # NCHW out


# ----------------------------------------------------------------------------
if __name__ == "__main__":
    key = jax.random.PRNGKey(0)
    pkey, xkey = jax.random.split(key)
    params = make_params(pkey)

    # small input consistent with (N, C, H, W) image tensor
    x = jax.random.normal(xkey, (2, 3, 16, 16), jnp.float32)

    fwd = jax.jit(ade20k_segmenter_forward)
    out = jax.block_until_ready(fwd(params, x))

    assert out.shape == (2, NUM_CLASSES, 16, 16), out.shape
    # softmax over the class dimension must sum to 1
    sums = jnp.sum(out, axis=1)
    assert bool(jnp.allclose(sums, 1.0, atol=1e-3)), "softmax sums off"
    assert bool(jnp.all(out >= 0.0)), "negative probabilities"

    print("KERNEL_OK")
</pallas_src>

<mosaic_0001>
module attributes {stable_mosaic.version = 11 : i64} {
  func.func @_mm_bias_kernel(%arg0: i32, %arg1: memref<1xi32, #tpu.memory_space<smem>>, %arg2: memref<128x128xbf16, #tpu.memory_space<vmem>>, %arg3: memref<1x128x128xbf16, #tpu.memory_space<vmem>>, %arg4: memref<1x1x128xf32, #tpu.memory_space<vmem>>, %arg5: memref<128x128xbf16, #tpu.memory_space<vmem>>) attributes {dimension_semantics = [#tpu.dimension_semantics<parallel>], iteration_bounds = array<i64: 1>, scalar_prefetch = 1 : i64, scratch_operands = 0 : i64, tpu.core_type = #tpu.core_type<tc>, window_params = [{transform_indices = @transform_0, window_bounds = array<i64: 128, 128>}, {transform_indices = @transform_1, window_bounds = array<i64: 1, 128, 128>}, {transform_indices = @transform_2, window_bounds = array<i64: 1, 1, 128>}, {transform_indices = @transform_3, window_bounds = array<i64: 128, 128>}]} {
    %c0 = arith.constant 0 : index
    %c0_0 = arith.constant 0 : index
    %0 = vector.load %arg2[%c0, %c0_0] : memref<128x128xbf16, #tpu.memory_space<vmem>>, vector<128x128xbf16>
    %c0_1 = arith.constant 0 : index
    %c0_2 = arith.constant 0 : index
    %c0_3 = arith.constant 0 : index
    %1 = vector.load %arg3[%c0_1, %c0_2, %c0_3] : memref<1x128x128xbf16, #tpu.memory_space<vmem>>, vector<1x128x128xbf16>
    %2 = vector.shape_cast %1 : vector<1x128x128xbf16> to vector<128x128xbf16>
    %cst = arith.constant dense<0.000000e+00> : vector<128x128xf32>
    %3 = tpu.matmul %0, %2, %cst {dimension_numbers = #tpu.dot_dimension_numbers<[1], [0], [0], [1], [0, 0, 1, 1], [], []>} : vector<128x128xbf16>, vector<128x128xbf16>, vector<128x128xf32> -> vector<128x128xf32>
    %c0_4 = arith.constant 0 : index
    %c0_5 = arith.constant 0 : index
    %c0_6 = arith.constant 0 : index
    %4 = vector.load %arg4[%c0_4, %c0_5, %c0_6] : memref<1x1x128xf32, #tpu.memory_space<vmem>>, vector<1x1x128xf32>
    %5 = vector.shape_cast %4 : vector<1x1x128xf32> to vector<1x128xf32>
    %6 = vector.broadcast %5 : vector<1x128xf32> to vector<128x128xf32>
    %7 = arith.addf %3, %6 : vector<128x128xf32>
    %cst_7 = arith.constant 0.000000e+00 : f32
    %8 = vector.broadcast %cst_7 : f32 to vector<128x128xf32>
    %9 = arith.maximumf %7, %8 : vector<128x128xf32>
    %10 = arith.truncf %9 : vector<128x128xf32> to vector<128x128xbf16>
    %c0_8 = arith.constant 0 : index
    %c0_9 = arith.constant 0 : index
    %11 = vector.load %arg5[%c0_8, %c0_9] : memref<128x128xbf16, #tpu.memory_space<vmem>>, vector<128x128xbf16>
    tpu.vector_store %arg5[%c0_8, %c0_9], %10 {strides = array<i32>} : memref<128x128xbf16, #tpu.memory_space<vmem>>, vector<128x128xbf16>,
    return
  }
  func.func @transform_0(%arg0: i32, %arg1: memref<1xi32, #tpu.memory_space<smem>>) -> (i32, i32) {
    %c0_i32 = arith.constant 0 : i32
    %c0_i32_0 = arith.constant 0 : i32
    return %arg0, %c0_i32 : i32, i32
  }
  func.func @transform_1(%arg0: i32, %arg1: memref<1xi32, #tpu.memory_space<smem>>) -> (i32, i32, i32) {
    %0 = arith.index_cast %arg0 : i32 to index
    %1 = memref.load %arg1[%0] : memref<1xi32, #tpu.memory_space<smem>>
    %c0_i32 = arith.constant 0 : i32
    %c0_i32_0 = arith.constant 0 : i32
    %c0_i32_1 = arith.constant 0 : i32
    return %1, %c0_i32, %c0_i32_0 : i32, i32, i32
  }
  func.func @transform_2(%arg0: i32, %arg1: memref<1xi32, #tpu.memory_space<smem>>) -> (i32, i32, i32) {
    %0 = arith.index_cast %arg0 : i32 to index
    %1 = memref.load %arg1[%0] : memref<1xi32, #tpu.memory_space<smem>>
    %c0_i32 = arith.constant 0 : i32
    %c0_i32_0 = arith.constant 0 : i32
    %c0_i32_1 = arith.constant 0 : i32
    return %1, %c0_i32, %c0_i32_0 : i32, i32, i32
  }
  func.func @transform_3(%arg0: i32, %arg1: memref<1xi32, #tpu.memory_space<smem>>) -> (i32, i32) {
    %c0_i32 = arith.constant 0 : i32
    %c0_i32_0 = arith.constant 0 : i32
    return %arg0, %c0_i32 : i32, i32
  }
}

module attributes {stable_mosaic.version = 11 : i64} {
  func.func @_mm_bias_kernel(%arg0: i32, %arg1: memref<1xi32, #tpu.memory_space<smem>>, %arg2: memref<32x256xbf16, #tpu.memory_space<vmem>>, %arg3: memref<1x256x128xbf16, #tpu.memory_space<vmem>>, %arg4: memref<1x1x128xf32, #tpu.memory_space<vmem>>, %arg5: memref<32x128xbf16, #tpu.memory_space<vmem>>) attributes {dimension_semantics = [#tpu.dimension_semantics<parallel>], iteration_bounds = array<i64: 1>, scalar_prefetch = 1 : i64, scratch_operands = 0 : i64, tpu.core_type = #tpu.core_type<tc>, window_params = [{transform_indices = @transform_0, window_bounds = array<i64: 32, 256>}, {transform_indices = @transform_1, window_bounds = array<i64: 1, 256, 128>}, {transform_indices = @transform_2, window_bounds = array<i64: 1, 1, 128>}, {transform_indices = @transform_3, window_bounds = array<i64: 32, 128>}]} {
    %c0 = arith.constant 0 : index
    %c0_0 = arith.constant 0 : index
    %0 = vector.load %arg2[%c0, %c0_0] : memref<32x256xbf16, #tpu.memory_space<vmem>>, vector<32x256xbf16>
    %c0_1 = arith.constant 0 : index
    %c0_2 = arith.constant 0 : index
    %c0_3 = arith.constant 0 : index
    %1 = vector.load %arg3[%c0_1, %c0_2, %c0_3] : memref<1x256x128xbf16, #tpu.memory_space<vmem>>, vector<1x256x128xbf16>
    %2 = vector.shape_cast %1 : vector<1x256x128xbf16> to vector<256x128xbf16>
    %cst = arith.constant dense<0.000000e+00> : vector<32x128xf32>
    %3 = tpu.matmul %0, %2, %cst {dimension_numbers = #tpu.dot_dimension_numbers<[1], [0], [0], [1], [0, 0, 1, 1], [], []>} : vector<32x256xbf16>, vector<256x128xbf16>, vector<32x128xf32> -> vector<32x128xf32>
    %c0_4 = arith.constant 0 : index
    %c0_5 = arith.constant 0 : index
    %c0_6 = arith.constant 0 : index
    %4 = vector.load %arg4[%c0_4, %c0_5, %c0_6] : memref<1x1x128xf32, #tpu.memory_space<vmem>>, vector<1x1x128xf32>
    %5 = vector.shape_cast %4 : vector<1x1x128xf32> to vector<1x128xf32>
    %6 = vector.broadcast %5 : vector<1x128xf32> to vector<32x128xf32>
    %7 = arith.addf %3, %6 : vector<32x128xf32>
    %cst_7 = arith.constant 0.000000e+00 : f32
    %8 = vector.broadcast %cst_7 : f32 to vector<32x128xf32>
    %9 = arith.maximumf %7, %8 : vector<32x128xf32>
    %10 = arith.truncf %9 : vector<32x128xf32> to vector<32x128xbf16>
    %c0_8 = arith.constant 0 : index
    %c0_9 = arith.constant 0 : index
    %11 = vector.load %arg5[%c0_8, %c0_9] : memref<32x128xbf16, #tpu.memory_space<vmem>>, vector<32x128xbf16>
    tpu.vector_store %arg5[%c0_8, %c0_9], %10 {strides = array<i32>} : memref<32x128xbf16, #tpu.memory_space<vmem>>, vector<32x128xbf16>,
    return
  }
  func.func @transform_0(%arg0: i32, %arg1: memref<1xi32, #tpu.memory_space<smem>>) -> (i32, i32) {
    %c0_i32 = arith.constant 0 : i32
    %c0_i32_0 = arith.constant 0 : i32
    return %arg0, %c0_i32 : i32, i32
  }
  func.func @transform_1(%arg0: i32, %arg1: memref<1xi32, #tpu.memory_space<smem>>) -> (i32, i32, i32) {
    %0 = arith.index_cast %arg0 : i32 to index
    %1 = memref.load %arg1[%0] : memref<1xi32, #tpu.memory_space<smem>>
    %c0_i32 = arith.constant 0 : i32
    %c0_i32_0 = arith.constant 0 : i32
    %c0_i32_1 = arith.constant 0 : i32
    return %1, %c0_i32, %c0_i32_0 : i32, i32, i32
  }
  func.func @transform_2(%arg0: i32, %arg1: memref<1xi32, #tpu.memory_space<smem>>) -> (i32, i32, i32) {
    %0 = arith.index_cast %arg0 : i32 to index
    %1 = memref.load %arg1[%0] : memref<1xi32, #tpu.memory_space<smem>>
    %c0_i32 = arith.constant 0 : i32
    %c0_i32_0 = arith.constant 0 : i32
    %c0_i32_1 = arith.constant 0 : i32
    return %1, %c0_i32, %c0_i32_0 : i32, i32, i32
  }
  func.func @transform_3(%arg0: i32, %arg1: memref<1xi32, #tpu.memory_space<smem>>) -> (i32, i32) {
    %c0_i32 = arith.constant 0 : i32
    %c0_i32_0 = arith.constant 0 : i32
    return %arg0, %c0_i32 : i32, i32
  }
}

module attributes {stable_mosaic.version = 11 : i64} {
  func.func @_mm_bias_kernel(%arg0: i32, %arg1: memref<1xi32, #tpu.memory_space<smem>>, %arg2: memref<8x384xbf16, #tpu.memory_space<vmem>>, %arg3: memref<1x384x128xbf16, #tpu.memory_space<vmem>>, %arg4: memref<1x1x128xf32, #tpu.memory_space<vmem>>, %arg5: memref<8x128xbf16, #tpu.memory_space<vmem>>) attributes {dimension_semantics = [#tpu.dimension_semantics<parallel>], iteration_bounds = array<i64: 1>, scalar_prefetch = 1 : i64, scratch_operands = 0 : i64, tpu.core_type = #tpu.core_type<tc>, window_params = [{transform_indices = @transform_0, window_bounds = array<i64: 8, 384>}, {transform_indices = @transform_1, window_bounds = array<i64: 1, 384, 128>}, {transform_indices = @transform_2, window_bounds = array<i64: 1, 1, 128>}, {transform_indices = @transform_3, window_bounds = array<i64: 8, 128>}]} {
    %c0 = arith.constant 0 : index
    %c0_0 = arith.constant 0 : index
    %0 = vector.load %arg2[%c0, %c0_0] : memref<8x384xbf16, #tpu.memory_space<vmem>>, vector<8x384xbf16>
    %c0_1 = arith.constant 0 : index
    %c0_2 = arith.constant 0 : index
    %c0_3 = arith.constant 0 : index
    %1 = vector.load %arg3[%c0_1, %c0_2, %c0_3] : memref<1x384x128xbf16, #tpu.memory_space<vmem>>, vector<1x384x128xbf16>
    %2 = vector.shape_cast %1 : vector<1x384x128xbf16> to vector<384x128xbf16>
    %cst = arith.constant dense<0.000000e+00> : vector<8x128xf32>
    %3 = tpu.matmul %0, %2, %cst {dimension_numbers = #tpu.dot_dimension_numbers<[1], [0], [0], [1], [0, 0, 1, 1], [], []>} : vector<8x384xbf16>, vector<384x128xbf16>, vector<8x128xf32> -> vector<8x128xf32>
    %c0_4 = arith.constant 0 : index
    %c0_5 = arith.constant 0 : index
    %c0_6 = arith.constant 0 : index
    %4 = vector.load %arg4[%c0_4, %c0_5, %c0_6] : memref<1x1x128xf32, #tpu.memory_space<vmem>>, vector<1x1x128xf32>
    %5 = vector.shape_cast %4 : vector<1x1x128xf32> to vector<1x128xf32>
    %6 = vector.broadcast %5 : vector<1x128xf32> to vector<8x128xf32>
    %7 = arith.addf %3, %6 : vector<8x128xf32>
    %cst_7 = arith.constant 0.000000e+00 : f32
    %8 = vector.broadcast %cst_7 : f32 to vector<8x128xf32>
    %9 = arith.maximumf %7, %8 : vector<8x128xf32>
    %10 = arith.truncf %9 : vector<8x128xf32> to vector<8x128xbf16>
    %c0_8 = arith.constant 0 : index
    %c0_9 = arith.constant 0 : index
    %11 = vector.load %arg5[%c0_8, %c0_9] : memref<8x128xbf16, #tpu.memory_space<vmem>>, vector<8x128xbf16>
    tpu.vector_store %arg5[%c0_8, %c0_9], %10 {strides = array<i32>} : memref<8x128xbf16, #tpu.memory_space<vmem>>, vector<8x128xbf16>,
    return
  }
  func.func @transform_0(%arg0: i32, %arg1: memref<1xi32, #tpu.memory_space<smem>>) -> (i32, i32) {
    %c0_i32 = arith.constant 0 : i32
    %c0_i32_0 = arith.constant 0 : i32
    return %arg0, %c0_i32 : i32, i32
  }
  func.func @transform_1(%arg0: i32, %arg1: memref<1xi32, #tpu.memory_space<smem>>) -> (i32, i32, i32) {
    %0 = arith.index_cast %arg0 : i32 to index
    %1 = memref.load %arg1[%0] : memref<1xi32, #tpu.memory_space<smem>>
    %c0_i32 = arith.constant 0 : i32
    %c0_i32_0 = arith.constant 0 : i32
    %c0_i32_1 = arith.constant 0 : i32
    return %1, %c0_i32, %c0_i32_0 : i32, i32, i32
  }
  func.func @transform_2(%arg0: i32, %arg1: memref<1xi32, #tpu.memory_space<smem>>) -> (i32, i32, i32) {
    %0 = arith.index_cast %arg0 : i32 to index
    %1 = memref.load %arg1[%0] : memref<1xi32, #tpu.memory_space<smem>>
    %c0_i32 = arith.constant 0 : i32
    %c0_i32_0 = arith.constant 0 : i32
    %c0_i32_1 = arith.constant 0 : i32
    return %1, %c0_i32, %c0_i32_0 : i32, i32, i32
  }
  func.func @transform_3(%arg0: i32, %arg1: memref<1xi32, #tpu.memory_space<smem>>) -> (i32, i32) {
    %c0_i32 = arith.constant 0 : i32
    %c0_i32_0 = arith.constant 0 : i32
    return %arg0, %c0_i32 : i32, i32
  }
}

module attributes {stable_mosaic.version = 11 : i64} {
  func.func @_mm_bias_kernel(%arg0: i32, %arg1: memref<1xi32, #tpu.memory_space<smem>>, %arg2: memref<8x640xbf16, #tpu.memory_space<vmem>>, %arg3: memref<1x640x128xbf16, #tpu.memory_space<vmem>>, %arg4: memref<1x1x128xf32, #tpu.memory_space<vmem>>, %arg5: memref<8x128xbf16, #tpu.memory_space<vmem>>) attributes {dimension_semantics = [#tpu.dimension_semantics<parallel>], iteration_bounds = array<i64: 1>, scalar_prefetch = 1 : i64, scratch_operands = 0 : i64, tpu.core_type = #tpu.core_type<tc>, window_params = [{transform_indices = @transform_0, window_bounds = array<i64: 8, 640>}, {transform_indices = @transform_1, window_bounds = array<i64: 1, 640, 128>}, {transform_indices = @transform_2, window_bounds = array<i64: 1, 1, 128>}, {transform_indices = @transform_3, window_bounds = array<i64: 8, 128>}]} {
    %c0 = arith.constant 0 : index
    %c0_0 = arith.constant 0 : index
    %0 = vector.load %arg2[%c0, %c0_0] : memref<8x640xbf16, #tpu.memory_space<vmem>>, vector<8x640xbf16>
    %c0_1 = arith.constant 0 : index
    %c0_2 = arith.constant 0 : index
    %c0_3 = arith.constant 0 : index
    %1 = vector.load %arg3[%c0_1, %c0_2, %c0_3] : memref<1x640x128xbf16, #tpu.memory_space<vmem>>, vector<1x640x128xbf16>
    %2 = vector.shape_cast %1 : vector<1x640x128xbf16> to vector<640x128xbf16>
    %cst = arith.constant dense<0.000000e+00> : vector<8x128xf32>
    %3 = tpu.matmul %0, %2, %cst {dimension_numbers = #tpu.dot_dimension_numbers<[1], [0], [0], [1], [0, 0, 1, 1], [], []>} : vector<8x640xbf16>, vector<640x128xbf16>, vector<8x128xf32> -> vector<8x128xf32>
    %c0_4 = arith.constant 0 : index
    %c0_5 = arith.constant 0 : index
    %c0_6 = arith.constant 0 : index
    %4 = vector.load %arg4[%c0_4, %c0_5, %c0_6] : memref<1x1x128xf32, #tpu.memory_space<vmem>>, vector<1x1x128xf32>
    %5 = vector.shape_cast %4 : vector<1x1x128xf32> to vector<1x128xf32>
    %6 = vector.broadcast %5 : vector<1x128xf32> to vector<8x128xf32>
    %7 = arith.addf %3, %6 : vector<8x128xf32>
    %cst_7 = arith.constant 0.000000e+00 : f32
    %8 = vector.broadcast %cst_7 : f32 to vector<8x128xf32>
    %9 = arith.maximumf %7, %8 : vector<8x128xf32>
    %10 = arith.truncf %9 : vector<8x128xf32> to vector<8x128xbf16>
    %c0_8 = arith.constant 0 : index
    %c0_9 = arith.constant 0 : index
    %11 = vector.load %arg5[%c0_8, %c0_9] : memref<8x128xbf16, #tpu.memory_space<vmem>>, vector<8x128xbf16>
    tpu.vector_store %arg5[%c0_8, %c0_9], %10 {strides = array<i32>} : memref<8x128xbf16, #tpu.memory_space<vmem>>, vector<8x128xbf16>,
    return
  }
  func.func @transform_0(%arg0: i32, %arg1: memref<1xi32, #tpu.memory_space<smem>>) -> (i32, i32) {
    %c0_i32 = arith.constant 0 : i32
    %c0_i32_0 = arith.constant 0 : i32
    return %arg0, %c0_i32 : i32, i32
  }
  func.func @transform_1(%arg0: i32, %arg1: memref<1xi32, #tpu.memory_space<smem>>) -> (i32, i32, i32) {
    %0 = arith.index_cast %arg0 : i32 to index
    %1 = memref.load %arg1[%0] : memref<1xi32, #tpu.memory_space<smem>>
    %c0_i32 = arith.constant 0 : i32
    %c0_i32_0 = arith.constant 0 : i32
    %c0_i32_1 = arith.constant 0 : i32
    return %1, %c0_i32, %c0_i32_0 : i32, i32, i32
  }
  func.func @transform_2(%arg0: i32, %arg1: memref<1xi32, #tpu.memory_space<smem>>) -> (i32, i32, i32) {
    %0 = arith.index_cast %arg0 : i32 to index
    %1 = memref.load %arg1[%0] : memref<1xi32, #tpu.memory_space<smem>>
    %c0_i32 = arith.constant 0 : i32
    %c0_i32_0 = arith.constant 0 : i32
    %c0_i32_1 = arith.constant 0 : i32
    return %1, %c0_i32, %c0_i32_0 : i32, i32, i32
  }
  func.func @transform_3(%arg0: i32, %arg1: memref<1xi32, #tpu.memory_space<smem>>) -> (i32, i32) {
    %c0_i32 = arith.constant 0 : i32
    %c0_i32_0 = arith.constant 0 : i32
    return %arg0, %c0_i32 : i32, i32
  }
}

module attributes {stable_mosaic.version = 11 : i64} {
  func.func @_mm_bias_kernel(%arg0: i32, %arg1: memref<4xi32, #tpu.memory_space<smem>>, %arg2: memref<128x128xbf16, #tpu.memory_space<vmem>>, %arg3: memref<1x128x128xbf16, #tpu.memory_space<vmem>>, %arg4: memref<1x1x128xf32, #tpu.memory_space<vmem>>, %arg5: memref<128x128xbf16, #tpu.memory_space<vmem>>) attributes {dimension_semantics = [#tpu.dimension_semantics<parallel>], iteration_bounds = array<i64: 4>, scalar_prefetch = 1 : i64, scratch_operands = 0 : i64, tpu.core_type = #tpu.core_type<tc>, window_params = [{transform_indices = @transform_0, window_bounds = array<i64: 128, 128>}, {transform_indices = @transform_1, window_bounds = array<i64: 1, 128, 128>}, {transform_indices = @transform_2, window_bounds = array<i64: 1, 1, 128>}, {transform_indices = @transform_3, window_bounds = array<i64: 128, 128>}]} {
    %c0 = arith.constant 0 : index
    %c0_0 = arith.constant 0 : index
    %0 = vector.load %arg2[%c0, %c0_0] : memref<128x128xbf16, #tpu.memory_space<vmem>>, vector<128x128xbf16>
    %c0_1 = arith.constant 0 : index
    %c0_2 = arith.constant 0 : index
    %c0_3 = arith.constant 0 : index
    %1 = vector.load %arg3[%c0_1, %c0_2, %c0_3] : memref<1x128x128xbf16, #tpu.memory_space<vmem>>, vector<1x128x128xbf16>
    %2 = vector.shape_cast %1 : vector<1x128x128xbf16> to vector<128x128xbf16>
    %cst = arith.constant dense<0.000000e+00> : vector<128x128xf32>
    %3 = tpu.matmul %0, %2, %cst {dimension_numbers = #tpu.dot_dimension_numbers<[1], [0], [0], [1], [0, 0, 1, 1], [], []>} : vector<128x128xbf16>, vector<128x128xbf16>, vector<128x128xf32> -> vector<128x128xf32>
    %c0_4 = arith.constant 0 : index
    %c0_5 = arith.constant 0 : index
    %c0_6 = arith.constant 0 : index
    %4 = vector.load %arg4[%c0_4, %c0_5, %c0_6] : memref<1x1x128xf32, #tpu.memory_space<vmem>>, vector<1x1x128xf32>
    %5 = vector.shape_cast %4 : vector<1x1x128xf32> to vector<1x128xf32>
    %6 = vector.broadcast %5 : vector<1x128xf32> to vector<128x128xf32>
    %7 = arith.addf %3, %6 : vector<128x128xf32>
    %cst_7 = arith.constant 0.000000e+00 : f32
    %8 = vector.broadcast %cst_7 : f32 to vector<128x128xf32>
    %9 = arith.maximumf %7, %8 : vector<128x128xf32>
    %10 = arith.truncf %9 : vector<128x128xf32> to vector<128x128xbf16>
    %c0_8 = arith.constant 0 : index
    %c0_9 = arith.constant 0 : index
    %11 = vector.load %arg5[%c0_8, %c0_9] : memref<128x128xbf16, #tpu.memory_space<vmem>>, vector<128x128xbf16>
    tpu.vector_store %arg5[%c0_8, %c0_9], %10 {strides = array<i32>} : memref<128x128xbf16, #tpu.memory_space<vmem>>, vector<128x128xbf16>,
    return
  }
  func.func @transform_0(%arg0: i32, %arg1: memref<4xi32, #tpu.memory_space<smem>>) -> (i32, i32) {
    %c0_i32 = arith.constant 0 : i32
    %c0_i32_0 = arith.constant 0 : i32
    return %arg0, %c0_i32 : i32, i32
  }
  func.func @transform_1(%arg0: i32, %arg1: memref<4xi32, #tpu.memory_space<smem>>) -> (i32, i32, i32) {
    %0 = arith.index_cast %arg0 : i32 to index
    %1 = memref.load %arg1[%0] : memref<4xi32, #tpu.memory_space<smem>>
    %c0_i32 = arith.constant 0 : i32
    %c0_i32_0 = arith.constant 0 : i32
    %c0_i32_1 = arith.constant 0 : i32
    return %1, %c0_i32, %c0_i32_0 : i32, i32, i32
  }
  func.func @transform_2(%arg0: i32, %arg1: memref<4xi32, #tpu.memory_space<smem>>) -> (i32, i32, i32) {
    %0 = arith.index_cast %arg0 : i32 to index
    %1 = memref.load %arg1[%0] : memref<4xi32, #tpu.memory_space<smem>>
    %c0_i32 = arith.constant 0 : i32
    %c0_i32_0 = arith.constant 0 : i32
    %c0_i32_1 = arith.constant 0 : i32
    return %1, %c0_i32, %c0_i32_0 : i32, i32, i32
  }
  func.func @transform_3(%arg0: i32, %arg1: memref<4xi32, #tpu.memory_space<smem>>) -> (i32, i32) {
    %c0_i32 = arith.constant 0 : i32
    %c0_i32_0 = arith.constant 0 : i32
    return %arg0, %c0_i32 : i32, i32
  }
}

module attributes {stable_mosaic.version = 11 : i64} {
  func.func @_mm_bias_kernel(%arg0: i32, %arg1: memref<1xi32, #tpu.memory_space<smem>>, %arg2: memref<8x1536xbf16, #tpu.memory_space<vmem>>, %arg3: memref<1x1536x128xbf16, #tpu.memory_space<vmem>>, %arg4: memref<1x1x128xf32, #tpu.memory_space<vmem>>, %arg5: memref<8x128xbf16, #tpu.memory_space<vmem>>) attributes {dimension_semantics = [#tpu.dimension_semantics<parallel>], iteration_bounds = array<i64: 1>, scalar_prefetch = 1 : i64, scratch_operands = 0 : i64, tpu.core_type = #tpu.core_type<tc>, window_params = [{transform_indices = @transform_0, window_bounds = array<i64: 8, 1536>}, {transform_indices = @transform_1, window_bounds = array<i64: 1, 1536, 128>}, {transform_indices = @transform_2, window_bounds = array<i64: 1, 1, 128>}, {transform_indices = @transform_3, window_bounds = array<i64: 8, 128>}]} {
    %c0 = arith.constant 0 : index
    %c0_0 = arith.constant 0 : index
    %0 = vector.load %arg2[%c0, %c0_0] : memref<8x1536xbf16, #tpu.memory_space<vmem>>, vector<8x1536xbf16>
    %c0_1 = arith.constant 0 : index
    %c0_2 = arith.constant 0 : index
    %c0_3 = arith.constant 0 : index
    %1 = vector.load %arg3[%c0_1, %c0_2, %c0_3] : memref<1x1536x128xbf16, #tpu.memory_space<vmem>>, vector<1x1536x128xbf16>
    %2 = vector.shape_cast %1 : vector<1x1536x128xbf16> to vector<1536x128xbf16>
    %cst = arith.constant dense<0.000000e+00> : vector<8x128xf32>
    %3 = tpu.matmul %0, %2, %cst {dimension_numbers = #tpu.dot_dimension_numbers<[1], [0], [0], [1], [0, 0, 1, 1], [], []>} : vector<8x1536xbf16>, vector<1536x128xbf16>, vector<8x128xf32> -> vector<8x128xf32>
    %c0_4 = arith.constant 0 : index
    %c0_5 = arith.constant 0 : index
    %c0_6 = arith.constant 0 : index
    %4 = vector.load %arg4[%c0_4, %c0_5, %c0_6] : memref<1x1x128xf32, #tpu.memory_space<vmem>>, vector<1x1x128xf32>
    %5 = vector.shape_cast %4 : vector<1x1x128xf32> to vector<1x128xf32>
    %6 = vector.broadcast %5 : vector<1x128xf32> to vector<8x128xf32>
    %7 = arith.addf %3, %6 : vector<8x128xf32>
    %cst_7 = arith.constant 0.000000e+00 : f32
    %8 = vector.broadcast %cst_7 : f32 to vector<8x128xf32>
    %9 = arith.maximumf %7, %8 : vector<8x128xf32>
    %10 = arith.truncf %9 : vector<8x128xf32> to vector<8x128xbf16>
    %c0_8 = arith.constant 0 : index
    %c0_9 = arith.constant 0 : index
    %11 = vector.load %arg5[%c0_8, %c0_9] : memref<8x128xbf16, #tpu.memory_space<vmem>>, vector<8x128xbf16>
    tpu.vector_store %arg5[%c0_8, %c0_9], %10 {strides = array<i32>} : memref<8x128xbf16, #tpu.memory_space<vmem>>, vector<8x128xbf16>,
    return
  }
  func.func @transform_0(%arg0: i32, %arg1: memref<1xi32, #tpu.memory_space<smem>>) -> (i32, i32) {
    %c0_i32 = arith.constant 0 : i32
    %c0_i32_0 = arith.constant 0 : i32
    return %arg0, %c0_i32 : i32, i32
  }
  func.func @transform_1(%arg0: i32, %arg1: memref<1xi32, #tpu.memory_space<smem>>) -> (i32, i32, i32) {
    %0 = arith.index_cast %arg0 : i32 to index
    %1 = memref.load %arg1[%0] : memref<1xi32, #tpu.memory_space<smem>>
    %c0_i32 = arith.constant 0 : i32
    %c0_i32_0 = arith.constant 0 : i32
    %c0_i32_1 = arith.constant 0 : i32
    return %1, %c0_i32, %c0_i32_0 : i32, i32, i32
  }
  func.func @transform_2(%arg0: i32, %arg1: memref<1xi32, #tpu.memory_space<smem>>) -> (i32, i32, i32) {
    %0 = arith.index_cast %arg0 : i32 to index
    %1 = memref.load %arg1[%0] : memref<1xi32, #tpu.memory_space<smem>>
    %c0_i32 = arith.constant 0 : i32
    %c0_i32_0 = arith.constant 0 : i32
    %c0_i32_1 = arith.constant 0 : i32
    return %1, %c0_i32, %c0_i32_0 : i32, i32, i32
  }
  func.func @transform_3(%arg0: i32, %arg1: memref<1xi32, #tpu.memory_space<smem>>) -> (i32, i32) {
    %c0_i32 = arith.constant 0 : i32
    %c0_i32_0 = arith.constant 0 : i32
    return %arg0, %c0_i32 : i32, i32
  }
}

module attributes {stable_mosaic.version = 11 : i64} {
  func.func @_mm_bias_kernel(%arg0: i32, %arg1: memref<3xi32, #tpu.memory_space<smem>>, %arg2: memref<128x384xbf16, #tpu.memory_space<vmem>>, %arg3: memref<1x384x128xbf16, #tpu.memory_space<vmem>>, %arg4: memref<1x1x128xf32, #tpu.memory_space<vmem>>, %arg5: memref<128x128xbf16, #tpu.memory_space<vmem>>) attributes {dimension_semantics = [#tpu.dimension_semantics<parallel>], iteration_bounds = array<i64: 3>, scalar_prefetch = 1 : i64, scratch_operands = 0 : i64, tpu.core_type = #tpu.core_type<tc>, window_params = [{transform_indices = @transform_0, window_bounds = array<i64: 128, 384>}, {transform_indices = @transform_1, window_bounds = array<i64: 1, 384, 128>}, {transform_indices = @transform_2, window_bounds = array<i64: 1, 1, 128>}, {transform_indices = @transform_3, window_bounds = array<i64: 128, 128>}]} {
    %c0 = arith.constant 0 : index
    %c0_0 = arith.constant 0 : index
    %0 = vector.load %arg2[%c0, %c0_0] : memref<128x384xbf16, #tpu.memory_space<vmem>>, vector<128x384xbf16>
    %c0_1 = arith.constant 0 : index
    %c0_2 = arith.constant 0 : index
    %c0_3 = arith.constant 0 : index
    %1 = vector.load %arg3[%c0_1, %c0_2, %c0_3] : memref<1x384x128xbf16, #tpu.memory_space<vmem>>, vector<1x384x128xbf16>
    %2 = vector.shape_cast %1 : vector<1x384x128xbf16> to vector<384x128xbf16>
    %cst = arith.constant dense<0.000000e+00> : vector<128x128xf32>
    %3 = tpu.matmul %0, %2, %cst {dimension_numbers = #tpu.dot_dimension_numbers<[1], [0], [0], [1], [0, 0, 1, 1], [], []>} : vector<128x384xbf16>, vector<384x128xbf16>, vector<128x128xf32> -> vector<128x128xf32>
    %c0_4 = arith.constant 0 : index
    %c0_5 = arith.constant 0 : index
    %c0_6 = arith.constant 0 : index
    %4 = vector.load %arg4[%c0_4, %c0_5, %c0_6] : memref<1x1x128xf32, #tpu.memory_space<vmem>>, vector<1x1x128xf32>
    %5 = vector.shape_cast %4 : vector<1x1x128xf32> to vector<1x128xf32>
    %6 = vector.broadcast %5 : vector<1x128xf32> to vector<128x128xf32>
    %7 = arith.addf %3, %6 : vector<128x128xf32>
    %cst_7 = arith.constant 0.000000e+00 : f32
    %8 = vector.broadcast %cst_7 : f32 to vector<128x128xf32>
    %9 = arith.maximumf %7, %8 : vector<128x128xf32>
    %10 = arith.truncf %9 : vector<128x128xf32> to vector<128x128xbf16>
    %c0_8 = arith.constant 0 : index
    %c0_9 = arith.constant 0 : index
    %11 = vector.load %arg5[%c0_8, %c0_9] : memref<128x128xbf16, #tpu.memory_space<vmem>>, vector<128x128xbf16>
    tpu.vector_store %arg5[%c0_8, %c0_9], %10 {strides = array<i32>} : memref<128x128xbf16, #tpu.memory_space<vmem>>, vector<128x128xbf16>,
    return
  }
  func.func @transform_0(%arg0: i32, %arg1: memref<3xi32, #tpu.memory_space<smem>>) -> (i32, i32) {
    %c0_i32 = arith.constant 0 : i32
    %c0_i32_0 = arith.constant 0 : i32
    return %arg0, %c0_i32 : i32, i32
  }
  func.func @transform_1(%arg0: i32, %arg1: memref<3xi32, #tpu.memory_space<smem>>) -> (i32, i32, i32) {
    %0 = arith.index_cast %arg0 : i32 to index
    %1 = memref.load %arg1[%0] : memref<3xi32, #tpu.memory_space<smem>>
    %c0_i32 = arith.constant 0 : i32
    %c0_i32_0 = arith.constant 0 : i32
    %c0_i32_1 = arith.constant 0 : i32
    return %1, %c0_i32, %c0_i32_0 : i32, i32, i32
  }
  func.func @transform_2(%arg0: i32, %arg1: memref<3xi32, #tpu.memory_space<smem>>) -> (i32, i32, i32) {
    %0 = arith.index_cast %arg0 : i32 to index
    %1 = memref.load %arg1[%0] : memref<3xi32, #tpu.memory_space<smem>>
    %c0_i32 = arith.constant 0 : i32
    %c0_i32_0 = arith.constant 0 : i32
    %c0_i32_1 = arith.constant 0 : i32
    return %1, %c0_i32, %c0_i32_0 : i32, i32, i32
  }
  func.func @transform_3(%arg0: i32, %arg1: memref<3xi32, #tpu.memory_space<smem>>) -> (i32, i32) {
    %c0_i32 = arith.constant 0 : i32
    %c0_i32_0 = arith.constant 0 : i32
    return %arg0, %c0_i32 : i32, i32
  }
}

module attributes {stable_mosaic.version = 11 : i64} {
  func.func @_mm_bias_kernel(%arg0: i32, %arg1: memref<1xi32, #tpu.memory_space<smem>>, %arg2: memref<128x1152xbf16, #tpu.memory_space<vmem>>, %arg3: memref<1x1152x128xbf16, #tpu.memory_space<vmem>>, %arg4: memref<1x1x128xf32, #tpu.memory_space<vmem>>, %arg5: memref<128x128xbf16, #tpu.memory_space<vmem>>) attributes {dimension_semantics = [#tpu.dimension_semantics<parallel>], iteration_bounds = array<i64: 1>, scalar_prefetch = 1 : i64, scratch_operands = 0 : i64, tpu.core_type = #tpu.core_type<tc>, window_params = [{transform_indices = @transform_0, window_bounds = array<i64: 128, 1152>}, {transform_indices = @transform_1, window_bounds = array<i64: 1, 1152, 128>}, {transform_indices = @transform_2, window_bounds = array<i64: 1, 1, 128>}, {transform_indices = @transform_3, window_bounds = array<i64: 128, 128>}]} {
    %c0 = arith.constant 0 : index
    %c0_0 = arith.constant 0 : index
    %0 = vector.load %arg2[%c0, %c0_0] : memref<128x1152xbf16, #tpu.memory_space<vmem>>, vector<128x1152xbf16>
    %c0_1 = arith.constant 0 : index
    %c0_2 = arith.constant 0 : index
    %c0_3 = arith.constant 0 : index
    %1 = vector.load %arg3[%c0_1, %c0_2, %c0_3] : memref<1x1152x128xbf16, #tpu.memory_space<vmem>>, vector<1x1152x128xbf16>
    %2 = vector.shape_cast %1 : vector<1x1152x128xbf16> to vector<1152x128xbf16>
    %cst = arith.constant dense<0.000000e+00> : vector<128x128xf32>
    %3 = tpu.matmul %0, %2, %cst {dimension_numbers = #tpu.dot_dimension_numbers<[1], [0], [0], [1], [0, 0, 1, 1], [], []>} : vector<128x1152xbf16>, vector<1152x128xbf16>, vector<128x128xf32> -> vector<128x128xf32>
    %c0_4 = arith.constant 0 : index
    %c0_5 = arith.constant 0 : index
    %c0_6 = arith.constant 0 : index
    %4 = vector.load %arg4[%c0_4, %c0_5, %c0_6] : memref<1x1x128xf32, #tpu.memory_space<vmem>>, vector<1x1x128xf32>
    %5 = vector.shape_cast %4 : vector<1x1x128xf32> to vector<1x128xf32>
    %6 = vector.broadcast %5 : vector<1x128xf32> to vector<128x128xf32>
    %7 = arith.addf %3, %6 : vector<128x128xf32>
    %cst_7 = arith.constant 0.000000e+00 : f32
    %8 = vector.broadcast %cst_7 : f32 to vector<128x128xf32>
    %9 = arith.maximumf %7, %8 : vector<128x128xf32>
    %10 = arith.truncf %9 : vector<128x128xf32> to vector<128x128xbf16>
    %c0_8 = arith.constant 0 : index
    %c0_9 = arith.constant 0 : index
    %11 = vector.load %arg5[%c0_8, %c0_9] : memref<128x128xbf16, #tpu.memory_space<vmem>>, vector<128x128xbf16>
    tpu.vector_store %arg5[%c0_8, %c0_9], %10 {strides = array<i32>} : memref<128x128xbf16, #tpu.memory_space<vmem>>, vector<128x128xbf16>,
    return
  }
  func.func @transform_0(%arg0: i32, %arg1: memref<1xi32, #tpu.memory_space<smem>>) -> (i32, i32) {
    %c0_i32 = arith.constant 0 : i32
    %c0_i32_0 = arith.constant 0 : i32
    return %arg0, %c0_i32 : i32, i32
  }
  func.func @transform_1(%arg0: i32, %arg1: memref<1xi32, #tpu.memory_space<smem>>) -> (i32, i32, i32) {
    %0 = arith.index_cast %arg0 : i32 to index
    %1 = memref.load %arg1[%0] : memref<1xi32, #tpu.memory_space<smem>>
    %c0_i32 = arith.constant 0 : i32
    %c0_i32_0 = arith.constant 0 : i32
    %c0_i32_1 = arith.constant 0 : i32
    return %1, %c0_i32, %c0_i32_0 : i32, i32, i32
  }
  func.func @transform_2(%arg0: i32, %arg1: memref<1xi32, #tpu.memory_space<smem>>) -> (i32, i32, i32) {
    %0 = arith.index_cast %arg0 : i32 to index
    %1 = memref.load %arg1[%0] : memref<1xi32, #tpu.memory_space<smem>>
    %c0_i32 = arith.constant 0 : i32
    %c0_i32_0 = arith.constant 0 : i32
    %c0_i32_1 = arith.constant 0 : i32
    return %1, %c0_i32, %c0_i32_0 : i32, i32, i32
  }
  func.func @transform_3(%arg0: i32, %arg1: memref<1xi32, #tpu.memory_space<smem>>) -> (i32, i32) {
    %c0_i32 = arith.constant 0 : i32
    %c0_i32_0 = arith.constant 0 : i32
    return %arg0, %c0_i32 : i32, i32
  }
}

module attributes {stable_mosaic.version = 11 : i64} {
  func.func @_mm_bias_kernel(%arg0: i32, %arg1: memref<1xi32, #tpu.memory_space<smem>>, %arg2: memref<128x128xbf16, #tpu.memory_space<vmem>>, %arg3: memref<1x128x256xbf16, #tpu.memory_space<vmem>>, %arg4: memref<1x1x256xf32, #tpu.memory_space<vmem>>, %arg5: memref<128x256xf32, #tpu.memory_space<vmem>>) attributes {dimension_semantics = [#tpu.dimension_semantics<parallel>], iteration_bounds = array<i64: 1>, scalar_prefetch = 1 : i64, scratch_operands = 0 : i64, tpu.core_type = #tpu.core_type<tc>, window_params = [{transform_indices = @transform_0, window_bounds = array<i64: 128, 128>}, {transform_indices = @transform_1, window_bounds = array<i64: 1, 128, 256>}, {transform_indices = @transform_2, window_bounds = array<i64: 1, 1, 256>}, {transform_indices = @transform_3, window_bounds = array<i64: 128, 256>}]} {
    %c0 = arith.constant 0 : index
    %c0_0 = arith.constant 0 : index
    %0 = vector.load %arg2[%c0, %c0_0] : memref<128x128xbf16, #tpu.memory_space<vmem>>, vector<128x128xbf16>
    %c0_1 = arith.constant 0 : index
    %c0_2 = arith.constant 0 : index
    %c0_3 = arith.constant 0 : index
    %1 = vector.load %arg3[%c0_1, %c0_2, %c0_3] : memref<1x128x256xbf16, #tpu.memory_space<vmem>>, vector<1x128x256xbf16>
    %2 = vector.shape_cast %1 : vector<1x128x256xbf16> to vector<128x256xbf16>
    %cst = arith.constant dense<0.000000e+00> : vector<128x256xf32>
    %3 = tpu.matmul %0, %2, %cst {dimension_numbers = #tpu.dot_dimension_numbers<[1], [0], [0], [1], [0, 0, 1, 1], [], []>} : vector<128x128xbf16>, vector<128x256xbf16>, vector<128x256xf32> -> vector<128x256xf32>
    %c0_4 = arith.constant 0 : index
    %c0_5 = arith.constant 0 : index
    %c0_6 = arith.constant 0 : index
    %4 = vector.load %arg4[%c0_4, %c0_5, %c0_6] : memref<1x1x256xf32, #tpu.memory_space<vmem>>, vector<1x1x256xf32>
    %5 = vector.shape_cast %4 : vector<1x1x256xf32> to vector<1x256xf32>
    %6 = vector.broadcast %5 : vector<1x256xf32> to vector<128x256xf32>
    %7 = arith.addf %3, %6 : vector<128x256xf32>
    %c0_7 = arith.constant 0 : index
    %c0_8 = arith.constant 0 : index
    %8 = vector.load %arg5[%c0_7, %c0_8] : memref<128x256xf32, #tpu.memory_space<vmem>>, vector<128x256xf32>
    tpu.vector_store %arg5[%c0_7, %c0_8], %7 {strides = array<i32>} : memref<128x256xf32, #tpu.memory_space<vmem>>, vector<128x256xf32>,
    return
  }
  func.func @transform_0(%arg0: i32, %arg1: memref<1xi32, #tpu.memory_space<smem>>) -> (i32, i32) {
    %c0_i32 = arith.constant 0 : i32
    %c0_i32_0 = arith.constant 0 : i32
    return %arg0, %c0_i32 : i32, i32
  }
  func.func @transform_1(%arg0: i32, %arg1: memref<1xi32, #tpu.memory_space<smem>>) -> (i32, i32, i32) {
    %0 = arith.index_cast %arg0 : i32 to index
    %1 = memref.load %arg1[%0] : memref<1xi32, #tpu.memory_space<smem>>
    %c0_i32 = arith.constant 0 : i32
    %c0_i32_0 = arith.constant 0 : i32
    %c0_i32_1 = arith.constant 0 : i32
    return %1, %c0_i32, %c0_i32_0 : i32, i32, i32
  }
  func.func @transform_2(%arg0: i32, %arg1: memref<1xi32, #tpu.memory_space<smem>>) -> (i32, i32, i32) {
    %0 = arith.index_cast %arg0 : i32 to index
    %1 = memref.load %arg1[%0] : memref<1xi32, #tpu.memory_space<smem>>
    %c0_i32 = arith.constant 0 : i32
    %c0_i32_0 = arith.constant 0 : i32
    %c0_i32_1 = arith.constant 0 : i32
    return %1, %c0_i32, %c0_i32_0 : i32, i32, i32
  }
  func.func @transform_3(%arg0: i32, %arg1: memref<1xi32, #tpu.memory_space<smem>>) -> (i32, i32) {
    %c0_i32 = arith.constant 0 : i32
    %c0_i32_0 = arith.constant 0 : i32
    return %arg0, %c0_i32 : i32, i32
  }
}

module attributes {stable_mosaic.version = 11 : i64} {
  func.func @_softmax_kernel(%arg0: i32, %arg1: memref<512x150xf32, #tpu.memory_space<vmem>>, %arg2: memref<512x150xf32, #tpu.memory_space<vmem>>) attributes {dimension_semantics = [#tpu.dimension_semantics<parallel>], iteration_bounds = array<i64: 1>, scalar_prefetch = 0 : i64, scratch_operands = 0 : i64, tpu.core_type = #tpu.core_type<tc>, window_params = [{transform_indices = @transform_0, window_bounds = array<i64: 512, 150>}, {transform_indices = @transform_1, window_bounds = array<i64: 512, 150>}]} {
    %c0 = arith.constant 0 : index
    %c0_0 = arith.constant 0 : index
    %0 = vector.load %arg1[%c0, %c0_0] : memref<512x150xf32, #tpu.memory_space<vmem>>, vector<512x150xf32>
    %cst = arith.constant dense<0xFF800000> : vector<512xf32>
    %1 = vector.multi_reduction <maximumf>, %0, %cst [1] : vector<512x150xf32> to vector<512xf32>
    %2 = vector.shape_cast %1 : vector<512xf32> to vector<512x1xf32>
    %3 = vector.broadcast %2 : vector<512x1xf32> to vector<512x150xf32>
    %4 = arith.subf %0, %3 : vector<512x150xf32>
    %5 = math.exp %4 : vector<512x150xf32>
    %cst_1 = arith.constant dense<0.000000e+00> : vector<512xf32>
    %6 = vector.multi_reduction <add>, %5, %cst_1 [1] : vector<512x150xf32> to vector<512xf32>
    %7 = vector.shape_cast %6 : vector<512xf32> to vector<512x1xf32>
    %8 = tpu.reciprocal %7 {approx = true} : vector<512x1xf32> -> vector<512x1xf32>
    %9 = arith.mulf %7, %8 : vector<512x1xf32>
    %cst_2 = arith.constant 2.000000e+00 : f32
    %10 = vector.broadcast %cst_2 : f32 to vector<512x1xf32>
    %11 = arith.subf %10, %9 : vector<512x1xf32>
    %12 = arith.mulf %8, %11 : vector<512x1xf32>
    %13 = vector.broadcast %12 : vector<512x1xf32> to vector<512x150xf32>
    %14 = arith.mulf %5, %13 : vector<512x150xf32>
    %c0_3 = arith.constant 0 : index
    %c0_4 = arith.constant 0 : index
    %15 = vector.load %arg2[%c0_3, %c0_4] : memref<512x150xf32, #tpu.memory_space<vmem>>, vector<512x150xf32>
    tpu.vector_store %arg2[%c0_3, %c0_4], %14 {strides = array<i32>} : memref<512x150xf32, #tpu.memory_space<vmem>>, vector<512x150xf32>,
    return
  }
  func.func @transform_0(%arg0: i32) -> (i32, i32) {
    %c0_i32 = arith.constant 0 : i32
    %c0_i32_0 = arith.constant 0 : i32
    return %arg0, %c0_i32 : i32, i32
  }
  func.func @transform_1(%arg0: i32) -> (i32, i32) {
    %c0_i32 = arith.constant 0 : i32
    %c0_i32_0 = arith.constant 0 : i32
    return %arg0, %c0_i32 : i32, i32
  }
}

</mosaic_0001>

<llo_original>
// kernel: ade20k_segmenter_forward.10
$region0: #{ade20k_segmenter_forward.10}
  #allocation0 [shape = 'u32[]', space=smem, size = 0x4, offset = 0x4, fixed_abs, tag = 'smem constant byte address 0x4 - core index']
  #allocation1 [shape = 'u32[144,128]{1,0:T(1,128)}', space=vmem, size = 0x12000, scoped, tag = 'internal scratch']
  #allocation2 [shape = 's32[1]{0}', space=sflag, size = 0x4, scoped, tag = 'scoped memory for ade20k_segmenter_forward.10']
  #allocation3 [shape = 's32[1]{0:T(128)S(6)}', space=smem, size = 0x200, scoped, tag = 'prefetched SMEM operand 0']
  %s0 = inlined_call_operand.<no memory space> [shape: s32[1], index: 0, kind: input, shape index: {}]
  %s1 = inlined_call_operand.vmem [shape: bf16[128,128], index: 1, kind: input, shape index: {}]
  %s2 = inlined_call_operand.vmem [shape: bf16[1,128,128], index: 2, kind: input, shape index: {}]
  %s3 = inlined_call_operand.vmem [shape: f32[1,1,128], index: 3, kind: input, shape index: {}]
  %s4 = inlined_call_operand.vmem [shape: bf16[128,128], index: 4, kind: output, shape index: {}]
  %s5 = sld [smem:[#allocation0]]
  $region22: #{ade20k_segmenter_forward.10} parent=0
    _
  %s7 = ssub.s32 1, %s5
  %s8 = scalar_select 0, %s7, %s5
  %9 = sst [smem:[#allocation3]] %s0
  // Predicated region
  $region2: #{ade20k_segmenter_forward.10} parent=0 // pred_check
    _
  $region3: #{ade20k_segmenter_forward.10} parent=0 // pred_check_branch
    %11 = sbr.rel (0) target = $region5
  $region4: #{ade20k_segmenter_forward.10} parent=0 // pred_region
    _
  $region5: #{ade20k_segmenter_forward.10} parent=0 // pred_fallthru
    _
  // Predicated region
  $region6: #{ade20k_segmenter_forward.10} parent=0 // pred_check
    _
  $region7: #{ade20k_segmenter_forward.10} parent=0 // pred_check_branch
    %13 = sbr.rel (0) target = $region9
  $region8: #{ade20k_segmenter_forward.10} parent=0 // pred_region
    %s14 = sld [smem:[#allocation3]]
    %p15 = scmp.lt.s32.totalorder %s14, 0
    %s16 = scalar_select %p15, %s14, 0
    %s17 = smul.addr %s16, 16
    %s18 = smul.addr %s17, 4
    %s19 = scalar_lea.vmem %s2, %s18
    %s20 = sld [smem:[#allocation3]]
  $region9: #{ade20k_segmenter_forward.10} parent=0 // pred_fallthru
    _
  // Predicated region
  $region10: #{ade20k_segmenter_forward.10} parent=0 // pred_check
    _
  $region11: #{ade20k_segmenter_forward.10} parent=0 // pred_check_branch
    %22 = sbr.rel (0) target = $region13
  $region12: #{ade20k_segmenter_forward.10} parent=0 // pred_region
    %s23 = sld [smem:[#allocation3]]
    %p24 = scmp.lt.s32.totalorder %s23, 0
    %s25 = scalar_select %p24, %s23, 0
    %s26 = scalar_lea.vmem %s3, %s25
    %s27 = sld [smem:[#allocation3]]
  $region13: #{ade20k_segmenter_forward.10} parent=0 // pred_fallthru
    _
  %s28 = sld [smem:[#allocation3]]
  %p29 = scmp.lt.s32.totalorder %s28, 0
  %s30 = scalar_select %p29, %s28, 0
  %s31 = smul.addr %s30, 16
  %s32 = smul.addr %s31, 4
  %s33 = scalar_lea.vmem %s2, %s32
  %s34 = sld [smem:[#allocation3]]
  %p35 = scmp.lt.s32.totalorder %s34, 0
  %s36 = scalar_select %p35, %s34, 0
  %s37 = scalar_lea.vmem %s3, %s36
  %s38 = sld [smem:[#allocation3]]
  %p39 = scmp.lt.s32.totalorder %s38, 0
  %s40 = scalar_select %p39, %s38, 0
  %s41 = smul.addr %s40, 16
  %s42 = smul.addr %s41, 4
  %s43 = scalar_lea.vmem %s2, %s42
  %s44 = sld [smem:[#allocation3]]
  %s45 = sld [smem:[#allocation3]]
  %p46 = scmp.lt.s32.totalorder %s45, 0
  %s47 = scalar_select %p46, %s45, 0
  %s48 = scalar_lea.vmem %s3, %s47
  %s49 = sld [smem:[#allocation3]]
  %v51 = vld [vmem:[%s1] sm:$0xf]
  %v52 = vld [vmem:[%s1 + $0x4] sm:$0xf]
  %v53 = vld [vmem:[%s1 + $0x8] sm:$0xf]
  %v54 = vld [vmem:[%s1 + $0xc] sm:$0xf]
  %v55 = vld [vmem:[%s1 + $0x10] sm:$0xf]
  %v56 = vld [vmem:[%s1 + $0x14] sm:$0xf]
  %v57 = vld [vmem:[%s1 + $0x18] sm:$0xf]
  %v58 = vld [vmem:[%s1 + $0x1c] sm:$0xf]
  %v59 = vld [vmem:[%s1 + $0x20] sm:$0xf]
  %v60 = vld [vmem:[%s1 + $0x24] sm:$0xf]
  %v61 = vld [vmem:[%s1 + $0x28] sm:$0xf]
  %v62 = vld [vmem:[%s1 + $0x2c] sm:$0xf]
  %v63 = vld [vmem:[%s1 + $0x30] sm:$0xf]
  %v64 = vld [vmem:[%s1 + $0x34] sm:$0xf]
  %v65 = vld [vmem:[%s1 + $0x38] sm:$0xf]
  %v66 = vld [vmem:[%s1 + $0x3c] sm:$0xf]
  %v67 = vld [vmem:[%s43] sm:$0xf]
  %v68 = vld [vmem:[%s43 + $0x4] sm:$0xf]
  %v69 = vld [vmem:[%s43 + $0x8] sm:$0xf]
  %v70 = vld [vmem:[%s43 + $0xc] sm:$0xf]
  %v71 = vld [vmem:[%s43 + $0x10] sm:$0xf]
  %v72 = vld [vmem:[%s43 + $0x14] sm:$0xf]
  %v73 = vld [vmem:[%s43 + $0x18] sm:$0xf]
  %v74 = vld [vmem:[%s43 + $0x1c] sm:$0xf]
  %v75 = vld [vmem:[%s43 + $0x20] sm:$0xf]
  %v76 = vld [vmem:[%s43 + $0x24] sm:$0xf]
  %v77 = vld [vmem:[%s43 + $0x28] sm:$0xf]
  %v78 = vld [vmem:[%s43 + $0x2c] sm:$0xf]
  %v79 = vld [vmem:[%s43 + $0x30] sm:$0xf]
  %v80 = vld [vmem:[%s43 + $0x34] sm:$0xf]
  %v81 = vld [vmem:[%s43 + $0x38] sm:$0xf]
  %v82 = vld [vmem:[%s43 + $0x3c] sm:$0xf]
  %v83 = vld [vmem:[%s48] sm:$0x1]
  %v85 = vlaneseq
  %v86 = vshrl.u32 %v85, 7
  %v87 = vsub.s32 0, %v86
  %v88 = vrot.slane %v83, %v87
  %v106 = vunpack.c.l.b16 %v51
  %v107 = vunpack.c.l.b16 %v52
  %v108 = vunpack.c.l.b16 %v53
  %v109 = vunpack.c.l.b16 %v54
  %v110 = vunpack.c.l.b16 %v55
  %v111 = vunpack.c.l.b16 %v56
  %v112 = vunpack.c.l.b16 %v57
  %v113 = vunpack.c.l.b16 %v58
  %v114 = vunpack.c.l.b16 %v59
  %v115 = vunpack.c.l.b16 %v60
  %v116 = vunpack.c.l.b16 %v61
  %v117 = vunpack.c.l.b16 %v62
  %v118 = vunpack.c.l.b16 %v63
  %v119 = vunpack.c.l.b16 %v64
  %v120 = vunpack.c.l.b16 %v65
  %v121 = vunpack.c.l.b16 %v66
  %v122 = vpack.c.b16 %v107, %v106
  %v123 = vpack.c.b16 %v109, %v108
  %v124 = vpack.c.b16 %v111, %v110
  %v125 = vpack.c.b16 %v113, %v112
  %v126 = vpack.c.b16 %v115, %v114
  %v127 = vpack.c.b16 %v117, %v116
  %v128 = vpack.c.b16 %v119, %v118
  %v129 = vpack.c.b16 %v121, %v120
  %v154 = vunpack.c.l.b16 %v67
  %v155 = vunpack.c.l.b16 %v68
  %v156 = vunpack.c.l.b16 %v69
  %v157 = vunpack.c.l.b16 %v70
  %v158 = vunpack.c.l.b16 %v71
  %v159 = vunpack.c.l.b16 %v72
  %v160 = vunpack.c.l.b16 %v73
  %v161 = vunpack.c.l.b16 %v74
  %v162 = vunpack.c.l.b16 %v75
  %v163 = vunpack.c.l.b16 %v76
  %v164 = vunpack.c.l.b16 %v77
  %v165 = vunpack.c.l.b16 %v78
  %v166 = vunpack.c.l.b16 %v79
  %v167 = vunpack.c.l.b16 %v80
  %v168 = vunpack.c.l.b16 %v81
  %v169 = vunpack.c.l.b16 %v82
  %v170 = vpack.c.b16 %v155, %v154
  %v171 = vpack.c.b16 %v157, %v156
  %v172 = vpack.c.b16 %v159, %v158
  %v173 = vpack.c.b16 %v161, %v160
  %v174 = vpack.c.b16 %v163, %v162
  %v175 = vpack.c.b16 %v165, %v164
  %v176 = vpack.c.b16 %v167, %v166
  %v177 = vpack.c.b16 %v169, %v168
  %186 = vmatprep.subr.bf16.mxu0 0
  %187 = vmatpush1.bf16.msra.mxu0 %v170
  %188 = vmatprep.subr.bf16.mxu0 0
  %189 = vmatpush1.bf16.msra.mxu0 %v171
  %190 = vmatprep.subr.bf16.mxu0 0
  %191 = vmatpush1.bf16.msra.mxu0 %v172
  %192 = vmatprep.subr.bf16.mxu0 0
  %193 = vmatpush1.bf16.msra.mxu0 %v173
  %194 = vmatprep.subr.bf16.mxu0 0
  %195 = vmatpush1.bf16.msra.mxu0 %v174
  %196 = vmatprep.subr.bf16.mxu0 0
  %197 = vmatpush1.bf16.msra.mxu0 %v175
  %198 = vmatprep.subr.bf16.mxu0 0
  %199 = vmatpush1.bf16.msra.mxu0 %v176
  %200 = vmatprep.subr.bf16.mxu0 0
  %201 = vmatpush1.bf16.msra.mxu0 %v177
  %202 = vmatprep.subr.bf16.mxu0 0
  %203 = vmatpush1.bf16.msra.mxu0 0
  %204 = vmatprep.subr.bf16.mxu0 0
  %205 = vmatpush1.bf16.msra.mxu0 0
  %206 = vmatprep.subr.bf16.mxu0 0
  %207 = vmatpush1.bf16.msra.mxu0 0
  %208 = vmatprep.subr.bf16.mxu0 0
  %209 = vmatpush1.bf16.msra.mxu0 0
  %210 = vmatprep.subr.bf16.mxu0 0
  %211 = vmatpush1.bf16.msra.mxu0 0
  %212 = vmatprep.subr.bf16.mxu0 0
  %213 = vmatpush1.bf16.msra.mxu0 0
  %214 = vmatprep.subr.bf16.mxu0 0
  %215 = vmatpush1.bf16.msra.mxu0 0
  %216 = vmatprep.subr.bf16.mxu0 0
  %217 = vmatpush1.bf16.msra.mxu0 0
  %218 = vmatprep.mubr.bf16.mxu0 0
  %219 = vmatmul.mubr.bf16.gmra.mrb[0].mxu0 %v122
  %v220 = vpop.f32.mrb[0].mxu0
  %v221 = vadd.f32 %v88, %v220
  %v222 = vpop.f32.mrb[0].mxu0
  %v223 = vpop.f32.mrb[0].mxu0
  %v224 = vadd.f32 %v88, %v223
  %v225 = vpop.f32.mrb[0].mxu0
  %226 = vmatprep.mubr.bf16.mxu0 0
  %227 = vmatmul.mubr.bf16.gmra.mrb[0].mxu0 %v123
  %v228 = vpop.f32.mrb[0].mxu0
  %v229 = vadd.f32 %v88, %v228
  %v230 = vpop.f32.mrb[0].mxu0
  %v231 = vpop.f32.mrb[0].mxu0
  %v232 = vadd.f32 %v88, %v231
  %v233 = vpop.f32.mrb[0].mxu0
  %234 = vmatprep.mubr.bf16.mxu0 0
  %235 = vmatmul.mubr.bf16.gmra.mrb[0].mxu0 %v124
  %v236 = vpop.f32.mrb[0].mxu0
  %v237 = vadd.f32 %v88, %v236
  %v238 = vpop.f32.mrb[0].mxu0
  %v239 = vpop.f32.mrb[0].mxu0
  %v240 = vadd.f32 %v88, %v239
  %v241 = vpop.f32.mrb[0].mxu0
  %242 = vmatprep.mubr.bf16.mxu0 0
  %243 = vmatmul.mubr.bf16.gmra.mrb[0].mxu0 %v125
  %v244 = vpop.f32.mrb[0].mxu0
  %v245 = vadd.f32 %v88, %v244
  %v246 = vpop.f32.mrb[0].mxu0
  %v247 = vpop.f32.mrb[0].mxu0
  %v248 = vadd.f32 %v88, %v247
  %v249 = vpop.f32.mrb[0].mxu0
  %250 = vmatprep.mubr.bf16.mxu0 0
  %251 = vmatmul.mubr.bf16.gmra.mrb[0].mxu0 %v126
  %v252 = vpop.f32.mrb[0].mxu0
  %v253 = vadd.f32 %v88, %v252
  %v254 = vpop.f32.mrb[0].mxu0
  %v255 = vpop.f32.mrb[0].mxu0
  %v256 = vadd.f32 %v88, %v255
  %v257 = vpop.f32.mrb[0].mxu0
  %258 = vmatprep.mubr.bf16.mxu0 0
  %259 = vmatmul.mubr.bf16.gmra.mrb[0].mxu0 %v127
  %v260 = vpop.f32.mrb[0].mxu0
  %v261 = vadd.f32 %v88, %v260
  %v262 = vpop.f32.mrb[0].mxu0
  %v263 = vpop.f32.mrb[0].mxu0
  %v264 = vadd.f32 %v88, %v263
  %v265 = vpop.f32.mrb[0].mxu0
  %266 = vmatprep.mubr.bf16.mxu0 0
  %267 = vmatmul.mubr.bf16.gmra.mrb[0].mxu0 %v128
  %v268 = vpop.f32.mrb[0].mxu0
  %v269 = vadd.f32 %v88, %v268
  %v270 = vpop.f32.mrb[0].mxu0
  %v271 = vpop.f32.mrb[0].mxu0
  %v272 = vadd.f32 %v88, %v271
  %v273 = vpop.f32.mrb[0].mxu0
  %274 = vmatprep.mubr.bf16.mxu0 0
  %275 = vmatmul.mubr.bf16.gmra.mrb[0].mxu0 %v129
  %v276 = vpop.f32.mrb[0].mxu0
  %v277 = vadd.f32 %v88, %v276
  %v278 = vpop.f32.mrb[0].mxu0
  %v279 = vpop.f32.mrb[0].mxu0
  %v280 = vadd.f32 %v88, %v279
  %v281 = vpop.f32.mrb[0].mxu0
  %282 = vdwg.mxu0
  %v283 = vmax.f32 %v221, 0.0
  %v284 = vmax.f32 %v224, 0.0
  %v285 = vmax.f32 %v229, 0.0
  %v286 = vmax.f32 %v232, 0.0
  %v287 = vmax.f32 %v237, 0.0
  %v288 = vmax.f32 %v240, 0.0
  %v289 = vmax.f32 %v245, 0.0
  %v290 = vmax.f32 %v248, 0.0
  %v291 = vmax.f32 %v253, 0.0
  %v292 = vmax.f32 %v256, 0.0
  %v293 = vmax.f32 %v261, 0.0
  %v294 = vmax.f32 %v264, 0.0
  %v295 = vmax.f32 %v269, 0.0
  %v296 = vmax.f32 %v272, 0.0
  %v297 = vmax.f32 %v277, 0.0
  %v298 = vmax.f32 %v280, 0.0
  %v299 = vpack.c.bf16 %v284, %v283
  %v300 = vpack.c.bf16 %v286, %v285
  %v301 = vpack.c.bf16 %v288, %v287
  %v302 = vpack.c.bf16 %v290, %v289
  %v303 = vpack.c.bf16 %v292, %v291
  %v304 = vpack.c.bf16 %v294, %v293
  %v305 = vpack.c.bf16 %v296, %v295
  %v306 = vpack.c.bf16 %v298, %v297
  %v315 = vunpack.c.l.b16 %v299
  %v316 = vunpack.c.h.b16 %v299
  %v317 = vunpack.c.l.b16 %v300
  %v318 = vunpack.c.h.b16 %v300
  %v319 = vunpack.c.l.b16 %v301
  %v320 = vunpack.c.h.b16 %v301
  %v321 = vunpack.c.l.b16 %v302
  %v322 = vunpack.c.h.b16 %v302
  %v323 = vunpack.c.l.b16 %v303
  %v324 = vunpack.c.h.b16 %v303
  %v325 = vunpack.c.l.b16 %v304
  %v326 = vunpack.c.h.b16 %v304
  %v327 = vunpack.c.l.b16 %v305
  %v328 = vunpack.c.h.b16 %v305
  %v329 = vunpack.c.l.b16 %v306
  %v330 = vunpack.c.h.b16 %v306
  %v331 = vpack.c.b16 %v315, %v315
  %v332 = vpack.c.b16 %v316, %v316
  %v333 = vpack.c.b16 %v317, %v317
  %v334 = vpack.c.b16 %v318, %v318
  %v335 = vpack.c.b16 %v319, %v319
  %v336 = vpack.c.b16 %v320, %v320
  %v337 = vpack.c.b16 %v321, %v321
  %v338 = vpack.c.b16 %v322, %v322
  %v339 = vpack.c.b16 %v323, %v323
  %v340 = vpack.c.b16 %v324, %v324
  %v341 = vpack.c.b16 %v325, %v325
  %v342 = vpack.c.b16 %v326, %v326
  %v343 = vpack.c.b16 %v327, %v327
  %v344 = vpack.c.b16 %v328, %v328
  %v345 = vpack.c.b16 %v329, %v329
  %v346 = vpack.c.b16 %v330, %v330
  %363 = vst [vmem:[%s4] sm:$0xf] %v331
  %364 = vst [vmem:[%s4 + $0x4] sm:$0xf] %v332
  %365 = vst [vmem:[%s4 + $0x8] sm:$0xf] %v333
  %366 = vst [vmem:[%s4 + $0xc] sm:$0xf] %v334
  %367 = vst [vmem:[%s4 + $0x10] sm:$0xf] %v335
  %368 = vst [vmem:[%s4 + $0x14] sm:$0xf] %v336
  %369 = vst [vmem:[%s4 + $0x18] sm:$0xf] %v337
  %370 = vst [vmem:[%s4 + $0x1c] sm:$0xf] %v338
  %371 = vst [vmem:[%s4 + $0x20] sm:$0xf] %v339
  %372 = vst [vmem:[%s4 + $0x24] sm:$0xf] %v340
  %373 = vst [vmem:[%s4 + $0x28] sm:$0xf] %v341
  %374 = vst [vmem:[%s4 + $0x2c] sm:$0xf] %v342
  %375 = vst [vmem:[%s4 + $0x30] sm:$0xf] %v343
  %376 = vst [vmem:[%s4 + $0x34] sm:$0xf] %v344
  %377 = vst [vmem:[%s4 + $0x38] sm:$0xf] %v345
  %378 = vst [vmem:[%s4 + $0x3c] sm:$0xf] %v346
  // Predicated region
  $region14: #{ade20k_segmenter_forward.10} parent=0 // pred_check
    _
  $region15: #{ade20k_segmenter_forward.10} parent=0 // pred_check_branch
    %380 = sbr.rel (0) target = $region17
  $region16: #{ade20k_segmenter_forward.10} parent=0 // pred_region
    _
  $region17: #{ade20k_segmenter_forward.10} parent=0 // pred_fallthru
    _
  // Predicated region
  $region18: #{ade20k_segmenter_forward.10} parent=0 // pred_check
    _
  $region19: #{ade20k_segmenter_forward.10} parent=0 // pred_check_branch
    %382 = sbr.rel (0) target = $region21
  $region20: #{ade20k_segmenter_forward.10} parent=0 // pred_region
    _
  $region21: #{ade20k_segmenter_forward.10} parent=0 // pred_fallthru
    _

// kernel: ade20k_segmenter_forward.11
$region0: #{ade20k_segmenter_forward.11}
  #allocation0 [shape = 'u32[]', space=smem, size = 0x4, offset = 0x4, fixed_abs, tag = 'smem constant byte address 0x4 - core index']
  #allocation1 [shape = 'u32[144,128]{1,0:T(1,128)}', space=vmem, size = 0x12000, scoped, tag = 'internal scratch']
  #allocation2 [shape = 's32[1]{0}', space=sflag, size = 0x4, scoped, tag = 'scoped memory for ade20k_segmenter_forward.11']
  #allocation3 [shape = 's32[1]{0:T(128)S(6)}', space=smem, size = 0x200, scoped, tag = 'prefetched SMEM operand 0']
  %s0 = inlined_call_operand.<no memory space> [shape: s32[1], index: 0, kind: input, shape index: {}]
  %s1 = inlined_call_operand.vmem [shape: bf16[32,256], index: 1, kind: input, shape index: {}]
  %s2 = inlined_call_operand.vmem [shape: bf16[1,256,128], index: 2, kind: input, shape index: {}]
  %s3 = inlined_call_operand.vmem [shape: f32[1,1,128], index: 3, kind: input, shape index: {}]
  %s4 = inlined_call_operand.vmem [shape: bf16[32,128], index: 4, kind: output, shape index: {}]
  %s5 = sld [smem:[#allocation0]]
  $region22: #{ade20k_segmenter_forward.11} parent=0
    _
  %s7 = ssub.s32 1, %s5
  %s8 = scalar_select 0, %s7, %s5
  %9 = sst [smem:[#allocation3]] %s0
  // Predicated region
  $region2: #{ade20k_segmenter_forward.11} parent=0 // pred_check
    _
  $region3: #{ade20k_segmenter_forward.11} parent=0 // pred_check_branch
    %11 = sbr.rel (0) target = $region5
  $region4: #{ade20k_segmenter_forward.11} parent=0 // pred_region
    _
  $region5: #{ade20k_segmenter_forward.11} parent=0 // pred_fallthru
    _
  // Predicated region
  $region6: #{ade20k_segmenter_forward.11} parent=0 // pred_check
    _
  $region7: #{ade20k_segmenter_forward.11} parent=0 // pred_check_branch
    %13 = sbr.rel (0) target = $region9
  $region8: #{ade20k_segmenter_forward.11} parent=0 // pred_region
    %s14 = sld [smem:[#allocation3]]
    %p15 = scmp.lt.s32.totalorder %s14, 0
    %s16 = scalar_select %p15, %s14, 0
    %s17 = smul.addr %s16, 32
    %s18 = smul.addr %s17, 4
    %s19 = scalar_lea.vmem %s2, %s18
    %s20 = sld [smem:[#allocation3]]
  $region9: #{ade20k_segmenter_forward.11} parent=0 // pred_fallthru
    _
  // Predicated region
  $region10: #{ade20k_segmenter_forward.11} parent=0 // pred_check
    _
  $region11: #{ade20k_segmenter_forward.11} parent=0 // pred_check_branch
    %22 = sbr.rel (0) target = $region13
  $region12: #{ade20k_segmenter_forward.11} parent=0 // pred_region
    %s23 = sld [smem:[#allocation3]]
    %p24 = scmp.lt.s32.totalorder %s23, 0
    %s25 = scalar_select %p24, %s23, 0
    %s26 = scalar_lea.vmem %s3, %s25
    %s27 = sld [smem:[#allocation3]]
  $region13: #{ade20k_segmenter_forward.11} parent=0 // pred_fallthru
    _
  %s28 = sld [smem:[#allocation3]]
  %p29 = scmp.lt.s32.totalorder %s28, 0
  %s30 = scalar_select %p29, %s28, 0
  %s31 = smul.addr %s30, 32
  %s32 = smul.addr %s31, 4
  %s33 = scalar_lea.vmem %s2, %s32
  %s34 = sld [smem:[#allocation3]]
  %p35 = scmp.lt.s32.totalorder %s34, 0
  %s36 = scalar_select %p35, %s34, 0
  %s37 = scalar_lea.vmem %s3, %s36
  %s38 = sld [smem:[#allocation3]]
  %p39 = scmp.lt.s32.totalorder %s38, 0
  %s40 = scalar_select %p39, %s38, 0
  %s41 = smul.addr %s40, 32
  %s42 = smul.addr %s41, 4
  %s43 = scalar_lea.vmem %s2, %s42
  %s44 = sld [smem:[#allocation3]]
  %s45 = sld [smem:[#allocation3]]
  %p46 = scmp.lt.s32.totalorder %s45, 0
  %s47 = scalar_select %p46, %s45, 0
  %s48 = scalar_lea.vmem %s3, %s47
  %s49 = sld [smem:[#allocation3]]
  %v51 = vld [vmem:[%s1] sm:$0xff]
  %v52 = vld [vmem:[%s1 + $0x8] sm:$0xff]
  %v53 = vld [vmem:[%s1 + $0x10] sm:$0xff]
  %v54 = vld [vmem:[%s1 + $0x18] sm:$0xff]
  %v55 = vld [vmem:[%s43] sm:$0xf]
  %v56 = vld [vmem:[%s43 + $0x4] sm:$0xf]
  %v57 = vld [vmem:[%s43 + $0x8] sm:$0xf]
  %v58 = vld [vmem:[%s43 + $0xc] sm:$0xf]
  %v59 = vld [vmem:[%s43 + $0x10] sm:$0xf]
  %v60 = vld [vmem:[%s43 + $0x14] sm:$0xf]
  %v61 = vld [vmem:[%s43 + $0x18] sm:$0xf]
  %v62 = vld [vmem:[%s43 + $0x1c] sm:$0xf]
  %v63 = vld [vmem:[%s43 + $0x20] sm:$0xf]
  %v64 = vld [vmem:[%s43 + $0x24] sm:$0xf]
  %v65 = vld [vmem:[%s43 + $0x28] sm:$0xf]
  %v66 = vld [vmem:[%s43 + $0x2c] sm:$0xf]
  %v67 = vld [vmem:[%s43 + $0x30] sm:$0xf]
  %v68 = vld [vmem:[%s43 + $0x34] sm:$0xf]
  %v69 = vld [vmem:[%s43 + $0x38] sm:$0xf]
  %v70 = vld [vmem:[%s43 + $0x3c] sm:$0xf]
  %v71 = vld [vmem:[%s43 + $0x40] sm:$0xf]
  %v72 = vld [vmem:[%s43 + $0x44] sm:$0xf]
  %v73 = vld [vmem:[%s43 + $0x48] sm:$0xf]
  %v74 = vld [vmem:[%s43 + $0x4c] sm:$0xf]
  %v75 = vld [vmem:[%s43 + $0x50] sm:$0xf]
  %v76 = vld [vmem:[%s43 + $0x54] sm:$0xf]
  %v77 = vld [vmem:[%s43 + $0x58] sm:$0xf]
  %v78 = vld [vmem:[%s43 + $0x5c] sm:$0xf]
  %v79 = vld [vmem:[%s43 + $0x60] sm:$0xf]
  %v80 = vld [vmem:[%s43 + $0x64] sm:$0xf]
  %v81 = vld [vmem:[%s43 + $0x68] sm:$0xf]
  %v82 = vld [vmem:[%s43 + $0x6c] sm:$0xf]
  %v83 = vld [vmem:[%s43 + $0x70] sm:$0xf]
  %v84 = vld [vmem:[%s43 + $0x74] sm:$0xf]
  %v85 = vld [vmem:[%s43 + $0x78] sm:$0xf]
  %v86 = vld [vmem:[%s43 + $0x7c] sm:$0xf]
  %v87 = vld [vmem:[%s48] sm:$0x1]
  %v89 = vlaneseq
  %v90 = vshrl.u32 %v89, 7
  %v91 = vsub.s32 0, %v90
  %v92 = vrot.slane %v87, %v91
  %v98 = vunpack.c.l.b16 %v51
  %v99 = vunpack.c.h.b16 %v51
  %v100 = vunpack.c.l.b16 %v52
  %v101 = vunpack.c.h.b16 %v52
  %v102 = vunpack.c.l.b16 %v53
  %v103 = vunpack.c.h.b16 %v53
  %v104 = vunpack.c.l.b16 %v54
  %v105 = vunpack.c.h.b16 %v54
  %v106 = vpack.c.b16 %v100, %v98
  %v107 = vpack.c.b16 %v101, %v99
  %v108 = vpack.c.b16 %v104, %v102
  %v109 = vpack.c.b16 %v105, %v103
  %v146 = vunpack.c.l.b16 %v55
  %v147 = vunpack.c.l.b16 %v56
  %v148 = vunpack.c.l.b16 %v57
  %v149 = vunpack.c.l.b16 %v58
  %v150 = vunpack.c.l.b16 %v59
  %v151 = vunpack.c.l.b16 %v60
  %v152 = vunpack.c.l.b16 %v61
  %v153 = vunpack.c.l.b16 %v62
  %v154 = vunpack.c.l.b16 %v63
  %v155 = vunpack.c.l.b16 %v64
  %v156 = vunpack.c.l.b16 %v65
  %v157 = vunpack.c.l.b16 %v66
  %v158 = vunpack.c.l.b16 %v67
  %v159 = vunpack.c.l.b16 %v68
  %v160 = vunpack.c.l.b16 %v69
  %v161 = vunpack.c.l.b16 %v70
  %v162 = vunpack.c.l.b16 %v71
  %v163 = vunpack.c.l.b16 %v72
  %v164 = vunpack.c.l.b16 %v73
  %v165 = vunpack.c.l.b16 %v74
  %v166 = vunpack.c.l.b16 %v75
  %v167 = vunpack.c.l.b16 %v76
  %v168 = vunpack.c.l.b16 %v77
  %v169 = vunpack.c.l.b16 %v78
  %v170 = vunpack.c.l.b16 %v79
  %v171 = vunpack.c.l.b16 %v80
  %v172 = vunpack.c.l.b16 %v81
  %v173 = vunpack.c.l.b16 %v82
  %v174 = vunpack.c.l.b16 %v83
  %v175 = vunpack.c.l.b16 %v84
  %v176 = vunpack.c.l.b16 %v85
  %v177 = vunpack.c.l.b16 %v86
  %v178 = vpack.c.b16 %v147, %v146
  %v179 = vpack.c.b16 %v149, %v148
  %v180 = vpack.c.b16 %v151, %v150
  %v181 = vpack.c.b16 %v153, %v152
  %v182 = vpack.c.b16 %v155, %v154
  %v183 = vpack.c.b16 %v157, %v156
  %v184 = vpack.c.b16 %v159, %v158
  %v185 = vpack.c.b16 %v161, %v160
  %v186 = vpack.c.b16 %v163, %v162
  %v187 = vpack.c.b16 %v165, %v164
  %v188 = vpack.c.b16 %v167, %v166
  %v189 = vpack.c.b16 %v169, %v168
  %v190 = vpack.c.b16 %v171, %v170
  %v191 = vpack.c.b16 %v173, %v172
  %v192 = vpack.c.b16 %v175, %v174
  %v193 = vpack.c.b16 %v177, %v176
  %210 = vmatprep.subr.bf16.mxu0 0
  %211 = vmatpush1.bf16.msra.mxu0 %v178
  %212 = vmatprep.subr.bf16.mxu0 0
  %213 = vmatpush1.bf16.msra.mxu0 %v179
  %214 = vmatprep.subr.bf16.mxu0 0
  %215 = vmatpush1.bf16.msra.mxu0 %v180
  %216 = vmatprep.subr.bf16.mxu0 0
  %217 = vmatpush1.bf16.msra.mxu0 %v181
  %218 = vmatprep.subr.bf16.mxu0 0
  %219 = vmatpush1.bf16.msra.mxu0 %v182
  %220 = vmatprep.subr.bf16.mxu0 0
  %221 = vmatpush1.bf16.msra.mxu0 %v183
  %222 = vmatprep.subr.bf16.mxu0 0
  %223 = vmatpush1.bf16.msra.mxu0 %v184
  %224 = vmatprep.subr.bf16.mxu0 0
  %225 = vmatpush1.bf16.msra.mxu0 %v185
  %226 = vmatprep.subr.bf16.mxu0 0
  %227 = vmatpush1.bf16.msra.mxu0 %v186
  %228 = vmatprep.subr.bf16.mxu0 0
  %229 = vmatpush1.bf16.msra.mxu0 %v187
  %230 = vmatprep.subr.bf16.mxu0 0
  %231 = vmatpush1.bf16.msra.mxu0 %v188
  %232 = vmatprep.subr.bf16.mxu0 0
  %233 = vmatpush1.bf16.msra.mxu0 %v189
  %234 = vmatprep.subr.bf16.mxu0 0
  %235 = vmatpush1.bf16.msra.mxu0 %v190
  %236 = vmatprep.subr.bf16.mxu0 0
  %237 = vmatpush1.bf16.msra.mxu0 %v191
  %238 = vmatprep.subr.bf16.mxu0 0
  %239 = vmatpush1.bf16.msra.mxu0 %v192
  %240 = vmatprep.subr.bf16.mxu0 0
  %241 = vmatpush1.bf16.msra.mxu0 %v193
  %242 = vmatprep.mubr.bf16.mxu0 %v107
  %243 = vmatmul.mubr.bf16.gmra.mrb[0].mxu0 %v106
  %v244 = vpop.f32.mrb[0].mxu0
  %v245 = vadd.f32 %v92, %v244
  %v246 = vpop.f32.mrb[0].mxu0
  %v247 = vpop.f32.mrb[0].mxu0
  %v248 = vadd.f32 %v92, %v247
  %v249 = vpop.f32.mrb[0].mxu0
  %250 = vmatprep.mubr.bf16.mxu0 %v109
  %251 = vmatmul.mubr.bf16.gmra.mrb[0].mxu0 %v108
  %v252 = vpop.f32.mrb[0].mxu0
  %v253 = vadd.f32 %v92, %v252
  %v254 = vpop.f32.mrb[0].mxu0
  %v255 = vpop.f32.mrb[0].mxu0
  %v256 = vadd.f32 %v92, %v255
  %v257 = vpop.f32.mrb[0].mxu0
  %258 = vdwg.mxu0
  %v259 = vmax.f32 %v245, 0.0
  %v260 = vmax.f32 %v248, 0.0
  %v261 = vmax.f32 %v253, 0.0
  %v262 = vmax.f32 %v256, 0.0
  %v263 = vpack.c.bf16 %v260, %v259
  %v264 = vpack.c.bf16 %v262, %v261
  %v267 = vunpack.c.l.b16 %v263
  %v268 = vunpack.c.h.b16 %v263
  %v269 = vunpack.c.l.b16 %v264
  %v270 = vunpack.c.h.b16 %v264
  %v271 = vpack.c.b16 %v267, %v267
  %v272 = vpack.c.b16 %v268, %v268
  %v273 = vpack.c.b16 %v269, %v269
  %v274 = vpack.c.b16 %v270, %v270
  %279 = vst [vmem:[%s4] sm:$0xf] %v271
  %280 = vst [vmem:[%s4 + $0x4] sm:$0xf] %v272
  %281 = vst [vmem:[%s4 + $0x8] sm:$0xf] %v273
  %282 = vst [vmem:[%s4 + $0xc] sm:$0xf] %v274
  // Predicated region
  $region14: #{ade20k_segmenter_forward.11} parent=0 // pred_check
    _
  $region15: #{ade20k_segmenter_forward.11} parent=0 // pred_check_branch
    %284 = sbr.rel (0) target = $region17
  $region16: #{ade20k_segmenter_forward.11} parent=0 // pred_region
    _
  $region17: #{ade20k_segmenter_forward.11} parent=0 // pred_fallthru
    _
  // Predicated region
  $region18: #{ade20k_segmenter_forward.11} parent=0 // pred_check
    _
  $region19: #{ade20k_segmenter_forward.11} parent=0 // pred_check_branch
    %286 = sbr.rel (0) target = $region21
  $region20: #{ade20k_segmenter_forward.11} parent=0 // pred_region
    _
  $region21: #{ade20k_segmenter_forward.11} parent=0 // pred_fallthru
    _

// kernel: ade20k_segmenter_forward.12
$region0: #{ade20k_segmenter_forward.12}
  #allocation0 [shape = 'u32[]', space=smem, size = 0x4, offset = 0x4, fixed_abs, tag = 'smem constant byte address 0x4 - core index']
  #allocation1 [shape = 'u32[144,128]{1,0:T(1,128)}', space=vmem, size = 0x12000, scoped, tag = 'internal scratch']
  #allocation2 [shape = 's32[1]{0}', space=sflag, size = 0x4, scoped, tag = 'scoped memory for ade20k_segmenter_forward.12']
  #allocation3 [shape = 's32[1]{0:T(128)S(6)}', space=smem, size = 0x200, scoped, tag = 'prefetched SMEM operand 0']
  %s0 = inlined_call_operand.<no memory space> [shape: s32[1], index: 0, kind: input, shape index: {}]
  %s1 = inlined_call_operand.vmem [shape: bf16[8,384], index: 1, kind: input, shape index: {}]
  %s2 = inlined_call_operand.vmem [shape: bf16[1,384,128], index: 2, kind: input, shape index: {}]
  %s3 = inlined_call_operand.vmem [shape: f32[1,1,128], index: 3, kind: input, shape index: {}]
  %s4 = inlined_call_operand.vmem [shape: bf16[8,128], index: 4, kind: output, shape index: {}]
  %s5 = sld [smem:[#allocation0]]
  $region22: #{ade20k_segmenter_forward.12} parent=0
    _
  %s7 = ssub.s32 1, %s5
  %s8 = scalar_select 0, %s7, %s5
  %9 = sst [smem:[#allocation3]] %s0
  // Predicated region
  $region2: #{ade20k_segmenter_forward.12} parent=0 // pred_check
    _
  $region3: #{ade20k_segmenter_forward.12} parent=0 // pred_check_branch
    %11 = sbr.rel (0) target = $region5
  $region4: #{ade20k_segmenter_forward.12} parent=0 // pred_region
    _
  $region5: #{ade20k_segmenter_forward.12} parent=0 // pred_fallthru
    _
  // Predicated region
  $region6: #{ade20k_segmenter_forward.12} parent=0 // pred_check
    _
  $region7: #{ade20k_segmenter_forward.12} parent=0 // pred_check_branch
    %13 = sbr.rel (0) target = $region9
  $region8: #{ade20k_segmenter_forward.12} parent=0 // pred_region
    %s14 = sld [smem:[#allocation3]]
    %p15 = scmp.lt.s32.totalorder %s14, 0
    %s16 = scalar_select %p15, %s14, 0
    %s17 = smul.addr %s16, 48
    %s18 = smul.addr %s17, 4
    %s19 = scalar_lea.vmem %s2, %s18
    %s20 = sld [smem:[#allocation3]]
  $region9: #{ade20k_segmenter_forward.12} parent=0 // pred_fallthru
    _
  // Predicated region
  $region10: #{ade20k_segmenter_forward.12} parent=0 // pred_check
    _
  $region11: #{ade20k_segmenter_forward.12} parent=0 // pred_check_branch
    %22 = sbr.rel (0) target = $region13
  $region12: #{ade20k_segmenter_forward.12} parent=0 // pred_region
    %s23 = sld [smem:[#allocation3]]
    %p24 = scmp.lt.s32.totalorder %s23, 0
    %s25 = scalar_select %p24, %s23, 0
    %s26 = scalar_lea.vmem %s3, %s25
    %s27 = sld [smem:[#allocation3]]
  $region13: #{ade20k_segmenter_forward.12} parent=0 // pred_fallthru
    _
  %s28 = sld [smem:[#allocation3]]
  %p29 = scmp.lt.s32.totalorder %s28, 0
  %s30 = scalar_select %p29, %s28, 0
  %s31 = smul.addr %s30, 48
  %s32 = smul.addr %s31, 4
  %s33 = scalar_lea.vmem %s2, %s32
  %s34 = sld [smem:[#allocation3]]
  %p35 = scmp.lt.s32.totalorder %s34, 0
  %s36 = scalar_select %p35, %s34, 0
  %s37 = scalar_lea.vmem %s3, %s36
  %s38 = sld [smem:[#allocation3]]
  %p39 = scmp.lt.s32.totalorder %s38, 0
  %s40 = scalar_select %p39, %s38, 0
  %s41 = smul.addr %s40, 48
  %s42 = smul.addr %s41, 4
  %s43 = scalar_lea.vmem %s2, %s42
  %s44 = sld [smem:[#allocation3]]
  %s45 = sld [smem:[#allocation3]]
  %p46 = scmp.lt.s32.totalorder %s45, 0
  %s47 = scalar_select %p46, %s45, 0
  %s48 = scalar_lea.vmem %s3, %s47
  %s49 = sld [smem:[#allocation3]]
  %v51 = vld [vmem:[%s1] sm:$0xff]
  %v52 = vld [vmem:[%s1 + $0x8] sm:$0xf]
  %v53 = vld [vmem:[%s43] sm:$0xf]
  %v54 = vld [vmem:[%s43 + $0x4] sm:$0xf]
  %v55 = vld [vmem:[%s43 + $0x8] sm:$0xf]
  %v56 = vld [vmem:[%s43 + $0xc] sm:$0xf]
  %v57 = vld [vmem:[%s43 + $0x10] sm:$0xf]
  %v58 = vld [vmem:[%s43 + $0x14] sm:$0xf]
  %v59 = vld [vmem:[%s43 + $0x18] sm:$0xf]
  %v60 = vld [vmem:[%s43 + $0x1c] sm:$0xf]
  %v61 = vld [vmem:[%s43 + $0x20] sm:$0xf]
  %v62 = vld [vmem:[%s43 + $0x24] sm:$0xf]
  %v63 = vld [vmem:[%s43 + $0x28] sm:$0xf]
  %v64 = vld [vmem:[%s43 + $0x2c] sm:$0xf]
  %v65 = vld [vmem:[%s43 + $0x30] sm:$0xf]
  %v66 = vld [vmem:[%s43 + $0x34] sm:$0xf]
  %v67 = vld [vmem:[%s43 + $0x38] sm:$0xf]
  %v68 = vld [vmem:[%s43 + $0x3c] sm:$0xf]
  %v69 = vld [vmem:[%s43 + $0x40] sm:$0xf]
  %v70 = vld [vmem:[%s43 + $0x44] sm:$0xf]
  %v71 = vld [vmem:[%s43 + $0x48] sm:$0xf]
  %v72 = vld [vmem:[%s43 + $0x4c] sm:$0xf]
  %v73 = vld [vmem:[%s43 + $0x50] sm:$0xf]
  %v74 = vld [vmem:[%s43 + $0x54] sm:$0xf]
  %v75 = vld [vmem:[%s43 + $0x58] sm:$0xf]
  %v76 = vld [vmem:[%s43 + $0x5c] sm:$0xf]
  %v77 = vld [vmem:[%s43 + $0x60] sm:$0xf]
  %v78 = vld [vmem:[%s43 + $0x64] sm:$0xf]
  %v79 = vld [vmem:[%s43 + $0x68] sm:$0xf]
  %v80 = vld [vmem:[%s43 + $0x6c] sm:$0xf]
  %v81 = vld [vmem:[%s43 + $0x70] sm:$0xf]
  %v82 = vld [vmem:[%s43 + $0x74] sm:$0xf]
  %v83 = vld [vmem:[%s43 + $0x78] sm:$0xf]
  %v84 = vld [vmem:[%s43 + $0x7c] sm:$0xf]
  %v85 = vld [vmem:[%s43 + $0x80] sm:$0xf]
  %v86 = vld [vmem:[%s43 + $0x84] sm:$0xf]
  %v87 = vld [vmem:[%s43 + $0x88] sm:$0xf]
  %v88 = vld [vmem:[%s43 + $0x8c] sm:$0xf]
  %v89 = vld [vmem:[%s43 + $0x90] sm:$0xf]
  %v90 = vld [vmem:[%s43 + $0x94] sm:$0xf]
  %v91 = vld [vmem:[%s43 + $0x98] sm:$0xf]
  %v92 = vld [vmem:[%s43 + $0x9c] sm:$0xf]
  %v93 = vld [vmem:[%s43 + $0xa0] sm:$0xf]
  %v94 = vld [vmem:[%s43 + $0xa4] sm:$0xf]
  %v95 = vld [vmem:[%s43 + $0xa8] sm:$0xf]
  %v96 = vld [vmem:[%s43 + $0xac] sm:$0xf]
  %v97 = vld [vmem:[%s43 + $0xb0] sm:$0xf]
  %v98 = vld [vmem:[%s43 + $0xb4] sm:$0xf]
  %v99 = vld [vmem:[%s43 + $0xb8] sm:$0xf]
  %v100 = vld [vmem:[%s43 + $0xbc] sm:$0xf]
  %v101 = vld [vmem:[%s48] sm:$0x1]
  %v103 = vlaneseq
  %v104 = vshrl.u32 %v103, 7
  %v105 = vsub.s32 0, %v104
  %v106 = vrot.slane %v101, %v105
  %v110 = vunpack.c.l.b16 %v51
  %v111 = vunpack.c.h.b16 %v51
  %v112 = vunpack.c.l.b16 %v52
  %v113 = vpack.c.b16 %v110, %v110
  %v114 = vpack.c.b16 %v111, %v111
  %v115 = vpack.c.b16 %v112, %v112
  %v167 = vunpack.c.l.b16 %v53
  %v168 = vunpack.c.l.b16 %v54
  %v169 = vunpack.c.l.b16 %v55
  %v170 = vunpack.c.l.b16 %v56
  %v171 = vunpack.c.l.b16 %v57
  %v172 = vunpack.c.l.b16 %v58
  %v173 = vunpack.c.l.b16 %v59
  %v174 = vunpack.c.l.b16 %v60
  %v175 = vunpack.c.l.b16 %v61
  %v176 = vunpack.c.l.b16 %v62
  %v177 = vunpack.c.l.b16 %v63
  %v178 = vunpack.c.l.b16 %v64
  %v179 = vunpack.c.l.b16 %v65
  %v180 = vunpack.c.l.b16 %v66
  %v181 = vunpack.c.l.b16 %v67
  %v182 = vunpack.c.l.b16 %v68
  %v183 = vunpack.c.l.b16 %v69
  %v184 = vunpack.c.l.b16 %v70
  %v185 = vunpack.c.l.b16 %v71
  %v186 = vunpack.c.l.b16 %v72
  %v187 = vunpack.c.l.b16 %v73
  %v188 = vunpack.c.l.b16 %v74
  %v189 = vunpack.c.l.b16 %v75
  %v190 = vunpack.c.l.b16 %v76
  %v191 = vunpack.c.l.b16 %v77
  %v192 = vunpack.c.l.b16 %v78
  %v193 = vunpack.c.l.b16 %v79
  %v194 = vunpack.c.l.b16 %v80
  %v195 = vunpack.c.l.b16 %v81
  %v196 = vunpack.c.l.b16 %v82
  %v197 = vunpack.c.l.b16 %v83
  %v198 = vunpack.c.l.b16 %v84
  %v199 = vunpack.c.l.b16 %v85
  %v200 = vunpack.c.l.b16 %v86
  %v201 = vunpack.c.l.b16 %v87
  %v202 = vunpack.c.l.b16 %v88
  %v203 = vunpack.c.l.b16 %v89
  %v204 = vunpack.c.l.b16 %v90
  %v205 = vunpack.c.l.b16 %v91
  %v206 = vunpack.c.l.b16 %v92
  %v207 = vunpack.c.l.b16 %v93
  %v208 = vunpack.c.l.b16 %v94
  %v209 = vunpack.c.l.b16 %v95
  %v210 = vunpack.c.l.b16 %v96
  %v211 = vunpack.c.l.b16 %v97
  %v212 = vunpack.c.l.b16 %v98
  %v213 = vunpack.c.l.b16 %v99
  %v214 = vunpack.c.l.b16 %v100
  %v215 = vpack.c.b16 %v168, %v167
  %v216 = vpack.c.b16 %v170, %v169
  %v217 = vpack.c.b16 %v172, %v171
  %v218 = vpack.c.b16 %v174, %v173
  %v219 = vpack.c.b16 %v176, %v175
  %v220 = vpack.c.b16 %v178, %v177
  %v221 = vpack.c.b16 %v180, %v179
  %v222 = vpack.c.b16 %v182, %v181
  %v223 = vpack.c.b16 %v184, %v183
  %v224 = vpack.c.b16 %v186, %v185
  %v225 = vpack.c.b16 %v188, %v187
  %v226 = vpack.c.b16 %v190, %v189
  %v227 = vpack.c.b16 %v192, %v191
  %v228 = vpack.c.b16 %v194, %v193
  %v229 = vpack.c.b16 %v196, %v195
  %v230 = vpack.c.b16 %v198, %v197
  %v231 = vpack.c.b16 %v200, %v199
  %v232 = vpack.c.b16 %v202, %v201
  %v233 = vpack.c.b16 %v204, %v203
  %v234 = vpack.c.b16 %v206, %v205
  %v235 = vpack.c.b16 %v208, %v207
  %v236 = vpack.c.b16 %v210, %v209
  %v237 = vpack.c.b16 %v212, %v211
  %v238 = vpack.c.b16 %v214, %v213
  %263 = vmatprep.subr.bf16.mxu0 0
  %264 = vmatpush1.bf16.msra.mxu0 %v215
  %265 = vmatprep.subr.bf16.mxu0 0
  %266 = vmatpush1.bf16.msra.mxu0 %v216
  %267 = vmatprep.subr.bf16.mxu0 0
  %268 = vmatpush1.bf16.msra.mxu0 %v217
  %269 = vmatprep.subr.bf16.mxu0 0
  %270 = vmatpush1.bf16.msra.mxu0 %v218
  %271 = vmatprep.subr.bf16.mxu0 0
  %272 = vmatpush1.bf16.msra.mxu0 %v219
  %273 = vmatprep.subr.bf16.mxu0 0
  %274 = vmatpush1.bf16.msra.mxu0 %v220
  %275 = vmatprep.subr.bf16.mxu0 0
  %276 = vmatpush1.bf16.msra.mxu0 %v221
  %277 = vmatprep.subr.bf16.mxu0 0
  %278 = vmatpush1.bf16.msra.mxu0 %v222
  %279 = vmatprep.subr.bf16.mxu0 0
  %280 = vmatpush1.bf16.msra.mxu0 %v223
  %281 = vmatprep.subr.bf16.mxu0 0
  %282 = vmatpush1.bf16.msra.mxu0 %v224
  %283 = vmatprep.subr.bf16.mxu0 0
  %284 = vmatpush1.bf16.msra.mxu0 %v225
  %285 = vmatprep.subr.bf16.mxu0 0
  %286 = vmatpush1.bf16.msra.mxu0 %v226
  %287 = vmatprep.subr.bf16.mxu0 0
  %288 = vmatpush1.bf16.msra.mxu0 %v227
  %289 = vmatprep.subr.bf16.mxu0 0
  %290 = vmatpush1.bf16.msra.mxu0 %v228
  %291 = vmatprep.subr.bf16.mxu0 0
  %292 = vmatpush1.bf16.msra.mxu0 %v229
  %293 = vmatprep.subr.bf16.mxu0 0
  %294 = vmatpush1.bf16.msra.mxu0 %v230
  %295 = vmatprep.mubr.bf16.mxu0 %v114
  %296 = vmatmul.mubr.bf16.gmra.mrb[0].mxu0 %v113
  %v297 = vpop.f32.mrb[0].mxu0
  %v298 = vadd.f32 %v106, %v297
  %v299 = vpop.f32.mrb[0].mxu0
  %v300 = vpop.f32.mrb[0].mxu0
  %v301 = vpop.f32.mrb[0].mxu0
  %302 = vdwg.mxu0
  %303 = vmatprep.subr.bf16.mxu0 0
  %304 = vmatpush1.bf16.msra.mxu0 %v231
  %305 = vmatprep.subr.bf16.mxu0 0
  %306 = vmatpush1.bf16.msra.mxu0 %v232
  %307 = vmatprep.subr.bf16.mxu0 0
  %308 = vmatpush1.bf16.msra.mxu0 %v233
  %309 = vmatprep.subr.bf16.mxu0 0
  %310 = vmatpush1.bf16.msra.mxu0 %v234
  %311 = vmatprep.subr.bf16.mxu0 0
  %312 = vmatpush1.bf16.msra.mxu0 %v235
  %313 = vmatprep.subr.bf16.mxu0 0
  %314 = vmatpush1.bf16.msra.mxu0 %v236
  %315 = vmatprep.subr.bf16.mxu0 0
  %316 = vmatpush1.bf16.msra.mxu0 %v237
  %317 = vmatprep.subr.bf16.mxu0 0
  %318 = vmatpush1.bf16.msra.mxu0 %v238
  %319 = vmatprep.subr.bf16.mxu0 0
  %320 = vmatpush1.bf16.msra.mxu0 0
  %321 = vmatprep.subr.bf16.mxu0 0
  %322 = vmatpush1.bf16.msra.mxu0 0
  %323 = vmatprep.subr.bf16.mxu0 0
  %324 = vmatpush1.bf16.msra.mxu0 0
  %325 = vmatprep.subr.bf16.mxu0 0
  %326 = vmatpush1.bf16.msra.mxu0 0
  %327 = vmatprep.subr.bf16.mxu0 0
  %328 = vmatpush1.bf16.msra.mxu0 0
  %329 = vmatprep.subr.bf16.mxu0 0
  %330 = vmatpush1.bf16.msra.mxu0 0
  %331 = vmatprep.subr.bf16.mxu0 0
  %332 = vmatpush1.bf16.msra.mxu0 0
  %333 = vmatprep.subr.bf16.mxu0 0
  %334 = vmatpush1.bf16.msra.mxu0 0
  %335 = vmatprep.mubr.bf16.mxu0 0
  %336 = vmatmul.mubr.bf16.gmra.mrb[0].mxu0 %v115
  %v337 = vpop.f32.mrb[0].mxu0
  %v338 = vadd.f32 %v298, %v337
  %v339 = vpop.f32.mrb[0].mxu0
  %v340 = vpop.f32.mrb[0].mxu0
  %v341 = vpop.f32.mrb[0].mxu0
  %342 = vdwg.mxu0
  %v343 = vmax.f32 %v338, 0.0
  %v344 = vpack.c.bf16 %v343, %v343
  %345 = vst [vmem:[%s4] sm:$0xf] %v344
  // Predicated region
  $region14: #{ade20k_segmenter_forward.12} parent=0 // pred_check
    _
  $region15: #{ade20k_segmenter_forward.12} parent=0 // pred_check_branch
    %347 = sbr.rel (0) target = $region17
  $region16: #{ade20k_segmenter_forward.12} parent=0 // pred_region
    _
  $region17: #{ade20k_segmenter_forward.12} parent=0 // pred_fallthru
    _
  // Predicated region
  $region18: #{ade20k_segmenter_forward.12} parent=0 // pred_check
    _
  $region19: #{ade20k_segmenter_forward.12} parent=0 // pred_check_branch
    %349 = sbr.rel (0) target = $region21
  $region20: #{ade20k_segmenter_forward.12} parent=0 // pred_region
    _
  $region21: #{ade20k_segmenter_forward.12} parent=0 // pred_fallthru
    _

// kernel: ade20k_segmenter_forward.13
$region0: #{ade20k_segmenter_forward.13}
  #allocation0 [shape = 'u32[]', space=smem, size = 0x4, offset = 0x4, fixed_abs, tag = 'smem constant byte address 0x4 - core index']
  #allocation1 [shape = 'u32[144,128]{1,0:T(1,128)}', space=vmem, size = 0x12000, scoped, tag = 'internal scratch']
  #allocation2 [shape = 's32[1]{0}', space=sflag, size = 0x4, scoped, tag = 'scoped memory for ade20k_segmenter_forward.13']
  #allocation3 [shape = 's32[1]{0:T(128)S(6)}', space=smem, size = 0x200, scoped, tag = 'prefetched SMEM operand 0']
  %s0 = inlined_call_operand.<no memory space> [shape: s32[1], index: 0, kind: input, shape index: {}]
  %s1 = inlined_call_operand.vmem [shape: bf16[8,640], index: 1, kind: input, shape index: {}]
  %s2 = inlined_call_operand.vmem [shape: bf16[1,640,128], index: 2, kind: input, shape index: {}]
  %s3 = inlined_call_operand.vmem [shape: f32[1,1,128], index: 3, kind: input, shape index: {}]
  %s4 = inlined_call_operand.vmem [shape: bf16[8,128], index: 4, kind: output, shape index: {}]
  %s5 = sld [smem:[#allocation0]]
  $region22: #{ade20k_segmenter_forward.13} parent=0
    _
  %s7 = ssub.s32 1, %s5
  %s8 = scalar_select 0, %s7, %s5
  %9 = sst [smem:[#allocation3]] %s0
  // Predicated region
  $region2: #{ade20k_segmenter_forward.13} parent=0 // pred_check
    _
  $region3: #{ade20k_segmenter_forward.13} parent=0 // pred_check_branch
    %11 = sbr.rel (0) target = $region5
  $region4: #{ade20k_segmenter_forward.13} parent=0 // pred_region
    _
  $region5: #{ade20k_segmenter_forward.13} parent=0 // pred_fallthru
    _
  // Predicated region
  $region6: #{ade20k_segmenter_forward.13} parent=0 // pred_check
    _
  $region7: #{ade20k_segmenter_forward.13} parent=0 // pred_check_branch
    %13 = sbr.rel (0) target = $region9
  $region8: #{ade20k_segmenter_forward.13} parent=0 // pred_region
    %s14 = sld [smem:[#allocation3]]
    %p15 = scmp.lt.s32.totalorder %s14, 0
    %s16 = scalar_select %p15, %s14, 0
    %s17 = smul.addr %s16, 80
    %s18 = smul.addr %s17, 4
    %s19 = scalar_lea.vmem %s2, %s18
    %s20 = sld [smem:[#allocation3]]
  $region9: #{ade20k_segmenter_forward.13} parent=0 // pred_fallthru
    _
  // Predicated region
  $region10: #{ade20k_segmenter_forward.13} parent=0 // pred_check
    _
  $region11: #{ade20k_segmenter_forward.13} parent=0 // pred_check_branch
    %22 = sbr.rel (0) target = $region13
  $region12: #{ade20k_segmenter_forward.13} parent=0 // pred_region
    %s23 = sld [smem:[#allocation3]]
    %p24 = scmp.lt.s32.totalorder %s23, 0
    %s25 = scalar_select %p24, %s23, 0
    %s26 = scalar_lea.vmem %s3, %s25
    %s27 = sld [smem:[#allocation3]]
  $region13: #{ade20k_segmenter_forward.13} parent=0 // pred_fallthru
    _
  %s28 = sld [smem:[#allocation3]]
  %p29 = scmp.lt.s32.totalorder %s28, 0
  %s30 = scalar_select %p29, %s28, 0
  %s31 = smul.addr %s30, 80
  %s32 = smul.addr %s31, 4
  %s33 = scalar_lea.vmem %s2, %s32
  %s34 = sld [smem:[#allocation3]]
  %p35 = scmp.lt.s32.totalorder %s34, 0
  %s36 = scalar_select %p35, %s34, 0
  %s37 = scalar_lea.vmem %s3, %s36
  %s38 = sld [smem:[#allocation3]]
  %p39 = scmp.lt.s32.totalorder %s38, 0
  %s40 = scalar_select %p39, %s38, 0
  %s41 = smul.addr %s40, 80
  %s42 = smul.addr %s41, 4
  %s43 = scalar_lea.vmem %s2, %s42
  %s44 = sld [smem:[#allocation3]]
  %s45 = sld [smem:[#allocation3]]
  %p46 = scmp.lt.s32.totalorder %s45, 0
  %s47 = scalar_select %p46, %s45, 0
  %s48 = scalar_lea.vmem %s3, %s47
  %s49 = sld [smem:[#allocation3]]
  %v51 = vld [vmem:[%s1] sm:$0xff]
  %v52 = vld [vmem:[%s1 + $0x8] sm:$0xff]
  %v53 = vld [vmem:[%s1 + $0x10] sm:$0xf]
  %v54 = vld [vmem:[%s43] sm:$0xf]
  %v55 = vld [vmem:[%s43 + $0x4] sm:$0xf]
  %v56 = vld [vmem:[%s43 + $0x8] sm:$0xf]
  %v57 = vld [vmem:[%s43 + $0xc] sm:$0xf]
  %v58 = vld [vmem:[%s43 + $0x10] sm:$0xf]
  %v59 = vld [vmem:[%s43 + $0x14] sm:$0xf]
  %v60 = vld [vmem:[%s43 + $0x18] sm:$0xf]
  %v61 = vld [vmem:[%s43 + $0x1c] sm:$0xf]
  %v62 = vld [vmem:[%s43 + $0x20] sm:$0xf]
  %v63 = vld [vmem:[%s43 + $0x24] sm:$0xf]
  %v64 = vld [vmem:[%s43 + $0x28] sm:$0xf]
  %v65 = vld [vmem:[%s43 + $0x2c] sm:$0xf]
  %v66 = vld [vmem:[%s43 + $0x30] sm:$0xf]
  %v67 = vld [vmem:[%s43 + $0x34] sm:$0xf]
  %v68 = vld [vmem:[%s43 + $0x38] sm:$0xf]
  %v69 = vld [vmem:[%s43 + $0x3c] sm:$0xf]
  %v70 = vld [vmem:[%s43 + $0x40] sm:$0xf]
  %v71 = vld [vmem:[%s43 + $0x44] sm:$0xf]
  %v72 = vld [vmem:[%s43 + $0x48] sm:$0xf]
  %v73 = vld [vmem:[%s43 + $0x4c] sm:$0xf]
  %v74 = vld [vmem:[%s43 + $0x50] sm:$0xf]
  %v75 = vld [vmem:[%s43 + $0x54] sm:$0xf]
  %v76 = vld [vmem:[%s43 + $0x58] sm:$0xf]
  %v77 = vld [vmem:[%s43 + $0x5c] sm:$0xf]
  %v78 = vld [vmem:[%s43 + $0x60] sm:$0xf]
  %v79 = vld [vmem:[%s43 + $0x64] sm:$0xf]
  %v80 = vld [vmem:[%s43 + $0x68] sm:$0xf]
  %v81 = vld [vmem:[%s43 + $0x6c] sm:$0xf]
  %v82 = vld [vmem:[%s43 + $0x70] sm:$0xf]
  %v83 = vld [vmem:[%s43 + $0x74] sm:$0xf]
  %v84 = vld [vmem:[%s43 + $0x78] sm:$0xf]
  %v85 = vld [vmem:[%s43 + $0x7c] sm:$0xf]
  %v86 = vld [vmem:[%s43 + $0x80] sm:$0xf]
  %v87 = vld [vmem:[%s43 + $0x84] sm:$0xf]
  %v88 = vld [vmem:[%s43 + $0x88] sm:$0xf]
  %v89 = vld [vmem:[%s43 + $0x8c] sm:$0xf]
  %v90 = vld [vmem:[%s43 + $0x90] sm:$0xf]
  %v91 = vld [vmem:[%s43 + $0x94] sm:$0xf]
  %v92 = vld [vmem:[%s43 + $0x98] sm:$0xf]
  %v93 = vld [vmem:[%s43 + $0x9c] sm:$0xf]
  %v94 = vld [vmem:[%s43 + $0xa0] sm:$0xf]
  %v95 = vld [vmem:[%s43 + $0xa4] sm:$0xf]
  %v96 = vld [vmem:[%s43 + $0xa8] sm:$0xf]
  %v97 = vld [vmem:[%s43 + $0xac] sm:$0xf]
  %v98 = vld [vmem:[%s43 + $0xb0] sm:$0xf]
  %v99 = vld [vmem:[%s43 + $0xb4] sm:$0xf]
  %v100 = vld [vmem:[%s43 + $0xb8] sm:$0xf]
  %v101 = vld [vmem:[%s43 + $0xbc] sm:$0xf]
  %v102 = vld [vmem:[%s43 + $0xc0] sm:$0xf]
  %v103 = vld [vmem:[%s43 + $0xc4] sm:$0xf]
  %v104 = vld [vmem:[%s43 + $0xc8] sm:$0xf]
  %v105 = vld [vmem:[%s43 + $0xcc] sm:$0xf]
  %v106 = vld [vmem:[%s43 + $0xd0] sm:$0xf]
  %v107 = vld [vmem:[%s43 + $0xd4] sm:$0xf]
  %v108 = vld [vmem:[%s43 + $0xd8] sm:$0xf]
  %v109 = vld [vmem:[%s43 + $0xdc] sm:$0xf]
  %v110 = vld [vmem:[%s43 + $0xe0] sm:$0xf]
  %v111 = vld [vmem:[%s43 + $0xe4] sm:$0xf]
  %v112 = vld [vmem:[%s43 + $0xe8] sm:$0xf]
  %v113 = vld [vmem:[%s43 + $0xec] sm:$0xf]
  %v114 = vld [vmem:[%s43 + $0xf0] sm:$0xf]
  %v115 = vld [vmem:[%s43 + $0xf4] sm:$0xf]
  %v116 = vld [vmem:[%s43 + $0xf8] sm:$0xf]
  %v117 = vld [vmem:[%s43 + $0xfc] sm:$0xf]
  %v118 = vld [vmem:[%s43 + $0x100] sm:$0xf]
  %v119 = vld [vmem:[%s43 + $0x104] sm:$0xf]
  %v120 = vld [vmem:[%s43 + $0x108] sm:$0xf]
  %v121 = vld [vmem:[%s43 + $0x10c] sm:$0xf]
  %v122 = vld [vmem:[%s43 + $0x110] sm:$0xf]
  %v123 = vld [vmem:[%s43 + $0x114] sm:$0xf]
  %v124 = vld [vmem:[%s43 + $0x118] sm:$0xf]
  %v125 = vld [vmem:[%s43 + $0x11c] sm:$0xf]
  %v126 = vld [vmem:[%s43 + $0x120] sm:$0xf]
  %v127 = vld [vmem:[%s43 + $0x124] sm:$0xf]
  %v128 = vld [vmem:[%s43 + $0x128] sm:$0xf]
  %v129 = vld [vmem:[%s43 + $0x12c] sm:$0xf]
  %v130 = vld [vmem:[%s43 + $0x130] sm:$0xf]
  %v131 = vld [vmem:[%s43 + $0x134] sm:$0xf]
  %v132 = vld [vmem:[%s43 + $0x138] sm:$0xf]
  %v133 = vld [vmem:[%s43 + $0x13c] sm:$0xf]
  %v134 = vld [vmem:[%s48] sm:$0x1]
  %v136 = vlaneseq
  %v137 = vshrl.u32 %v136, 7
  %v138 = vsub.s32 0, %v137
  %v139 = vrot.slane %v134, %v138
  %v144 = vunpack.c.l.b16 %v51
  %v145 = vunpack.c.h.b16 %v51
  %v146 = vunpack.c.l.b16 %v52
  %v147 = vunpack.c.h.b16 %v52
  %v148 = vunpack.c.l.b16 %v53
  %v149 = vpack.c.b16 %v144, %v144
  %v150 = vpack.c.b16 %v145, %v145
  %v151 = vpack.c.b16 %v146, %v146
  %v152 = vpack.c.b16 %v147, %v147
  %v153 = vpack.c.b16 %v148, %v148
  %v239 = vunpack.c.l.b16 %v54
  %v240 = vunpack.c.l.b16 %v55
  %v241 = vunpack.c.l.b16 %v56
  %v242 = vunpack.c.l.b16 %v57
  %v243 = vunpack.c.l.b16 %v58
  %v244 = vunpack.c.l.b16 %v59
  %v245 = vunpack.c.l.b16 %v60
  %v246 = vunpack.c.l.b16 %v61
  %v247 = vunpack.c.l.b16 %v62
  %v248 = vunpack.c.l.b16 %v63
  %v249 = vunpack.c.l.b16 %v64
  %v250 = vunpack.c.l.b16 %v65
  %v251 = vunpack.c.l.b16 %v66
  %v252 = vunpack.c.l.b16 %v67
  %v253 = vunpack.c.l.b16 %v68
  %v254 = vunpack.c.l.b16 %v69
  %v255 = vunpack.c.l.b16 %v70
  %v256 = vunpack.c.l.b16 %v71
  %v257 = vunpack.c.l.b16 %v72
  %v258 = vunpack.c.l.b16 %v73
  %v259 = vunpack.c.l.b16 %v74
  %v260 = vunpack.c.l.b16 %v75
  %v261 = vunpack.c.l.b16 %v76
  %v262 = vunpack.c.l.b16 %v77
  %v263 = vunpack.c.l.b16 %v78
  %v264 = vunpack.c.l.b16 %v79
  %v265 = vunpack.c.l.b16 %v80
  %v266 = vunpack.c.l.b16 %v81
  %v267 = vunpack.c.l.b16 %v82
  %v268 = vunpack.c.l.b16 %v83
  %v269 = vunpack.c.l.b16 %v84
  %v270 = vunpack.c.l.b16 %v85
  %v271 = vunpack.c.l.b16 %v86
  %v272 = vunpack.c.l.b16 %v87
  %v273 = vunpack.c.l.b16 %v88
  %v274 = vunpack.c.l.b16 %v89
  %v275 = vunpack.c.l.b16 %v90
  %v276 = vunpack.c.l.b16 %v91
  %v277 = vunpack.c.l.b16 %v92
  %v278 = vunpack.c.l.b16 %v93
  %v279 = vunpack.c.l.b16 %v94
  %v280 = vunpack.c.l.b16 %v95
  %v281 = vunpack.c.l.b16 %v96
  %v282 = vunpack.c.l.b16 %v97
  %v283 = vunpack.c.l.b16 %v98
  %v284 = vunpack.c.l.b16 %v99
  %v285 = vunpack.c.l.b16 %v100
  %v286 = vunpack.c.l.b16 %v101
  %v287 = vunpack.c.l.b16 %v102
  %v288 = vunpack.c.l.b16 %v103
  %v289 = vunpack.c.l.b16 %v104
  %v290 = vunpack.c.l.b16 %v105
  %v291 = vunpack.c.l.b16 %v106
  %v292 = vunpack.c.l.b16 %v107
  %v293 = vunpack.c.l.b16 %v108
  %v294 = vunpack.c.l.b16 %v109
  %v295 = vunpack.c.l.b16 %v110
  %v296 = vunpack.c.l.b16 %v111
  %v297 = vunpack.c.l.b16 %v112
  %v298 = vunpack.c.l.b16 %v113
  %v299 = vunpack.c.l.b16 %v114
  %v300 = vunpack.c.l.b16 %v115
  %v301 = vunpack.c.l.b16 %v116
  %v302 = vunpack.c.l.b16 %v117
  %v303 = vunpack.c.l.b16 %v118
  %v304 = vunpack.c.l.b16 %v119
  %v305 = vunpack.c.l.b16 %v120
  %v306 = vunpack.c.l.b16 %v121
  %v307 = vunpack.c.l.b16 %v122
  %v308 = vunpack.c.l.b16 %v123
  %v309 = vunpack.c.l.b16 %v124
  %v310 = vunpack.c.l.b16 %v125
  %v311 = vunpack.c.l.b16 %v126
  %v312 = vunpack.c.l.b16 %v127
  %v313 = vunpack.c.l.b16 %v128
  %v314 = vunpack.c.l.b16 %v129
  %v315 = vunpack.c.l.b16 %v130
  %v316 = vunpack.c.l.b16 %v131
  %v317 = vunpack.c.l.b16 %v132
  %v318 = vunpack.c.l.b16 %v133
  %v319 = vpack.c.b16 %v240, %v239
  %v320 = vpack.c.b16 %v242, %v241
  %v321 = vpack.c.b16 %v244, %v243
  %v322 = vpack.c.b16 %v246, %v245
  %v323 = vpack.c.b16 %v248, %v247
  %v324 = vpack.c.b16 %v250, %v249
  %v325 = vpack.c.b16 %v252, %v251
  %v326 = vpack.c.b16 %v254, %v253
  %v327 = vpack.c.b16 %v256, %v255
  %v328 = vpack.c.b16 %v258, %v257
  %v329 = vpack.c.b16 %v260, %v259
  %v330 = vpack.c.b16 %v262, %v261
  %v331 = vpack.c.b16 %v264, %v263
  %v332 = vpack.c.b16 %v266, %v265
  %v333 = vpack.c.b16 %v268, %v267
  %v334 = vpack.c.b16 %v270, %v269
  %v335 = vpack.c.b16 %v272, %v271
  %v336 = vpack.c.b16 %v274, %v273
  %v337 = vpack.c.b16 %v276, %v275
  %v338 = vpack.c.b16 %v278, %v277
  %v339 = vpack.c.b16 %v280, %v279
  %v340 = vpack.c.b16 %v282, %v281
  %v341 = vpack.c.b16 %v284, %v283
  %v342 = vpack.c.b16 %v286, %v285
  %v343 = vpack.c.b16 %v288, %v287
  %v344 = vpack.c.b16 %v290, %v289
  %v345 = vpack.c.b16 %v292, %v291
  %v346 = vpack.c.b16 %v294, %v293
  %v347 = vpack.c.b16 %v296, %v295
  %v348 = vpack.c.b16 %v298, %v297
  %v349 = vpack.c.b16 %v300, %v299
  %v350 = vpack.c.b16 %v302, %v301
  %v351 = vpack.c.b16 %v304, %v303
  %v352 = vpack.c.b16 %v306, %v305
  %v353 = vpack.c.b16 %v308, %v307
  %v354 = vpack.c.b16 %v310, %v309
  %v355 = vpack.c.b16 %v312, %v311
  %v356 = vpack.c.b16 %v314, %v313
  %v357 = vpack.c.b16 %v316, %v315
  %v358 = vpack.c.b16 %v318, %v317
  %399 = vmatprep.subr.bf16.mxu0 0
  %400 = vmatpush1.bf16.msra.mxu0 %v319
  %401 = vmatprep.subr.bf16.mxu0 0
  %402 = vmatpush1.bf16.msra.mxu0 %v320
  %403 = vmatprep.subr.bf16.mxu0 0
  %404 = vmatpush1.bf16.msra.mxu0 %v321
  %405 = vmatprep.subr.bf16.mxu0 0
  %406 = vmatpush1.bf16.msra.mxu0 %v322
  %407 = vmatprep.subr.bf16.mxu0 0
  %408 = vmatpush1.bf16.msra.mxu0 %v323
  %409 = vmatprep.subr.bf16.mxu0 0
  %410 = vmatpush1.bf16.msra.mxu0 %v324
  %411 = vmatprep.subr.bf16.mxu0 0
  %412 = vmatpush1.bf16.msra.mxu0 %v325
  %413 = vmatprep.subr.bf16.mxu0 0
  %414 = vmatpush1.bf16.msra.mxu0 %v326
  %415 = vmatprep.subr.bf16.mxu0 0
  %416 = vmatpush1.bf16.msra.mxu0 %v327
  %417 = vmatprep.subr.bf16.mxu0 0
  %418 = vmatpush1.bf16.msra.mxu0 %v328
  %419 = vmatprep.subr.bf16.mxu0 0
  %420 = vmatpush1.bf16.msra.mxu0 %v329
  %421 = vmatprep.subr.bf16.mxu0 0
  %422 = vmatpush1.bf16.msra.mxu0 %v330
  %423 = vmatprep.subr.bf16.mxu0 0
  %424 = vmatpush1.bf16.msra.mxu0 %v331
  %425 = vmatprep.subr.bf16.mxu0 0
  %426 = vmatpush1.bf16.msra.mxu0 %v332
  %427 = vmatprep.subr.bf16.mxu0 0
  %428 = vmatpush1.bf16.msra.mxu0 %v333
  %429 = vmatprep.subr.bf16.mxu0 0
  %430 = vmatpush1.bf16.msra.mxu0 %v334
  %431 = vmatprep.mubr.bf16.mxu0 %v150
  %432 = vmatmul.mubr.bf16.gmra.mrb[0].mxu0 %v149
  %v433 = vpop.f32.mrb[0].mxu0
  %v434 = vadd.f32 %v139, %v433
  %v435 = vpop.f32.mrb[0].mxu0
  %v436 = vpop.f32.mrb[0].mxu0
  %v437 = vpop.f32.mrb[0].mxu0
  %438 = vdwg.mxu0
  %439 = vmatprep.subr.bf16.mxu0 0
  %440 = vmatpush1.bf16.msra.mxu0 %v335
  %441 = vmatprep.subr.bf16.mxu0 0
  %442 = vmatpush1.bf16.msra.mxu0 %v336
  %443 = vmatprep.subr.bf16.mxu0 0
  %444 = vmatpush1.bf16.msra.mxu0 %v337
  %445 = vmatprep.subr.bf16.mxu0 0
  %446 = vmatpush1.bf16.msra.mxu0 %v338
  %447 = vmatprep.subr.bf16.mxu0 0
  %448 = vmatpush1.bf16.msra.mxu0 %v339
  %449 = vmatprep.subr.bf16.mxu0 0
  %450 = vmatpush1.bf16.msra.mxu0 %v340
  %451 = vmatprep.subr.bf16.mxu0 0
  %452 = vmatpush1.bf16.msra.mxu0 %v341
  %453 = vmatprep.subr.bf16.mxu0 0
  %454 = vmatpush1.bf16.msra.mxu0 %v342
  %455 = vmatprep.subr.bf16.mxu0 0
  %456 = vmatpush1.bf16.msra.mxu0 %v343
  %457 = vmatprep.subr.bf16.mxu0 0
  %458 = vmatpush1.bf16.msra.mxu0 %v344
  %459 = vmatprep.subr.bf16.mxu0 0
  %460 = vmatpush1.bf16.msra.mxu0 %v345
  %461 = vmatprep.subr.bf16.mxu0 0
  %462 = vmatpush1.bf16.msra.mxu0 %v346
  %463 = vmatprep.subr.bf16.mxu0 0
  %464 = vmatpush1.bf16.msra.mxu0 %v347
  %465 = vmatprep.subr.bf16.mxu0 0
  %466 = vmatpush1.bf16.msra.mxu0 %v348
  %467 = vmatprep.subr.bf16.mxu0 0
  %468 = vmatpush1.bf16.msra.mxu0 %v349
  %469 = vmatprep.subr.bf16.mxu0 0
  %470 = vmatpush1.bf16.msra.mxu0 %v350
  %471 = vmatprep.mubr.bf16.mxu0 %v152
  %472 = vmatmul.mubr.bf16.gmra.mrb[0].mxu0 %v151
  %v473 = vpop.f32.mrb[0].mxu0
  %v474 = vadd.f32 %v434, %v473
  %v475 = vpop.f32.mrb[0].mxu0
  %v476 = vpop.f32.mrb[0].mxu0
  %v477 = vpop.f32.mrb[0].mxu0
  %478 = vdwg.mxu0
  %479 = vmatprep.subr.bf16.mxu0 0
  %480 = vmatpush1.bf16.msra.mxu0 %v351
  %481 = vmatprep.subr.bf16.mxu0 0
  %482 = vmatpush1.bf16.msra.mxu0 %v352
  %483 = vmatprep.subr.bf16.mxu0 0
  %484 = vmatpush1.bf16.msra.mxu0 %v353
  %485 = vmatprep.subr.bf16.mxu0 0
  %486 = vmatpush1.bf16.msra.mxu0 %v354
  %487 = vmatprep.subr.bf16.mxu0 0
  %488 = vmatpush1.bf16.msra.mxu0 %v355
  %489 = vmatprep.subr.bf16.mxu0 0
  %490 = vmatpush1.bf16.msra.mxu0 %v356
  %491 = vmatprep.subr.bf16.mxu0 0
  %492 = vmatpush1.bf16.msra.mxu0 %v357
  %493 = vmatprep.subr.bf16.mxu0 0
  %494 = vmatpush1.bf16.msra.mxu0 %v358
  %495 = vmatprep.subr.bf16.mxu0 0
  %496 = vmatpush1.bf16.msra.mxu0 0
  %497 = vmatprep.subr.bf16.mxu0 0
  %498 = vmatpush1.bf16.msra.mxu0 0
  %499 = vmatprep.subr.bf16.mxu0 0
  %500 = vmatpush1.bf16.msra.mxu0 0
  %501 = vmatprep.subr.bf16.mxu0 0
  %502 = vmatpush1.bf16.msra.mxu0 0
  %503 = vmatprep.subr.bf16.mxu0 0
  %504 = vmatpush1.bf16.msra.mxu0 0
  %505 = vmatprep.subr.bf16.mxu0 0
  %506 = vmatpush1.bf16.msra.mxu0 0
  %507 = vmatprep.subr.bf16.mxu0 0
  %508 = vmatpush1.bf16.msra.mxu0 0
  %509 = vmatprep.subr.bf16.mxu0 0
  %510 = vmatpush1.bf16.msra.mxu0 0
  %511 = vmatprep.mubr.bf16.mxu0 0
  %512 = vmatmul.mubr.bf16.gmra.mrb[0].mxu0 %v153
  %v513 = vpop.f32.mrb[0].mxu0
  %v514 = vadd.f32 %v474, %v513
  %v515 = vpop.f32.mrb[0].mxu0
  %v516 = vpop.f32.mrb[0].mxu0
  %v517 = vpop.f32.mrb[0].mxu0
  %518 = vdwg.mxu0
  %v519 = vmax.f32 %v514, 0.0
  %v520 = vpack.c.bf16 %v519, %v519
  %521 = vst [vmem:[%s4] sm:$0xf] %v520
  // Predicated region
  $region14: #{ade20k_segmenter_forward.13} parent=0 // pred_check
    _
  $region15: #{ade20k_segmenter_forward.13} parent=0 // pred_check_branch
    %523 = sbr.rel (0) target = $region17
  $region16: #{ade20k_segmenter_forward.13} parent=0 // pred_region
    _
  $region17: #{ade20k_segmenter_forward.13} parent=0 // pred_fallthru
    _
  // Predicated region
  $region18: #{ade20k_segmenter_forward.13} parent=0 // pred_check
    _
  $region19: #{ade20k_segmenter_forward.13} parent=0 // pred_check_branch
    %525 = sbr.rel (0) target = $region21
  $region20: #{ade20k_segmenter_forward.13} parent=0 // pred_region
    _
  $region21: #{ade20k_segmenter_forward.13} parent=0 // pred_fallthru
    _

// kernel: ade20k_segmenter_forward.14
$region0: #{ade20k_segmenter_forward.14}
  #allocation0 [shape = 'u32[]', space=smem, size = 0x4, offset = 0x4, fixed_abs, tag = 'smem constant byte address 0x4 - core index']
  #allocation1 [shape = 'u32[144,128]{1,0:T(1,128)}', space=vmem, size = 0x12000, scoped, tag = 'internal scratch']
  #allocation2 [shape = 's32[1]{0}', space=sflag, size = 0x4, scoped, tag = 'scoped memory for ade20k_segmenter_forward.14']
  #allocation3 [shape = 'u8[512]{0}', space=smem, size = 0x200, scoped, tag = 'prefetched SMEM operand 0']
  %s0 = inlined_call_operand.vmem [shape: s32[4], index: 0, kind: input, shape index: {}]
  %s1 = inlined_call_operand.vmem [shape: bf16[512,128], index: 1, kind: input, shape index: {}]
  %s2 = inlined_call_operand.vmem [shape: bf16[4,128,128], index: 2, kind: input, shape index: {}]
  %s3 = inlined_call_operand.vmem [shape: f32[4,1,128], index: 3, kind: input, shape index: {}]
  %s4 = inlined_call_operand.vmem [shape: bf16[512,128], index: 4, kind: output, shape index: {}]
  %s5 = sld [smem:[#allocation0]]
  $region45: #{ade20k_segmenter_forward.14} parent=0
    _
  %s7 = ssub.s32 1, %s5
  %s8 = scalar_select 0, %s7, %s5
  %s9 = sshll.u32 %s0, 4
  %s10 = int_to_ptr.vmem [resolvable:$true] %s9
  %12 = dma.vmem_to_smem %s10, 16, [#allocation3], [#allocation2]
  %13 = dma.done [#allocation2], 16
  %14 = sfence
  loop: start=0, step=1, limit=6
  $region2: #{ade20k_segmenter_forward.14} parent=0 // loop_pre_header
    _
  $region3: #{ade20k_segmenter_forward.14} parent=0 // loop_header
    %s16 = sphi 0, %s20
    %p17 = scmp.ge.s32.totalorder %s16, 6
    %s26 = sphi 0, %s28
    %s29 = sphi 0, %s26
    %s30 = sphi 0, %s29
    %s46 = sphi 0, %s30
    %s54 = sphi 0, %s56
    %s57 = sphi 0, %s54
    %s58 = sphi 0, %s57
    %s74 = sphi 0, %s58
    %s82 = sphi 0, %s84
    %s85 = sphi 0, %s82
    %s86 = sphi 0, %s85
    %s102 = sphi 0, %s86
    %s108 = sphi 0, %s110
    %s111 = sphi 0, %s108
    %s112 = sphi 0, %s111
    %s128 = sphi 0, %s112
  $region4: #{ade20k_segmenter_forward.14} parent=0 // loop_header_branch
    %19 = sbr.rel (%p17) target = $region8
  $region5: #{ade20k_segmenter_forward.14} parent=0 // loop_body
    %s21 = ssub.s32 %s16, 1
    %s22 = ssub.s32 %s16, 2
    %s23 = sadd.s32 %s16, 1
    %s24 = ssub.s32 %s16, %s23
    %p25 = scmp.eq.s32.totalorder %s24, 0
    %s27 = sadd.s32 %s26, 1
    %s28 = scalar_select %p25, %s26, %s27
    %p31 = pneg %p25
    %p32 = scmp.eq.s32.totalorder %s16, 3
    %p33 = por %p31, %p32
    %p34 = scmp.ne.s32.totalorder %s26, %s29
    %p35 = scmp.eq.s32.totalorder %s16, 0
    %p36 = por %p34, %p35
    %p37 = scmp.ne.s32.totalorder %s26, %s29
    %p38 = scmp.eq.s32.totalorder %s21, 3
    %p39 = por %p37, %p38
    %p40 = scmp.ne.s32.totalorder %s29, %s30
    %p41 = scmp.eq.s32.totalorder %s21, 0
    %p42 = por %p40, %p41
    %p43 = scmp.ne.s32.totalorder %s29, %s30
    %p44 = scmp.eq.s32.totalorder %s22, 3
    %p45 = por %p43, %p44
    %p47 = scmp.ne.s32.totalorder %s30, %s46
    %p48 = scmp.eq.s32.totalorder %s22, 0
    %p49 = por %p47, %p48
    %s50 = sld [smem:[#allocation3 + %s16]]
    %s51 = sld [smem:[#allocation3 + %s23]]
    %s52 = ssub.s32 %s50, %s51
    %p53 = scmp.eq.s32.totalorder %s52, 0
    %s55 = sadd.s32 %s54, 1
    %s56 = scalar_select %p53, %s54, %s55
    %p59 = pneg %p53
    %p60 = scmp.eq.s32.totalorder %s16, 3
    %p61 = por %p59, %p60
    %p62 = scmp.ne.s32.totalorder %s54, %s57
    %p63 = scmp.eq.s32.totalorder %s16, 0
    %p64 = por %p62, %p63
    %p65 = scmp.ne.s32.totalorder %s54, %s57
    %p66 = scmp.eq.s32.totalorder %s21, 3
    %p67 = por %p65, %p66
    %p68 = scmp.ne.s32.totalorder %s57, %s58
    %p69 = scmp.eq.s32.totalorder %s21, 0
    %p70 = por %p68, %p69
    %p71 = scmp.ne.s32.totalorder %s57, %s58
    %p72 = scmp.eq.s32.totalorder %s22, 3
    %p73 = por %p71, %p72
    %p75 = scmp.ne.s32.totalorder %s58, %s74
    %p76 = scmp.eq.s32.totalorder %s22, 0
    %p77 = por %p75, %p76
    %s78 = sld [smem:[#allocation3 + %s16]]
    %s79 = sld [smem:[#allocation3 + %s23]]
    %s80 = ssub.s32 %s78, %s79
    %p81 = scmp.eq.s32.totalorder %s80, 0
    %s83 = sadd.s32 %s82, 1
    %s84 = scalar_select %p81, %s82, %s83
    %p87 = pneg %p81
    %p88 = scmp.eq.s32.totalorder %s16, 3
    %p89 = por %p87, %p88
    %p90 = scmp.ne.s32.totalorder %s82, %s85
    %p91 = scmp.eq.s32.totalorder %s16, 0
    %p92 = por %p90, %p91
    %p93 = scmp.ne.s32.totalorder %s82, %s85
    %p94 = scmp.eq.s32.totalorder %s21, 3
    %p95 = por %p93, %p94
    %p96 = scmp.ne.s32.totalorder %s85, %s86
    %p97 = scmp.eq.s32.totalorder %s21, 0
    %p98 = por %p96, %p97
    %p99 = scmp.ne.s32.totalorder %s85, %s86
    %p100 = scmp.eq.s32.totalorder %s22, 3
    %p101 = por %p99, %p100
    %p103 = scmp.ne.s32.totalorder %s86, %s102
    %p104 = scmp.eq.s32.totalorder %s22, 0
    %p105 = por %p103, %p104
    %s106 = ssub.s32 %s16, %s23
    %p107 = scmp.eq.s32.totalorder %s106, 0
    %s109 = sadd.s32 %s108, 1
    %s110 = scalar_select %p107, %s108, %s109
    %p113 = pneg %p107
    %p114 = scmp.eq.s32.totalorder %s16, 3
    %p115 = por %p113, %p114
    %p116 = scmp.ne.s32.totalorder %s108, %s111
    %p117 = scmp.eq.s32.totalorder %s16, 0
    %p118 = por %p116, %p117
    %p119 = scmp.ne.s32.totalorder %s108, %s111
    %p120 = scmp.eq.s32.totalorder %s21, 3
    %p121 = por %p119, %p120
    %p122 = scmp.ne.s32.totalorder %s111, %s112
    %p123 = scmp.eq.s32.totalorder %s21, 0
    %p124 = por %p122, %p123
    %p125 = scmp.ne.s32.totalorder %s111, %s112
    %p126 = scmp.eq.s32.totalorder %s22, 3
    %p127 = por %p125, %p126
    %p129 = scmp.ne.s32.totalorder %s112, %s128
    %p130 = scmp.eq.s32.totalorder %s22, 0
    %p131 = por %p129, %p130
    %p132 = scmp.le.s32.totalorder 1, %s16
    %p133 = scmp.lt.s32.totalorder %s16, 5
    %p134 = pnand %p132, %p133
    %p135 = pneg %p134
    // Predicated region
    $region9: #{ade20k_segmenter_forward.14} parent=5 // pred_check
      _
    $region10: #{ade20k_segmenter_forward.14} parent=5 // pred_check_branch
      %137 = sbr.rel (%p134) target = $region12
    $region11: #{ade20k_segmenter_forward.14} parent=5 // pred_region
      %s138 = ssub.s32 %s16, 1
    $region12: #{ade20k_segmenter_forward.14} parent=5 // pred_fallthru
      _
    %p139 = scmp.lt.s32.totalorder %s16, 4
    // Predicated region
    $region13: #{ade20k_segmenter_forward.14} parent=5 // pred_check
      %p140 = pneg %p139
    $region14: #{ade20k_segmenter_forward.14} parent=5 // pred_check_branch
      %142 = sbr.rel (%p140) target = $region16
    $region15: #{ade20k_segmenter_forward.14} parent=5 // pred_region
      // Predicated region
      $region17: #{ade20k_segmenter_forward.14} parent=15 // pred_check
        %p143 = pneg %p36
      $region18: #{ade20k_segmenter_forward.14} parent=15 // pred_check_branch
        %145 = sbr.rel (%p143) target = $region20
      $region19: #{ade20k_segmenter_forward.14} parent=15 // pred_region
        %s146 = smul.u32 16, %s16
        %p147 = scmp.lt.s32.totalorder %s146, 63
        %s148 = scalar_select %p147, %s146, 63
        %s149 = smul.addr %s148, 4
        %s150 = scalar_lea.vmem %s1, %s149
        %s151 = smul.u32 16, %s16
      $region20: #{ade20k_segmenter_forward.14} parent=15 // pred_fallthru
        _
      // Predicated region
      $region21: #{ade20k_segmenter_forward.14} parent=15 // pred_check
        %p152 = pneg %p64
      $region22: #{ade20k_segmenter_forward.14} parent=15 // pred_check_branch
        %154 = sbr.rel (%p152) target = $region24
      $region23: #{ade20k_segmenter_forward.14} parent=15 // pred_region
        %s155 = sld [smem:[#allocation3 + %s16]]
        %p156 = scmp.lt.s32.totalorder %s155, 3
        %s157 = scalar_select %p156, %s155, 3
        %s158 = smul.addr %s157, 16
        %s159 = smul.addr %s158, 4
        %s160 = scalar_lea.vmem %s2, %s159
        %s161 = sld [smem:[#allocation3 + %s16]]
      $region24: #{ade20k_segmenter_forward.14} parent=15 // pred_fallthru
        _
      // Predicated region
      $region25: #{ade20k_segmenter_forward.14} parent=15 // pred_check
        %p162 = pneg %p92
      $region26: #{ade20k_segmenter_forward.14} parent=15 // pred_check_branch
        %164 = sbr.rel (%p162) target = $region28
      $region27: #{ade20k_segmenter_forward.14} parent=15 // pred_region
        %s165 = sld [smem:[#allocation3 + %s16]]
        %p166 = scmp.lt.s32.totalorder %s165, 3
        %s167 = scalar_select %p166, %s165, 3
        %s168 = scalar_lea.vmem %s3, %s167
        %s169 = sld [smem:[#allocation3 + %s16]]
      $region28: #{ade20k_segmenter_forward.14} parent=15 // pred_fallthru
        _
    $region16: #{ade20k_segmenter_forward.14} parent=5 // pred_fallthru
      _
    %p170 = scmp.le.s32.totalorder 1, %s16
    %p171 = scmp.lt.s32.totalorder %s16, 5
    %p172 = pnand %p170, %p171
    %p173 = pneg %p172
    // Predicated region
    $region29: #{ade20k_segmenter_forward.14} parent=5 // pred_check
      _
    $region30: #{ade20k_segmenter_forward.14} parent=5 // pred_check_branch
      %175 = sbr.rel (%p172) target = $region32
    $region31: #{ade20k_segmenter_forward.14} parent=5 // pred_region
      %s176 = ssub.s32 %s16, 1
      %s177 = smul.u32 16, %s21
      %p178 = scmp.lt.s32.totalorder %s177, 63
      %s179 = scalar_select %p178, %s177, 63
      %s180 = smul.addr %s179, 4
      %s181 = scalar_lea.vmem %s1, %s180
      %p182 = pneg %p42
      %p183 = pneg %p39
      %s184 = sld [smem:[#allocation3 + %s21]]
      %p185 = scmp.lt.s32.totalorder %s184, 3
      %s186 = scalar_select %p185, %s184, 3
      %s187 = smul.addr %s186, 16
      %s188 = smul.addr %s187, 4
      %s189 = scalar_lea.vmem %s2, %s188
      %p190 = pneg %p70
      %p191 = pneg %p67
      %s192 = sld [smem:[#allocation3 + %s21]]
      %p193 = scmp.lt.s32.totalorder %s192, 3
      %s194 = scalar_select %p193, %s192, 3
      %s195 = scalar_lea.vmem %s3, %s194
      %p196 = pneg %p98
      %p197 = pneg %p95
      %p198 = pneg %p124
      %p199 = pneg %p121
      %s200 = smul.u32 16, %s21
      %p201 = scmp.lt.s32.totalorder %s200, 63
      %s202 = scalar_select %p201, %s200, 63
      %s203 = smul.addr %s202, 4
      %s204 = scalar_lea.vmem %s4, %s203
      %s205 = smul.u32 16, %s21
      %p206 = scmp.lt.s32.totalorder %s205, 63
      %s207 = scalar_select %p206, %s205, 63
      %s208 = smul.addr %s207, 4
      %s209 = scalar_lea.vmem %s1, %s208
      %s210 = smul.u32 16, %s21
      %s211 = sld [smem:[#allocation3 + %s21]]
      %p212 = scmp.lt.s32.totalorder %s211, 3
      %s213 = scalar_select %p212, %s211, 3
      %s214 = smul.addr %s213, 16
      %s215 = smul.addr %s214, 4
      %s216 = scalar_lea.vmem %s2, %s215
      %s217 = sld [smem:[#allocation3 + %s21]]
      %s218 = sld [smem:[#allocation3 + %s21]]
      %p219 = scmp.lt.s32.totalorder %s218, 3
      %s220 = scalar_select %p219, %s218, 3
      %s221 = scalar_lea.vmem %s3, %s220
      %s222 = sld [smem:[#allocation3 + %s21]]
      %s223 = smul.u32 16, %s21
      %p224 = scmp.lt.s32.totalorder %s223, 63
      %s225 = scalar_select %p224, %s223, 63
      %s226 = smul.addr %s225, 4
      %s227 = scalar_lea.vmem %s4, %s226
      %s228 = smul.u32 16, %s21
      %v230 = vld [vmem:[%s209] sm:$0xf]
      %v231 = vld [vmem:[%s209 + $0x4] sm:$0xf]
      %v232 = vld [vmem:[%s209 + $0x8] sm:$0xf]
      %v233 = vld [vmem:[%s209 + $0xc] sm:$0xf]
      %v234 = vld [vmem:[%s209 + $0x10] sm:$0xf]
      %v235 = vld [vmem:[%s209 + $0x14] sm:$0xf]
      %v236 = vld [vmem:[%s209 + $0x18] sm:$0xf]
      %v237 = vld [vmem:[%s209 + $0x1c] sm:$0xf]
      %v238 = vld [vmem:[%s209 + $0x20] sm:$0xf]
      %v239 = vld [vmem:[%s209 + $0x24] sm:$0xf]
      %v240 = vld [vmem:[%s209 + $0x28] sm:$0xf]
      %v241 = vld [vmem:[%s209 + $0x2c] sm:$0xf]
      %v242 = vld [vmem:[%s209 + $0x30] sm:$0xf]
      %v243 = vld [vmem:[%s209 + $0x34] sm:$0xf]
      %v244 = vld [vmem:[%s209 + $0x38] sm:$0xf]
      %v245 = vld [vmem:[%s209 + $0x3c] sm:$0xf]
      %v246 = vld [vmem:[%s216] sm:$0xf]
      %v247 = vld [vmem:[%s216 + $0x4] sm:$0xf]
      %v248 = vld [vmem:[%s216 + $0x8] sm:$0xf]
      %v249 = vld [vmem:[%s216 + $0xc] sm:$0xf]
      %v250 = vld [vmem:[%s216 + $0x10] sm:$0xf]
      %v251 = vld [vmem:[%s216 + $0x14] sm:$0xf]
      %v252 = vld [vmem:[%s216 + $0x18] sm:$0xf]
      %v253 = vld [vmem:[%s216 + $0x1c] sm:$0xf]
      %v254 = vld [vmem:[%s216 + $0x20] sm:$0xf]
      %v255 = vld [vmem:[%s216 + $0x24] sm:$0xf]
      %v256 = vld [vmem:[%s216 + $0x28] sm:$0xf]
      %v257 = vld [vmem:[%s216 + $0x2c] sm:$0xf]
      %v258 = vld [vmem:[%s216 + $0x30] sm:$0xf]
      %v259 = vld [vmem:[%s216 + $0x34] sm:$0xf]
      %v260 = vld [vmem:[%s216 + $0x38] sm:$0xf]
      %v261 = vld [vmem:[%s216 + $0x3c] sm:$0xf]
      %v262 = vld [vmem:[%s221] sm:$0x1]
      %v264 = vlaneseq
      %v265 = vshrl.u32 %v264, 7
      %v266 = vsub.s32 0, %v265
      %v267 = vrot.slane %v262, %v266
      %v285 = vunpack.c.l.b16 %v230
      %v286 = vunpack.c.l.b16 %v231
      %v287 = vunpack.c.l.b16 %v232
      %v288 = vunpack.c.l.b16 %v233
      %v289 = vunpack.c.l.b16 %v234
      %v290 = vunpack.c.l.b16 %v235
      %v291 = vunpack.c.l.b16 %v236
      %v292 = vunpack.c.l.b16 %v237
      %v293 = vunpack.c.l.b16 %v238
      %v294 = vunpack.c.l.b16 %v239
      %v295 = vunpack.c.l.b16 %v240
      %v296 = vunpack.c.l.b16 %v241
      %v297 = vunpack.c.l.b16 %v242
      %v298 = vunpack.c.l.b16 %v243
      %v299 = vunpack.c.l.b16 %v244
      %v300 = vunpack.c.l.b16 %v245
      %v301 = vpack.c.b16 %v286, %v285
      %v302 = vpack.c.b16 %v288, %v287
      %v303 = vpack.c.b16 %v290, %v289
      %v304 = vpack.c.b16 %v292, %v291
      %v305 = vpack.c.b16 %v294, %v293
      %v306 = vpack.c.b16 %v296, %v295
      %v307 = vpack.c.b16 %v298, %v297
      %v308 = vpack.c.b16 %v300, %v299
      %v333 = vunpack.c.l.b16 %v246
      %v334 = vunpack.c.l.b16 %v247
      %v335 = vunpack.c.l.b16 %v248
      %v336 = vunpack.c.l.b16 %v249
      %v337 = vunpack.c.l.b16 %v250
      %v338 = vunpack.c.l.b16 %v251
      %v339 = vunpack.c.l.b16 %v252
      %v340 = vunpack.c.l.b16 %v253
      %v341 = vunpack.c.l.b16 %v254
      %v342 = vunpack.c.l.b16 %v255
      %v343 = vunpack.c.l.b16 %v256
      %v344 = vunpack.c.l.b16 %v257
      %v345 = vunpack.c.l.b16 %v258
      %v346 = vunpack.c.l.b16 %v259
      %v347 = vunpack.c.l.b16 %v260
      %v348 = vunpack.c.l.b16 %v261
      %v349 = vpack.c.b16 %v334, %v333
      %v350 = vpack.c.b16 %v336, %v335
      %v351 = vpack.c.b16 %v338, %v337
      %v352 = vpack.c.b16 %v340, %v339
      %v353 = vpack.c.b16 %v342, %v341
      %v354 = vpack.c.b16 %v344, %v343
      %v355 = vpack.c.b16 %v346, %v345
      %v356 = vpack.c.b16 %v348, %v347
      %365 = vmatprep.subr.bf16.mxu0 0
      %366 = vmatpush1.bf16.msra.mxu0 %v349
      %367 = vmatprep.subr.bf16.mxu0 0
      %368 = vmatpush1.bf16.msra.mxu0 %v350
      %369 = vmatprep.subr.bf16.mxu0 0
      %370 = vmatpush1.bf16.msra.mxu0 %v351
      %371 = vmatprep.subr.bf16.mxu0 0
      %372 = vmatpush1.bf16.msra.mxu0 %v352
      %373 = vmatprep.subr.bf16.mxu0 0
      %374 = vmatpush1.bf16.msra.mxu0 %v353
      %375 = vmatprep.subr.bf16.mxu0 0
      %376 = vmatpush1.bf16.msra.mxu0 %v354
      %377 = vmatprep.subr.bf16.mxu0 0
      %378 = vmatpush1.bf16.msra.mxu0 %v355
      %379 = vmatprep.subr.bf16.mxu0 0
      %380 = vmatpush1.bf16.msra.mxu0 %v356
      %381 = vmatprep.subr.bf16.mxu0 0
      %382 = vmatpush1.bf16.msra.mxu0 0
      %383 = vmatprep.subr.bf16.mxu0 0
      %384 = vmatpush1.bf16.msra.mxu0 0
      %385 = vmatprep.subr.bf16.mxu0 0
      %386 = vmatpush1.bf16.msra.mxu0 0
      %387 = vmatprep.subr.bf16.mxu0 0
      %388 = vmatpush1.bf16.msra.mxu0 0
      %389 = vmatprep.subr.bf16.mxu0 0
      %390 = vmatpush1.bf16.msra.mxu0 0
      %391 = vmatprep.subr.bf16.mxu0 0
      %392 = vmatpush1.bf16.msra.mxu0 0
      %393 = vmatprep.subr.bf16.mxu0 0
      %394 = vmatpush1.bf16.msra.mxu0 0
      %395 = vmatprep.subr.bf16.mxu0 0
      %396 = vmatpush1.bf16.msra.mxu0 0
      %397 = vmatprep.mubr.bf16.mxu0 0
      %398 = vmatmul.mubr.bf16.gmra.mrb[0].mxu0 %v301
      %v399 = vpop.f32.mrb[0].mxu0
      %v400 = vadd.f32 %v267, %v399
      %v401 = vpop.f32.mrb[0].mxu0
      %v402 = vpop.f32.mrb[0].mxu0
      %v403 = vadd.f32 %v267, %v402
      %v404 = vpop.f32.mrb[0].mxu0
      %405 = vmatprep.mubr.bf16.mxu0 0
      %406 = vmatmul.mubr.bf16.gmra.mrb[0].mxu0 %v302
      %v407 = vpop.f32.mrb[0].mxu0
      %v408 = vadd.f32 %v267, %v407
      %v409 = vpop.f32.mrb[0].mxu0
      %v410 = vpop.f32.mrb[0].mxu0
      %v411 = vadd.f32 %v267, %v410
      %v412 = vpop.f32.mrb[0].mxu0
      %413 = vmatprep.mubr.bf16.mxu0 0
      %414 = vmatmul.mubr.bf16.gmra.mrb[0].mxu0 %v303
      %v415 = vpop.f32.mrb[0].mxu0
      %v416 = vadd.f32 %v267, %v415
      %v417 = vpop.f32.mrb[0].mxu0
      %v418 = vpop.f32.mrb[0].mxu0
      %v419 = vadd.f32 %v267, %v418
      %v420 = vpop.f32.mrb[0].mxu0
      %421 = vmatprep.mubr.bf16.mxu0 0
      %422 = vmatmul.mubr.bf16.gmra.mrb[0].mxu0 %v304
      %v423 = vpop.f32.mrb[0].mxu0
      %v424 = vadd.f32 %v267, %v423
      %v425 = vpop.f32.mrb[0].mxu0
      %v426 = vpop.f32.mrb[0].mxu0
      %v427 = vadd.f32 %v267, %v426
      %v428 = vpop.f32.mrb[0].mxu0
      %429 = vmatprep.mubr.bf16.mxu0 0
      %430 = vmatmul.mubr.bf16.gmra.mrb[0].mxu0 %v305
      %v431 = vpop.f32.mrb[0].mxu0
      %v432 = vadd.f32 %v267, %v431
      %v433 = vpop.f32.mrb[0].mxu0
      %v434 = vpop.f32.mrb[0].mxu0
      %v435 = vadd.f32 %v267, %v434
      %v436 = vpop.f32.mrb[0].mxu0
      %437 = vmatprep.mubr.bf16.mxu0 0
      %438 = vmatmul.mubr.bf16.gmra.mrb[0].mxu0 %v306
      %v439 = vpop.f32.mrb[0].mxu0
      %v440 = vadd.f32 %v267, %v439
      %v441 = vpop.f32.mrb[0].mxu0
      %v442 = vpop.f32.mrb[0].mxu0
      %v443 = vadd.f32 %v267, %v442
      %v444 = vpop.f32.mrb[0].mxu0
      %445 = vmatprep.mubr.bf16.mxu0 0
      %446 = vmatmul.mubr.bf16.gmra.mrb[0].mxu0 %v307
      %v447 = vpop.f32.mrb[0].mxu0
      %v448 = vadd.f32 %v267, %v447
      %v449 = vpop.f32.mrb[0].mxu0
      %v450 = vpop.f32.mrb[0].mxu0
      %v451 = vadd.f32 %v267, %v450
      %v452 = vpop.f32.mrb[0].mxu0
      %453 = vmatprep.mubr.bf16.mxu0 0
      %454 = vmatmul.mubr.bf16.gmra.mrb[0].mxu0 %v308
      %v455 = vpop.f32.mrb[0].mxu0
      %v456 = vadd.f32 %v267, %v455
      %v457 = vpop.f32.mrb[0].mxu0
      %v458 = vpop.f32.mrb[0].mxu0
      %v459 = vadd.f32 %v267, %v458
      %v460 = vpop.f32.mrb[0].mxu0
      %461 = vdwg.mxu0
      %v462 = vmax.f32 %v400, 0.0
      %v463 = vmax.f32 %v403, 0.0
      %v464 = vmax.f32 %v408, 0.0
      %v465 = vmax.f32 %v411, 0.0
      %v466 = vmax.f32 %v416, 0.0
      %v467 = vmax.f32 %v419, 0.0
      %v468 = vmax.f32 %v424, 0.0
      %v469 = vmax.f32 %v427, 0.0
      %v470 = vmax.f32 %v432, 0.0
      %v471 = vmax.f32 %v435, 0.0
      %v472 = vmax.f32 %v440, 0.0
      %v473 = vmax.f32 %v443, 0.0
      %v474 = vmax.f32 %v448, 0.0
      %v475 = vmax.f32 %v451, 0.0
      %v476 = vmax.f32 %v456, 0.0
      %v477 = vmax.f32 %v459, 0.0
      %v478 = vpack.c.bf16 %v463, %v462
      %v479 = vpack.c.bf16 %v465, %v464
      %v480 = vpack.c.bf16 %v467, %v466
      %v481 = vpack.c.bf16 %v469, %v468
      %v482 = vpack.c.bf16 %v471, %v470
      %v483 = vpack.c.bf16 %v473, %v472
      %v484 = vpack.c.bf16 %v475, %v474
      %v485 = vpack.c.bf16 %v477, %v476
      %v494 = vunpack.c.l.b16 %v478
      %v495 = vunpack.c.h.b16 %v478
      %v496 = vunpack.c.l.b16 %v479
      %v497 = vunpack.c.h.b16 %v479
      %v498 = vunpack.c.l.b16 %v480
      %v499 = vunpack.c.h.b16 %v480
      %v500 = vunpack.c.l.b16 %v481
      %v501 = vunpack.c.h.b16 %v481
      %v502 = vunpack.c.l.b16 %v482
      %v503 = vunpack.c.h.b16 %v482
      %v504 = vunpack.c.l.b16 %v483
      %v505 = vunpack.c.h.b16 %v483
      %v506 = vunpack.c.l.b16 %v484
      %v507 = vunpack.c.h.b16 %v484
      %v508 = vunpack.c.l.b16 %v485
      %v509 = vunpack.c.h.b16 %v485
      %v510 = vpack.c.b16 %v494, %v494
      %v511 = vpack.c.b16 %v495, %v495
      %v512 = vpack.c.b16 %v496, %v496
      %v513 = vpack.c.b16 %v497, %v497
      %v514 = vpack.c.b16 %v498, %v498
      %v515 = vpack.c.b16 %v499, %v499
      %v516 = vpack.c.b16 %v500, %v500
      %v517 = vpack.c.b16 %v501, %v501
      %v518 = vpack.c.b16 %v502, %v502
      %v519 = vpack.c.b16 %v503, %v503
      %v520 = vpack.c.b16 %v504, %v504
      %v521 = vpack.c.b16 %v505, %v505
      %v522 = vpack.c.b16 %v506, %v506
      %v523 = vpack.c.b16 %v507, %v507
      %v524 = vpack.c.b16 %v508, %v508
      %v525 = vpack.c.b16 %v509, %v509
      %542 = vst [vmem:[%s227] sm:$0xf] %v510
      %543 = vst [vmem:[%s227 + $0x4] sm:$0xf] %v511
      %544 = vst [vmem:[%s227 + $0x8] sm:$0xf] %v512
      %545 = vst [vmem:[%s227 + $0xc] sm:$0xf] %v513
      %546 = vst [vmem:[%s227 + $0x10] sm:$0xf] %v514
      %547 = vst [vmem:[%s227 + $0x14] sm:$0xf] %v515
      %548 = vst [vmem:[%s227 + $0x18] sm:$0xf] %v516
      %549 = vst [vmem:[%s227 + $0x1c] sm:$0xf] %v517
      %550 = vst [vmem:[%s227 + $0x20] sm:$0xf] %v518
      %551 = vst [vmem:[%s227 + $0x24] sm:$0xf] %v519
      %552 = vst [vmem:[%s227 + $0x28] sm:$0xf] %v520
      %553 = vst [vmem:[%s227 + $0x2c] sm:$0xf] %v521
      %554 = vst [vmem:[%s227 + $0x30] sm:$0xf] %v522
      %555 = vst [vmem:[%s227 + $0x34] sm:$0xf] %v523
      %556 = vst [vmem:[%s227 + $0x38] sm:$0xf] %v524
      %557 = vst [vmem:[%s227 + $0x3c] sm:$0xf] %v525
      %s558 = smul.u32 16, %s21
      %p559 = scmp.lt.s32.totalorder %s558, 63
      %s560 = scalar_select %p559, %s558, 63
      %s561 = smul.addr %s560, 4
      %s562 = scalar_lea.vmem %s4, %s561
      // Predicated region
      $region33: #{ade20k_segmenter_forward.14} parent=31 // pred_check
        %p563 = pneg %p121
      $region34: #{ade20k_segmenter_forward.14} parent=31 // pred_check_branch
        %565 = sbr.rel (%p563) target = $region36
      $region35: #{ade20k_segmenter_forward.14} parent=31 // pred_region
        %s566 = smul.u32 16, %s21
      $region36: #{ade20k_segmenter_forward.14} parent=31 // pred_fallthru
        _
    $region32: #{ade20k_segmenter_forward.14} parent=5 // pred_fallthru
      _
    %p567 = scmp.le.s32.totalorder 2, %s16
    // Predicated region
    $region37: #{ade20k_segmenter_forward.14} parent=5 // pred_check
      %p568 = pneg %p567
    $region38: #{ade20k_segmenter_forward.14} parent=5 // pred_check_branch
      %570 = sbr.rel (%p568) target = $region40
    $region39: #{ade20k_segmenter_forward.14} parent=5 // pred_region
      %s571 = ssub.s32 %s16, 2
      // Predicated region
      $region41: #{ade20k_segmenter_forward.14} parent=39 // pred_check
        %p572 = pneg %p127
      $region42: #{ade20k_segmenter_forward.14} parent=39 // pred_check_branch
        %574 = sbr.rel (%p572) target = $region44
      $region43: #{ade20k_segmenter_forward.14} parent=39 // pred_region
        %s575 = smul.u32 16, %s22
        %p576 = scmp.lt.s32.totalorder %s575, 63
        %s577 = scalar_select %p576, %s575, 63
        %s578 = smul.addr %s577, 4
        %s579 = scalar_lea.vmem %s4, %s578
      $region44: #{ade20k_segmenter_forward.14} parent=39 // pred_fallthru
        _
    $region40: #{ade20k_segmenter_forward.14} parent=5 // pred_fallthru
      _
  $region6: #{ade20k_segmenter_forward.14} parent=0 // loop_footer
    %s20 = sadd.s32 1, %s16
  $region7: #{ade20k_segmenter_forward.14} parent=0 // loop_footer_branch
    %15 = sbr.rel target = $region3
  $region8: #{ade20k_segmenter_forward.14} parent=0 // loop_exit
    _

// kernel: ade20k_segmenter_forward.15
$region0: #{ade20k_segmenter_forward.15}
  #allocation0 [shape = 'u32[]', space=smem, size = 0x4, offset = 0x4, fixed_abs, tag = 'smem constant byte address 0x4 - core index']
  #allocation1 [shape = 'u32[144,128]{1,0:T(1,128)}', space=vmem, size = 0x12000, scoped, tag = 'internal scratch']
  #allocation2 [shape = 's32[1]{0}', space=sflag, size = 0x4, scoped, tag = 'scoped memory for ade20k_segmenter_forward.15']
  #allocation3 [shape = 's32[1]{0:T(128)S(6)}', space=smem, size = 0x200, scoped, tag = 'prefetched SMEM operand 0']
  %s0 = inlined_call_operand.<no memory space> [shape: s32[1], index: 0, kind: input, shape index: {}]
  %s1 = inlined_call_operand.vmem [shape: bf16[8,1536], index: 1, kind: input, shape index: {}]
  %s2 = inlined_call_operand.vmem [shape: bf16[1,1536,128], index: 2, kind: input, shape index: {}]
  %s3 = inlined_call_operand.vmem [shape: f32[1,1,128], index: 3, kind: input, shape index: {}]
  %s4 = inlined_call_operand.vmem [shape: bf16[8,128], index: 4, kind: output, shape index: {}]
  %s5 = sld [smem:[#allocation0]]
  $region22: #{ade20k_segmenter_forward.15} parent=0
    _
  %s7 = ssub.s32 1, %s5
  %s8 = scalar_select 0, %s7, %s5
  %9 = sst [smem:[#allocation3]] %s0
  // Predicated region
  $region2: #{ade20k_segmenter_forward.15} parent=0 // pred_check
    _
  $region3: #{ade20k_segmenter_forward.15} parent=0 // pred_check_branch
    %11 = sbr.rel (0) target = $region5
  $region4: #{ade20k_segmenter_forward.15} parent=0 // pred_region
    _
  $region5: #{ade20k_segmenter_forward.15} parent=0 // pred_fallthru
    _
  // Predicated region
  $region6: #{ade20k_segmenter_forward.15} parent=0 // pred_check
    _
  $region7: #{ade20k_segmenter_forward.15} parent=0 // pred_check_branch
    %13 = sbr.rel (0) target = $region9
  $region8: #{ade20k_segmenter_forward.15} parent=0 // pred_region
    %s14 = sld [smem:[#allocation3]]
    %p15 = scmp.lt.s32.totalorder %s14, 0
    %s16 = scalar_select %p15, %s14, 0
    %s17 = smul.addr %s16, 192
    %s18 = smul.addr %s17, 4
    %s19 = scalar_lea.vmem %s2, %s18
    %s20 = sld [smem:[#allocation3]]
  $region9: #{ade20k_segmenter_forward.15} parent=0 // pred_fallthru
    _
  // Predicated region
  $region10: #{ade20k_segmenter_forward.15} parent=0 // pred_check
    _
  $region11: #{ade20k_segmenter_forward.15} parent=0 // pred_check_branch
    %22 = sbr.rel (0) target = $region13
  $region12: #{ade20k_segmenter_forward.15} parent=0 // pred_region
    %s23 = sld [smem:[#allocation3]]
    %p24 = scmp.lt.s32.totalorder %s23, 0
    %s25 = scalar_select %p24, %s23, 0
    %s26 = scalar_lea.vmem %s3, %s25
    %s27 = sld [smem:[#allocation3]]
  $region13: #{ade20k_segmenter_forward.15} parent=0 // pred_fallthru
    _
  %s28 = sld [smem:[#allocation3]]
  %p29 = scmp.lt.s32.totalorder %s28, 0
  %s30 = scalar_select %p29, %s28, 0
  %s31 = smul.addr %s30, 192
  %s32 = smul.addr %s31, 4
  %s33 = scalar_lea.vmem %s2, %s32
  %s34 = sld [smem:[#allocation3]]
  %p35 = scmp.lt.s32.totalorder %s34, 0
  %s36 = scalar_select %p35, %s34, 0
  %s37 = scalar_lea.vmem %s3, %s36
  %s38 = sld [smem:[#allocation3]]
  %p39 = scmp.lt.s32.totalorder %s38, 0
  %s40 = scalar_select %p39, %s38, 0
  %s41 = smul.addr %s40, 192
  %s42 = smul.addr %s41, 4
  %s43 = scalar_lea.vmem %s2, %s42
  %s44 = sld [smem:[#allocation3]]
  %s45 = sld [smem:[#allocation3]]
  %p46 = scmp.lt.s32.totalorder %s45, 0
  %s47 = scalar_select %p46, %s45, 0
  %s48 = scalar_lea.vmem %s3, %s47
  %s49 = sld [smem:[#allocation3]]
  %v51 = vld [vmem:[%s1] sm:$0xff]
  %v52 = vld [vmem:[%s1 + $0x8] sm:$0xff]
  %v53 = vld [vmem:[%s1 + $0x10] sm:$0xff]
  %v54 = vld [vmem:[%s1 + $0x18] sm:$0xff]
  %v55 = vld [vmem:[%s1 + $0x20] sm:$0xff]
  %v56 = vld [vmem:[%s1 + $0x28] sm:$0xff]
  %v57 = vld [vmem:[%s43] sm:$0xf]
  %v58 = vld [vmem:[%s43 + $0x4] sm:$0xf]
  %v59 = vld [vmem:[%s43 + $0x8] sm:$0xf]
  %v60 = vld [vmem:[%s43 + $0xc] sm:$0xf]
  %v61 = vld [vmem:[%s43 + $0x10] sm:$0xf]
  %v62 = vld [vmem:[%s43 + $0x14] sm:$0xf]
  %v63 = vld [vmem:[%s43 + $0x18] sm:$0xf]
  %v64 = vld [vmem:[%s43 + $0x1c] sm:$0xf]
  %v65 = vld [vmem:[%s43 + $0x20] sm:$0xf]
  %v66 = vld [vmem:[%s43 + $0x24] sm:$0xf]
  %v67 = vld [vmem:[%s43 + $0x28] sm:$0xf]
  %v68 = vld [vmem:[%s43 + $0x2c] sm:$0xf]
  %v69 = vld [vmem:[%s43 + $0x30] sm:$0xf]
  %v70 = vld [vmem:[%s43 + $0x34] sm:$0xf]
  %v71 = vld [vmem:[%s43 + $0x38] sm:$0xf]
  %v72 = vld [vmem:[%s43 + $0x3c] sm:$0xf]
  %v73 = vld [vmem:[%s43 + $0x40] sm:$0xf]
  %v74 = vld [vmem:[%s43 + $0x44] sm:$0xf]
  %v75 = vld [vmem:[%s43 + $0x48] sm:$0xf]
  %v76 = vld [vmem:[%s43 + $0x4c] sm:$0xf]
  %v77 = vld [vmem:[%s43 + $0x50] sm:$0xf]
  %v78 = vld [vmem:[%s43 + $0x54] sm:$0xf]
  %v79 = vld [vmem:[%s43 + $0x58] sm:$0xf]
  %v80 = vld [vmem:[%s43 + $0x5c] sm:$0xf]
  %v81 = vld [vmem:[%s43 + $0x60] sm:$0xf]
  %v82 = vld [vmem:[%s43 + $0x64] sm:$0xf]
  %v83 = vld [vmem:[%s43 + $0x68] sm:$0xf]
  %v84 = vld [vmem:[%s43 + $0x6c] sm:$0xf]
  %v85 = vld [vmem:[%s43 + $0x70] sm:$0xf]
  %v86 = vld [vmem:[%s43 + $0x74] sm:$0xf]
  %v87 = vld [vmem:[%s43 + $0x78] sm:$0xf]
  %v88 = vld [vmem:[%s43 + $0x7c] sm:$0xf]
  %v89 = vld [vmem:[%s43 + $0x80] sm:$0xf]
  %v90 = vld [vmem:[%s43 + $0x84] sm:$0xf]
  %v91 = vld [vmem:[%s43 + $0x88] sm:$0xf]
  %v92 = vld [vmem:[%s43 + $0x8c] sm:$0xf]
  %v93 = vld [vmem:[%s43 + $0x90] sm:$0xf]
  %v94 = vld [vmem:[%s43 + $0x94] sm:$0xf]
  %v95 = vld [vmem:[%s43 + $0x98] sm:$0xf]
  %v96 = vld [vmem:[%s43 + $0x9c] sm:$0xf]
  %v97 = vld [vmem:[%s43 + $0xa0] sm:$0xf]
  %v98 = vld [vmem:[%s43 + $0xa4] sm:$0xf]
  %v99 = vld [vmem:[%s43 + $0xa8] sm:$0xf]
  %v100 = vld [vmem:[%s43 + $0xac] sm:$0xf]
  %v101 = vld [vmem:[%s43 + $0xb0] sm:$0xf]
  %v102 = vld [vmem:[%s43 + $0xb4] sm:$0xf]
  %v103 = vld [vmem:[%s43 + $0xb8] sm:$0xf]
  %v104 = vld [vmem:[%s43 + $0xbc] sm:$0xf]
  %v105 = vld [vmem:[%s43 + $0xc0] sm:$0xf]
  %v106 = vld [vmem:[%s43 + $0xc4] sm:$0xf]
  %v107 = vld [vmem:[%s43 + $0xc8] sm:$0xf]
  %v108 = vld [vmem:[%s43 + $0xcc] sm:$0xf]
  %v109 = vld [vmem:[%s43 + $0xd0] sm:$0xf]
  %v110 = vld [vmem:[%s43 + $0xd4] sm:$0xf]
  %v111 = vld [vmem:[%s43 + $0xd8] sm:$0xf]
  %v112 = vld [vmem:[%s43 + $0xdc] sm:$0xf]
  %v113 = vld [vmem:[%s43 + $0xe0] sm:$0xf]
  %v114 = vld [vmem:[%s43 + $0xe4] sm:$0xf]
  %v115 = vld [vmem:[%s43 + $0xe8] sm:$0xf]
  %v116 = vld [vmem:[%s43 + $0xec] sm:$0xf]
  %v117 = vld [vmem:[%s43 + $0xf0] sm:$0xf]
  %v118 = vld [vmem:[%s43 + $0xf4] sm:$0xf]
  %v119 = vld [vmem:[%s43 + $0xf8] sm:$0xf]
  %v120 = vld [vmem:[%s43 + $0xfc] sm:$0xf]
  %v121 = vld [vmem:[%s43 + $0x100] sm:$0xf]
  %v122 = vld [vmem:[%s43 + $0x104] sm:$0xf]
  %v123 = vld [vmem:[%s43 + $0x108] sm:$0xf]
  %v124 = vld [vmem:[%s43 + $0x10c] sm:$0xf]
  %v125 = vld [vmem:[%s43 + $0x110] sm:$0xf]
  %v126 = vld [vmem:[%s43 + $0x114] sm:$0xf]
  %v127 = vld [vmem:[%s43 + $0x118] sm:$0xf]
  %v128 = vld [vmem:[%s43 + $0x11c] sm:$0xf]
  %v129 = vld [vmem:[%s43 + $0x120] sm:$0xf]
  %v130 = vld [vmem:[%s43 + $0x124] sm:$0xf]
  %v131 = vld [vmem:[%s43 + $0x128] sm:$0xf]
  %v132 = vld [vmem:[%s43 + $0x12c] sm:$0xf]
  %v133 = vld [vmem:[%s43 + $0x130] sm:$0xf]
  %v134 = vld [vmem:[%s43 + $0x134] sm:$0xf]
  %v135 = vld [vmem:[%s43 + $0x138] sm:$0xf]
  %v136 = vld [vmem:[%s43 + $0x13c] sm:$0xf]
  %v137 = vld [vmem:[%s43 + $0x140] sm:$0xf]
  %v138 = vld [vmem:[%s43 + $0x144] sm:$0xf]
  %v139 = vld [vmem:[%s43 + $0x148] sm:$0xf]
  %v140 = vld [vmem:[%s43 + $0x14c] sm:$0xf]
  %v141 = vld [vmem:[%s43 + $0x150] sm:$0xf]
  %v142 = vld [vmem:[%s43 + $0x154] sm:$0xf]
  %v143 = vld [vmem:[%s43 + $0x158] sm:$0xf]
  %v144 = vld [vmem:[%s43 + $0x15c] sm:$0xf]
  %v145 = vld [vmem:[%s43 + $0x160] sm:$0xf]
  %v146 = vld [vmem:[%s43 + $0x164] sm:$0xf]
  %v147 = vld [vmem:[%s43 + $0x168] sm:$0xf]
  %v148 = vld [vmem:[%s43 + $0x16c] sm:$0xf]
  %v149 = vld [vmem:[%s43 + $0x170] sm:$0xf]
  %v150 = vld [vmem:[%s43 + $0x174] sm:$0xf]
  %v151 = vld [vmem:[%s43 + $0x178] sm:$0xf]
  %v152 = vld [vmem:[%s43 + $0x17c] sm:$0xf]
  %v153 = vld [vmem:[%s43 + $0x180] sm:$0xf]
  %v154 = vld [vmem:[%s43 + $0x184] sm:$0xf]
  %v155 = vld [vmem:[%s43 + $0x188] sm:$0xf]
  %v156 = vld [vmem:[%s43 + $0x18c] sm:$0xf]
  %v157 = vld [vmem:[%s43 + $0x190] sm:$0xf]
  %v158 = vld [vmem:[%s43 + $0x194] sm:$0xf]
  %v159 = vld [vmem:[%s43 + $0x198] sm:$0xf]
  %v160 = vld [vmem:[%s43 + $0x19c] sm:$0xf]
  %v161 = vld [vmem:[%s43 + $0x1a0] sm:$0xf]
  %v162 = vld [vmem:[%s43 + $0x1a4] sm:$0xf]
  %v163 = vld [vmem:[%s43 + $0x1a8] sm:$0xf]
  %v164 = vld [vmem:[%s43 + $0x1ac] sm:$0xf]
  %v165 = vld [vmem:[%s43 + $0x1b0] sm:$0xf]
  %v166 = vld [vmem:[%s43 + $0x1b4] sm:$0xf]
  %v167 = vld [vmem:[%s43 + $0x1b8] sm:$0xf]
  %v168 = vld [vmem:[%s43 + $0x1bc] sm:$0xf]
  %v169 = vld [vmem:[%s43 + $0x1c0] sm:$0xf]
  %v170 = vld [vmem:[%s43 + $0x1c4] sm:$0xf]
  %v171 = vld [vmem:[%s43 + $0x1c8] sm:$0xf]
  %v172 = vld [vmem:[%s43 + $0x1cc] sm:$0xf]
  %v173 = vld [vmem:[%s43 + $0x1d0] sm:$0xf]
  %v174 = vld [vmem:[%s43 + $0x1d4] sm:$0xf]
  %v175 = vld [vmem:[%s43 + $0x1d8] sm:$0xf]
  %v176 = vld [vmem:[%s43 + $0x1dc] sm:$0xf]
  %v177 = vld [vmem:[%s43 + $0x1e0] sm:$0xf]
  %v178 = vld [vmem:[%s43 + $0x1e4] sm:$0xf]
  %v179 = vld [vmem:[%s43 + $0x1e8] sm:$0xf]
  %v180 = vld [vmem:[%s43 + $0x1ec] sm:$0xf]
  %v181 = vld [vmem:[%s43 + $0x1f0] sm:$0xf]
  %v182 = vld [vmem:[%s43 + $0x1f4] sm:$0xf]
  %v183 = vld [vmem:[%s43 + $0x1f8] sm:$0xf]
  %v184 = vld [vmem:[%s43 + $0x1fc] sm:$0xf]
  %v185 = vld [vmem:[%s43 + $0x200] sm:$0xf]
  %v186 = vld [vmem:[%s43 + $0x204] sm:$0xf]
  %v187 = vld [vmem:[%s43 + $0x208] sm:$0xf]
  %v188 = vld [vmem:[%s43 + $0x20c] sm:$0xf]
  %v189 = vld [vmem:[%s43 + $0x210] sm:$0xf]
  %v190 = vld [vmem:[%s43 + $0x214] sm:$0xf]
  %v191 = vld [vmem:[%s43 + $0x218] sm:$0xf]
  %v192 = vld [vmem:[%s43 + $0x21c] sm:$0xf]
  %v193 = vld [vmem:[%s43 + $0x220] sm:$0xf]
  %v194 = vld [vmem:[%s43 + $0x224] sm:$0xf]
  %v195 = vld [vmem:[%s43 + $0x228] sm:$0xf]
  %v196 = vld [vmem:[%s43 + $0x22c] sm:$0xf]
  %v197 = vld [vmem:[%s43 + $0x230] sm:$0xf]
  %v198 = vld [vmem:[%s43 + $0x234] sm:$0xf]
  %v199 = vld [vmem:[%s43 + $0x238] sm:$0xf]
  %v200 = vld [vmem:[%s43 + $0x23c] sm:$0xf]
  %v201 = vld [vmem:[%s43 + $0x240] sm:$0xf]
  %v202 = vld [vmem:[%s43 + $0x244] sm:$0xf]
  %v203 = vld [vmem:[%s43 + $0x248] sm:$0xf]
  %v204 = vld [vmem:[%s43 + $0x24c] sm:$0xf]
  %v205 = vld [vmem:[%s43 + $0x250] sm:$0xf]
  %v206 = vld [vmem:[%s43 + $0x254] sm:$0xf]
  %v207 = vld [vmem:[%s43 + $0x258] sm:$0xf]
  %v208 = vld [vmem:[%s43 + $0x25c] sm:$0xf]
  %v209 = vld [vmem:[%s43 + $0x260] sm:$0xf]
  %v210 = vld [vmem:[%s43 + $0x264] sm:$0xf]
  %v211 = vld [vmem:[%s43 + $0x268] sm:$0xf]
  %v212 = vld [vmem:[%s43 + $0x26c] sm:$0xf]
  %v213 = vld [vmem:[%s43 + $0x270] sm:$0xf]
  %v214 = vld [vmem:[%s43 + $0x274] sm:$0xf]
  %v215 = vld [vmem:[%s43 + $0x278] sm:$0xf]
  %v216 = vld [vmem:[%s43 + $0x27c] sm:$0xf]
  %v217 = vld [vmem:[%s43 + $0x280] sm:$0xf]
  %v218 = vld [vmem:[%s43 + $0x284] sm:$0xf]
  %v219 = vld [vmem:[%s43 + $0x288] sm:$0xf]
  %v220 = vld [vmem:[%s43 + $0x28c] sm:$0xf]
  %v221 = vld [vmem:[%s43 + $0x290] sm:$0xf]
  %v222 = vld [vmem:[%s43 + $0x294] sm:$0xf]
  %v223 = vld [vmem:[%s43 + $0x298] sm:$0xf]
  %v224 = vld [vmem:[%s43 + $0x29c] sm:$0xf]
  %v225 = vld [vmem:[%s43 + $0x2a0] sm:$0xf]
  %v226 = vld [vmem:[%s43 + $0x2a4] sm:$0xf]
  %v227 = vld [vmem:[%s43 + $0x2a8] sm:$0xf]
  %v228 = vld [vmem:[%s43 + $0x2ac] sm:$0xf]
  %v229 = vld [vmem:[%s43 + $0x2b0] sm:$0xf]
  %v230 = vld [vmem:[%s43 + $0x2b4] sm:$0xf]
  %v231 = vld [vmem:[%s43 + $0x2b8] sm:$0xf]
  %v232 = vld [vmem:[%s43 + $0x2bc] sm:$0xf]
  %v233 = vld [vmem:[%s43 + $0x2c0] sm:$0xf]
  %v234 = vld [vmem:[%s43 + $0x2c4] sm:$0xf]
  %v235 = vld [vmem:[%s43 + $0x2c8] sm:$0xf]
  %v236 = vld [vmem:[%s43 + $0x2cc] sm:$0xf]
  %v237 = vld [vmem:[%s43 + $0x2d0] sm:$0xf]
  %v238 = vld [vmem:[%s43 + $0x2d4] sm:$0xf]
  %v239 = vld [vmem:[%s43 + $0x2d8] sm:$0xf]
  %v240 = vld [vmem:[%s43 + $0x2dc] sm:$0xf]
  %v241 = vld [vmem:[%s43 + $0x2e0] sm:$0xf]
  %v242 = vld [vmem:[%s43 + $0x2e4] sm:$0xf]
  %v243 = vld [vmem:[%s43 + $0x2e8] sm:$0xf]
  %v244 = vld [vmem:[%s43 + $0x2ec] sm:$0xf]
  %v245 = vld [vmem:[%s43 + $0x2f0] sm:$0xf]
  %v246 = vld [vmem:[%s43 + $0x2f4] sm:$0xf]
  %v247 = vld [vmem:[%s43 + $0x2f8] sm:$0xf]
  %v248 = vld [vmem:[%s43 + $0x2fc] sm:$0xf]
  %v249 = vld [vmem:[%s48] sm:$0x1]
  %v251 = vlaneseq
  %v252 = vshrl.u32 %v251, 7
  %v253 = vsub.s32 0, %v252
  %v254 = vrot.slane %v249, %v253
  %v262 = vunpack.c.l.b16 %v51
  %v263 = vunpack.c.h.b16 %v51
  %v264 = vunpack.c.l.b16 %v52
  %v265 = vunpack.c.h.b16 %v52
  %v266 = vunpack.c.l.b16 %v53
  %v267 = vunpack.c.h.b16 %v53
  %v268 = vunpack.c.l.b16 %v54
  %v269 = vunpack.c.h.b16 %v54
  %v270 = vunpack.c.l.b16 %v55
  %v271 = vunpack.c.h.b16 %v55
  %v272 = vunpack.c.l.b16 %v56
  %v273 = vunpack.c.h.b16 %v56
  %v274 = vpack.c.b16 %v262, %v262
  %v275 = vpack.c.b16 %v263, %v263
  %v276 = vpack.c.b16 %v264, %v264
  %v277 = vpack.c.b16 %v265, %v265
  %v278 = vpack.c.b16 %v266, %v266
  %v279 = vpack.c.b16 %v267, %v267
  %v280 = vpack.c.b16 %v268, %v268
  %v281 = vpack.c.b16 %v269, %v269
  %v282 = vpack.c.b16 %v270, %v270
  %v283 = vpack.c.b16 %v271, %v271
  %v284 = vpack.c.b16 %v272, %v272
  %v285 = vpack.c.b16 %v273, %v273
  %v490 = vunpack.c.l.b16 %v57
  %v491 = vunpack.c.l.b16 %v58
  %v492 = vunpack.c.l.b16 %v59
  %v493 = vunpack.c.l.b16 %v60
  %v494 = vunpack.c.l.b16 %v61
  %v495 = vunpack.c.l.b16 %v62
  %v496 = vunpack.c.l.b16 %v63
  %v497 = vunpack.c.l.b16 %v64
  %v498 = vunpack.c.l.b16 %v65
  %v499 = vunpack.c.l.b16 %v66
  %v500 = vunpack.c.l.b16 %v67
  %v501 = vunpack.c.l.b16 %v68
  %v502 = vunpack.c.l.b16 %v69
  %v503 = vunpack.c.l.b16 %v70
  %v504 = vunpack.c.l.b16 %v71
  %v505 = vunpack.c.l.b16 %v72
  %v506 = vunpack.c.l.b16 %v73
  %v507 = vunpack.c.l.b16 %v74
  %v508 = vunpack.c.l.b16 %v75
  %v509 = vunpack.c.l.b16 %v76
  %v510 = vunpack.c.l.b16 %v77
  %v511 = vunpack.c.l.b16 %v78
  %v512 = vunpack.c.l.b16 %v79
  %v513 = vunpack.c.l.b16 %v80
  %v514 = vunpack.c.l.b16 %v81
  %v515 = vunpack.c.l.b16 %v82
  %v516 = vunpack.c.l.b16 %v83
  %v517 = vunpack.c.l.b16 %v84
  %v518 = vunpack.c.l.b16 %v85
  %v519 = vunpack.c.l.b16 %v86
  %v520 = vunpack.c.l.b16 %v87
  %v521 = vunpack.c.l.b16 %v88
  %v522 = vunpack.c.l.b16 %v89
  %v523 = vunpack.c.l.b16 %v90
  %v524 = vunpack.c.l.b16 %v91
  %v525 = vunpack.c.l.b16 %v92
  %v526 = vunpack.c.l.b16 %v93
  %v527 = vunpack.c.l.b16 %v94
  %v528 = vunpack.c.l.b16 %v95
  %v529 = vunpack.c.l.b16 %v96
  %v530 = vunpack.c.l.b16 %v97
  %v531 = vunpack.c.l.b16 %v98
  %v532 = vunpack.c.l.b16 %v99
  %v533 = vunpack.c.l.b16 %v100
  %v534 = vunpack.c.l.b16 %v101
  %v535 = vunpack.c.l.b16 %v102
  %v536 = vunpack.c.l.b16 %v103
  %v537 = vunpack.c.l.b16 %v104
  %v538 = vunpack.c.l.b16 %v105
  %v539 = vunpack.c.l.b16 %v106
  %v540 = vunpack.c.l.b16 %v107
  %v541 = vunpack.c.l.b16 %v108
  %v542 = vunpack.c.l.b16 %v109
  %v543 = vunpack.c.l.b16 %v110
  %v544 = vunpack.c.l.b16 %v111
  %v545 = vunpack.c.l.b16 %v112
  %v546 = vunpack.c.l.b16 %v113
  %v547 = vunpack.c.l.b16 %v114
  %v548 = vunpack.c.l.b16 %v115
  %v549 = vunpack.c.l.b16 %v116
  %v550 = vunpack.c.l.b16 %v117
  %v551 = vunpack.c.l.b16 %v118
  %v552 = vunpack.c.l.b16 %v119
  %v553 = vunpack.c.l.b16 %v120
  %v554 = vunpack.c.l.b16 %v121
  %v555 = vunpack.c.l.b16 %v122
  %v556 = vunpack.c.l.b16 %v123
  %v557 = vunpack.c.l.b16 %v124
  %v558 = vunpack.c.l.b16 %v125
  %v559 = vunpack.c.l.b16 %v126
  %v560 = vunpack.c.l.b16 %v127
  %v561 = vunpack.c.l.b16 %v128
  %v562 = vunpack.c.l.b16 %v129
  %v563 = vunpack.c.l.b16 %v130
  %v564 = vunpack.c.l.b16 %v131
  %v565 = vunpack.c.l.b16 %v132
  %v566 = vunpack.c.l.b16 %v133
  %v567 = vunpack.c.l.b16 %v134
  %v568 = vunpack.c.l.b16 %v135
  %v569 = vunpack.c.l.b16 %v136
  %v570 = vunpack.c.l.b16 %v137
  %v571 = vunpack.c.l.b16 %v138
  %v572 = vunpack.c.l.b16 %v139
  %v573 = vunpack.c.l.b16 %v140
  %v574 = vunpack.c.l.b16 %v141
  %v575 = vunpack.c.l.b16 %v142
  %v576 = vunpack.c.l.b16 %v143
  %v577 = vunpack.c.l.b16 %v144
  %v578 = vunpack.c.l.b16 %v145
  %v579 = vunpack.c.l.b16 %v146
  %v580 = vunpack.c.l.b16 %v147
  %v581 = vunpack.c.l.b16 %v148
  %v582 = vunpack.c.l.b16 %v149
  %v583 = vunpack.c.l.b16 %v150
  %v584 = vunpack.c.l.b16 %v151
  %v585 = vunpack.c.l.b16 %v152
  %v586 = vunpack.c.l.b16 %v153
  %v587 = vunpack.c.l.b16 %v154
  %v588 = vunpack.c.l.b16 %v155
  %v589 = vunpack.c.l.b16 %v156
  %v590 = vunpack.c.l.b16 %v157
  %v591 = vunpack.c.l.b16 %v158
  %v592 = vunpack.c.l.b16 %v159
  %v593 = vunpack.c.l.b16 %v160
  %v594 = vunpack.c.l.b16 %v161
  %v595 = vunpack.c.l.b16 %v162
  %v596 = vunpack.c.l.b16 %v163
  %v597 = vunpack.c.l.b16 %v164
  %v598 = vunpack.c.l.b16 %v165
  %v599 = vunpack.c.l.b16 %v166
  %v600 = vunpack.c.l.b16 %v167
  %v601 = vunpack.c.l.b16 %v168
  %v602 = vunpack.c.l.b16 %v169
  %v603 = vunpack.c.l.b16 %v170
  %v604 = vunpack.c.l.b16 %v171
  %v605 = vunpack.c.l.b16 %v172
  %v606 = vunpack.c.l.b16 %v173
  %v607 = vunpack.c.l.b16 %v174
  %v608 = vunpack.c.l.b16 %v175
  %v609 = vunpack.c.l.b16 %v176
  %v610 = vunpack.c.l.b16 %v177
  %v611 = vunpack.c.l.b16 %v178
  %v612 = vunpack.c.l.b16 %v179
  %v613 = vunpack.c.l.b16 %v180
  %v614 = vunpack.c.l.b16 %v181
  %v615 = vunpack.c.l.b16 %v182
  %v616 = vunpack.c.l.b16 %v183
  %v617 = vunpack.c.l.b16 %v184
  %v618 = vunpack.c.l.b16 %v185
  %v619 = vunpack.c.l.b16 %v186
  %v620 = vunpack.c.l.b16 %v187
  %v621 = vunpack.c.l.b16 %v188
  %v622 = vunpack.c.l.b16 %v189
  %v623 = vunpack.c.l.b16 %v190
  %v624 = vunpack.c.l.b16 %v191
  %v625 = vunpack.c.l.b16 %v192
  %v626 = vunpack.c.l.b16 %v193
  %v627 = vunpack.c.l.b16 %v194
  %v628 = vunpack.c.l.b16 %v195
  %v629 = vunpack.c.l.b16 %v196
  %v630 = vunpack.c.l.b16 %v197
  %v631 = vunpack.c.l.b16 %v198
  %v632 = vunpack.c.l.b16 %v199
  %v633 = vunpack.c.l.b16 %v200
  %v634 = vunpack.c.l.b16 %v201
  %v635 = vunpack.c.l.b16 %v202
  %v636 = vunpack.c.l.b16 %v203
  %v637 = vunpack.c.l.b16 %v204
  %v638 = vunpack.c.l.b16 %v205
  %v639 = vunpack.c.l.b16 %v206
  %v640 = vunpack.c.l.b16 %v207
  %v641 = vunpack.c.l.b16 %v208
  %v642 = vunpack.c.l.b16 %v209
  %v643 = vunpack.c.l.b16 %v210
  %v644 = vunpack.c.l.b16 %v211
  %v645 = vunpack.c.l.b16 %v212
  %v646 = vunpack.c.l.b16 %v213
  %v647 = vunpack.c.l.b16 %v214
  %v648 = vunpack.c.l.b16 %v215
  %v649 = vunpack.c.l.b16 %v216
  %v650 = vunpack.c.l.b16 %v217
  %v651 = vunpack.c.l.b16 %v218
  %v652 = vunpack.c.l.b16 %v219
  %v653 = vunpack.c.l.b16 %v220
  %v654 = vunpack.c.l.b16 %v221
  %v655 = vunpack.c.l.b16 %v222
  %v656 = vunpack.c.l.b16 %v223
  %v657 = vunpack.c.l.b16 %v224
  %v658 = vunpack.c.l.b16 %v225
  %v659 = vunpack.c.l.b16 %v226
  %v660 = vunpack.c.l.b16 %v227
  %v661 = vunpack.c.l.b16 %v228
  %v662 = vunpack.c.l.b16 %v229
  %v663 = vunpack.c.l.b16 %v230
  %v664 = vunpack.c.l.b16 %v231
  %v665 = vunpack.c.l.b16 %v232
  %v666 = vunpack.c.l.b16 %v233
  %v667 = vunpack.c.l.b16 %v234
  %v668 = vunpack.c.l.b16 %v235
  %v669 = vunpack.c.l.b16 %v236
  %v670 = vunpack.c.l.b16 %v237
  %v671 = vunpack.c.l.b16 %v238
  %v672 = vunpack.c.l.b16 %v239
  %v673 = vunpack.c.l.b16 %v240
  %v674 = vunpack.c.l.b16 %v241
  %v675 = vunpack.c.l.b16 %v242
  %v676 = vunpack.c.l.b16 %v243
  %v677 = vunpack.c.l.b16 %v244
  %v678 = vunpack.c.l.b16 %v245
  %v679 = vunpack.c.l.b16 %v246
  %v680 = vunpack.c.l.b16 %v247
  %v681 = vunpack.c.l.b16 %v248
  %v682 = vpack.c.b16 %v491, %v490
  %v683 = vpack.c.b16 %v493, %v492
  %v684 = vpack.c.b16 %v495, %v494
  %v685 = vpack.c.b16 %v497, %v496
  %v686 = vpack.c.b16 %v499, %v498
  %v687 = vpack.c.b16 %v501, %v500
  %v688 = vpack.c.b16 %v503, %v502
  %v689 = vpack.c.b16 %v505, %v504
  %v690 = vpack.c.b16 %v507, %v506
  %v691 = vpack.c.b16 %v509, %v508
  %v692 = vpack.c.b16 %v511, %v510
  %v693 = vpack.c.b16 %v513, %v512
  %v694 = vpack.c.b16 %v515, %v514
  %v695 = vpack.c.b16 %v517, %v516
  %v696 = vpack.c.b16 %v519, %v518
  %v697 = vpack.c.b16 %v521, %v520
  %v698 = vpack.c.b16 %v523, %v522
  %v699 = vpack.c.b16 %v525, %v524
  %v700 = vpack.c.b16 %v527, %v526
  %v701 = vpack.c.b16 %v529, %v528
  %v702 = vpack.c.b16 %v531, %v530
  %v703 = vpack.c.b16 %v533, %v532
  %v704 = vpack.c.b16 %v535, %v534
  %v705 = vpack.c.b16 %v537, %v536
  %v706 = vpack.c.b16 %v539, %v538
  %v707 = vpack.c.b16 %v541, %v540
  %v708 = vpack.c.b16 %v543, %v542
  %v709 = vpack.c.b16 %v545, %v544
  %v710 = vpack.c.b16 %v547, %v546
  %v711 = vpack.c.b16 %v549, %v548
  %v712 = vpack.c.b16 %v551, %v550
  %v713 = vpack.c.b16 %v553, %v552
  %v714 = vpack.c.b16 %v555, %v554
  %v715 = vpack.c.b16 %v557, %v556
  %v716 = vpack.c.b16 %v559, %v558
  %v717 = vpack.c.b16 %v561, %v560
  %v718 = vpack.c.b16 %v563, %v562
  %v719 = vpack.c.b16 %v565, %v564
  %v720 = vpack.c.b16 %v567, %v566
  %v721 = vpack.c.b16 %v569, %v568
  %v722 = vpack.c.b16 %v571, %v570
  %v723 = vpack.c.b16 %v573, %v572
  %v724 = vpack.c.b16 %v575, %v574
  %v725 = vpack.c.b16 %v577, %v576
  %v726 = vpack.c.b16 %v579, %v578
  %v727 = vpack.c.b16 %v581, %v580
  %v728 = vpack.c.b16 %v583, %v582
  %v729 = vpack.c.b16 %v585, %v584
  %v730 = vpack.c.b16 %v587, %v586
  %v731 = vpack.c.b16 %v589, %v588
  %v732 = vpack.c.b16 %v591, %v590
  %v733 = vpack.c.b16 %v593, %v592
  %v734 = vpack.c.b16 %v595, %v594
  %v735 = vpack.c.b16 %v597, %v596
  %v736 = vpack.c.b16 %v599, %v598
  %v737 = vpack.c.b16 %v601, %v600
  %v738 = vpack.c.b16 %v603, %v602
  %v739 = vpack.c.b16 %v605, %v604
  %v740 = vpack.c.b16 %v607, %v606
  %v741 = vpack.c.b16 %v609, %v608
  %v742 = vpack.c.b16 %v611, %v610
  %v743 = vpack.c.b16 %v613, %v612
  %v744 = vpack.c.b16 %v615, %v614
  %v745 = vpack.c.b16 %v617, %v616
  %v746 = vpack.c.b16 %v619, %v618
  %v747 = vpack.c.b16 %v621, %v620
  %v748 = vpack.c.b16 %v623, %v622
  %v749 = vpack.c.b16 %v625, %v624
  %v750 = vpack.c.b16 %v627, %v626
  %v751 = vpack.c.b16 %v629, %v628
  %v752 = vpack.c.b16 %v631, %v630
  %v753 = vpack.c.b16 %v633, %v632
  %v754 = vpack.c.b16 %v635, %v634
  %v755 = vpack.c.b16 %v637, %v636
  %v756 = vpack.c.b16 %v639, %v638
  %v757 = vpack.c.b16 %v641, %v640
  %v758 = vpack.c.b16 %v643, %v642
  %v759 = vpack.c.b16 %v645, %v644
  %v760 = vpack.c.b16 %v647, %v646
  %v761 = vpack.c.b16 %v649, %v648
  %v762 = vpack.c.b16 %v651, %v650
  %v763 = vpack.c.b16 %v653, %v652
  %v764 = vpack.c.b16 %v655, %v654
  %v765 = vpack.c.b16 %v657, %v656
  %v766 = vpack.c.b16 %v659, %v658
  %v767 = vpack.c.b16 %v661, %v660
  %v768 = vpack.c.b16 %v663, %v662
  %v769 = vpack.c.b16 %v665, %v664
  %v770 = vpack.c.b16 %v667, %v666
  %v771 = vpack.c.b16 %v669, %v668
  %v772 = vpack.c.b16 %v671, %v670
  %v773 = vpack.c.b16 %v673, %v672
  %v774 = vpack.c.b16 %v675, %v674
  %v775 = vpack.c.b16 %v677, %v676
  %v776 = vpack.c.b16 %v679, %v678
  %v777 = vpack.c.b16 %v681, %v680
  %874 = vmatprep.subr.bf16.mxu0 0
  %875 = vmatpush1.bf16.msra.mxu0 %v682
  %876 = vmatprep.subr.bf16.mxu0 0
  %877 = vmatpush1.bf16.msra.mxu0 %v683
  %878 = vmatprep.subr.bf16.mxu0 0
  %879 = vmatpush1.bf16.msra.mxu0 %v684
  %880 = vmatprep.subr.bf16.mxu0 0
  %881 = vmatpush1.bf16.msra.mxu0 %v685
  %882 = vmatprep.subr.bf16.mxu0 0
  %883 = vmatpush1.bf16.msra.mxu0 %v686
  %884 = vmatprep.subr.bf16.mxu0 0
  %885 = vmatpush1.bf16.msra.mxu0 %v687
  %886 = vmatprep.subr.bf16.mxu0 0
  %887 = vmatpush1.bf16.msra.mxu0 %v688
  %888 = vmatprep.subr.bf16.mxu0 0
  %889 = vmatpush1.bf16.msra.mxu0 %v689
  %890 = vmatprep.subr.bf16.mxu0 0
  %891 = vmatpush1.bf16.msra.mxu0 %v690
  %892 = vmatprep.subr.bf16.mxu0 0
  %893 = vmatpush1.bf16.msra.mxu0 %v691
  %894 = vmatprep.subr.bf16.mxu0 0
  %895 = vmatpush1.bf16.msra.mxu0 %v692
  %896 = vmatprep.subr.bf16.mxu0 0
  %897 = vmatpush1.bf16.msra.mxu0 %v693
  %898 = vmatprep.subr.bf16.mxu0 0
  %899 = vmatpush1.bf16.msra.mxu0 %v694
  %900 = vmatprep.subr.bf16.mxu0 0
  %901 = vmatpush1.bf16.msra.mxu0 %v695
  %902 = vmatprep.subr.bf16.mxu0 0
  %903 = vmatpush1.bf16.msra.mxu0 %v696
  %904 = vmatprep.subr.bf16.mxu0 0
  %905 = vmatpush1.bf16.msra.mxu0 %v697
  %906 = vmatprep.mubr.bf16.mxu0 %v275
  %907 = vmatmul.mubr.bf16.gmra.mrb[0].mxu0 %v274
  %v908 = vpop.f32.mrb[0].mxu0
  %v909 = vadd.f32 %v254, %v908
  %v910 = vpop.f32.mrb[0].mxu0
  %v911 = vpop.f32.mrb[0].mxu0
  %v912 = vpop.f32.mrb[0].mxu0
  %913 = vdwg.mxu0
  %914 = vmatprep.subr.bf16.mxu0 0
  %915 = vmatpush1.bf16.msra.mxu0 %v698
  %916 = vmatprep.subr.bf16.mxu0 0
  %917 = vmatpush1.bf16.msra.mxu0 %v699
  %918 = vmatprep.subr.bf16.mxu0 0
  %919 = vmatpush1.bf16.msra.mxu0 %v700
  %920 = vmatprep.subr.bf16.mxu0 0
  %921 = vmatpush1.bf16.msra.mxu0 %v701
  %922 = vmatprep.subr.bf16.mxu0 0
  %923 = vmatpush1.bf16.msra.mxu0 %v702
  %924 = vmatprep.subr.bf16.mxu0 0
  %925 = vmatpush1.bf16.msra.mxu0 %v703
  %926 = vmatprep.subr.bf16.mxu0 0
  %927 = vmatpush1.bf16.msra.mxu0 %v704
  %928 = vmatprep.subr.bf16.mxu0 0
  %929 = vmatpush1.bf16.msra.mxu0 %v705
  %930 = vmatprep.subr.bf16.mxu0 0
  %931 = vmatpush1.bf16.msra.mxu0 %v706
  %932 = vmatprep.subr.bf16.mxu0 0
  %933 = vmatpush1.bf16.msra.mxu0 %v707
  %934 = vmatprep.subr.bf16.mxu0 0
  %935 = vmatpush1.bf16.msra.mxu0 %v708
  %936 = vmatprep.subr.bf16.mxu0 0
  %937 = vmatpush1.bf16.msra.mxu0 %v709
  %938 = vmatprep.subr.bf16.mxu0 0
  %939 = vmatpush1.bf16.msra.mxu0 %v710
  %940 = vmatprep.subr.bf16.mxu0 0
  %941 = vmatpush1.bf16.msra.mxu0 %v711
  %942 = vmatprep.subr.bf16.mxu0 0
  %943 = vmatpush1.bf16.msra.mxu0 %v712
  %944 = vmatprep.subr.bf16.mxu0 0
  %945 = vmatpush1.bf16.msra.mxu0 %v713
  %946 = vmatprep.mubr.bf16.mxu0 %v277
  %947 = vmatmul.mubr.bf16.gmra.mrb[0].mxu0 %v276
  %v948 = vpop.f32.mrb[0].mxu0
  %v949 = vadd.f32 %v909, %v948
  %v950 = vpop.f32.mrb[0].mxu0
  %v951 = vpop.f32.mrb[0].mxu0
  %v952 = vpop.f32.mrb[0].mxu0
  %953 = vdwg.mxu0
  %954 = vmatprep.subr.bf16.mxu0 0
  %955 = vmatpush1.bf16.msra.mxu0 %v714
  %956 = vmatprep.subr.bf16.mxu0 0
  %957 = vmatpush1.bf16.msra.mxu0 %v715
  %958 = vmatprep.subr.bf16.mxu0 0
  %959 = vmatpush1.bf16.msra.mxu0 %v716
  %960 = vmatprep.subr.bf16.mxu0 0
  %961 = vmatpush1.bf16.msra.mxu0 %v717
  %962 = vmatprep.subr.bf16.mxu0 0
  %963 = vmatpush1.bf16.msra.mxu0 %v718
  %964 = vmatprep.subr.bf16.mxu0 0
  %965 = vmatpush1.bf16.msra.mxu0 %v719
  %966 = vmatprep.subr.bf16.mxu0 0
  %967 = vmatpush1.bf16.msra.mxu0 %v720
  %968 = vmatprep.subr.bf16.mxu0 0
  %969 = vmatpush1.bf16.msra.mxu0 %v721
  %970 = vmatprep.subr.bf16.mxu0 0
  %971 = vmatpush1.bf16.msra.mxu0 %v722
  %972 = vmatprep.subr.bf16.mxu0 0
  %973 = vmatpush1.bf16.msra.mxu0 %v723
  %974 = vmatprep.subr.bf16.mxu0 0
  %975 = vmatpush1.bf16.msra.mxu0 %v724
  %976 = vmatprep.subr.bf16.mxu0 0
  %977 = vmatpush1.bf16.msra.mxu0 %v725
  %978 = vmatprep.subr.bf16.mxu0 0
  %979 = vmatpush1.bf16.msra.mxu0 %v726
  %980 = vmatprep.subr.bf16.mxu0 0
  %981 = vmatpush1.bf16.msra.mxu0 %v727
  %982 = vmatprep.subr.bf16.mxu0 0
  %983 = vmatpush1.bf16.msra.mxu0 %v728
  %984 = vmatprep.subr.bf16.mxu0 0
  %985 = vmatpush1.bf16.msra.mxu0 %v729
  %986 = vmatprep.mubr.bf16.mxu0 %v279
  %987 = vmatmul.mubr.bf16.gmra.mrb[0].mxu0 %v278
  %v988 = vpop.f32.mrb[0].mxu0
  %v989 = vadd.f32 %v949, %v988
  %v990 = vpop.f32.mrb[0].mxu0
  %v991 = vpop.f32.mrb[0].mxu0
  %v992 = vpop.f32.mrb[0].mxu0
  %993 = vdwg.mxu0
  %994 = vmatprep.subr.bf16.mxu0 0
  %995 = vmatpush1.bf16.msra.mxu0 %v730
  %996 = vmatprep.subr.bf16.mxu0 0
  %997 = vmatpush1.bf16.msra.mxu0 %v731
  %998 = vmatprep.subr.bf16.mxu0 0
  %999 = vmatpush1.bf16.msra.mxu0 %v732
  %1000 = vmatprep.subr.bf16.mxu0 0
  %1001 = vmatpush1.bf16.msra.mxu0 %v733
  %1002 = vmatprep.subr.bf16.mxu0 0
  %1003 = vmatpush1.bf16.msra.mxu0 %v734
  %1004 = vmatprep.subr.bf16.mxu0 0
  %1005 = vmatpush1.bf16.msra.mxu0 %v735
  %1006 = vmatprep.subr.bf16.mxu0 0
  %1007 = vmatpush1.bf16.msra.mxu0 %v736
  %1008 = vmatprep.subr.bf16.mxu0 0
  %1009 = vmatpush1.bf16.msra.mxu0 %v737
  %1010 = vmatprep.subr.bf16.mxu0 0
  %1011 = vmatpush1.bf16.msra.mxu0 %v738
  %1012 = vmatprep.subr.bf16.mxu0 0
  %1013 = vmatpush1.bf16.msra.mxu0 %v739
  %1014 = vmatprep.subr.bf16.mxu0 0
  %1015 = vmatpush1.bf16.msra.mxu0 %v740
  %1016 = vmatprep.subr.bf16.mxu0 0
  %1017 = vmatpush1.bf16.msra.mxu0 %v741
  %1018 = vmatprep.subr.bf16.mxu0 0
  %1019 = vmatpush1.bf16.msra.mxu0 %v742
  %1020 = vmatprep.subr.bf16.mxu0 0
  %1021 = vmatpush1.bf16.msra.mxu0 %v743
  %1022 = vmatprep.subr.bf16.mxu0 0
  %1023 = vmatpush1.bf16.msra.mxu0 %v744
  %1024 = vmatprep.subr.bf16.mxu0 0
  %1025 = vmatpush1.bf16.msra.mxu0 %v745
  %1026 = vmatprep.mubr.bf16.mxu0 %v281
  %1027 = vmatmul.mubr.bf16.gmra.mrb[0].mxu0 %v280
  %v1028 = vpop.f32.mrb[0].mxu0
  %v1029 = vadd.f32 %v989, %v1028
  %v1030 = vpop.f32.mrb[0].mxu0
  %v1031 = vpop.f32.mrb[0].mxu0
  %v1032 = vpop.f32.mrb[0].mxu0
  %1033 = vdwg.mxu0
  %1034 = vmatprep.subr.bf16.mxu0 0
  %1035 = vmatpush1.bf16.msra.mxu0 %v746
  %1036 = vmatprep.subr.bf16.mxu0 0
  %1037 = vmatpush1.bf16.msra.mxu0 %v747
  %1038 = vmatprep.subr.bf16.mxu0 0
  %1039 = vmatpush1.bf16.msra.mxu0 %v748
  %1040 = vmatprep.subr.bf16.mxu0 0
  %1041 = vmatpush1.bf16.msra.mxu0 %v749
  %1042 = vmatprep.subr.bf16.mxu0 0
  %1043 = vmatpush1.bf16.msra.mxu0 %v750
  %1044 = vmatprep.subr.bf16.mxu0 0
  %1045 = vmatpush1.bf16.msra.mxu0 %v751
  %1046 = vmatprep.subr.bf16.mxu0 0
  %1047 = vmatpush1.bf16.msra.mxu0 %v752
  %1048 = vmatprep.subr.bf16.mxu0 0
  %1049 = vmatpush1.bf16.msra.mxu0 %v753
  %1050 = vmatprep.subr.bf16.mxu0 0
  %1051 = vmatpush1.bf16.msra.mxu0 %v754
  %1052 = vmatprep.subr.bf16.mxu0 0
  %1053 = vmatpush1.bf16.msra.mxu0 %v755
  %1054 = vmatprep.subr.bf16.mxu0 0
  %1055 = vmatpush1.bf16.msra.mxu0 %v756
  %1056 = vmatprep.subr.bf16.mxu0 0
  %1057 = vmatpush1.bf16.msra.mxu0 %v757
  %1058 = vmatprep.subr.bf16.mxu0 0
  %1059 = vmatpush1.bf16.msra.mxu0 %v758
  %1060 = vmatprep.subr.bf16.mxu0 0
  %1061 = vmatpush1.bf16.msra.mxu0 %v759
  %1062 = vmatprep.subr.bf16.mxu0 0
  %1063 = vmatpush1.bf16.msra.mxu0 %v760
  %1064 = vmatprep.subr.bf16.mxu0 0
  %1065 = vmatpush1.bf16.msra.mxu0 %v761
  %1066 = vmatprep.mubr.bf16.mxu0 %v283
  %1067 = vmatmul.mubr.bf16.gmra.mrb[0].mxu0 %v282
  %v1068 = vpop.f32.mrb[0].mxu0
  %v1069 = vadd.f32 %v1029, %v1068
  %v1070 = vpop.f32.mrb[0].mxu0
  %v1071 = vpop.f32.mrb[0].mxu0
  %v1072 = vpop.f32.mrb[0].mxu0
  %1073 = vdwg.mxu0
  %1074 = vmatprep.subr.bf16.mxu0 0
  %1075 = vmatpush1.bf16.msra.mxu0 %v762
  %1076 = vmatprep.subr.bf16.mxu0 0
  %1077 = vmatpush1.bf16.msra.mxu0 %v763
  %1078 = vmatprep.subr.bf16.mxu0 0
  %1079 = vmatpush1.bf16.msra.mxu0 %v764
  %1080 = vmatprep.subr.bf16.mxu0 0
  %1081 = vmatpush1.bf16.msra.mxu0 %v765
  %1082 = vmatprep.subr.bf16.mxu0 0
  %1083 = vmatpush1.bf16.msra.mxu0 %v766
  %1084 = vmatprep.subr.bf16.mxu0 0
  %1085 = vmatpush1.bf16.msra.mxu0 %v767
  %1086 = vmatprep.subr.bf16.mxu0 0
  %1087 = vmatpush1.bf16.msra.mxu0 %v768
  %1088 = vmatprep.subr.bf16.mxu0 0
  %1089 = vmatpush1.bf16.msra.mxu0 %v769
  %1090 = vmatprep.subr.bf16.mxu0 0
  %1091 = vmatpush1.bf16.msra.mxu0 %v770
  %1092 = vmatprep.subr.bf16.mxu0 0
  %1093 = vmatpush1.bf16.msra.mxu0 %v771
  %1094 = vmatprep.subr.bf16.mxu0 0
  %1095 = vmatpush1.bf16.msra.mxu0 %v772
  %1096 = vmatprep.subr.bf16.mxu0 0
  %1097 = vmatpush1.bf16.msra.mxu0 %v773
  %1098 = vmatprep.subr.bf16.mxu0 0
  %1099 = vmatpush1.bf16.msra.mxu0 %v774
  %1100 = vmatprep.subr.bf16.mxu0 0
  %1101 = vmatpush1.bf16.msra.mxu0 %v775
  %1102 = vmatprep.subr.bf16.mxu0 0
  %1103 = vmatpush1.bf16.msra.mxu0 %v776
  %1104 = vmatprep.subr.bf16.mxu0 0
  %1105 = vmatpush1.bf16.msra.mxu0 %v777
  %1106 = vmatprep.mubr.bf16.mxu0 %v285
  %1107 = vmatmul.mubr.bf16.gmra.mrb[0].mxu0 %v284
  %v1108 = vpop.f32.mrb[0].mxu0
  %v1109 = vadd.f32 %v1069, %v1108
  %v1110 = vpop.f32.mrb[0].mxu0
  %v1111 = vpop.f32.mrb[0].mxu0
  %v1112 = vpop.f32.mrb[0].mxu0
  %1113 = vdwg.mxu0
  %v1114 = vmax.f32 %v1109, 0.0
  %v1115 = vpack.c.bf16 %v1114, %v1114
  %1116 = vst [vmem:[%s4] sm:$0xf] %v1115
  // Predicated region
  $region14: #{ade20k_segmenter_forward.15} parent=0 // pred_check
    _
  $region15: #{ade20k_segmenter_forward.15} parent=0 // pred_check_branch
    %1118 = sbr.rel (0) target = $region17
  $region16: #{ade20k_segmenter_forward.15} parent=0 // pred_region
    _
  $region17: #{ade20k_segmenter_forward.15} parent=0 // pred_fallthru
    _
  // Predicated region
  $region18: #{ade20k_segmenter_forward.15} parent=0 // pred_check
    _
  $region19: #{ade20k_segmenter_forward.15} parent=0 // pred_check_branch
    %1120 = sbr.rel (0) target = $region21
  $region20: #{ade20k_segmenter_forward.15} parent=0 // pred_region
    _
  $region21: #{ade20k_segmenter_forward.15} parent=0 // pred_fallthru
    _

// kernel: ade20k_segmenter_forward.16
$region0: #{ade20k_segmenter_forward.16}
  #allocation0 [shape = 'u32[]', space=smem, size = 0x4, offset = 0x4, fixed_abs, tag = 'smem constant byte address 0x4 - core index']
  #allocation1 [shape = 'u32[144,128]{1,0:T(1,128)}', space=vmem, size = 0x12000, scoped, tag = 'internal scratch']
  #allocation2 [shape = 's32[1]{0}', space=sflag, size = 0x4, scoped, tag = 'scoped memory for ade20k_segmenter_forward.16']
  #allocation3 [shape = 'u8[512]{0}', space=smem, size = 0x200, scoped, tag = 'prefetched SMEM operand 0']
  %s0 = inlined_call_operand.vmem [shape: s32[3], index: 0, kind: input, shape index: {}]
  %s1 = inlined_call_operand.vmem [shape: bf16[384,384], index: 1, kind: input, shape index: {}]
  %s2 = inlined_call_operand.vmem [shape: bf16[3,384,128], index: 2, kind: input, shape index: {}]
  %s3 = inlined_call_operand.vmem [shape: f32[3,1,128], index: 3, kind: input, shape index: {}]
  %s4 = inlined_call_operand.vmem [shape: bf16[384,128], index: 4, kind: output, shape index: {}]
  %s5 = sld [smem:[#allocation0]]
  $region45: #{ade20k_segmenter_forward.16} parent=0
    _
  %s7 = ssub.s32 1, %s5
  %s8 = scalar_select 0, %s7, %s5
  %s9 = sshll.u32 %s0, 4
  %s10 = int_to_ptr.vmem [resolvable:$true] %s9
  %12 = dma.vmem_to_smem %s10, 16, [#allocation3], [#allocation2]
  %13 = dma.done [#allocation2], 16
  %14 = sfence
  loop: start=0, step=1, limit=5
  $region2: #{ade20k_segmenter_forward.16} parent=0 // loop_pre_header
    _
  $region3: #{ade20k_segmenter_forward.16} parent=0 // loop_header
    %s16 = sphi 0, %s20
    %p17 = scmp.ge.s32.totalorder %s16, 5
    %s26 = sphi 0, %s28
    %s29 = sphi 0, %s26
    %s30 = sphi 0, %s29
    %s46 = sphi 0, %s30
    %s54 = sphi 0, %s56
    %s57 = sphi 0, %s54
    %s58 = sphi 0, %s57
    %s74 = sphi 0, %s58
    %s82 = sphi 0, %s84
    %s85 = sphi 0, %s82
    %s86 = sphi 0, %s85
    %s102 = sphi 0, %s86
    %s108 = sphi 0, %s110
    %s111 = sphi 0, %s108
    %s112 = sphi 0, %s111
    %s128 = sphi 0, %s112
  $region4: #{ade20k_segmenter_forward.16} parent=0 // loop_header_branch
    %19 = sbr.rel (%p17) target = $region8
  $region5: #{ade20k_segmenter_forward.16} parent=0 // loop_body
    %s21 = ssub.s32 %s16, 1
    %s22 = ssub.s32 %s16, 2
    %s23 = sadd.s32 %s16, 1
    %s24 = ssub.s32 %s16, %s23
    %p25 = scmp.eq.s32.totalorder %s24, 0
    %s27 = sadd.s32 %s26, 1
    %s28 = scalar_select %p25, %s26, %s27
    %p31 = pneg %p25
    %p32 = scmp.eq.s32.totalorder %s16, 2
    %p33 = por %p31, %p32
    %p34 = scmp.ne.s32.totalorder %s26, %s29
    %p35 = scmp.eq.s32.totalorder %s16, 0
    %p36 = por %p34, %p35
    %p37 = scmp.ne.s32.totalorder %s26, %s29
    %p38 = scmp.eq.s32.totalorder %s21, 2
    %p39 = por %p37, %p38
    %p40 = scmp.ne.s32.totalorder %s29, %s30
    %p41 = scmp.eq.s32.totalorder %s21, 0
    %p42 = por %p40, %p41
    %p43 = scmp.ne.s32.totalorder %s29, %s30
    %p44 = scmp.eq.s32.totalorder %s22, 2
    %p45 = por %p43, %p44
    %p47 = scmp.ne.s32.totalorder %s30, %s46
    %p48 = scmp.eq.s32.totalorder %s22, 0
    %p49 = por %p47, %p48
    %s50 = sld [smem:[#allocation3 + %s16]]
    %s51 = sld [smem:[#allocation3 + %s23]]
    %s52 = ssub.s32 %s50, %s51
    %p53 = scmp.eq.s32.totalorder %s52, 0
    %s55 = sadd.s32 %s54, 1
    %s56 = scalar_select %p53, %s54, %s55
    %p59 = pneg %p53
    %p60 = scmp.eq.s32.totalorder %s16, 2
    %p61 = por %p59, %p60
    %p62 = scmp.ne.s32.totalorder %s54, %s57
    %p63 = scmp.eq.s32.totalorder %s16, 0
    %p64 = por %p62, %p63
    %p65 = scmp.ne.s32.totalorder %s54, %s57
    %p66 = scmp.eq.s32.totalorder %s21, 2
    %p67 = por %p65, %p66
    %p68 = scmp.ne.s32.totalorder %s57, %s58
    %p69 = scmp.eq.s32.totalorder %s21, 0
    %p70 = por %p68, %p69
    %p71 = scmp.ne.s32.totalorder %s57, %s58
    %p72 = scmp.eq.s32.totalorder %s22, 2
    %p73 = por %p71, %p72
    %p75 = scmp.ne.s32.totalorder %s58, %s74
    %p76 = scmp.eq.s32.totalorder %s22, 0
    %p77 = por %p75, %p76
    %s78 = sld [smem:[#allocation3 + %s16]]
    %s79 = sld [smem:[#allocation3 + %s23]]
    %s80 = ssub.s32 %s78, %s79
    %p81 = scmp.eq.s32.totalorder %s80, 0
    %s83 = sadd.s32 %s82, 1
    %s84 = scalar_select %p81, %s82, %s83
    %p87 = pneg %p81
    %p88 = scmp.eq.s32.totalorder %s16, 2
    %p89 = por %p87, %p88
    %p90 = scmp.ne.s32.totalorder %s82, %s85
    %p91 = scmp.eq.s32.totalorder %s16, 0
    %p92 = por %p90, %p91
    %p93 = scmp.ne.s32.totalorder %s82, %s85
    %p94 = scmp.eq.s32.totalorder %s21, 2
    %p95 = por %p93, %p94
    %p96 = scmp.ne.s32.totalorder %s85, %s86
    %p97 = scmp.eq.s32.totalorder %s21, 0
    %p98 = por %p96, %p97
    %p99 = scmp.ne.s32.totalorder %s85, %s86
    %p100 = scmp.eq.s32.totalorder %s22, 2
    %p101 = por %p99, %p100
    %p103 = scmp.ne.s32.totalorder %s86, %s102
    %p104 = scmp.eq.s32.totalorder %s22, 0
    %p105 = por %p103, %p104
    %s106 = ssub.s32 %s16, %s23
    %p107 = scmp.eq.s32.totalorder %s106, 0
    %s109 = sadd.s32 %s108, 1
    %s110 = scalar_select %p107, %s108, %s109
    %p113 = pneg %p107
    %p114 = scmp.eq.s32.totalorder %s16, 2
    %p115 = por %p113, %p114
    %p116 = scmp.ne.s32.totalorder %s108, %s111
    %p117 = scmp.eq.s32.totalorder %s16, 0
    %p118 = por %p116, %p117
    %p119 = scmp.ne.s32.totalorder %s108, %s111
    %p120 = scmp.eq.s32.totalorder %s21, 2
    %p121 = por %p119, %p120
    %p122 = scmp.ne.s32.totalorder %s111, %s112
    %p123 = scmp.eq.s32.totalorder %s21, 0
    %p124 = por %p122, %p123
    %p125 = scmp.ne.s32.totalorder %s111, %s112
    %p126 = scmp.eq.s32.totalorder %s22, 2
    %p127 = por %p125, %p126
    %p129 = scmp.ne.s32.totalorder %s112, %s128
    %p130 = scmp.eq.s32.totalorder %s22, 0
    %p131 = por %p129, %p130
    %p132 = scmp.le.s32.totalorder 1, %s16
    %p133 = scmp.lt.s32.totalorder %s16, 4
    %p134 = pnand %p132, %p133
    %p135 = pneg %p134
    // Predicated region
    $region9: #{ade20k_segmenter_forward.16} parent=5 // pred_check
      _
    $region10: #{ade20k_segmenter_forward.16} parent=5 // pred_check_branch
      %137 = sbr.rel (%p134) target = $region12
    $region11: #{ade20k_segmenter_forward.16} parent=5 // pred_region
      %s138 = ssub.s32 %s16, 1
    $region12: #{ade20k_segmenter_forward.16} parent=5 // pred_fallthru
      _
    %p139 = scmp.lt.s32.totalorder %s16, 3
    // Predicated region
    $region13: #{ade20k_segmenter_forward.16} parent=5 // pred_check
      %p140 = pneg %p139
    $region14: #{ade20k_segmenter_forward.16} parent=5 // pred_check_branch
      %142 = sbr.rel (%p140) target = $region16
    $region15: #{ade20k_segmenter_forward.16} parent=5 // pred_region
      // Predicated region
      $region17: #{ade20k_segmenter_forward.16} parent=15 // pred_check
        %p143 = pneg %p36
      $region18: #{ade20k_segmenter_forward.16} parent=15 // pred_check_branch
        %145 = sbr.rel (%p143) target = $region20
      $region19: #{ade20k_segmenter_forward.16} parent=15 // pred_region
        %s146 = smul.u32 16, %s16
        %p147 = scmp.lt.s32.totalorder %s146, 47
        %s148 = scalar_select %p147, %s146, 47
        %s149 = smul.addr %s148, 3
        %s150 = smul.addr %s149, 4
        %s151 = scalar_lea.vmem %s1, %s150
        %s152 = smul.u32 16, %s16
      $region20: #{ade20k_segmenter_forward.16} parent=15 // pred_fallthru
        _
      // Predicated region
      $region21: #{ade20k_segmenter_forward.16} parent=15 // pred_check
        %p153 = pneg %p64
      $region22: #{ade20k_segmenter_forward.16} parent=15 // pred_check_branch
        %155 = sbr.rel (%p153) target = $region24
      $region23: #{ade20k_segmenter_forward.16} parent=15 // pred_region
        %s156 = sld [smem:[#allocation3 + %s16]]
        %p157 = scmp.lt.s32.totalorder %s156, 2
        %s158 = scalar_select %p157, %s156, 2
        %s159 = smul.addr %s158, 48
        %s160 = smul.addr %s159, 4
        %s161 = scalar_lea.vmem %s2, %s160
        %s162 = sld [smem:[#allocation3 + %s16]]
      $region24: #{ade20k_segmenter_forward.16} parent=15 // pred_fallthru
        _
      // Predicated region
      $region25: #{ade20k_segmenter_forward.16} parent=15 // pred_check
        %p163 = pneg %p92
      $region26: #{ade20k_segmenter_forward.16} parent=15 // pred_check_branch
        %165 = sbr.rel (%p163) target = $region28
      $region27: #{ade20k_segmenter_forward.16} parent=15 // pred_region
        %s166 = sld [smem:[#allocation3 + %s16]]
        %p167 = scmp.lt.s32.totalorder %s166, 2
        %s168 = scalar_select %p167, %s166, 2
        %s169 = scalar_lea.vmem %s3, %s168
        %s170 = sld [smem:[#allocation3 + %s16]]
      $region28: #{ade20k_segmenter_forward.16} parent=15 // pred_fallthru
        _
    $region16: #{ade20k_segmenter_forward.16} parent=5 // pred_fallthru
      _
    %p171 = scmp.le.s32.totalorder 1, %s16
    %p172 = scmp.lt.s32.totalorder %s16, 4
    %p173 = pnand %p171, %p172
    %p174 = pneg %p173
    // Predicated region
    $region29: #{ade20k_segmenter_forward.16} parent=5 // pred_check
      _
    $region30: #{ade20k_segmenter_forward.16} parent=5 // pred_check_branch
      %176 = sbr.rel (%p173) target = $region32
    $region31: #{ade20k_segmenter_forward.16} parent=5 // pred_region
      %s177 = ssub.s32 %s16, 1
      %s178 = smul.u32 16, %s21
      %p179 = scmp.lt.s32.totalorder %s178, 47
      %s180 = scalar_select %p179, %s178, 47
      %s181 = smul.addr %s180, 3
      %s182 = smul.addr %s181, 4
      %s183 = scalar_lea.vmem %s1, %s182
      %p184 = pneg %p42
      %p185 = pneg %p39
      %s186 = sld [smem:[#allocation3 + %s21]]
      %p187 = scmp.lt.s32.totalorder %s186, 2
      %s188 = scalar_select %p187, %s186, 2
      %s189 = smul.addr %s188, 48
      %s190 = smul.addr %s189, 4
      %s191 = scalar_lea.vmem %s2, %s190
      %p192 = pneg %p70
      %p193 = pneg %p67
      %s194 = sld [smem:[#allocation3 + %s21]]
      %p195 = scmp.lt.s32.totalorder %s194, 2
      %s196 = scalar_select %p195, %s194, 2
      %s197 = scalar_lea.vmem %s3, %s196
      %p198 = pneg %p98
      %p199 = pneg %p95
      %p200 = pneg %p124
      %p201 = pneg %p121
      %s202 = smul.u32 16, %s21
      %p203 = scmp.lt.s32.totalorder %s202, 47
      %s204 = scalar_select %p203, %s202, 47
      %s205 = smul.addr %s204, 4
      %s206 = scalar_lea.vmem %s4, %s205
      %s207 = smul.u32 16, %s21
      %p208 = scmp.lt.s32.totalorder %s207, 47
      %s209 = scalar_select %p208, %s207, 47
      %s210 = smul.addr %s209, 3
      %s211 = smul.addr %s210, 4
      %s212 = scalar_lea.vmem %s1, %s211
      %s213 = smul.u32 16, %s21
      %s214 = sld [smem:[#allocation3 + %s21]]
      %p215 = scmp.lt.s32.totalorder %s214, 2
      %s216 = scalar_select %p215, %s214, 2
      %s217 = smul.addr %s216, 48
      %s218 = smul.addr %s217, 4
      %s219 = scalar_lea.vmem %s2, %s218
      %s220 = sld [smem:[#allocation3 + %s21]]
      %s221 = sld [smem:[#allocation3 + %s21]]
      %p222 = scmp.lt.s32.totalorder %s221, 2
      %s223 = scalar_select %p222, %s221, 2
      %s224 = scalar_lea.vmem %s3, %s223
      %s225 = sld [smem:[#allocation3 + %s21]]
      %s226 = smul.u32 16, %s21
      %p227 = scmp.lt.s32.totalorder %s226, 47
      %s228 = scalar_select %p227, %s226, 47
      %s229 = smul.addr %s228, 4
      %s230 = scalar_lea.vmem %s4, %s229
      %s231 = smul.u32 16, %s21
      %v233 = vld [vmem:[%s212] sm:$0xff]
      %v234 = vld [vmem:[%s212 + $0x8] sm:$0xf]
      %v235 = vld [vmem:[%s212 + $0xc] sm:$0xff]
      %v236 = vld [vmem:[%s212 + $0x14] sm:$0xf]
      %v237 = vld [vmem:[%s212 + $0x18] sm:$0xff]
      %v238 = vld [vmem:[%s212 + $0x20] sm:$0xf]
      %v239 = vld [vmem:[%s212 + $0x24] sm:$0xff]
      %v240 = vld [vmem:[%s212 + $0x2c] sm:$0xf]
      %v241 = vld [vmem:[%s212 + $0x30] sm:$0xff]
      %v242 = vld [vmem:[%s212 + $0x38] sm:$0xf]
      %v243 = vld [vmem:[%s212 + $0x3c] sm:$0xff]
      %v244 = vld [vmem:[%s212 + $0x44] sm:$0xf]
      %v245 = vld [vmem:[%s212 + $0x48] sm:$0xff]
      %v246 = vld [vmem:[%s212 + $0x50] sm:$0xf]
      %v247 = vld [vmem:[%s212 + $0x54] sm:$0xff]
      %v248 = vld [vmem:[%s212 + $0x5c] sm:$0xf]
      %v249 = vld [vmem:[%s212 + $0x60] sm:$0xff]
      %v250 = vld [vmem:[%s212 + $0x68] sm:$0xf]
      %v251 = vld [vmem:[%s212 + $0x6c] sm:$0xff]
      %v252 = vld [vmem:[%s212 + $0x74] sm:$0xf]
      %v253 = vld [vmem:[%s212 + $0x78] sm:$0xff]
      %v254 = vld [vmem:[%s212 + $0x80] sm:$0xf]
      %v255 = vld [vmem:[%s212 + $0x84] sm:$0xff]
      %v256 = vld [vmem:[%s212 + $0x8c] sm:$0xf]
      %v257 = vld [vmem:[%s212 + $0x90] sm:$0xff]
      %v258 = vld [vmem:[%s212 + $0x98] sm:$0xf]
      %v259 = vld [vmem:[%s212 + $0x9c] sm:$0xff]
      %v260 = vld [vmem:[%s212 + $0xa4] sm:$0xf]
      %v261 = vld [vmem:[%s212 + $0xa8] sm:$0xff]
      %v262 = vld [vmem:[%s212 + $0xb0] sm:$0xf]
      %v263 = vld [vmem:[%s212 + $0xb4] sm:$0xff]
      %v264 = vld [vmem:[%s212 + $0xbc] sm:$0xf]
      %v265 = vld [vmem:[%s219] sm:$0xf]
      %v266 = vld [vmem:[%s219 + $0x4] sm:$0xf]
      %v267 = vld [vmem:[%s219 + $0x8] sm:$0xf]
      %v268 = vld [vmem:[%s219 + $0xc] sm:$0xf]
      %v269 = vld [vmem:[%s219 + $0x10] sm:$0xf]
      %v270 = vld [vmem:[%s219 + $0x14] sm:$0xf]
      %v271 = vld [vmem:[%s219 + $0x18] sm:$0xf]
      %v272 = vld [vmem:[%s219 + $0x1c] sm:$0xf]
      %v273 = vld [vmem:[%s219 + $0x20] sm:$0xf]
      %v274 = vld [vmem:[%s219 + $0x24] sm:$0xf]
      %v275 = vld [vmem:[%s219 + $0x28] sm:$0xf]
      %v276 = vld [vmem:[%s219 + $0x2c] sm:$0xf]
      %v277 = vld [vmem:[%s219 + $0x30] sm:$0xf]
      %v278 = vld [vmem:[%s219 + $0x34] sm:$0xf]
      %v279 = vld [vmem:[%s219 + $0x38] sm:$0xf]
      %v280 = vld [vmem:[%s219 + $0x3c] sm:$0xf]
      %v281 = vld [vmem:[%s219 + $0x40] sm:$0xf]
      %v282 = vld [vmem:[%s219 + $0x44] sm:$0xf]
      %v283 = vld [vmem:[%s219 + $0x48] sm:$0xf]
      %v284 = vld [vmem:[%s219 + $0x4c] sm:$0xf]
      %v285 = vld [vmem:[%s219 + $0x50] sm:$0xf]
      %v286 = vld [vmem:[%s219 + $0x54] sm:$0xf]
      %v287 = vld [vmem:[%s219 + $0x58] sm:$0xf]
      %v288 = vld [vmem:[%s219 + $0x5c] sm:$0xf]
      %v289 = vld [vmem:[%s219 + $0x60] sm:$0xf]
      %v290 = vld [vmem:[%s219 + $0x64] sm:$0xf]
      %v291 = vld [vmem:[%s219 + $0x68] sm:$0xf]
      %v292 = vld [vmem:[%s219 + $0x6c] sm:$0xf]
      %v293 = vld [vmem:[%s219 + $0x70] sm:$0xf]
      %v294 = vld [vmem:[%s219 + $0x74] sm:$0xf]
      %v295 = vld [vmem:[%s219 + $0x78] sm:$0xf]
      %v296 = vld [vmem:[%s219 + $0x7c] sm:$0xf]
      %v297 = vld [vmem:[%s219 + $0x80] sm:$0xf]
      %v298 = vld [vmem:[%s219 + $0x84] sm:$0xf]
      %v299 = vld [vmem:[%s219 + $0x88] sm:$0xf]
      %v300 = vld [vmem:[%s219 + $0x8c] sm:$0xf]
      %v301 = vld [vmem:[%s219 + $0x90] sm:$0xf]
      %v302 = vld [vmem:[%s219 + $0x94] sm:$0xf]
      %v303 = vld [vmem:[%s219 + $0x98] sm:$0xf]
      %v304 = vld [vmem:[%s219 + $0x9c] sm:$0xf]
      %v305 = vld [vmem:[%s219 + $0xa0] sm:$0xf]
      %v306 = vld [vmem:[%s219 + $0xa4] sm:$0xf]
      %v307 = vld [vmem:[%s219 + $0xa8] sm:$0xf]
      %v308 = vld [vmem:[%s219 + $0xac] sm:$0xf]
      %v309 = vld [vmem:[%s219 + $0xb0] sm:$0xf]
      %v310 = vld [vmem:[%s219 + $0xb4] sm:$0xf]
      %v311 = vld [vmem:[%s219 + $0xb8] sm:$0xf]
      %v312 = vld [vmem:[%s219 + $0xbc] sm:$0xf]
      %v313 = vld [vmem:[%s224] sm:$0x1]
      %v315 = vlaneseq
      %v316 = vshrl.u32 %v315, 7
      %v317 = vsub.s32 0, %v316
      %v318 = vrot.slane %v313, %v317
      %v352 = vunpack.c.l.b16 %v233
      %v353 = vunpack.c.h.b16 %v233
      %v354 = vunpack.c.l.b16 %v234
      %v355 = vunpack.c.l.b16 %v235
      %v356 = vunpack.c.h.b16 %v235
      %v357 = vunpack.c.l.b16 %v236
      %v358 = vunpack.c.l.b16 %v237
      %v359 = vunpack.c.h.b16 %v237
      %v360 = vunpack.c.l.b16 %v238
      %v361 = vunpack.c.l.b16 %v239
      %v362 = vunpack.c.h.b16 %v239
      %v363 = vunpack.c.l.b16 %v240
      %v364 = vunpack.c.l.b16 %v241
      %v365 = vunpack.c.h.b16 %v241
      %v366 = vunpack.c.l.b16 %v242
      %v367 = vunpack.c.l.b16 %v243
      %v368 = vunpack.c.h.b16 %v243
      %v369 = vunpack.c.l.b16 %v244
      %v370 = vunpack.c.l.b16 %v245
      %v371 = vunpack.c.h.b16 %v245
      %v372 = vunpack.c.l.b16 %v246
      %v373 = vunpack.c.l.b16 %v247
      %v374 = vunpack.c.h.b16 %v247
      %v375 = vunpack.c.l.b16 %v248
      %v376 = vunpack.c.l.b16 %v249
      %v377 = vunpack.c.h.b16 %v249
      %v378 = vunpack.c.l.b16 %v250
      %v379 = vunpack.c.l.b16 %v251
      %v380 = vunpack.c.h.b16 %v251
      %v381 = vunpack.c.l.b16 %v252
      %v382 = vunpack.c.l.b16 %v253
      %v383 = vunpack.c.h.b16 %v253
      %v384 = vunpack.c.l.b16 %v254
      %v385 = vunpack.c.l.b16 %v255
      %v386 = vunpack.c.h.b16 %v255
      %v387 = vunpack.c.l.b16 %v256
      %v388 = vunpack.c.l.b16 %v257
      %v389 = vunpack.c.h.b16 %v257
      %v390 = vunpack.c.l.b16 %v258
      %v391 = vunpack.c.l.b16 %v259
      %v392 = vunpack.c.h.b16 %v259
      %v393 = vunpack.c.l.b16 %v260
      %v394 = vunpack.c.l.b16 %v261
      %v395 = vunpack.c.h.b16 %v261
      %v396 = vunpack.c.l.b16 %v262
      %v397 = vunpack.c.l.b16 %v263
      %v398 = vunpack.c.h.b16 %v263
      %v399 = vunpack.c.l.b16 %v264
      %v400 = vpack.c.b16 %v355, %v352
      %v401 = vpack.c.b16 %v356, %v353
      %v402 = vpack.c.b16 %v357, %v354
      %v403 = vpack.c.b16 %v361, %v358
      %v404 = vpack.c.b16 %v362, %v359
      %v405 = vpack.c.b16 %v363, %v360
      %v406 = vpack.c.b16 %v367, %v364
      %v407 = vpack.c.b16 %v368, %v365
      %v408 = vpack.c.b16 %v369, %v366
      %v409 = vpack.c.b16 %v373, %v370
      %v410 = vpack.c.b16 %v374, %v371
      %v411 = vpack.c.b16 %v375, %v372
      %v412 = vpack.c.b16 %v379, %v376
      %v413 = vpack.c.b16 %v380, %v377
      %v414 = vpack.c.b16 %v381, %v378
      %v415 = vpack.c.b16 %v385, %v382
      %v416 = vpack.c.b16 %v386, %v383
      %v417 = vpack.c.b16 %v387, %v384
      %v418 = vpack.c.b16 %v391, %v388
      %v419 = vpack.c.b16 %v392, %v389
      %v420 = vpack.c.b16 %v393, %v390
      %v421 = vpack.c.b16 %v397, %v394
      %v422 = vpack.c.b16 %v398, %v395
      %v423 = vpack.c.b16 %v399, %v396
      %v496 = vunpack.c.l.b16 %v265
      %v497 = vunpack.c.l.b16 %v266
      %v498 = vunpack.c.l.b16 %v267
      %v499 = vunpack.c.l.b16 %v268
      %v500 = vunpack.c.l.b16 %v269
      %v501 = vunpack.c.l.b16 %v270
      %v502 = vunpack.c.l.b16 %v271
      %v503 = vunpack.c.l.b16 %v272
      %v504 = vunpack.c.l.b16 %v273
      %v505 = vunpack.c.l.b16 %v274
      %v506 = vunpack.c.l.b16 %v275
      %v507 = vunpack.c.l.b16 %v276
      %v508 = vunpack.c.l.b16 %v277
      %v509 = vunpack.c.l.b16 %v278
      %v510 = vunpack.c.l.b16 %v279
      %v511 = vunpack.c.l.b16 %v280
      %v512 = vunpack.c.l.b16 %v281
      %v513 = vunpack.c.l.b16 %v282
      %v514 = vunpack.c.l.b16 %v283
      %v515 = vunpack.c.l.b16 %v284
      %v516 = vunpack.c.l.b16 %v285
      %v517 = vunpack.c.l.b16 %v286
      %v518 = vunpack.c.l.b16 %v287
      %v519 = vunpack.c.l.b16 %v288
      %v520 = vunpack.c.l.b16 %v289
      %v521 = vunpack.c.l.b16 %v290
      %v522 = vunpack.c.l.b16 %v291
      %v523 = vunpack.c.l.b16 %v292
      %v524 = vunpack.c.l.b16 %v293
      %v525 = vunpack.c.l.b16 %v294
      %v526 = vunpack.c.l.b16 %v295
      %v527 = vunpack.c.l.b16 %v296
      %v528 = vunpack.c.l.b16 %v297
      %v529 = vunpack.c.l.b16 %v298
      %v530 = vunpack.c.l.b16 %v299
      %v531 = vunpack.c.l.b16 %v300
      %v532 = vunpack.c.l.b16 %v301
      %v533 = vunpack.c.l.b16 %v302
      %v534 = vunpack.c.l.b16 %v303
      %v535 = vunpack.c.l.b16 %v304
      %v536 = vunpack.c.l.b16 %v305
      %v537 = vunpack.c.l.b16 %v306
      %v538 = vunpack.c.l.b16 %v307
      %v539 = vunpack.c.l.b16 %v308
      %v540 = vunpack.c.l.b16 %v309
      %v541 = vunpack.c.l.b16 %v310
      %v542 = vunpack.c.l.b16 %v311
      %v543 = vunpack.c.l.b16 %v312
      %v544 = vpack.c.b16 %v497, %v496
      %v545 = vpack.c.b16 %v499, %v498
      %v546 = vpack.c.b16 %v501, %v500
      %v547 = vpack.c.b16 %v503, %v502
      %v548 = vpack.c.b16 %v505, %v504
      %v549 = vpack.c.b16 %v507, %v506
      %v550 = vpack.c.b16 %v509, %v508
      %v551 = vpack.c.b16 %v511, %v510
      %v552 = vpack.c.b16 %v513, %v512
      %v553 = vpack.c.b16 %v515, %v514
      %v554 = vpack.c.b16 %v517, %v516
      %v555 = vpack.c.b16 %v519, %v518
      %v556 = vpack.c.b16 %v521, %v520
      %v557 = vpack.c.b16 %v523, %v522
      %v558 = vpack.c.b16 %v525, %v524
      %v559 = vpack.c.b16 %v527, %v526
      %v560 = vpack.c.b16 %v529, %v528
      %v561 = vpack.c.b16 %v531, %v530
      %v562 = vpack.c.b16 %v533, %v532
      %v563 = vpack.c.b16 %v535, %v534
      %v564 = vpack.c.b16 %v537, %v536
      %v565 = vpack.c.b16 %v539, %v538
      %v566 = vpack.c.b16 %v541, %v540
      %v567 = vpack.c.b16 %v543, %v542
      %592 = vmatprep.subr.bf16.mxu0 0
      %593 = vmatpush1.bf16.msra.mxu0 %v544
      %594 = vmatprep.subr.bf16.mxu0 0
      %595 = vmatpush1.bf16.msra.mxu0 %v545
      %596 = vmatprep.subr.bf16.mxu0 0
      %597 = vmatpush1.bf16.msra.mxu0 %v546
      %598 = vmatprep.subr.bf16.mxu0 0
      %599 = vmatpush1.bf16.msra.mxu0 %v547
      %600 = vmatprep.subr.bf16.mxu0 0
      %601 = vmatpush1.bf16.msra.mxu0 %v548
      %602 = vmatprep.subr.bf16.mxu0 0
      %603 = vmatpush1.bf16.msra.mxu0 %v549
      %604 = vmatprep.subr.bf16.mxu0 0
      %605 = vmatpush1.bf16.msra.mxu0 %v550
      %606 = vmatprep.subr.bf16.mxu0 0
      %607 = vmatpush1.bf16.msra.mxu0 %v551
      %608 = vmatprep.subr.bf16.mxu0 0
      %609 = vmatpush1.bf16.msra.mxu0 %v552
      %610 = vmatprep.subr.bf16.mxu0 0
      %611 = vmatpush1.bf16.msra.mxu0 %v553
      %612 = vmatprep.subr.bf16.mxu0 0
      %613 = vmatpush1.bf16.msra.mxu0 %v554
      %614 = vmatprep.subr.bf16.mxu0 0
      %615 = vmatpush1.bf16.msra.mxu0 %v555
      %616 = vmatprep.subr.bf16.mxu0 0
      %617 = vmatpush1.bf16.msra.mxu0 %v556
      %618 = vmatprep.subr.bf16.mxu0 0
      %619 = vmatpush1.bf16.msra.mxu0 %v557
      %620 = vmatprep.subr.bf16.mxu0 0
      %621 = vmatpush1.bf16.msra.mxu0 %v558
      %622 = vmatprep.subr.bf16.mxu0 0
      %623 = vmatpush1.bf16.msra.mxu0 %v559
      %624 = vmatprep.mubr.bf16.mxu0 %v401
      %625 = vmatmul.mubr.bf16.gmra.mrb[0].mxu0 %v400
      %v626 = vpop.f32.mrb[0].mxu0
      %v627 = vadd.f32 %v318, %v626
      %v628 = vpop.f32.mrb[0].mxu0
      %v629 = vpop.f32.mrb[0].mxu0
      %v630 = vadd.f32 %v318, %v629
      %v631 = vpop.f32.mrb[0].mxu0
      %632 = vmatprep.mubr.bf16.mxu0 %v404
      %633 = vmatmul.mubr.bf16.gmra.mrb[0].mxu0 %v403
      %v634 = vpop.f32.mrb[0].mxu0
      %v635 = vadd.f32 %v318, %v634
      %v636 = vpop.f32.mrb[0].mxu0
      %v637 = vpop.f32.mrb[0].mxu0
      %v638 = vadd.f32 %v318, %v637
      %v639 = vpop.f32.mrb[0].mxu0
      %640 = vmatprep.mubr.bf16.mxu0 %v407
      %641 = vmatmul.mubr.bf16.gmra.mrb[0].mxu0 %v406
      %v642 = vpop.f32.mrb[0].mxu0
      %v643 = vadd.f32 %v318, %v642
      %v644 = vpop.f32.mrb[0].mxu0
      %v645 = vpop.f32.mrb[0].mxu0
      %v646 = vadd.f32 %v318, %v645
      %v647 = vpop.f32.mrb[0].mxu0
      %648 = vmatprep.mubr.bf16.mxu0 %v410
      %649 = vmatmul.mubr.bf16.gmra.mrb[0].mxu0 %v409
      %v650 = vpop.f32.mrb[0].mxu0
      %v651 = vadd.f32 %v318, %v650
      %v652 = vpop.f32.mrb[0].mxu0
      %v653 = vpop.f32.mrb[0].mxu0
      %v654 = vadd.f32 %v318, %v653
      %v655 = vpop.f32.mrb[0].mxu0
      %656 = vmatprep.mubr.bf16.mxu0 %v413
      %657 = vmatmul.mubr.bf16.gmra.mrb[0].mxu0 %v412
      %v658 = vpop.f32.mrb[0].mxu0
      %v659 = vadd.f32 %v318, %v658
      %v660 = vpop.f32.mrb[0].mxu0
      %v661 = vpop.f32.mrb[0].mxu0
      %v662 = vadd.f32 %v318, %v661
      %v663 = vpop.f32.mrb[0].mxu0
      %664 = vmatprep.mubr.bf16.mxu0 %v416
      %665 = vmatmul.mubr.bf16.gmra.mrb[0].mxu0 %v415
      %v666 = vpop.f32.mrb[0].mxu0
      %v667 = vadd.f32 %v318, %v666
      %v668 = vpop.f32.mrb[0].mxu0
      %v669 = vpop.f32.mrb[0].mxu0
      %v670 = vadd.f32 %v318, %v669
      %v671 = vpop.f32.mrb[0].mxu0
      %672 = vmatprep.mubr.bf16.mxu0 %v419
      %673 = vmatmul.mubr.bf16.gmra.mrb[0].mxu0 %v418
      %v674 = vpop.f32.mrb[0].mxu0
      %v675 = vadd.f32 %v318, %v674
      %v676 = vpop.f32.mrb[0].mxu0
      %v677 = vpop.f32.mrb[0].mxu0
      %v678 = vadd.f32 %v318, %v677
      %v679 = vpop.f32.mrb[0].mxu0
      %680 = vmatprep.mubr.bf16.mxu0 %v422
      %681 = vmatmul.mubr.bf16.gmra.mrb[0].mxu0 %v421
      %v682 = vpop.f32.mrb[0].mxu0
      %v683 = vadd.f32 %v318, %v682
      %v684 = vpop.f32.mrb[0].mxu0
      %v685 = vpop.f32.mrb[0].mxu0
      %v686 = vadd.f32 %v318, %v685
      %v687 = vpop.f32.mrb[0].mxu0
      %688 = vdwg.mxu0
      %689 = vmatprep.subr.bf16.mxu0 0
      %690 = vmatpush1.bf16.msra.mxu0 %v560
      %691 = vmatprep.subr.bf16.mxu0 0
      %692 = vmatpush1.bf16.msra.mxu0 %v561
      %693 = vmatprep.subr.bf16.mxu0 0
      %694 = vmatpush1.bf16.msra.mxu0 %v562
      %695 = vmatprep.subr.bf16.mxu0 0
      %696 = vmatpush1.bf16.msra.mxu0 %v563
      %697 = vmatprep.subr.bf16.mxu0 0
      %698 = vmatpush1.bf16.msra.mxu0 %v564
      %699 = vmatprep.subr.bf16.mxu0 0
      %700 = vmatpush1.bf16.msra.mxu0 %v565
      %701 = vmatprep.subr.bf16.mxu0 0
      %702 = vmatpush1.bf16.msra.mxu0 %v566
      %703 = vmatprep.subr.bf16.mxu0 0
      %704 = vmatpush1.bf16.msra.mxu0 %v567
      %705 = vmatprep.subr.bf16.mxu0 0
      %706 = vmatpush1.bf16.msra.mxu0 0
      %707 = vmatprep.subr.bf16.mxu0 0
      %708 = vmatpush1.bf16.msra.mxu0 0
      %709 = vmatprep.subr.bf16.mxu0 0
      %710 = vmatpush1.bf16.msra.mxu0 0
      %711 = vmatprep.subr.bf16.mxu0 0
      %712 = vmatpush1.bf16.msra.mxu0 0
      %713 = vmatprep.subr.bf16.mxu0 0
      %714 = vmatpush1.bf16.msra.mxu0 0
      %715 = vmatprep.subr.bf16.mxu0 0
      %716 = vmatpush1.bf16.msra.mxu0 0
      %717 = vmatprep.subr.bf16.mxu0 0
      %718 = vmatpush1.bf16.msra.mxu0 0
      %719 = vmatprep.subr.bf16.mxu0 0
      %720 = vmatpush1.bf16.msra.mxu0 0
      %721 = vmatprep.mubr.bf16.mxu0 0
      %722 = vmatmul.mubr.bf16.gmra.mrb[0].mxu0 %v402
      %v723 = vpop.f32.mrb[0].mxu0
      %v724 = vadd.f32 %v627, %v723
      %v725 = vpop.f32.mrb[0].mxu0
      %v726 = vpop.f32.mrb[0].mxu0
      %v727 = vadd.f32 %v630, %v726
      %v728 = vpop.f32.mrb[0].mxu0
      %729 = vmatprep.mubr.bf16.mxu0 0
      %730 = vmatmul.mubr.bf16.gmra.mrb[0].mxu0 %v405
      %v731 = vpop.f32.mrb[0].mxu0
      %v732 = vadd.f32 %v635, %v731
      %v733 = vpop.f32.mrb[0].mxu0
      %v734 = vpop.f32.mrb[0].mxu0
      %v735 = vadd.f32 %v638, %v734
      %v736 = vpop.f32.mrb[0].mxu0
      %737 = vmatprep.mubr.bf16.mxu0 0
      %738 = vmatmul.mubr.bf16.gmra.mrb[0].mxu0 %v408
      %v739 = vpop.f32.mrb[0].mxu0
      %v740 = vadd.f32 %v643, %v739
      %v741 = vpop.f32.mrb[0].mxu0
      %v742 = vpop.f32.mrb[0].mxu0
      %v743 = vadd.f32 %v646, %v742
      %v744 = vpop.f32.mrb[0].mxu0
      %745 = vmatprep.mubr.bf16.mxu0 0
      %746 = vmatmul.mubr.bf16.gmra.mrb[0].mxu0 %v411
      %v747 = vpop.f32.mrb[0].mxu0
      %v748 = vadd.f32 %v651, %v747
      %v749 = vpop.f32.mrb[0].mxu0
      %v750 = vpop.f32.mrb[0].mxu0
      %v751 = vadd.f32 %v654, %v750
      %v752 = vpop.f32.mrb[0].mxu0
      %753 = vmatprep.mubr.bf16.mxu0 0
      %754 = vmatmul.mubr.bf16.gmra.mrb[0].mxu0 %v414
      %v755 = vpop.f32.mrb[0].mxu0
      %v756 = vadd.f32 %v659, %v755
      %v757 = vpop.f32.mrb[0].mxu0
      %v758 = vpop.f32.mrb[0].mxu0
      %v759 = vadd.f32 %v662, %v758
      %v760 = vpop.f32.mrb[0].mxu0
      %761 = vmatprep.mubr.bf16.mxu0 0
      %762 = vmatmul.mubr.bf16.gmra.mrb[0].mxu0 %v417
      %v763 = vpop.f32.mrb[0].mxu0
      %v764 = vadd.f32 %v667, %v763
      %v765 = vpop.f32.mrb[0].mxu0
      %v766 = vpop.f32.mrb[0].mxu0
      %v767 = vadd.f32 %v670, %v766
      %v768 = vpop.f32.mrb[0].mxu0
      %769 = vmatprep.mubr.bf16.mxu0 0
      %770 = vmatmul.mubr.bf16.gmra.mrb[0].mxu0 %v420
      %v771 = vpop.f32.mrb[0].mxu0
      %v772 = vadd.f32 %v675, %v771
      %v773 = vpop.f32.mrb[0].mxu0
      %v774 = vpop.f32.mrb[0].mxu0
      %v775 = vadd.f32 %v678, %v774
      %v776 = vpop.f32.mrb[0].mxu0
      %777 = vmatprep.mubr.bf16.mxu0 0
      %778 = vmatmul.mubr.bf16.gmra.mrb[0].mxu0 %v423
      %v779 = vpop.f32.mrb[0].mxu0
      %v780 = vadd.f32 %v683, %v779
      %v781 = vpop.f32.mrb[0].mxu0
      %v782 = vpop.f32.mrb[0].mxu0
      %v783 = vadd.f32 %v686, %v782
      %v784 = vpop.f32.mrb[0].mxu0
      %785 = vdwg.mxu0
      %v786 = vmax.f32 %v724, 0.0
      %v787 = vmax.f32 %v727, 0.0
      %v788 = vmax.f32 %v732, 0.0
      %v789 = vmax.f32 %v735, 0.0
      %v790 = vmax.f32 %v740, 0.0
      %v791 = vmax.f32 %v743, 0.0
      %v792 = vmax.f32 %v748, 0.0
      %v793 = vmax.f32 %v751, 0.0
      %v794 = vmax.f32 %v756, 0.0
      %v795 = vmax.f32 %v759, 0.0
      %v796 = vmax.f32 %v764, 0.0
      %v797 = vmax.f32 %v767, 0.0
      %v798 = vmax.f32 %v772, 0.0
      %v799 = vmax.f32 %v775, 0.0
      %v800 = vmax.f32 %v780, 0.0
      %v801 = vmax.f32 %v783, 0.0
      %v802 = vpack.c.bf16 %v787, %v786
      %v803 = vpack.c.bf16 %v789, %v788
      %v804 = vpack.c.bf16 %v791, %v790
      %v805 = vpack.c.bf16 %v793, %v792
      %v806 = vpack.c.bf16 %v795, %v794
      %v807 = vpack.c.bf16 %v797, %v796
      %v808 = vpack.c.bf16 %v799, %v798
      %v809 = vpack.c.bf16 %v801, %v800
      %v818 = vunpack.c.l.b16 %v802
      %v819 = vunpack.c.h.b16 %v802
      %v820 = vunpack.c.l.b16 %v803
      %v821 = vunpack.c.h.b16 %v803
      %v822 = vunpack.c.l.b16 %v804
      %v823 = vunpack.c.h.b16 %v804
      %v824 = vunpack.c.l.b16 %v805
      %v825 = vunpack.c.h.b16 %v805
      %v826 = vunpack.c.l.b16 %v806
      %v827 = vunpack.c.h.b16 %v806
      %v828 = vunpack.c.l.b16 %v807
      %v829 = vunpack.c.h.b16 %v807
      %v830 = vunpack.c.l.b16 %v808
      %v831 = vunpack.c.h.b16 %v808
      %v832 = vunpack.c.l.b16 %v809
      %v833 = vunpack.c.h.b16 %v809
      %v834 = vpack.c.b16 %v818, %v818
      %v835 = vpack.c.b16 %v819, %v819
      %v836 = vpack.c.b16 %v820, %v820
      %v837 = vpack.c.b16 %v821, %v821
      %v838 = vpack.c.b16 %v822, %v822
      %v839 = vpack.c.b16 %v823, %v823
      %v840 = vpack.c.b16 %v824, %v824
      %v841 = vpack.c.b16 %v825, %v825
      %v842 = vpack.c.b16 %v826, %v826
      %v843 = vpack.c.b16 %v827, %v827
      %v844 = vpack.c.b16 %v828, %v828
      %v845 = vpack.c.b16 %v829, %v829
      %v846 = vpack.c.b16 %v830, %v830
      %v847 = vpack.c.b16 %v831, %v831
      %v848 = vpack.c.b16 %v832, %v832
      %v849 = vpack.c.b16 %v833, %v833
      %866 = vst [vmem:[%s230] sm:$0xf] %v834
      %867 = vst [vmem:[%s230 + $0x4] sm:$0xf] %v835
      %868 = vst [vmem:[%s230 + $0x8] sm:$0xf] %v836
      %869 = vst [vmem:[%s230 + $0xc] sm:$0xf] %v837
      %870 = vst [vmem:[%s230 + $0x10] sm:$0xf] %v838
      %871 = vst [vmem:[%s230 + $0x14] sm:$0xf] %v839
      %872 = vst [vmem:[%s230 + $0x18] sm:$0xf] %v840
      %873 = vst [vmem:[%s230 + $0x1c] sm:$0xf] %v841
      %874 = vst [vmem:[%s230 + $0x20] sm:$0xf] %v842
      %875 = vst [vmem:[%s230 + $0x24] sm:$0xf] %v843
      %876 = vst [vmem:[%s230 + $0x28] sm:$0xf] %v844
      %877 = vst [vmem:[%s230 + $0x2c] sm:$0xf] %v845
      %878 = vst [vmem:[%s230 + $0x30] sm:$0xf] %v846
      %879 = vst [vmem:[%s230 + $0x34] sm:$0xf] %v847
      %880 = vst [vmem:[%s230 + $0x38] sm:$0xf] %v848
      %881 = vst [vmem:[%s230 + $0x3c] sm:$0xf] %v849
      %s882 = smul.u32 16, %s21
      %p883 = scmp.lt.s32.totalorder %s882, 47
      %s884 = scalar_select %p883, %s882, 47
      %s885 = smul.addr %s884, 4
      %s886 = scalar_lea.vmem %s4, %s885
      // Predicated region
      $region33: #{ade20k_segmenter_forward.16} parent=31 // pred_check
        %p887 = pneg %p121
      $region34: #{ade20k_segmenter_forward.16} parent=31 // pred_check_branch
        %889 = sbr.rel (%p887) target = $region36
      $region35: #{ade20k_segmenter_forward.16} parent=31 // pred_region
        %s890 = smul.u32 16, %s21
      $region36: #{ade20k_segmenter_forward.16} parent=31 // pred_fallthru
        _
    $region32: #{ade20k_segmenter_forward.16} parent=5 // pred_fallthru
      _
    %p891 = scmp.le.s32.totalorder 2, %s16
    // Predicated region
    $region37: #{ade20k_segmenter_forward.16} parent=5 // pred_check
      %p892 = pneg %p891
    $region38: #{ade20k_segmenter_forward.16} parent=5 // pred_check_branch
      %894 = sbr.rel (%p892) target = $region40
    $region39: #{ade20k_segmenter_forward.16} parent=5 // pred_region
      %s895 = ssub.s32 %s16, 2
      // Predicated region
      $region41: #{ade20k_segmenter_forward.16} parent=39 // pred_check
        %p896 = pneg %p127
      $region42: #{ade20k_segmenter_forward.16} parent=39 // pred_check_branch
        %898 = sbr.rel (%p896) target = $region44
      $region43: #{ade20k_segmenter_forward.16} parent=39 // pred_region
        %s899 = smul.u32 16, %s22
        %p900 = scmp.lt.s32.totalorder %s899, 47
        %s901 = scalar_select %p900, %s899, 47
        %s902 = smul.addr %s901, 4
        %s903 = scalar_lea.vmem %s4, %s902
      $region44: #{ade20k_segmenter_forward.16} parent=39 // pred_fallthru
        _
    $region40: #{ade20k_segmenter_forward.16} parent=5 // pred_fallthru
      _
  $region6: #{ade20k_segmenter_forward.16} parent=0 // loop_footer
    %s20 = sadd.s32 1, %s16
  $region7: #{ade20k_segmenter_forward.16} parent=0 // loop_footer_branch
    %15 = sbr.rel target = $region3
  $region8: #{ade20k_segmenter_forward.16} parent=0 // loop_exit
    _

// kernel: ade20k_segmenter_forward.18
$region0: #{ade20k_segmenter_forward.18}
  #allocation0 [shape = 'u32[]', space=smem, size = 0x4, offset = 0x4, fixed_abs, tag = 'smem constant byte address 0x4 - core index']
  #allocation1 [shape = 'u32[144,128]{1,0:T(1,128)}', space=vmem, size = 0x12000, scoped, tag = 'internal scratch']
  #allocation2 [shape = 's32[1]{0}', space=sflag, size = 0x4, scoped, tag = 'scoped memory for ade20k_segmenter_forward.18']
  #allocation3 [shape = 's32[1]{0:T(128)S(6)}', space=smem, size = 0x200, scoped, tag = 'prefetched SMEM operand 0']
  %s0 = inlined_call_operand.<no memory space> [shape: s32[1], index: 0, kind: input, shape index: {}]
  %s1 = inlined_call_operand.vmem [shape: bf16[128,128], index: 1, kind: input, shape index: {}]
  %s2 = inlined_call_operand.vmem [shape: bf16[1,128,256], index: 2, kind: input, shape index: {}]
  %s3 = inlined_call_operand.vmem [shape: f32[1,1,256], index: 3, kind: input, shape index: {}]
  %s4 = inlined_call_operand.vmem [shape: f32[128,256], index: 4, kind: output, shape index: {}]
  %s5 = sld [smem:[#allocation0]]
  $region22: #{ade20k_segmenter_forward.18} parent=0
    _
  %s7 = ssub.s32 1, %s5
  %s8 = scalar_select 0, %s7, %s5
  %9 = sst [smem:[#allocation3]] %s0
  // Predicated region
  $region2: #{ade20k_segmenter_forward.18} parent=0 // pred_check
    _
  $region3: #{ade20k_segmenter_forward.18} parent=0 // pred_check_branch
    %11 = sbr.rel (0) target = $region5
  $region4: #{ade20k_segmenter_forward.18} parent=0 // pred_region
    _
  $region5: #{ade20k_segmenter_forward.18} parent=0 // pred_fallthru
    _
  // Predicated region
  $region6: #{ade20k_segmenter_forward.18} parent=0 // pred_check
    _
  $region7: #{ade20k_segmenter_forward.18} parent=0 // pred_check_branch
    %13 = sbr.rel (0) target = $region9
  $region8: #{ade20k_segmenter_forward.18} parent=0 // pred_region
    %s14 = sld [smem:[#allocation3]]
    %p15 = scmp.lt.s32.totalorder %s14, 0
    %s16 = scalar_select %p15, %s14, 0
    %s17 = smul.addr %s16, 32
    %s18 = smul.addr %s17, 4
    %s19 = scalar_lea.vmem %s2, %s18
    %s20 = sld [smem:[#allocation3]]
  $region9: #{ade20k_segmenter_forward.18} parent=0 // pred_fallthru
    _
  // Predicated region
  $region10: #{ade20k_segmenter_forward.18} parent=0 // pred_check
    _
  $region11: #{ade20k_segmenter_forward.18} parent=0 // pred_check_branch
    %22 = sbr.rel (0) target = $region13
  $region12: #{ade20k_segmenter_forward.18} parent=0 // pred_region
    %s23 = sld [smem:[#allocation3]]
    %p24 = scmp.lt.s32.totalorder %s23, 0
    %s25 = scalar_select %p24, %s23, 0
    %s26 = smul.addr %s25, 2
    %s27 = scalar_lea.vmem %s3, %s26
    %s28 = sld [smem:[#allocation3]]
  $region13: #{ade20k_segmenter_forward.18} parent=0 // pred_fallthru
    _
  %s29 = sld [smem:[#allocation3]]
  %p30 = scmp.lt.s32.totalorder %s29, 0
  %s31 = scalar_select %p30, %s29, 0
  %s32 = smul.addr %s31, 32
  %s33 = smul.addr %s32, 4
  %s34 = scalar_lea.vmem %s2, %s33
  %s35 = sld [smem:[#allocation3]]
  %p36 = scmp.lt.s32.totalorder %s35, 0
  %s37 = scalar_select %p36, %s35, 0
  %s38 = smul.addr %s37, 2
  %s39 = scalar_lea.vmem %s3, %s38
  %s40 = sld [smem:[#allocation3]]
  %p41 = scmp.lt.s32.totalorder %s40, 0
  %s42 = scalar_select %p41, %s40, 0
  %s43 = smul.addr %s42, 32
  %s44 = smul.addr %s43, 4
  %s45 = scalar_lea.vmem %s2, %s44
  %s46 = sld [smem:[#allocation3]]
  %s47 = sld [smem:[#allocation3]]
  %p48 = scmp.lt.s32.totalorder %s47, 0
  %s49 = scalar_select %p48, %s47, 0
  %s50 = smul.addr %s49, 2
  %s51 = scalar_lea.vmem %s3, %s50
  %s52 = sld [smem:[#allocation3]]
  %v54 = vld [vmem:[%s1] sm:$0xf]
  %v55 = vld [vmem:[%s1 + $0x4] sm:$0xf]
  %v56 = vld [vmem:[%s1 + $0x8] sm:$0xf]
  %v57 = vld [vmem:[%s1 + $0xc] sm:$0xf]
  %v58 = vld [vmem:[%s1 + $0x10] sm:$0xf]
  %v59 = vld [vmem:[%s1 + $0x14] sm:$0xf]
  %v60 = vld [vmem:[%s1 + $0x18] sm:$0xf]
  %v61 = vld [vmem:[%s1 + $0x1c] sm:$0xf]
  %v62 = vld [vmem:[%s1 + $0x20] sm:$0xf]
  %v63 = vld [vmem:[%s1 + $0x24] sm:$0xf]
  %v64 = vld [vmem:[%s1 + $0x28] sm:$0xf]
  %v65 = vld [vmem:[%s1 + $0x2c] sm:$0xf]
  %v66 = vld [vmem:[%s1 + $0x30] sm:$0xf]
  %v67 = vld [vmem:[%s1 + $0x34] sm:$0xf]
  %v68 = vld [vmem:[%s1 + $0x38] sm:$0xf]
  %v69 = vld [vmem:[%s1 + $0x3c] sm:$0xf]
  %v70 = vld [vmem:[%s45] sm:$0xff]
  %v71 = vld [vmem:[%s45 + $0x8] sm:$0xff]
  %v72 = vld [vmem:[%s45 + $0x10] sm:$0xff]
  %v73 = vld [vmem:[%s45 + $0x18] sm:$0xff]
  %v74 = vld [vmem:[%s45 + $0x20] sm:$0xff]
  %v75 = vld [vmem:[%s45 + $0x28] sm:$0xff]
  %v76 = vld [vmem:[%s45 + $0x30] sm:$0xff]
  %v77 = vld [vmem:[%s45 + $0x38] sm:$0xff]
  %v78 = vld [vmem:[%s45 + $0x40] sm:$0xff]
  %v79 = vld [vmem:[%s45 + $0x48] sm:$0xff]
  %v80 = vld [vmem:[%s45 + $0x50] sm:$0xff]
  %v81 = vld [vmem:[%s45 + $0x58] sm:$0xff]
  %v82 = vld [vmem:[%s45 + $0x60] sm:$0xff]
  %v83 = vld [vmem:[%s45 + $0x68] sm:$0xff]
  %v84 = vld [vmem:[%s45 + $0x70] sm:$0xff]
  %v85 = vld [vmem:[%s45 + $0x78] sm:$0xff]
  %v86 = vld [vmem:[%s51] sm:$0x3]
  %v88 = vlaneseq
  %v89 = vshrl.u32 %v88, 7
  %v90 = vsub.s32 0, %v89
  %v91 = vrot.slane %v86, %v90
  %v92 = vlaneseq
  %v93 = vshrl.u32 %v92, 7
  %v94 = vsub.s32 1, %v93
  %v95 = vrot.slane %v86, %v94
  %v114 = vunpack.c.l.b16 %v54
  %v115 = vunpack.c.l.b16 %v55
  %v116 = vunpack.c.l.b16 %v56
  %v117 = vunpack.c.l.b16 %v57
  %v118 = vunpack.c.l.b16 %v58
  %v119 = vunpack.c.l.b16 %v59
  %v120 = vunpack.c.l.b16 %v60
  %v121 = vunpack.c.l.b16 %v61
  %v122 = vunpack.c.l.b16 %v62
  %v123 = vunpack.c.l.b16 %v63
  %v124 = vunpack.c.l.b16 %v64
  %v125 = vunpack.c.l.b16 %v65
  %v126 = vunpack.c.l.b16 %v66
  %v127 = vunpack.c.l.b16 %v67
  %v128 = vunpack.c.l.b16 %v68
  %v129 = vunpack.c.l.b16 %v69
  %v130 = vpack.c.b16 %v115, %v114
  %v131 = vpack.c.b16 %v117, %v116
  %v132 = vpack.c.b16 %v119, %v118
  %v133 = vpack.c.b16 %v121, %v120
  %v134 = vpack.c.b16 %v123, %v122
  %v135 = vpack.c.b16 %v125, %v124
  %v136 = vpack.c.b16 %v127, %v126
  %v137 = vpack.c.b16 %v129, %v128
  %v162 = vunpack.c.l.b16 %v70
  %v163 = vunpack.c.h.b16 %v70
  %v164 = vunpack.c.l.b16 %v71
  %v165 = vunpack.c.h.b16 %v71
  %v166 = vunpack.c.l.b16 %v72
  %v167 = vunpack.c.h.b16 %v72
  %v168 = vunpack.c.l.b16 %v73
  %v169 = vunpack.c.h.b16 %v73
  %v170 = vunpack.c.l.b16 %v74
  %v171 = vunpack.c.h.b16 %v74
  %v172 = vunpack.c.l.b16 %v75
  %v173 = vunpack.c.h.b16 %v75
  %v174 = vunpack.c.l.b16 %v76
  %v175 = vunpack.c.h.b16 %v76
  %v176 = vunpack.c.l.b16 %v77
  %v177 = vunpack.c.h.b16 %v77
  %v178 = vunpack.c.l.b16 %v78
  %v179 = vunpack.c.h.b16 %v78
  %v180 = vunpack.c.l.b16 %v79
  %v181 = vunpack.c.h.b16 %v79
  %v182 = vunpack.c.l.b16 %v80
  %v183 = vunpack.c.h.b16 %v80
  %v184 = vunpack.c.l.b16 %v81
  %v185 = vunpack.c.h.b16 %v81
  %v186 = vunpack.c.l.b16 %v82
  %v187 = vunpack.c.h.b16 %v82
  %v188 = vunpack.c.l.b16 %v83
  %v189 = vunpack.c.h.b16 %v83
  %v190 = vunpack.c.l.b16 %v84
  %v191 = vunpack.c.h.b16 %v84
  %v192 = vunpack.c.l.b16 %v85
  %v193 = vunpack.c.h.b16 %v85
  %v194 = vpack.c.b16 %v164, %v162
  %v195 = vpack.c.b16 %v165, %v163
  %v196 = vpack.c.b16 %v168, %v166
  %v197 = vpack.c.b16 %v169, %v167
  %v198 = vpack.c.b16 %v172, %v170
  %v199 = vpack.c.b16 %v173, %v171
  %v200 = vpack.c.b16 %v176, %v174
  %v201 = vpack.c.b16 %v177, %v175
  %v202 = vpack.c.b16 %v180, %v178
  %v203 = vpack.c.b16 %v181, %v179
  %v204 = vpack.c.b16 %v184, %v182
  %v205 = vpack.c.b16 %v185, %v183
  %v206 = vpack.c.b16 %v188, %v186
  %v207 = vpack.c.b16 %v189, %v187
  %v208 = vpack.c.b16 %v192, %v190
  %v209 = vpack.c.b16 %v193, %v191
  %226 = vmatprep.subr.bf16.mxu0 %v195
  %227 = vmatpush1.bf16.msra.mxu0 %v194
  %228 = vmatprep.subr.bf16.mxu0 %v197
  %229 = vmatpush1.bf16.msra.mxu0 %v196
  %230 = vmatprep.subr.bf16.mxu0 %v199
  %231 = vmatpush1.bf16.msra.mxu0 %v198
  %232 = vmatprep.subr.bf16.mxu0 %v201
  %233 = vmatpush1.bf16.msra.mxu0 %v200
  %234 = vmatprep.subr.bf16.mxu0 %v203
  %235 = vmatpush1.bf16.msra.mxu0 %v202
  %236 = vmatprep.subr.bf16.mxu0 %v205
  %237 = vmatpush1.bf16.msra.mxu0 %v204
  %238 = vmatprep.subr.bf16.mxu0 %v207
  %239 = vmatpush1.bf16.msra.mxu0 %v206
  %240 = vmatprep.subr.bf16.mxu0 %v209
  %241 = vmatpush1.bf16.msra.mxu0 %v208
  %242 = vmatprep.subr.bf16.mxu0 0
  %243 = vmatpush1.bf16.msra.mxu0 0
  %244 = vmatprep.subr.bf16.mxu0 0
  %245 = vmatpush1.bf16.msra.mxu0 0
  %246 = vmatprep.subr.bf16.mxu0 0
  %247 = vmatpush1.bf16.msra.mxu0 0
  %248 = vmatprep.subr.bf16.mxu0 0
  %249 = vmatpush1.bf16.msra.mxu0 0
  %250 = vmatprep.subr.bf16.mxu0 0
  %251 = vmatpush1.bf16.msra.mxu0 0
  %252 = vmatprep.subr.bf16.mxu0 0
  %253 = vmatpush1.bf16.msra.mxu0 0
  %254 = vmatprep.subr.bf16.mxu0 0
  %255 = vmatpush1.bf16.msra.mxu0 0
  %256 = vmatprep.subr.bf16.mxu0 0
  %257 = vmatpush1.bf16.msra.mxu0 0
  %258 = vmatprep.mubr.bf16.mxu0 0
  %259 = vmatmul.mubr.bf16.gmra.mrb[0].mxu0 %v130
  %v260 = vpop.f32.mrb[0].mxu0
  %v261 = vadd.f32 %v91, %v260
  %v262 = vpop.f32.mrb[0].mxu0
  %v263 = vadd.f32 %v95, %v262
  %v264 = vpop.f32.mrb[0].mxu0
  %v265 = vadd.f32 %v91, %v264
  %v266 = vpop.f32.mrb[0].mxu0
  %v267 = vadd.f32 %v95, %v266
  %268 = vmatprep.mubr.bf16.mxu0 0
  %269 = vmatmul.mubr.bf16.gmra.mrb[0].mxu0 %v131
  %v270 = vpop.f32.mrb[0].mxu0
  %v271 = vadd.f32 %v91, %v270
  %v272 = vpop.f32.mrb[0].mxu0
  %v273 = vadd.f32 %v95, %v272
  %v274 = vpop.f32.mrb[0].mxu0
  %v275 = vadd.f32 %v91, %v274
  %v276 = vpop.f32.mrb[0].mxu0
  %v277 = vadd.f32 %v95, %v276
  %278 = vmatprep.mubr.bf16.mxu0 0
  %279 = vmatmul.mubr.bf16.gmra.mrb[0].mxu0 %v132
  %v280 = vpop.f32.mrb[0].mxu0
  %v281 = vadd.f32 %v91, %v280
  %v282 = vpop.f32.mrb[0].mxu0
  %v283 = vadd.f32 %v95, %v282
  %v284 = vpop.f32.mrb[0].mxu0
  %v285 = vadd.f32 %v91, %v284
  %v286 = vpop.f32.mrb[0].mxu0
  %v287 = vadd.f32 %v95, %v286
  %288 = vmatprep.mubr.bf16.mxu0 0
  %289 = vmatmul.mubr.bf16.gmra.mrb[0].mxu0 %v133
  %v290 = vpop.f32.mrb[0].mxu0
  %v291 = vadd.f32 %v91, %v290
  %v292 = vpop.f32.mrb[0].mxu0
  %v293 = vadd.f32 %v95, %v292
  %v294 = vpop.f32.mrb[0].mxu0
  %v295 = vadd.f32 %v91, %v294
  %v296 = vpop.f32.mrb[0].mxu0
  %v297 = vadd.f32 %v95, %v296
  %298 = vmatprep.mubr.bf16.mxu0 0
  %299 = vmatmul.mubr.bf16.gmra.mrb[0].mxu0 %v134
  %v300 = vpop.f32.mrb[0].mxu0
  %v301 = vadd.f32 %v91, %v300
  %v302 = vpop.f32.mrb[0].mxu0
  %v303 = vadd.f32 %v95, %v302
  %v304 = vpop.f32.mrb[0].mxu0
  %v305 = vadd.f32 %v91, %v304
  %v306 = vpop.f32.mrb[0].mxu0
  %v307 = vadd.f32 %v95, %v306
  %308 = vmatprep.mubr.bf16.mxu0 0
  %309 = vmatmul.mubr.bf16.gmra.mrb[0].mxu0 %v135
  %v310 = vpop.f32.mrb[0].mxu0
  %v311 = vadd.f32 %v91, %v310
  %v312 = vpop.f32.mrb[0].mxu0
  %v313 = vadd.f32 %v95, %v312
  %v314 = vpop.f32.mrb[0].mxu0
  %v315 = vadd.f32 %v91, %v314
  %v316 = vpop.f32.mrb[0].mxu0
  %v317 = vadd.f32 %v95, %v316
  %318 = vmatprep.mubr.bf16.mxu0 0
  %319 = vmatmul.mubr.bf16.gmra.mrb[0].mxu0 %v136
  %v320 = vpop.f32.mrb[0].mxu0
  %v321 = vadd.f32 %v91, %v320
  %v322 = vpop.f32.mrb[0].mxu0
  %v323 = vadd.f32 %v95, %v322
  %v324 = vpop.f32.mrb[0].mxu0
  %v325 = vadd.f32 %v91, %v324
  %v326 = vpop.f32.mrb[0].mxu0
  %v327 = vadd.f32 %v95, %v326
  %328 = vmatprep.mubr.bf16.mxu0 0
  %329 = vmatmul.mubr.bf16.gmra.mrb[0].mxu0 %v137
  %v330 = vpop.f32.mrb[0].mxu0
  %v331 = vadd.f32 %v91, %v330
  %v332 = vpop.f32.mrb[0].mxu0
  %v333 = vadd.f32 %v95, %v332
  %v334 = vpop.f32.mrb[0].mxu0
  %v335 = vadd.f32 %v91, %v334
  %v336 = vpop.f32.mrb[0].mxu0
  %v337 = vadd.f32 %v95, %v336
  %338 = vdwg.mxu0
  %339 = vst [vmem:[%s4] sm:$0xff] %v261
  %340 = vst [vmem:[%s4 + $0x8] sm:$0xff] %v263
  %341 = vst [vmem:[%s4 + $0x10] sm:$0xff] %v265
  %342 = vst [vmem:[%s4 + $0x18] sm:$0xff] %v267
  %343 = vst [vmem:[%s4 + $0x20] sm:$0xff] %v271
  %344 = vst [vmem:[%s4 + $0x28] sm:$0xff] %v273
  %345 = vst [vmem:[%s4 + $0x30] sm:$0xff] %v275
  %346 = vst [vmem:[%s4 + $0x38] sm:$0xff] %v277
  %347 = vst [vmem:[%s4 + $0x40] sm:$0xff] %v281
  %348 = vst [vmem:[%s4 + $0x48] sm:$0xff] %v283
  %349 = vst [vmem:[%s4 + $0x50] sm:$0xff] %v285
  %350 = vst [vmem:[%s4 + $0x58] sm:$0xff] %v287
  %351 = vst [vmem:[%s4 + $0x60] sm:$0xff] %v291
  %352 = vst [vmem:[%s4 + $0x68] sm:$0xff] %v293
  %353 = vst [vmem:[%s4 + $0x70] sm:$0xff] %v295
  %354 = vst [vmem:[%s4 + $0x78] sm:$0xff] %v297
  %355 = vst [vmem:[%s4 + $0x80] sm:$0xff] %v301
  %356 = vst [vmem:[%s4 + $0x88] sm:$0xff] %v303
  %357 = vst [vmem:[%s4 + $0x90] sm:$0xff] %v305
  %358 = vst [vmem:[%s4 + $0x98] sm:$0xff] %v307
  %359 = vst [vmem:[%s4 + $0xa0] sm:$0xff] %v311
  %360 = vst [vmem:[%s4 + $0xa8] sm:$0xff] %v313
  %361 = vst [vmem:[%s4 + $0xb0] sm:$0xff] %v315
  %362 = vst [vmem:[%s4 + $0xb8] sm:$0xff] %v317
  %363 = vst [vmem:[%s4 + $0xc0] sm:$0xff] %v321
  %364 = vst [vmem:[%s4 + $0xc8] sm:$0xff] %v323
  %365 = vst [vmem:[%s4 + $0xd0] sm:$0xff] %v325
  %366 = vst [vmem:[%s4 + $0xd8] sm:$0xff] %v327
  %367 = vst [vmem:[%s4 + $0xe0] sm:$0xff] %v331
  %368 = vst [vmem:[%s4 + $0xe8] sm:$0xff] %v333
  %369 = vst [vmem:[%s4 + $0xf0] sm:$0xff] %v335
  %370 = vst [vmem:[%s4 + $0xf8] sm:$0xff] %v337
  // Predicated region
  $region14: #{ade20k_segmenter_forward.18} parent=0 // pred_check
    _
  $region15: #{ade20k_segmenter_forward.18} parent=0 // pred_check_branch
    %372 = sbr.rel (0) target = $region17
  $region16: #{ade20k_segmenter_forward.18} parent=0 // pred_region
    _
  $region17: #{ade20k_segmenter_forward.18} parent=0 // pred_fallthru
    _
  // Predicated region
  $region18: #{ade20k_segmenter_forward.18} parent=0 // pred_check
    _
  $region19: #{ade20k_segmenter_forward.18} parent=0 // pred_check_branch
    %374 = sbr.rel (0) target = $region21
  $region20: #{ade20k_segmenter_forward.18} parent=0 // pred_region
    _
  $region21: #{ade20k_segmenter_forward.18} parent=0 // pred_fallthru
    _

// kernel: ade20k_segmenter_forward.17
$region0: #{ade20k_segmenter_forward.17}
  #allocation0 [shape = 'u32[]', space=smem, size = 0x4, offset = 0x4, fixed_abs, tag = 'smem constant byte address 0x4 - core index']
  #allocation1 [shape = 'u32[144,128]{1,0:T(1,128)}', space=vmem, size = 0x12000, scoped, tag = 'internal scratch']
  #allocation2 [shape = 's32[1]{0}', space=sflag, size = 0x4, scoped, tag = 'scoped memory for ade20k_segmenter_forward.17']
  #allocation3 [shape = 's32[1]{0:T(128)S(6)}', space=smem, size = 0x200, scoped, tag = 'prefetched SMEM operand 0']
  %s0 = inlined_call_operand.<no memory space> [shape: s32[1], index: 0, kind: input, shape index: {}]
  %s1 = inlined_call_operand.vmem [shape: bf16[128,1152], index: 1, kind: input, shape index: {}]
  %s2 = inlined_call_operand.vmem [shape: bf16[1,1152,128], index: 2, kind: input, shape index: {}]
  %s3 = inlined_call_operand.vmem [shape: f32[1,1,128], index: 3, kind: input, shape index: {}]
  %s4 = inlined_call_operand.vmem [shape: bf16[128,128], index: 4, kind: output, shape index: {}]
  %s5 = sld [smem:[#allocation0]]
  $region22: #{ade20k_segmenter_forward.17} parent=0
    _
  %s7 = ssub.s32 1, %s5
  %s8 = scalar_select 0, %s7, %s5
  %9 = sst [smem:[#allocation3]] %s0
  // Predicated region
  $region2: #{ade20k_segmenter_forward.17} parent=0 // pred_check
    _
  $region3: #{ade20k_segmenter_forward.17} parent=0 // pred_check_branch
    %11 = sbr.rel (0) target = $region5
  $region4: #{ade20k_segmenter_forward.17} parent=0 // pred_region
    _
  $region5: #{ade20k_segmenter_forward.17} parent=0 // pred_fallthru
    _
  // Predicated region
  $region6: #{ade20k_segmenter_forward.17} parent=0 // pred_check
    _
  $region7: #{ade20k_segmenter_forward.17} parent=0 // pred_check_branch
    %13 = sbr.rel (0) target = $region9
  $region8: #{ade20k_segmenter_forward.17} parent=0 // pred_region
    %s14 = sld [smem:[#allocation3]]
    %p15 = scmp.lt.s32.totalorder %s14, 0
    %s16 = scalar_select %p15, %s14, 0
    %s17 = smul.addr %s16, 144
    %s18 = smul.addr %s17, 4
    %s19 = scalar_lea.vmem %s2, %s18
    %s20 = sld [smem:[#allocation3]]
  $region9: #{ade20k_segmenter_forward.17} parent=0 // pred_fallthru
    _
  // Predicated region
  $region10: #{ade20k_segmenter_forward.17} parent=0 // pred_check
    _
  $region11: #{ade20k_segmenter_forward.17} parent=0 // pred_check_branch
    %22 = sbr.rel (0) target = $region13
  $region12: #{ade20k_segmenter_forward.17} parent=0 // pred_region
    %s23 = sld [smem:[#allocation3]]
    %p24 = scmp.lt.s32.totalorder %s23, 0
    %s25 = scalar_select %p24, %s23, 0
    %s26 = scalar_lea.vmem %s3, %s25
    %s27 = sld [smem:[#allocation3]]
  $region13: #{ade20k_segmenter_forward.17} parent=0 // pred_fallthru
    _
  %s28 = sld [smem:[#allocation3]]
  %p29 = scmp.lt.s32.totalorder %s28, 0
  %s30 = scalar_select %p29, %s28, 0
  %s31 = smul.addr %s30, 144
  %s32 = smul.addr %s31, 4
  %s33 = scalar_lea.vmem %s2, %s32
  %s34 = sld [smem:[#allocation3]]
  %p35 = scmp.lt.s32.totalorder %s34, 0
  %s36 = scalar_select %p35, %s34, 0
  %s37 = scalar_lea.vmem %s3, %s36
  %s38 = sld [smem:[#allocation3]]
  %p39 = scmp.lt.s32.totalorder %s38, 0
  %s40 = scalar_select %p39, %s38, 0
  %s41 = smul.addr %s40, 144
  %s42 = smul.addr %s41, 4
  %s43 = scalar_lea.vmem %s2, %s42
  %s44 = sld [smem:[#allocation3]]
  %s45 = sld [smem:[#allocation3]]
  %p46 = scmp.lt.s32.totalorder %s45, 0
  %s47 = scalar_select %p46, %s45, 0
  %s48 = scalar_lea.vmem %s3, %s47
  %s49 = sld [smem:[#allocation3]]
  %v51 = vld [vmem:[%s1] sm:$0xff]
  %v52 = vld [vmem:[%s1 + $0x8] sm:$0xff]
  %v53 = vld [vmem:[%s1 + $0x10] sm:$0xff]
  %v54 = vld [vmem:[%s1 + $0x18] sm:$0xff]
  %v55 = vld [vmem:[%s1 + $0x20] sm:$0xf]
  %v56 = vld [vmem:[%s1 + $0x24] sm:$0xff]
  %v57 = vld [vmem:[%s1 + $0x2c] sm:$0xff]
  %v58 = vld [vmem:[%s1 + $0x34] sm:$0xff]
  %v59 = vld [vmem:[%s1 + $0x3c] sm:$0xff]
  %v60 = vld [vmem:[%s1 + $0x44] sm:$0xf]
  %v61 = vld [vmem:[%s1 + $0x48] sm:$0xff]
  %v62 = vld [vmem:[%s1 + $0x50] sm:$0xff]
  %v63 = vld [vmem:[%s1 + $0x58] sm:$0xff]
  %v64 = vld [vmem:[%s1 + $0x60] sm:$0xff]
  %v65 = vld [vmem:[%s1 + $0x68] sm:$0xf]
  %v66 = vld [vmem:[%s1 + $0x6c] sm:$0xff]
  %v67 = vld [vmem:[%s1 + $0x74] sm:$0xff]
  %v68 = vld [vmem:[%s1 + $0x7c] sm:$0xff]
  %v69 = vld [vmem:[%s1 + $0x84] sm:$0xff]
  %v70 = vld [vmem:[%s1 + $0x8c] sm:$0xf]
  %v71 = vld [vmem:[%s1 + $0x90] sm:$0xff]
  %v72 = vld [vmem:[%s1 + $0x98] sm:$0xff]
  %v73 = vld [vmem:[%s1 + $0xa0] sm:$0xff]
  %v74 = vld [vmem:[%s1 + $0xa8] sm:$0xff]
  %v75 = vld [vmem:[%s1 + $0xb0] sm:$0xf]
  %v76 = vld [vmem:[%s1 + $0xb4] sm:$0xff]
  %v77 = vld [vmem:[%s1 + $0xbc] sm:$0xff]
  %v78 = vld [vmem:[%s1 + $0xc4] sm:$0xff]
  %v79 = vld [vmem:[%s1 + $0xcc] sm:$0xff]
  %v80 = vld [vmem:[%s1 + $0xd4] sm:$0xf]
  %v81 = vld [vmem:[%s1 + $0xd8] sm:$0xff]
  %v82 = vld [vmem:[%s1 + $0xe0] sm:$0xff]
  %v83 = vld [vmem:[%s1 + $0xe8] sm:$0xff]
  %v84 = vld [vmem:[%s1 + $0xf0] sm:$0xff]
  %v85 = vld [vmem:[%s1 + $0xf8] sm:$0xf]
  %v86 = vld [vmem:[%s1 + $0xfc] sm:$0xff]
  %v87 = vld [vmem:[%s1 + $0x104] sm:$0xff]
  %v88 = vld [vmem:[%s1 + $0x10c] sm:$0xff]
  %v89 = vld [vmem:[%s1 + $0x114] sm:$0xff]
  %v90 = vld [vmem:[%s1 + $0x11c] sm:$0xf]
  %v91 = vld [vmem:[%s1 + $0x120] sm:$0xff]
  %v92 = vld [vmem:[%s1 + $0x128] sm:$0xff]
  %v93 = vld [vmem:[%s1 + $0x130] sm:$0xff]
  %v94 = vld [vmem:[%s1 + $0x138] sm:$0xff]
  %v95 = vld [vmem:[%s1 + $0x140] sm:$0xf]
  %v96 = vld [vmem:[%s1 + $0x144] sm:$0xff]
  %v97 = vld [vmem:[%s1 + $0x14c] sm:$0xff]
  %v98 = vld [vmem:[%s1 + $0x154] sm:$0xff]
  %v99 = vld [vmem:[%s1 + $0x15c] sm:$0xff]
  %v100 = vld [vmem:[%s1 + $0x164] sm:$0xf]
  %v101 = vld [vmem:[%s1 + $0x168] sm:$0xff]
  %v102 = vld [vmem:[%s1 + $0x170] sm:$0xff]
  %v103 = vld [vmem:[%s1 + $0x178] sm:$0xff]
  %v104 = vld [vmem:[%s1 + $0x180] sm:$0xff]
  %v105 = vld [vmem:[%s1 + $0x188] sm:$0xf]
  %v106 = vld [vmem:[%s1 + $0x18c] sm:$0xff]
  %v107 = vld [vmem:[%s1 + $0x194] sm:$0xff]
  %v108 = vld [vmem:[%s1 + $0x19c] sm:$0xff]
  %v109 = vld [vmem:[%s1 + $0x1a4] sm:$0xff]
  %v110 = vld [vmem:[%s1 + $0x1ac] sm:$0xf]
  %v111 = vld [vmem:[%s1 + $0x1b0] sm:$0xff]
  %v112 = vld [vmem:[%s1 + $0x1b8] sm:$0xff]
  %v113 = vld [vmem:[%s1 + $0x1c0] sm:$0xff]
  %v114 = vld [vmem:[%s1 + $0x1c8] sm:$0xff]
  %v115 = vld [vmem:[%s1 + $0x1d0] sm:$0xf]
  %v116 = vld [vmem:[%s1 + $0x1d4] sm:$0xff]
  %v117 = vld [vmem:[%s1 + $0x1dc] sm:$0xff]
  %v118 = vld [vmem:[%s1 + $0x1e4] sm:$0xff]
  %v119 = vld [vmem:[%s1 + $0x1ec] sm:$0xff]
  %v120 = vld [vmem:[%s1 + $0x1f4] sm:$0xf]
  %v121 = vld [vmem:[%s1 + $0x1f8] sm:$0xff]
  %v122 = vld [vmem:[%s1 + $0x200] sm:$0xff]
  %v123 = vld [vmem:[%s1 + $0x208] sm:$0xff]
  %v124 = vld [vmem:[%s1 + $0x210] sm:$0xff]
  %v125 = vld [vmem:[%s1 + $0x218] sm:$0xf]
  %v126 = vld [vmem:[%s1 + $0x21c] sm:$0xff]
  %v127 = vld [vmem:[%s1 + $0x224] sm:$0xff]
  %v128 = vld [vmem:[%s1 + $0x22c] sm:$0xff]
  %v129 = vld [vmem:[%s1 + $0x234] sm:$0xff]
  %v130 = vld [vmem:[%s1 + $0x23c] sm:$0xf]
  %v131 = vld [vmem:[%s43] sm:$0xf]
  %v132 = vld [vmem:[%s43 + $0x4] sm:$0xf]
  %v133 = vld [vmem:[%s43 + $0x8] sm:$0xf]
  %v134 = vld [vmem:[%s43 + $0xc] sm:$0xf]
  %v135 = vld [vmem:[%s43 + $0x10] sm:$0xf]
  %v136 = vld [vmem:[%s43 + $0x14] sm:$0xf]
  %v137 = vld [vmem:[%s43 + $0x18] sm:$0xf]
  %v138 = vld [vmem:[%s43 + $0x1c] sm:$0xf]
  %v139 = vld [vmem:[%s43 + $0x20] sm:$0xf]
  %v140 = vld [vmem:[%s43 + $0x24] sm:$0xf]
  %v141 = vld [vmem:[%s43 + $0x28] sm:$0xf]
  %v142 = vld [vmem:[%s43 + $0x2c] sm:$0xf]
  %v143 = vld [vmem:[%s43 + $0x30] sm:$0xf]
  %v144 = vld [vmem:[%s43 + $0x34] sm:$0xf]
  %v145 = vld [vmem:[%s43 + $0x38] sm:$0xf]
  %v146 = vld [vmem:[%s43 + $0x3c] sm:$0xf]
  %v147 = vld [vmem:[%s43 + $0x40] sm:$0xf]
  %v148 = vld [vmem:[%s43 + $0x44] sm:$0xf]
  %v149 = vld [vmem:[%s43 + $0x48] sm:$0xf]
  %v150 = vld [vmem:[%s43 + $0x4c] sm:$0xf]
  %v151 = vld [vmem:[%s43 + $0x50] sm:$0xf]
  %v152 = vld [vmem:[%s43 + $0x54] sm:$0xf]
  %v153 = vld [vmem:[%s43 + $0x58] sm:$0xf]
  %v154 = vld [vmem:[%s43 + $0x5c] sm:$0xf]
  %v155 = vld [vmem:[%s43 + $0x60] sm:$0xf]
  %v156 = vld [vmem:[%s43 + $0x64] sm:$0xf]
  %v157 = vld [vmem:[%s43 + $0x68] sm:$0xf]
  %v158 = vld [vmem:[%s43 + $0x6c] sm:$0xf]
  %v159 = vld [vmem:[%s43 + $0x70] sm:$0xf]
  %v160 = vld [vmem:[%s43 + $0x74] sm:$0xf]
  %v161 = vld [vmem:[%s43 + $0x78] sm:$0xf]
  %v162 = vld [vmem:[%s43 + $0x7c] sm:$0xf]
  %v163 = vld [vmem:[%s43 + $0x80] sm:$0xf]
  %v164 = vld [vmem:[%s43 + $0x84] sm:$0xf]
  %v165 = vld [vmem:[%s43 + $0x88] sm:$0xf]
  %v166 = vld [vmem:[%s43 + $0x8c] sm:$0xf]
  %v167 = vld [vmem:[%s43 + $0x90] sm:$0xf]
  %v168 = vld [vmem:[%s43 + $0x94] sm:$0xf]
  %v169 = vld [vmem:[%s43 + $0x98] sm:$0xf]
  %v170 = vld [vmem:[%s43 + $0x9c] sm:$0xf]
  %v171 = vld [vmem:[%s43 + $0xa0] sm:$0xf]
  %v172 = vld [vmem:[%s43 + $0xa4] sm:$0xf]
  %v173 = vld [vmem:[%s43 + $0xa8] sm:$0xf]
  %v174 = vld [vmem:[%s43 + $0xac] sm:$0xf]
  %v175 = vld [vmem:[%s43 + $0xb0] sm:$0xf]
  %v176 = vld [vmem:[%s43 + $0xb4] sm:$0xf]
  %v177 = vld [vmem:[%s43 + $0xb8] sm:$0xf]
  %v178 = vld [vmem:[%s43 + $0xbc] sm:$0xf]
  %v179 = vld [vmem:[%s43 + $0xc0] sm:$0xf]
  %v180 = vld [vmem:[%s43 + $0xc4] sm:$0xf]
  %v181 = vld [vmem:[%s43 + $0xc8] sm:$0xf]
  %v182 = vld [vmem:[%s43 + $0xcc] sm:$0xf]
  %v183 = vld [vmem:[%s43 + $0xd0] sm:$0xf]
  %v184 = vld [vmem:[%s43 + $0xd4] sm:$0xf]
  %v185 = vld [vmem:[%s43 + $0xd8] sm:$0xf]
  %v186 = vld [vmem:[%s43 + $0xdc] sm:$0xf]
  %v187 = vld [vmem:[%s43 + $0xe0] sm:$0xf]
  %v188 = vld [vmem:[%s43 + $0xe4] sm:$0xf]
  %v189 = vld [vmem:[%s43 + $0xe8] sm:$0xf]
  %v190 = vld [vmem:[%s43 + $0xec] sm:$0xf]
  %v191 = vld [vmem:[%s43 + $0xf0] sm:$0xf]
  %v192 = vld [vmem:[%s43 + $0xf4] sm:$0xf]
  %v193 = vld [vmem:[%s43 + $0xf8] sm:$0xf]
  %v194 = vld [vmem:[%s43 + $0xfc] sm:$0xf]
  %v195 = vld [vmem:[%s43 + $0x100] sm:$0xf]
  %v196 = vld [vmem:[%s43 + $0x104] sm:$0xf]
  %v197 = vld [vmem:[%s43 + $0x108] sm:$0xf]
  %v198 = vld [vmem:[%s43 + $0x10c] sm:$0xf]
  %v199 = vld [vmem:[%s43 + $0x110] sm:$0xf]
  %v200 = vld [vmem:[%s43 + $0x114] sm:$0xf]
  %v201 = vld [vmem:[%s43 + $0x118] sm:$0xf]
  %v202 = vld [vmem:[%s43 + $0x11c] sm:$0xf]
  %v203 = vld [vmem:[%s43 + $0x120] sm:$0xf]
  %v204 = vld [vmem:[%s43 + $0x124] sm:$0xf]
  %v205 = vld [vmem:[%s43 + $0x128] sm:$0xf]
  %v206 = vld [vmem:[%s43 + $0x12c] sm:$0xf]
  %v207 = vld [vmem:[%s43 + $0x130] sm:$0xf]
  %v208 = vld [vmem:[%s43 + $0x134] sm:$0xf]
  %v209 = vld [vmem:[%s43 + $0x138] sm:$0xf]
  %v210 = vld [vmem:[%s43 + $0x13c] sm:$0xf]
  %v211 = vld [vmem:[%s43 + $0x140] sm:$0xf]
  %v212 = vld [vmem:[%s43 + $0x144] sm:$0xf]
  %v213 = vld [vmem:[%s43 + $0x148] sm:$0xf]
  %v214 = vld [vmem:[%s43 + $0x14c] sm:$0xf]
  %v215 = vld [vmem:[%s43 + $0x150] sm:$0xf]
  %v216 = vld [vmem:[%s43 + $0x154] sm:$0xf]
  %v217 = vld [vmem:[%s43 + $0x158] sm:$0xf]
  %v218 = vld [vmem:[%s43 + $0x15c] sm:$0xf]
  %v219 = vld [vmem:[%s43 + $0x160] sm:$0xf]
  %v220 = vld [vmem:[%s43 + $0x164] sm:$0xf]
  %v221 = vld [vmem:[%s43 + $0x168] sm:$0xf]
  %v222 = vld [vmem:[%s43 + $0x16c] sm:$0xf]
  %v223 = vld [vmem:[%s43 + $0x170] sm:$0xf]
  %v224 = vld [vmem:[%s43 + $0x174] sm:$0xf]
  %v225 = vld [vmem:[%s43 + $0x178] sm:$0xf]
  %v226 = vld [vmem:[%s43 + $0x17c] sm:$0xf]
  %v227 = vld [vmem:[%s43 + $0x180] sm:$0xf]
  %v228 = vld [vmem:[%s43 + $0x184] sm:$0xf]
  %v229 = vld [vmem:[%s43 + $0x188] sm:$0xf]
  %v230 = vld [vmem:[%s43 + $0x18c] sm:$0xf]
  %v231 = vld [vmem:[%s43 + $0x190] sm:$0xf]
  %v232 = vld [vmem:[%s43 + $0x194] sm:$0xf]
  %v233 = vld [vmem:[%s43 + $0x198] sm:$0xf]
  %v234 = vld [vmem:[%s43 + $0x19c] sm:$0xf]
  %v235 = vld [vmem:[%s43 + $0x1a0] sm:$0xf]
  %v236 = vld [vmem:[%s43 + $0x1a4] sm:$0xf]
  %v237 = vld [vmem:[%s43 + $0x1a8] sm:$0xf]
  %v238 = vld [vmem:[%s43 + $0x1ac] sm:$0xf]
  %v239 = vld [vmem:[%s43 + $0x1b0] sm:$0xf]
  %v240 = vld [vmem:[%s43 + $0x1b4] sm:$0xf]
  %v241 = vld [vmem:[%s43 + $0x1b8] sm:$0xf]
  %v242 = vld [vmem:[%s43 + $0x1bc] sm:$0xf]
  %v243 = vld [vmem:[%s43 + $0x1c0] sm:$0xf]
  %v244 = vld [vmem:[%s43 + $0x1c4] sm:$0xf]
  %v245 = vld [vmem:[%s43 + $0x1c8] sm:$0xf]
  %v246 = vld [vmem:[%s43 + $0x1cc] sm:$0xf]
  %v247 = vld [vmem:[%s43 + $0x1d0] sm:$0xf]
  %v248 = vld [vmem:[%s43 + $0x1d4] sm:$0xf]
  %v249 = vld [vmem:[%s43 + $0x1d8] sm:$0xf]
  %v250 = vld [vmem:[%s43 + $0x1dc] sm:$0xf]
  %v251 = vld [vmem:[%s43 + $0x1e0] sm:$0xf]
  %v252 = vld [vmem:[%s43 + $0x1e4] sm:$0xf]
  %v253 = vld [vmem:[%s43 + $0x1e8] sm:$0xf]
  %v254 = vld [vmem:[%s43 + $0x1ec] sm:$0xf]
  %v255 = vld [vmem:[%s43 + $0x1f0] sm:$0xf]
  %v256 = vld [vmem:[%s43 + $0x1f4] sm:$0xf]
  %v257 = vld [vmem:[%s43 + $0x1f8] sm:$0xf]
  %v258 = vld [vmem:[%s43 + $0x1fc] sm:$0xf]
  %v259 = vld [vmem:[%s43 + $0x200] sm:$0xf]
  %v260 = vld [vmem:[%s43 + $0x204] sm:$0xf]
  %v261 = vld [vmem:[%s43 + $0x208] sm:$0xf]
  %v262 = vld [vmem:[%s43 + $0x20c] sm:$0xf]
  %v263 = vld [vmem:[%s43 + $0x210] sm:$0xf]
  %v264 = vld [vmem:[%s43 + $0x214] sm:$0xf]
  %v265 = vld [vmem:[%s43 + $0x218] sm:$0xf]
  %v266 = vld [vmem:[%s43 + $0x21c] sm:$0xf]
  %v267 = vld [vmem:[%s43 + $0x220] sm:$0xf]
  %v268 = vld [vmem:[%s43 + $0x224] sm:$0xf]
  %v269 = vld [vmem:[%s43 + $0x228] sm:$0xf]
  %v270 = vld [vmem:[%s43 + $0x22c] sm:$0xf]
  %v271 = vld [vmem:[%s43 + $0x230] sm:$0xf]
  %v272 = vld [vmem:[%s43 + $0x234] sm:$0xf]
  %v273 = vld [vmem:[%s43 + $0x238] sm:$0xf]
  %v274 = vld [vmem:[%s43 + $0x23c] sm:$0xf]
  %v275 = vld [vmem:[%s48] sm:$0x1]
  %v277 = vlaneseq
  %v278 = vshrl.u32 %v277, 7
  %v279 = vsub.s32 0, %v278
  %v280 = vrot.slane %v275, %v279
  %v362 = vunpack.c.l.b16 %v51
  %v363 = vunpack.c.h.b16 %v51
  %v364 = vunpack.c.l.b16 %v52
  %v365 = vunpack.c.h.b16 %v52
  %v366 = vunpack.c.l.b16 %v53
  %v367 = vunpack.c.h.b16 %v53
  %v368 = vunpack.c.l.b16 %v54
  %v369 = vunpack.c.h.b16 %v54
  %v370 = vunpack.c.l.b16 %v55
  %v371 = vunpack.c.l.b16 %v56
  %v372 = vunpack.c.h.b16 %v56
  %v373 = vunpack.c.l.b16 %v57
  %v374 = vunpack.c.h.b16 %v57
  %v375 = vunpack.c.l.b16 %v58
  %v376 = vunpack.c.h.b16 %v58
  %v377 = vunpack.c.l.b16 %v59
  %v378 = vunpack.c.h.b16 %v59
  %v379 = vunpack.c.l.b16 %v60
  %v380 = vunpack.c.l.b16 %v61
  %v381 = vunpack.c.h.b16 %v61
  %v382 = vunpack.c.l.b16 %v62
  %v383 = vunpack.c.h.b16 %v62
  %v384 = vunpack.c.l.b16 %v63
  %v385 = vunpack.c.h.b16 %v63
  %v386 = vunpack.c.l.b16 %v64
  %v387 = vunpack.c.h.b16 %v64
  %v388 = vunpack.c.l.b16 %v65
  %v389 = vunpack.c.l.b16 %v66
  %v390 = vunpack.c.h.b16 %v66
  %v391 = vunpack.c.l.b16 %v67
  %v392 = vunpack.c.h.b16 %v67
  %v393 = vunpack.c.l.b16 %v68
  %v394 = vunpack.c.h.b16 %v68
  %v395 = vunpack.c.l.b16 %v69
  %v396 = vunpack.c.h.b16 %v69
  %v397 = vunpack.c.l.b16 %v70
  %v398 = vunpack.c.l.b16 %v71
  %v399 = vunpack.c.h.b16 %v71
  %v400 = vunpack.c.l.b16 %v72
  %v401 = vunpack.c.h.b16 %v72
  %v402 = vunpack.c.l.b16 %v73
  %v403 = vunpack.c.h.b16 %v73
  %v404 = vunpack.c.l.b16 %v74
  %v405 = vunpack.c.h.b16 %v74
  %v406 = vunpack.c.l.b16 %v75
  %v407 = vunpack.c.l.b16 %v76
  %v408 = vunpack.c.h.b16 %v76
  %v409 = vunpack.c.l.b16 %v77
  %v410 = vunpack.c.h.b16 %v77
  %v411 = vunpack.c.l.b16 %v78
  %v412 = vunpack.c.h.b16 %v78
  %v413 = vunpack.c.l.b16 %v79
  %v414 = vunpack.c.h.b16 %v79
  %v415 = vunpack.c.l.b16 %v80
  %v416 = vunpack.c.l.b16 %v81
  %v417 = vunpack.c.h.b16 %v81
  %v418 = vunpack.c.l.b16 %v82
  %v419 = vunpack.c.h.b16 %v82
  %v420 = vunpack.c.l.b16 %v83
  %v421 = vunpack.c.h.b16 %v83
  %v422 = vunpack.c.l.b16 %v84
  %v423 = vunpack.c.h.b16 %v84
  %v424 = vunpack.c.l.b16 %v85
  %v425 = vunpack.c.l.b16 %v86
  %v426 = vunpack.c.h.b16 %v86
  %v427 = vunpack.c.l.b16 %v87
  %v428 = vunpack.c.h.b16 %v87
  %v429 = vunpack.c.l.b16 %v88
  %v430 = vunpack.c.h.b16 %v88
  %v431 = vunpack.c.l.b16 %v89
  %v432 = vunpack.c.h.b16 %v89
  %v433 = vunpack.c.l.b16 %v90
  %v434 = vunpack.c.l.b16 %v91
  %v435 = vunpack.c.h.b16 %v91
  %v436 = vunpack.c.l.b16 %v92
  %v437 = vunpack.c.h.b16 %v92
  %v438 = vunpack.c.l.b16 %v93
  %v439 = vunpack.c.h.b16 %v93
  %v440 = vunpack.c.l.b16 %v94
  %v441 = vunpack.c.h.b16 %v94
  %v442 = vunpack.c.l.b16 %v95
  %v443 = vunpack.c.l.b16 %v96
  %v444 = vunpack.c.h.b16 %v96
  %v445 = vunpack.c.l.b16 %v97
  %v446 = vunpack.c.h.b16 %v97
  %v447 = vunpack.c.l.b16 %v98
  %v448 = vunpack.c.h.b16 %v98
  %v449 = vunpack.c.l.b16 %v99
  %v450 = vunpack.c.h.b16 %v99
  %v451 = vunpack.c.l.b16 %v100
  %v452 = vunpack.c.l.b16 %v101
  %v453 = vunpack.c.h.b16 %v101
  %v454 = vunpack.c.l.b16 %v102
  %v455 = vunpack.c.h.b16 %v102
  %v456 = vunpack.c.l.b16 %v103
  %v457 = vunpack.c.h.b16 %v103
  %v458 = vunpack.c.l.b16 %v104
  %v459 = vunpack.c.h.b16 %v104
  %v460 = vunpack.c.l.b16 %v105
  %v461 = vunpack.c.l.b16 %v106
  %v462 = vunpack.c.h.b16 %v106
  %v463 = vunpack.c.l.b16 %v107
  %v464 = vunpack.c.h.b16 %v107
  %v465 = vunpack.c.l.b16 %v108
  %v466 = vunpack.c.h.b16 %v108
  %v467 = vunpack.c.l.b16 %v109
  %v468 = vunpack.c.h.b16 %v109
  %v469 = vunpack.c.l.b16 %v110
  %v470 = vunpack.c.l.b16 %v111
  %v471 = vunpack.c.h.b16 %v111
  %v472 = vunpack.c.l.b16 %v112
  %v473 = vunpack.c.h.b16 %v112
  %v474 = vunpack.c.l.b16 %v113
  %v475 = vunpack.c.h.b16 %v113
  %v476 = vunpack.c.l.b16 %v114
  %v477 = vunpack.c.h.b16 %v114
  %v478 = vunpack.c.l.b16 %v115
  %v479 = vunpack.c.l.b16 %v116
  %v480 = vunpack.c.h.b16 %v116
  %v481 = vunpack.c.l.b16 %v117
  %v482 = vunpack.c.h.b16 %v117
  %v483 = vunpack.c.l.b16 %v118
  %v484 = vunpack.c.h.b16 %v118
  %v485 = vunpack.c.l.b16 %v119
  %v486 = vunpack.c.h.b16 %v119
  %v487 = vunpack.c.l.b16 %v120
  %v488 = vunpack.c.l.b16 %v121
  %v489 = vunpack.c.h.b16 %v121
  %v490 = vunpack.c.l.b16 %v122
  %v491 = vunpack.c.h.b16 %v122
  %v492 = vunpack.c.l.b16 %v123
  %v493 = vunpack.c.h.b16 %v123
  %v494 = vunpack.c.l.b16 %v124
  %v495 = vunpack.c.h.b16 %v124
  %v496 = vunpack.c.l.b16 %v125
  %v497 = vunpack.c.l.b16 %v126
  %v498 = vunpack.c.h.b16 %v126
  %v499 = vunpack.c.l.b16 %v127
  %v500 = vunpack.c.h.b16 %v127
  %v501 = vunpack.c.l.b16 %v128
  %v502 = vunpack.c.h.b16 %v128
  %v503 = vunpack.c.l.b16 %v129
  %v504 = vunpack.c.h.b16 %v129
  %v505 = vunpack.c.l.b16 %v130
  %v506 = vpack.c.b16 %v371, %v362
  %v507 = vpack.c.b16 %v372, %v363
  %v508 = vpack.c.b16 %v373, %v364
  %v509 = vpack.c.b16 %v374, %v365
  %v510 = vpack.c.b16 %v375, %v366
  %v511 = vpack.c.b16 %v376, %v367
  %v512 = vpack.c.b16 %v377, %v368
  %v513 = vpack.c.b16 %v378, %v369
  %v514 = vpack.c.b16 %v379, %v370
  %v515 = vpack.c.b16 %v389, %v380
  %v516 = vpack.c.b16 %v390, %v381
  %v517 = vpack.c.b16 %v391, %v382
  %v518 = vpack.c.b16 %v392, %v383
  %v519 = vpack.c.b16 %v393, %v384
  %v520 = vpack.c.b16 %v394, %v385
  %v521 = vpack.c.b16 %v395, %v386
  %v522 = vpack.c.b16 %v396, %v387
  %v523 = vpack.c.b16 %v397, %v388
  %v524 = vpack.c.b16 %v407, %v398
  %v525 = vpack.c.b16 %v408, %v399
  %v526 = vpack.c.b16 %v409, %v400
  %v527 = vpack.c.b16 %v410, %v401
  %v528 = vpack.c.b16 %v411, %v402
  %v529 = vpack.c.b16 %v412, %v403
  %v530 = vpack.c.b16 %v413, %v404
  %v531 = vpack.c.b16 %v414, %v405
  %v532 = vpack.c.b16 %v415, %v406
  %v533 = vpack.c.b16 %v425, %v416
  %v534 = vpack.c.b16 %v426, %v417
  %v535 = vpack.c.b16 %v427, %v418
  %v536 = vpack.c.b16 %v428, %v419
  %v537 = vpack.c.b16 %v429, %v420
  %v538 = vpack.c.b16 %v430, %v421
  %v539 = vpack.c.b16 %v431, %v422
  %v540 = vpack.c.b16 %v432, %v423
  %v541 = vpack.c.b16 %v433, %v424
  %v542 = vpack.c.b16 %v443, %v434
  %v543 = vpack.c.b16 %v444, %v435
  %v544 = vpack.c.b16 %v445, %v436
  %v545 = vpack.c.b16 %v446, %v437
  %v546 = vpack.c.b16 %v447, %v438
  %v547 = vpack.c.b16 %v448, %v439
  %v548 = vpack.c.b16 %v449, %v440
  %v549 = vpack.c.b16 %v450, %v441
  %v550 = vpack.c.b16 %v451, %v442
  %v551 = vpack.c.b16 %v461, %v452
  %v552 = vpack.c.b16 %v462, %v453
  %v553 = vpack.c.b16 %v463, %v454
  %v554 = vpack.c.b16 %v464, %v455
  %v555 = vpack.c.b16 %v465, %v456
  %v556 = vpack.c.b16 %v466, %v457
  %v557 = vpack.c.b16 %v467, %v458
  %v558 = vpack.c.b16 %v468, %v459
  %v559 = vpack.c.b16 %v469, %v460
  %v560 = vpack.c.b16 %v479, %v470
  %v561 = vpack.c.b16 %v480, %v471
  %v562 = vpack.c.b16 %v481, %v472
  %v563 = vpack.c.b16 %v482, %v473
  %v564 = vpack.c.b16 %v483, %v474
  %v565 = vpack.c.b16 %v484, %v475
  %v566 = vpack.c.b16 %v485, %v476
  %v567 = vpack.c.b16 %v486, %v477
  %v568 = vpack.c.b16 %v487, %v478
  %v569 = vpack.c.b16 %v497, %v488
  %v570 = vpack.c.b16 %v498, %v489
  %v571 = vpack.c.b16 %v499, %v490
  %v572 = vpack.c.b16 %v500, %v491
  %v573 = vpack.c.b16 %v501, %v492
  %v574 = vpack.c.b16 %v502, %v493
  %v575 = vpack.c.b16 %v503, %v494
  %v576 = vpack.c.b16 %v504, %v495
  %v577 = vpack.c.b16 %v505, %v496
  %v794 = vunpack.c.l.b16 %v131
  %v795 = vunpack.c.l.b16 %v132
  %v796 = vunpack.c.l.b16 %v133
  %v797 = vunpack.c.l.b16 %v134
  %v798 = vunpack.c.l.b16 %v135
  %v799 = vunpack.c.l.b16 %v136
  %v800 = vunpack.c.l.b16 %v137
  %v801 = vunpack.c.l.b16 %v138
  %v802 = vunpack.c.l.b16 %v139
  %v803 = vunpack.c.l.b16 %v140
  %v804 = vunpack.c.l.b16 %v141
  %v805 = vunpack.c.l.b16 %v142
  %v806 = vunpack.c.l.b16 %v143
  %v807 = vunpack.c.l.b16 %v144
  %v808 = vunpack.c.l.b16 %v145
  %v809 = vunpack.c.l.b16 %v146
  %v810 = vunpack.c.l.b16 %v147
  %v811 = vunpack.c.l.b16 %v148
  %v812 = vunpack.c.l.b16 %v149
  %v813 = vunpack.c.l.b16 %v150
  %v814 = vunpack.c.l.b16 %v151
  %v815 = vunpack.c.l.b16 %v152
  %v816 = vunpack.c.l.b16 %v153
  %v817 = vunpack.c.l.b16 %v154
  %v818 = vunpack.c.l.b16 %v155
  %v819 = vunpack.c.l.b16 %v156
  %v820 = vunpack.c.l.b16 %v157
  %v821 = vunpack.c.l.b16 %v158
  %v822 = vunpack.c.l.b16 %v159
  %v823 = vunpack.c.l.b16 %v160
  %v824 = vunpack.c.l.b16 %v161
  %v825 = vunpack.c.l.b16 %v162
  %v826 = vunpack.c.l.b16 %v163
  %v827 = vunpack.c.l.b16 %v164
  %v828 = vunpack.c.l.b16 %v165
  %v829 = vunpack.c.l.b16 %v166
  %v830 = vunpack.c.l.b16 %v167
  %v831 = vunpack.c.l.b16 %v168
  %v832 = vunpack.c.l.b16 %v169
  %v833 = vunpack.c.l.b16 %v170
  %v834 = vunpack.c.l.b16 %v171
  %v835 = vunpack.c.l.b16 %v172
  %v836 = vunpack.c.l.b16 %v173
  %v837 = vunpack.c.l.b16 %v174
  %v838 = vunpack.c.l.b16 %v175
  %v839 = vunpack.c.l.b16 %v176
  %v840 = vunpack.c.l.b16 %v177
  %v841 = vunpack.c.l.b16 %v178
  %v842 = vunpack.c.l.b16 %v179
  %v843 = vunpack.c.l.b16 %v180
  %v844 = vunpack.c.l.b16 %v181
  %v845 = vunpack.c.l.b16 %v182
  %v846 = vunpack.c.l.b16 %v183
  %v847 = vunpack.c.l.b16 %v184
  %v848 = vunpack.c.l.b16 %v185
  %v849 = vunpack.c.l.b16 %v186
  %v850 = vunpack.c.l.b16 %v187
  %v851 = vunpack.c.l.b16 %v188
  %v852 = vunpack.c.l.b16 %v189
  %v853 = vunpack.c.l.b16 %v190
  %v854 = vunpack.c.l.b16 %v191
  %v855 = vunpack.c.l.b16 %v192
  %v856 = vunpack.c.l.b16 %v193
  %v857 = vunpack.c.l.b16 %v194
  %v858 = vunpack.c.l.b16 %v195
  %v859 = vunpack.c.l.b16 %v196
  %v860 = vunpack.c.l.b16 %v197
  %v861 = vunpack.c.l.b16 %v198
  %v862 = vunpack.c.l.b16 %v199
  %v863 = vunpack.c.l.b16 %v200
  %v864 = vunpack.c.l.b16 %v201
  %v865 = vunpack.c.l.b16 %v202
  %v866 = vunpack.c.l.b16 %v203
  %v867 = vunpack.c.l.b16 %v204
  %v868 = vunpack.c.l.b16 %v205
  %v869 = vunpack.c.l.b16 %v206
  %v870 = vunpack.c.l.b16 %v207
  %v871 = vunpack.c.l.b16 %v208
  %v872 = vunpack.c.l.b16 %v209
  %v873 = vunpack.c.l.b16 %v210
  %v874 = vunpack.c.l.b16 %v211
  %v875 = vunpack.c.l.b16 %v212
  %v876 = vunpack.c.l.b16 %v213
  %v877 = vunpack.c.l.b16 %v214
  %v878 = vunpack.c.l.b16 %v215
  %v879 = vunpack.c.l.b16 %v216
  %v880 = vunpack.c.l.b16 %v217
  %v881 = vunpack.c.l.b16 %v218
  %v882 = vunpack.c.l.b16 %v219
  %v883 = vunpack.c.l.b16 %v220
  %v884 = vunpack.c.l.b16 %v221
  %v885 = vunpack.c.l.b16 %v222
  %v886 = vunpack.c.l.b16 %v223
  %v887 = vunpack.c.l.b16 %v224
  %v888 = vunpack.c.l.b16 %v225
  %v889 = vunpack.c.l.b16 %v226
  %v890 = vunpack.c.l.b16 %v227
  %v891 = vunpack.c.l.b16 %v228
  %v892 = vunpack.c.l.b16 %v229
  %v893 = vunpack.c.l.b16 %v230
  %v894 = vunpack.c.l.b16 %v231
  %v895 = vunpack.c.l.b16 %v232
  %v896 = vunpack.c.l.b16 %v233
  %v897 = vunpack.c.l.b16 %v234
  %v898 = vunpack.c.l.b16 %v235
  %v899 = vunpack.c.l.b16 %v236
  %v900 = vunpack.c.l.b16 %v237
  %v901 = vunpack.c.l.b16 %v238
  %v902 = vunpack.c.l.b16 %v239
  %v903 = vunpack.c.l.b16 %v240
  %v904 = vunpack.c.l.b16 %v241
  %v905 = vunpack.c.l.b16 %v242
  %v906 = vunpack.c.l.b16 %v243
  %v907 = vunpack.c.l.b16 %v244
  %v908 = vunpack.c.l.b16 %v245
  %v909 = vunpack.c.l.b16 %v246
  %v910 = vunpack.c.l.b16 %v247
  %v911 = vunpack.c.l.b16 %v248
  %v912 = vunpack.c.l.b16 %v249
  %v913 = vunpack.c.l.b16 %v250
  %v914 = vunpack.c.l.b16 %v251
  %v915 = vunpack.c.l.b16 %v252
  %v916 = vunpack.c.l.b16 %v253
  %v917 = vunpack.c.l.b16 %v254
  %v918 = vunpack.c.l.b16 %v255
  %v919 = vunpack.c.l.b16 %v256
  %v920 = vunpack.c.l.b16 %v257
  %v921 = vunpack.c.l.b16 %v258
  %v922 = vunpack.c.l.b16 %v259
  %v923 = vunpack.c.l.b16 %v260
  %v924 = vunpack.c.l.b16 %v261
  %v925 = vunpack.c.l.b16 %v262
  %v926 = vunpack.c.l.b16 %v263
  %v927 = vunpack.c.l.b16 %v264
  %v928 = vunpack.c.l.b16 %v265
  %v929 = vunpack.c.l.b16 %v266
  %v930 = vunpack.c.l.b16 %v267
  %v931 = vunpack.c.l.b16 %v268
  %v932 = vunpack.c.l.b16 %v269
  %v933 = vunpack.c.l.b16 %v270
  %v934 = vunpack.c.l.b16 %v271
  %v935 = vunpack.c.l.b16 %v272
  %v936 = vunpack.c.l.b16 %v273
  %v937 = vunpack.c.l.b16 %v274
  %v938 = vpack.c.b16 %v795, %v794
  %v939 = vpack.c.b16 %v797, %v796
  %v940 = vpack.c.b16 %v799, %v798
  %v941 = vpack.c.b16 %v801, %v800
  %v942 = vpack.c.b16 %v803, %v802
  %v943 = vpack.c.b16 %v805, %v804
  %v944 = vpack.c.b16 %v807, %v806
  %v945 = vpack.c.b16 %v809, %v808
  %v946 = vpack.c.b16 %v811, %v810
  %v947 = vpack.c.b16 %v813, %v812
  %v948 = vpack.c.b16 %v815, %v814
  %v949 = vpack.c.b16 %v817, %v816
  %v950 = vpack.c.b16 %v819, %v818
  %v951 = vpack.c.b16 %v821, %v820
  %v952 = vpack.c.b16 %v823, %v822
  %v953 = vpack.c.b16 %v825, %v824
  %v954 = vpack.c.b16 %v827, %v826
  %v955 = vpack.c.b16 %v829, %v828
  %v956 = vpack.c.b16 %v831, %v830
  %v957 = vpack.c.b16 %v833, %v832
  %v958 = vpack.c.b16 %v835, %v834
  %v959 = vpack.c.b16 %v837, %v836
  %v960 = vpack.c.b16 %v839, %v838
  %v961 = vpack.c.b16 %v841, %v840
  %v962 = vpack.c.b16 %v843, %v842
  %v963 = vpack.c.b16 %v845, %v844
  %v964 = vpack.c.b16 %v847, %v846
  %v965 = vpack.c.b16 %v849, %v848
  %v966 = vpack.c.b16 %v851, %v850
  %v967 = vpack.c.b16 %v853, %v852
  %v968 = vpack.c.b16 %v855, %v854
  %v969 = vpack.c.b16 %v857, %v856
  %v970 = vpack.c.b16 %v859, %v858
  %v971 = vpack.c.b16 %v861, %v860
  %v972 = vpack.c.b16 %v863, %v862
  %v973 = vpack.c.b16 %v865, %v864
  %v974 = vpack.c.b16 %v867, %v866
  %v975 = vpack.c.b16 %v869, %v868
  %v976 = vpack.c.b16 %v871, %v870
  %v977 = vpack.c.b16 %v873, %v872
  %v978 = vpack.c.b16 %v875, %v874
  %v979 = vpack.c.b16 %v877, %v876
  %v980 = vpack.c.b16 %v879, %v878
  %v981 = vpack.c.b16 %v881, %v880
  %v982 = vpack.c.b16 %v883, %v882
  %v983 = vpack.c.b16 %v885, %v884
  %v984 = vpack.c.b16 %v887, %v886
  %v985 = vpack.c.b16 %v889, %v888
  %v986 = vpack.c.b16 %v891, %v890
  %v987 = vpack.c.b16 %v893, %v892
  %v988 = vpack.c.b16 %v895, %v894
  %v989 = vpack.c.b16 %v897, %v896
  %v990 = vpack.c.b16 %v899, %v898
  %v991 = vpack.c.b16 %v901, %v900
  %v992 = vpack.c.b16 %v903, %v902
  %v993 = vpack.c.b16 %v905, %v904
  %v994 = vpack.c.b16 %v907, %v906
  %v995 = vpack.c.b16 %v909, %v908
  %v996 = vpack.c.b16 %v911, %v910
  %v997 = vpack.c.b16 %v913, %v912
  %v998 = vpack.c.b16 %v915, %v914
  %v999 = vpack.c.b16 %v917, %v916
  %v1000 = vpack.c.b16 %v919, %v918
  %v1001 = vpack.c.b16 %v921, %v920
  %v1002 = vpack.c.b16 %v923, %v922
  %v1003 = vpack.c.b16 %v925, %v924
  %v1004 = vpack.c.b16 %v927, %v926
  %v1005 = vpack.c.b16 %v929, %v928
  %v1006 = vpack.c.b16 %v931, %v930
  %v1007 = vpack.c.b16 %v933, %v932
  %v1008 = vpack.c.b16 %v935, %v934
  %v1009 = vpack.c.b16 %v937, %v936
  %1082 = vmatprep.subr.bf16.mxu0 0
  %1083 = vmatpush1.bf16.msra.mxu0 %v938
  %1084 = vmatprep.subr.bf16.mxu0 0
  %1085 = vmatpush1.bf16.msra.mxu0 %v939
  %1086 = vmatprep.subr.bf16.mxu0 0
  %1087 = vmatpush1.bf16.msra.mxu0 %v940
  %1088 = vmatprep.subr.bf16.mxu0 0
  %1089 = vmatpush1.bf16.msra.mxu0 %v941
  %1090 = vmatprep.subr.bf16.mxu0 0
  %1091 = vmatpush1.bf16.msra.mxu0 %v942
  %1092 = vmatprep.subr.bf16.mxu0 0
  %1093 = vmatpush1.bf16.msra.mxu0 %v943
  %1094 = vmatprep.subr.bf16.mxu0 0
  %1095 = vmatpush1.bf16.msra.mxu0 %v944
  %1096 = vmatprep.subr.bf16.mxu0 0
  %1097 = vmatpush1.bf16.msra.mxu0 %v945
  %1098 = vmatprep.subr.bf16.mxu0 0
  %1099 = vmatpush1.bf16.msra.mxu0 %v946
  %1100 = vmatprep.subr.bf16.mxu0 0
  %1101 = vmatpush1.bf16.msra.mxu0 %v947
  %1102 = vmatprep.subr.bf16.mxu0 0
  %1103 = vmatpush1.bf16.msra.mxu0 %v948
  %1104 = vmatprep.subr.bf16.mxu0 0
  %1105 = vmatpush1.bf16.msra.mxu0 %v949
  %1106 = vmatprep.subr.bf16.mxu0 0
  %1107 = vmatpush1.bf16.msra.mxu0 %v950
  %1108 = vmatprep.subr.bf16.mxu0 0
  %1109 = vmatpush1.bf16.msra.mxu0 %v951
  %1110 = vmatprep.subr.bf16.mxu0 0
  %1111 = vmatpush1.bf16.msra.mxu0 %v952
  %1112 = vmatprep.subr.bf16.mxu0 0
  %1113 = vmatpush1.bf16.msra.mxu0 %v953
  %1114 = vmatprep.mubr.bf16.mxu0 %v507
  %1115 = vmatmul.mubr.bf16.gmra.mrb[0].mxu0 %v506
  %v1116 = vpop.f32.mrb[0].mxu0
  %v1117 = vadd.f32 %v280, %v1116
  %v1118 = vpop.f32.mrb[0].mxu0
  %v1119 = vpop.f32.mrb[0].mxu0
  %v1120 = vadd.f32 %v280, %v1119
  %v1121 = vpop.f32.mrb[0].mxu0
  %1122 = vmatprep.mubr.bf16.mxu0 %v516
  %1123 = vmatmul.mubr.bf16.gmra.mrb[0].mxu0 %v515
  %v1124 = vpop.f32.mrb[0].mxu0
  %v1125 = vadd.f32 %v280, %v1124
  %v1126 = vpop.f32.mrb[0].mxu0
  %v1127 = vpop.f32.mrb[0].mxu0
  %v1128 = vadd.f32 %v280, %v1127
  %v1129 = vpop.f32.mrb[0].mxu0
  %1130 = vmatprep.mubr.bf16.mxu0 %v525
  %1131 = vmatmul.mubr.bf16.gmra.mrb[0].mxu0 %v524
  %v1132 = vpop.f32.mrb[0].mxu0
  %v1133 = vadd.f32 %v280, %v1132
  %v1134 = vpop.f32.mrb[0].mxu0
  %v1135 = vpop.f32.mrb[0].mxu0
  %v1136 = vadd.f32 %v280, %v1135
  %v1137 = vpop.f32.mrb[0].mxu0
  %1138 = vmatprep.mubr.bf16.mxu0 %v534
  %1139 = vmatmul.mubr.bf16.gmra.mrb[0].mxu0 %v533
  %v1140 = vpop.f32.mrb[0].mxu0
  %v1141 = vadd.f32 %v280, %v1140
  %v1142 = vpop.f32.mrb[0].mxu0
  %v1143 = vpop.f32.mrb[0].mxu0
  %v1144 = vadd.f32 %v280, %v1143
  %v1145 = vpop.f32.mrb[0].mxu0
  %1146 = vmatprep.mubr.bf16.mxu0 %v543
  %1147 = vmatmul.mubr.bf16.gmra.mrb[0].mxu0 %v542
  %v1148 = vpop.f32.mrb[0].mxu0
  %v1149 = vadd.f32 %v280, %v1148
  %v1150 = vpop.f32.mrb[0].mxu0
  %v1151 = vpop.f32.mrb[0].mxu0
  %v1152 = vadd.f32 %v280, %v1151
  %v1153 = vpop.f32.mrb[0].mxu0
  %1154 = vmatprep.mubr.bf16.mxu0 %v552
  %1155 = vmatmul.mubr.bf16.gmra.mrb[0].mxu0 %v551
  %v1156 = vpop.f32.mrb[0].mxu0
  %v1157 = vadd.f32 %v280, %v1156
  %v1158 = vpop.f32.mrb[0].mxu0
  %v1159 = vpop.f32.mrb[0].mxu0
  %v1160 = vadd.f32 %v280, %v1159
  %v1161 = vpop.f32.mrb[0].mxu0
  %1162 = vmatprep.mubr.bf16.mxu0 %v561
  %1163 = vmatmul.mubr.bf16.gmra.mrb[0].mxu0 %v560
  %v1164 = vpop.f32.mrb[0].mxu0
  %v1165 = vadd.f32 %v280, %v1164
  %v1166 = vpop.f32.mrb[0].mxu0
  %v1167 = vpop.f32.mrb[0].mxu0
  %v1168 = vadd.f32 %v280, %v1167
  %v1169 = vpop.f32.mrb[0].mxu0
  %1170 = vmatprep.mubr.bf16.mxu0 %v570
  %1171 = vmatmul.mubr.bf16.gmra.mrb[0].mxu0 %v569
  %v1172 = vpop.f32.mrb[0].mxu0
  %v1173 = vadd.f32 %v280, %v1172
  %v1174 = vpop.f32.mrb[0].mxu0
  %v1175 = vpop.f32.mrb[0].mxu0
  %v1176 = vadd.f32 %v280, %v1175
  %v1177 = vpop.f32.mrb[0].mxu0
  %1178 = vdwg.mxu0
  %1179 = vmatprep.subr.bf16.mxu0 0
  %1180 = vmatpush1.bf16.msra.mxu0 %v954
  %1181 = vmatprep.subr.bf16.mxu0 0
  %1182 = vmatpush1.bf16.msra.mxu0 %v955
  %1183 = vmatprep.subr.bf16.mxu0 0
  %1184 = vmatpush1.bf16.msra.mxu0 %v956
  %1185 = vmatprep.subr.bf16.mxu0 0
  %1186 = vmatpush1.bf16.msra.mxu0 %v957
  %1187 = vmatprep.subr.bf16.mxu0 0
  %1188 = vmatpush1.bf16.msra.mxu0 %v958
  %1189 = vmatprep.subr.bf16.mxu0 0
  %1190 = vmatpush1.bf16.msra.mxu0 %v959
  %1191 = vmatprep.subr.bf16.mxu0 0
  %1192 = vmatpush1.bf16.msra.mxu0 %v960
  %1193 = vmatprep.subr.bf16.mxu0 0
  %1194 = vmatpush1.bf16.msra.mxu0 %v961
  %1195 = vmatprep.subr.bf16.mxu0 0
  %1196 = vmatpush1.bf16.msra.mxu0 %v962
  %1197 = vmatprep.subr.bf16.mxu0 0
  %1198 = vmatpush1.bf16.msra.mxu0 %v963
  %1199 = vmatprep.subr.bf16.mxu0 0
  %1200 = vmatpush1.bf16.msra.mxu0 %v964
  %1201 = vmatprep.subr.bf16.mxu0 0
  %1202 = vmatpush1.bf16.msra.mxu0 %v965
  %1203 = vmatprep.subr.bf16.mxu0 0
  %1204 = vmatpush1.bf16.msra.mxu0 %v966
  %1205 = vmatprep.subr.bf16.mxu0 0
  %1206 = vmatpush1.bf16.msra.mxu0 %v967
  %1207 = vmatprep.subr.bf16.mxu0 0
  %1208 = vmatpush1.bf16.msra.mxu0 %v968
  %1209 = vmatprep.subr.bf16.mxu0 0
  %1210 = vmatpush1.bf16.msra.mxu0 %v969
  %1211 = vmatprep.mubr.bf16.mxu0 %v509
  %1212 = vmatmul.mubr.bf16.gmra.mrb[0].mxu0 %v508
  %v1213 = vpop.f32.mrb[0].mxu0
  %v1214 = vadd.f32 %v1117, %v1213
  %v1215 = vpop.f32.mrb[0].mxu0
  %v1216 = vpop.f32.mrb[0].mxu0
  %v1217 = vadd.f32 %v1120, %v1216
  %v1218 = vpop.f32.mrb[0].mxu0
  %1219 = vmatprep.mubr.bf16.mxu0 %v518
  %1220 = vmatmul.mubr.bf16.gmra.mrb[0].mxu0 %v517
  %v1221 = vpop.f32.mrb[0].mxu0
  %v1222 = vadd.f32 %v1125, %v1221
  %v1223 = vpop.f32.mrb[0].mxu0
  %v1224 = vpop.f32.mrb[0].mxu0
  %v1225 = vadd.f32 %v1128, %v1224
  %v1226 = vpop.f32.mrb[0].mxu0
  %1227 = vmatprep.mubr.bf16.mxu0 %v527
  %1228 = vmatmul.mubr.bf16.gmra.mrb[0].mxu0 %v526
  %v1229 = vpop.f32.mrb[0].mxu0
  %v1230 = vadd.f32 %v1133, %v1229
  %v1231 = vpop.f32.mrb[0].mxu0
  %v1232 = vpop.f32.mrb[0].mxu0
  %v1233 = vadd.f32 %v1136, %v1232
  %v1234 = vpop.f32.mrb[0].mxu0
  %1235 = vmatprep.mubr.bf16.mxu0 %v536
  %1236 = vmatmul.mubr.bf16.gmra.mrb[0].mxu0 %v535
  %v1237 = vpop.f32.mrb[0].mxu0
  %v1238 = vadd.f32 %v1141, %v1237
  %v1239 = vpop.f32.mrb[0].mxu0
  %v1240 = vpop.f32.mrb[0].mxu0
  %v1241 = vadd.f32 %v1144, %v1240
  %v1242 = vpop.f32.mrb[0].mxu0
  %1243 = vmatprep.mubr.bf16.mxu0 %v545
  %1244 = vmatmul.mubr.bf16.gmra.mrb[0].mxu0 %v544
  %v1245 = vpop.f32.mrb[0].mxu0
  %v1246 = vadd.f32 %v1149, %v1245
  %v1247 = vpop.f32.mrb[0].mxu0
  %v1248 = vpop.f32.mrb[0].mxu0
  %v1249 = vadd.f32 %v1152, %v1248
  %v1250 = vpop.f32.mrb[0].mxu0
  %1251 = vmatprep.mubr.bf16.mxu0 %v554
  %1252 = vmatmul.mubr.bf16.gmra.mrb[0].mxu0 %v553
  %v1253 = vpop.f32.mrb[0].mxu0
  %v1254 = vadd.f32 %v1157, %v1253
  %v1255 = vpop.f32.mrb[0].mxu0
  %v1256 = vpop.f32.mrb[0].mxu0
  %v1257 = vadd.f32 %v1160, %v1256
  %v1258 = vpop.f32.mrb[0].mxu0
  %1259 = vmatprep.mubr.bf16.mxu0 %v563
  %1260 = vmatmul.mubr.bf16.gmra.mrb[0].mxu0 %v562
  %v1261 = vpop.f32.mrb[0].mxu0
  %v1262 = vadd.f32 %v1165, %v1261
  %v1263 = vpop.f32.mrb[0].mxu0
  %v1264 = vpop.f32.mrb[0].mxu0
  %v1265 = vadd.f32 %v1168, %v1264
  %v1266 = vpop.f32.mrb[0].mxu0
  %1267 = vmatprep.mubr.bf16.mxu0 %v572
  %1268 = vmatmul.mubr.bf16.gmra.mrb[0].mxu0 %v571
  %v1269 = vpop.f32.mrb[0].mxu0
  %v1270 = vadd.f32 %v1173, %v1269
  %v1271 = vpop.f32.mrb[0].mxu0
  %v1272 = vpop.f32.mrb[0].mxu0
  %v1273 = vadd.f32 %v1176, %v1272
  %v1274 = vpop.f32.mrb[0].mxu0
  %1275 = vdwg.mxu0
  %1276 = vmatprep.subr.bf16.mxu0 0
  %1277 = vmatpush1.bf16.msra.mxu0 %v970
  %1278 = vmatprep.subr.bf16.mxu0 0
  %1279 = vmatpush1.bf16.msra.mxu0 %v971
  %1280 = vmatprep.subr.bf16.mxu0 0
  %1281 = vmatpush1.bf16.msra.mxu0 %v972
  %1282 = vmatprep.subr.bf16.mxu0 0
  %1283 = vmatpush1.bf16.msra.mxu0 %v973
  %1284 = vmatprep.subr.bf16.mxu0 0
  %1285 = vmatpush1.bf16.msra.mxu0 %v974
  %1286 = vmatprep.subr.bf16.mxu0 0
  %1287 = vmatpush1.bf16.msra.mxu0 %v975
  %1288 = vmatprep.subr.bf16.mxu0 0
  %1289 = vmatpush1.bf16.msra.mxu0 %v976
  %1290 = vmatprep.subr.bf16.mxu0 0
  %1291 = vmatpush1.bf16.msra.mxu0 %v977
  %1292 = vmatprep.subr.bf16.mxu0 0
  %1293 = vmatpush1.bf16.msra.mxu0 %v978
  %1294 = vmatprep.subr.bf16.mxu0 0
  %1295 = vmatpush1.bf16.msra.mxu0 %v979
  %1296 = vmatprep.subr.bf16.mxu0 0
  %1297 = vmatpush1.bf16.msra.mxu0 %v980
  %1298 = vmatprep.subr.bf16.mxu0 0
  %1299 = vmatpush1.bf16.msra.mxu0 %v981
  %1300 = vmatprep.subr.bf16.mxu0 0
  %1301 = vmatpush1.bf16.msra.mxu0 %v982
  %1302 = vmatprep.subr.bf16.mxu0 0
  %1303 = vmatpush1.bf16.msra.mxu0 %v983
  %1304 = vmatprep.subr.bf16.mxu0 0
  %1305 = vmatpush1.bf16.msra.mxu0 %v984
  %1306 = vmatprep.subr.bf16.mxu0 0
  %1307 = vmatpush1.bf16.msra.mxu0 %v985
  %1308 = vmatprep.mubr.bf16.mxu0 %v511
  %1309 = vmatmul.mubr.bf16.gmra.mrb[0].mxu0 %v510
  %v1310 = vpop.f32.mrb[0].mxu0
  %v1311 = vadd.f32 %v1214, %v1310
  %v1312 = vpop.f32.mrb[0].mxu0
  %v1313 = vpop.f32.mrb[0].mxu0
  %v1314 = vadd.f32 %v1217, %v1313
  %v1315 = vpop.f32.mrb[0].mxu0
  %1316 = vmatprep.mubr.bf16.mxu0 %v520
  %1317 = vmatmul.mubr.bf16.gmra.mrb[0].mxu0 %v519
  %v1318 = vpop.f32.mrb[0].mxu0
  %v1319 = vadd.f32 %v1222, %v1318
  %v1320 = vpop.f32.mrb[0].mxu0
  %v1321 = vpop.f32.mrb[0].mxu0
  %v1322 = vadd.f32 %v1225, %v1321
  %v1323 = vpop.f32.mrb[0].mxu0
  %1324 = vmatprep.mubr.bf16.mxu0 %v529
  %1325 = vmatmul.mubr.bf16.gmra.mrb[0].mxu0 %v528
  %v1326 = vpop.f32.mrb[0].mxu0
  %v1327 = vadd.f32 %v1230, %v1326
  %v1328 = vpop.f32.mrb[0].mxu0
  %v1329 = vpop.f32.mrb[0].mxu0
  %v1330 = vadd.f32 %v1233, %v1329
  %v1331 = vpop.f32.mrb[0].mxu0
  %1332 = vmatprep.mubr.bf16.mxu0 %v538
  %1333 = vmatmul.mubr.bf16.gmra.mrb[0].mxu0 %v537
  %v1334 = vpop.f32.mrb[0].mxu0
  %v1335 = vadd.f32 %v1238, %v1334
  %v1336 = vpop.f32.mrb[0].mxu0
  %v1337 = vpop.f32.mrb[0].mxu0
  %v1338 = vadd.f32 %v1241, %v1337
  %v1339 = vpop.f32.mrb[0].mxu0
  %1340 = vmatprep.mubr.bf16.mxu0 %v547
  %1341 = vmatmul.mubr.bf16.gmra.mrb[0].mxu0 %v546
  %v1342 = vpop.f32.mrb[0].mxu0
  %v1343 = vadd.f32 %v1246, %v1342
  %v1344 = vpop.f32.mrb[0].mxu0
  %v1345 = vpop.f32.mrb[0].mxu0
  %v1346 = vadd.f32 %v1249, %v1345
  %v1347 = vpop.f32.mrb[0].mxu0
  %1348 = vmatprep.mubr.bf16.mxu0 %v556
  %1349 = vmatmul.mubr.bf16.gmra.mrb[0].mxu0 %v555
  %v1350 = vpop.f32.mrb[0].mxu0
  %v1351 = vadd.f32 %v1254, %v1350
  %v1352 = vpop.f32.mrb[0].mxu0
  %v1353 = vpop.f32.mrb[0].mxu0
  %v1354 = vadd.f32 %v1257, %v1353
  %v1355 = vpop.f32.mrb[0].mxu0
  %1356 = vmatprep.mubr.bf16.mxu0 %v565
  %1357 = vmatmul.mubr.bf16.gmra.mrb[0].mxu0 %v564
  %v1358 = vpop.f32.mrb[0].mxu0
  %v1359 = vadd.f32 %v1262, %v1358
  %v1360 = vpop.f32.mrb[0].mxu0
  %v1361 = vpop.f32.mrb[0].mxu0
  %v1362 = vadd.f32 %v1265, %v1361
  %v1363 = vpop.f32.mrb[0].mxu0
  %1364 = vmatprep.mubr.bf16.mxu0 %v574
  %1365 = vmatmul.mubr.bf16.gmra.mrb[0].mxu0 %v573
  %v1366 = vpop.f32.mrb[0].mxu0
  %v1367 = vadd.f32 %v1270, %v1366
  %v1368 = vpop.f32.mrb[0].mxu0
  %v1369 = vpop.f32.mrb[0].mxu0
  %v1370 = vadd.f32 %v1273, %v1369
  %v1371 = vpop.f32.mrb[0].mxu0
  %1372 = vdwg.mxu0
  %1373 = vmatprep.subr.bf16.mxu0 0
  %1374 = vmatpush1.bf16.msra.mxu0 %v986
  %1375 = vmatprep.subr.bf16.mxu0 0
  %1376 = vmatpush1.bf16.msra.mxu0 %v987
  %1377 = vmatprep.subr.bf16.mxu0 0
  %1378 = vmatpush1.bf16.msra.mxu0 %v988
  %1379 = vmatprep.subr.bf16.mxu0 0
  %1380 = vmatpush1.bf16.msra.mxu0 %v989
  %1381 = vmatprep.subr.bf16.mxu0 0
  %1382 = vmatpush1.bf16.msra.mxu0 %v990
  %1383 = vmatprep.subr.bf16.mxu0 0
  %1384 = vmatpush1.bf16.msra.mxu0 %v991
  %1385 = vmatprep.subr.bf16.mxu0 0
  %1386 = vmatpush1.bf16.msra.mxu0 %v992
  %1387 = vmatprep.subr.bf16.mxu0 0
  %1388 = vmatpush1.bf16.msra.mxu0 %v993
  %1389 = vmatprep.subr.bf16.mxu0 0
  %1390 = vmatpush1.bf16.msra.mxu0 %v994
  %1391 = vmatprep.subr.bf16.mxu0 0
  %1392 = vmatpush1.bf16.msra.mxu0 %v995
  %1393 = vmatprep.subr.bf16.mxu0 0
  %1394 = vmatpush1.bf16.msra.mxu0 %v996
  %1395 = vmatprep.subr.bf16.mxu0 0
  %1396 = vmatpush1.bf16.msra.mxu0 %v997
  %1397 = vmatprep.subr.bf16.mxu0 0
  %1398 = vmatpush1.bf16.msra.mxu0 %v998
  %1399 = vmatprep.subr.bf16.mxu0 0
  %1400 = vmatpush1.bf16.msra.mxu0 %v999
  %1401 = vmatprep.subr.bf16.mxu0 0
  %1402 = vmatpush1.bf16.msra.mxu0 %v1000
  %1403 = vmatprep.subr.bf16.mxu0 0
  %1404 = vmatpush1.bf16.msra.mxu0 %v1001
  %1405 = vmatprep.mubr.bf16.mxu0 %v513
  %1406 = vmatmul.mubr.bf16.gmra.mrb[0].mxu0 %v512
  %v1407 = vpop.f32.mrb[0].mxu0
  %v1408 = vadd.f32 %v1311, %v1407
  %v1409 = vpop.f32.mrb[0].mxu0
  %v1410 = vpop.f32.mrb[0].mxu0
  %v1411 = vadd.f32 %v1314, %v1410
  %v1412 = vpop.f32.mrb[0].mxu0
  %1413 = vmatprep.mubr.bf16.mxu0 %v522
  %1414 = vmatmul.mubr.bf16.gmra.mrb[0].mxu0 %v521
  %v1415 = vpop.f32.mrb[0].mxu0
  %v1416 = vadd.f32 %v1319, %v1415
  %v1417 = vpop.f32.mrb[0].mxu0
  %v1418 = vpop.f32.mrb[0].mxu0
  %v1419 = vadd.f32 %v1322, %v1418
  %v1420 = vpop.f32.mrb[0].mxu0
  %1421 = vmatprep.mubr.bf16.mxu0 %v531
  %1422 = vmatmul.mubr.bf16.gmra.mrb[0].mxu0 %v530
  %v1423 = vpop.f32.mrb[0].mxu0
  %v1424 = vadd.f32 %v1327, %v1423
  %v1425 = vpop.f32.mrb[0].mxu0
  %v1426 = vpop.f32.mrb[0].mxu0
  %v1427 = vadd.f32 %v1330, %v1426
  %v1428 = vpop.f32.mrb[0].mxu0
  %1429 = vmatprep.mubr.bf16.mxu0 %v540
  %1430 = vmatmul.mubr.bf16.gmra.mrb[0].mxu0 %v539
  %v1431 = vpop.f32.mrb[0].mxu0
  %v1432 = vadd.f32 %v1335, %v1431
  %v1433 = vpop.f32.mrb[0].mxu0
  %v1434 = vpop.f32.mrb[0].mxu0
  %v1435 = vadd.f32 %v1338, %v1434
  %v1436 = vpop.f32.mrb[0].mxu0
  %1437 = vmatprep.mubr.bf16.mxu0 %v549
  %1438 = vmatmul.mubr.bf16.gmra.mrb[0].mxu0 %v548
  %v1439 = vpop.f32.mrb[0].mxu0
  %v1440 = vadd.f32 %v1343, %v1439
  %v1441 = vpop.f32.mrb[0].mxu0
  %v1442 = vpop.f32.mrb[0].mxu0
  %v1443 = vadd.f32 %v1346, %v1442
  %v1444 = vpop.f32.mrb[0].mxu0
  %1445 = vmatprep.mubr.bf16.mxu0 %v558
  %1446 = vmatmul.mubr.bf16.gmra.mrb[0].mxu0 %v557
  %v1447 = vpop.f32.mrb[0].mxu0
  %v1448 = vadd.f32 %v1351, %v1447
  %v1449 = vpop.f32.mrb[0].mxu0
  %v1450 = vpop.f32.mrb[0].mxu0
  %v1451 = vadd.f32 %v1354, %v1450
  %v1452 = vpop.f32.mrb[0].mxu0
  %1453 = vmatprep.mubr.bf16.mxu0 %v567
  %1454 = vmatmul.mubr.bf16.gmra.mrb[0].mxu0 %v566
  %v1455 = vpop.f32.mrb[0].mxu0
  %v1456 = vadd.f32 %v1359, %v1455
  %v1457 = vpop.f32.mrb[0].mxu0
  %v1458 = vpop.f32.mrb[0].mxu0
  %v1459 = vadd.f32 %v1362, %v1458
  %v1460 = vpop.f32.mrb[0].mxu0
  %1461 = vmatprep.mubr.bf16.mxu0 %v576
  %1462 = vmatmul.mubr.bf16.gmra.mrb[0].mxu0 %v575
  %v1463 = vpop.f32.mrb[0].mxu0
  %v1464 = vadd.f32 %v1367, %v1463
  %v1465 = vpop.f32.mrb[0].mxu0
  %v1466 = vpop.f32.mrb[0].mxu0
  %v1467 = vadd.f32 %v1370, %v1466
  %v1468 = vpop.f32.mrb[0].mxu0
  %1469 = vdwg.mxu0
  %1470 = vmatprep.subr.bf16.mxu0 0
  %1471 = vmatpush1.bf16.msra.mxu0 %v1002
  %1472 = vmatprep.subr.bf16.mxu0 0
  %1473 = vmatpush1.bf16.msra.mxu0 %v1003
  %1474 = vmatprep.subr.bf16.mxu0 0
  %1475 = vmatpush1.bf16.msra.mxu0 %v1004
  %1476 = vmatprep.subr.bf16.mxu0 0
  %1477 = vmatpush1.bf16.msra.mxu0 %v1005
  %1478 = vmatprep.subr.bf16.mxu0 0
  %1479 = vmatpush1.bf16.msra.mxu0 %v1006
  %1480 = vmatprep.subr.bf16.mxu0 0
  %1481 = vmatpush1.bf16.msra.mxu0 %v1007
  %1482 = vmatprep.subr.bf16.mxu0 0
  %1483 = vmatpush1.bf16.msra.mxu0 %v1008
  %1484 = vmatprep.subr.bf16.mxu0 0
  %1485 = vmatpush1.bf16.msra.mxu0 %v1009
  %1486 = vmatprep.subr.bf16.mxu0 0
  %1487 = vmatpush1.bf16.msra.mxu0 0
  %1488 = vmatprep.subr.bf16.mxu0 0
  %1489 = vmatpush1.bf16.msra.mxu0 0
  %1490 = vmatprep.subr.bf16.mxu0 0
  %1491 = vmatpush1.bf16.msra.mxu0 0
  %1492 = vmatprep.subr.bf16.mxu0 0
  %1493 = vmatpush1.bf16.msra.mxu0 0
  %1494 = vmatprep.subr.bf16.mxu0 0
  %1495 = vmatpush1.bf16.msra.mxu0 0
  %1496 = vmatprep.subr.bf16.mxu0 0
  %1497 = vmatpush1.bf16.msra.mxu0 0
  %1498 = vmatprep.subr.bf16.mxu0 0
  %1499 = vmatpush1.bf16.msra.mxu0 0
  %1500 = vmatprep.subr.bf16.mxu0 0
  %1501 = vmatpush1.bf16.msra.mxu0 0
  %1502 = vmatprep.mubr.bf16.mxu0 0
  %1503 = vmatmul.mubr.bf16.gmra.mrb[0].mxu0 %v514
  %v1504 = vpop.f32.mrb[0].mxu0
  %v1505 = vadd.f32 %v1408, %v1504
  %v1506 = vpop.f32.mrb[0].mxu0
  %v1507 = vpop.f32.mrb[0].mxu0
  %v1508 = vadd.f32 %v1411, %v1507
  %v1509 = vpop.f32.mrb[0].mxu0
  %1510 = vmatprep.mubr.bf16.mxu0 0
  %1511 = vmatmul.mubr.bf16.gmra.mrb[0].mxu0 %v523
  %v1512 = vpop.f32.mrb[0].mxu0
  %v1513 = vadd.f32 %v1416, %v1512
  %v1514 = vpop.f32.mrb[0].mxu0
  %v1515 = vpop.f32.mrb[0].mxu0
  %v1516 = vadd.f32 %v1419, %v1515
  %v1517 = vpop.f32.mrb[0].mxu0
  %1518 = vmatprep.mubr.bf16.mxu0 0
  %1519 = vmatmul.mubr.bf16.gmra.mrb[0].mxu0 %v532
  %v1520 = vpop.f32.mrb[0].mxu0
  %v1521 = vadd.f32 %v1424, %v1520
  %v1522 = vpop.f32.mrb[0].mxu0
  %v1523 = vpop.f32.mrb[0].mxu0
  %v1524 = vadd.f32 %v1427, %v1523
  %v1525 = vpop.f32.mrb[0].mxu0
  %1526 = vmatprep.mubr.bf16.mxu0 0
  %1527 = vmatmul.mubr.bf16.gmra.mrb[0].mxu0 %v541
  %v1528 = vpop.f32.mrb[0].mxu0
  %v1529 = vadd.f32 %v1432, %v1528
  %v1530 = vpop.f32.mrb[0].mxu0
  %v1531 = vpop.f32.mrb[0].mxu0
  %v1532 = vadd.f32 %v1435, %v1531
  %v1533 = vpop.f32.mrb[0].mxu0
  %1534 = vmatprep.mubr.bf16.mxu0 0
  %1535 = vmatmul.mubr.bf16.gmra.mrb[0].mxu0 %v550
  %v1536 = vpop.f32.mrb[0].mxu0
  %v1537 = vadd.f32 %v1440, %v1536
  %v1538 = vpop.f32.mrb[0].mxu0
  %v1539 = vpop.f32.mrb[0].mxu0
  %v1540 = vadd.f32 %v1443, %v1539
  %v1541 = vpop.f32.mrb[0].mxu0
  %1542 = vmatprep.mubr.bf16.mxu0 0
  %1543 = vmatmul.mubr.bf16.gmra.mrb[0].mxu0 %v559
  %v1544 = vpop.f32.mrb[0].mxu0
  %v1545 = vadd.f32 %v1448, %v1544
  %v1546 = vpop.f32.mrb[0].mxu0
  %v1547 = vpop.f32.mrb[0].mxu0
  %v1548 = vadd.f32 %v1451, %v1547
  %v1549 = vpop.f32.mrb[0].mxu0
  %1550 = vmatprep.mubr.bf16.mxu0 0
  %1551 = vmatmul.mubr.bf16.gmra.mrb[0].mxu0 %v568
  %v1552 = vpop.f32.mrb[0].mxu0
  %v1553 = vadd.f32 %v1456, %v1552
  %v1554 = vpop.f32.mrb[0].mxu0
  %v1555 = vpop.f32.mrb[0].mxu0
  %v1556 = vadd.f32 %v1459, %v1555
  %v1557 = vpop.f32.mrb[0].mxu0
  %1558 = vmatprep.mubr.bf16.mxu0 0
  %1559 = vmatmul.mubr.bf16.gmra.mrb[0].mxu0 %v577
  %v1560 = vpop.f32.mrb[0].mxu0
  %v1561 = vadd.f32 %v1464, %v1560
  %v1562 = vpop.f32.mrb[0].mxu0
  %v1563 = vpop.f32.mrb[0].mxu0
  %v1564 = vadd.f32 %v1467, %v1563
  %v1565 = vpop.f32.mrb[0].mxu0
  %1566 = vdwg.mxu0
  %v1567 = vmax.f32 %v1505, 0.0
  %v1568 = vmax.f32 %v1508, 0.0
  %v1569 = vmax.f32 %v1513, 0.0
  %v1570 = vmax.f32 %v1516, 0.0
  %v1571 = vmax.f32 %v1521, 0.0
  %v1572 = vmax.f32 %v1524, 0.0
  %v1573 = vmax.f32 %v1529, 0.0
  %v1574 = vmax.f32 %v1532, 0.0
  %v1575 = vmax.f32 %v1537, 0.0
  %v1576 = vmax.f32 %v1540, 0.0
  %v1577 = vmax.f32 %v1545, 0.0
  %v1578 = vmax.f32 %v1548, 0.0
  %v1579 = vmax.f32 %v1553, 0.0
  %v1580 = vmax.f32 %v1556, 0.0
  %v1581 = vmax.f32 %v1561, 0.0
  %v1582 = vmax.f32 %v1564, 0.0
  %v1583 = vpack.c.bf16 %v1568, %v1567
  %v1584 = vpack.c.bf16 %v1570, %v1569
  %v1585 = vpack.c.bf16 %v1572, %v1571
  %v1586 = vpack.c.bf16 %v1574, %v1573
  %v1587 = vpack.c.bf16 %v1576, %v1575
  %v1588 = vpack.c.bf16 %v1578, %v1577
  %v1589 = vpack.c.bf16 %v1580, %v1579
  %v1590 = vpack.c.bf16 %v1582, %v1581
  %v1599 = vunpack.c.l.b16 %v1583
  %v1600 = vunpack.c.h.b16 %v1583
  %v1601 = vunpack.c.l.b16 %v1584
  %v1602 = vunpack.c.h.b16 %v1584
  %v1603 = vunpack.c.l.b16 %v1585
  %v1604 = vunpack.c.h.b16 %v1585
  %v1605 = vunpack.c.l.b16 %v1586
  %v1606 = vunpack.c.h.b16 %v1586
  %v1607 = vunpack.c.l.b16 %v1587
  %v1608 = vunpack.c.h.b16 %v1587
  %v1609 = vunpack.c.l.b16 %v1588
  %v1610 = vunpack.c.h.b16 %v1588
  %v1611 = vunpack.c.l.b16 %v1589
  %v1612 = vunpack.c.h.b16 %v1589
  %v1613 = vunpack.c.l.b16 %v1590
  %v1614 = vunpack.c.h.b16 %v1590
  %v1615 = vpack.c.b16 %v1599, %v1599
  %v1616 = vpack.c.b16 %v1600, %v1600
  %v1617 = vpack.c.b16 %v1601, %v1601
  %v1618 = vpack.c.b16 %v1602, %v1602
  %v1619 = vpack.c.b16 %v1603, %v1603
  %v1620 = vpack.c.b16 %v1604, %v1604
  %v1621 = vpack.c.b16 %v1605, %v1605
  %v1622 = vpack.c.b16 %v1606, %v1606
  %v1623 = vpack.c.b16 %v1607, %v1607
  %v1624 = vpack.c.b16 %v1608, %v1608
  %v1625 = vpack.c.b16 %v1609, %v1609
  %v1626 = vpack.c.b16 %v1610, %v1610
  %v1627 = vpack.c.b16 %v1611, %v1611
  %v1628 = vpack.c.b16 %v1612, %v1612
  %v1629 = vpack.c.b16 %v1613, %v1613
  %v1630 = vpack.c.b16 %v1614, %v1614
  %1647 = vst [vmem:[%s4] sm:$0xf] %v1615
  %1648 = vst [vmem:[%s4 + $0x4] sm:$0xf] %v1616
  %1649 = vst [vmem:[%s4 + $0x8] sm:$0xf] %v1617
  %1650 = vst [vmem:[%s4 + $0xc] sm:$0xf] %v1618
  %1651 = vst [vmem:[%s4 + $0x10] sm:$0xf] %v1619
  %1652 = vst [vmem:[%s4 + $0x14] sm:$0xf] %v1620
  %1653 = vst [vmem:[%s4 + $0x18] sm:$0xf] %v1621
  %1654 = vst [vmem:[%s4 + $0x1c] sm:$0xf] %v1622
  %1655 = vst [vmem:[%s4 + $0x20] sm:$0xf] %v1623
  %1656 = vst [vmem:[%s4 + $0x24] sm:$0xf] %v1624
  %1657 = vst [vmem:[%s4 + $0x28] sm:$0xf] %v1625
  %1658 = vst [vmem:[%s4 + $0x2c] sm:$0xf] %v1626
  %1659 = vst [vmem:[%s4 + $0x30] sm:$0xf] %v1627
  %1660 = vst [vmem:[%s4 + $0x34] sm:$0xf] %v1628
  %1661 = vst [vmem:[%s4 + $0x38] sm:$0xf] %v1629
  %1662 = vst [vmem:[%s4 + $0x3c] sm:$0xf] %v1630
  // Predicated region
  $region14: #{ade20k_segmenter_forward.17} parent=0 // pred_check
    _
  $region15: #{ade20k_segmenter_forward.17} parent=0 // pred_check_branch
    %1664 = sbr.rel (0) target = $region17
  $region16: #{ade20k_segmenter_forward.17} parent=0 // pred_region
    _
  $region17: #{ade20k_segmenter_forward.17} parent=0 // pred_fallthru
    _
  // Predicated region
  $region18: #{ade20k_segmenter_forward.17} parent=0 // pred_check
    _
  $region19: #{ade20k_segmenter_forward.17} parent=0 // pred_check_branch
    %1666 = sbr.rel (0) target = $region21
  $region20: #{ade20k_segmenter_forward.17} parent=0 // pred_region
    _
  $region21: #{ade20k_segmenter_forward.17} parent=0 // pred_fallthru
    _

// kernel: ade20k_segmenter_forward.19
$region0: #{ade20k_segmenter_forward.19}
  #allocation0 [shape = 'u32[]', space=smem, size = 0x4, offset = 0x4, fixed_abs, tag = 'smem constant byte address 0x4 - core index']
  #allocation1 [shape = 'u32[144,128]{1,0:T(1,128)}', space=vmem, size = 0x12000, scoped, tag = 'internal scratch']
  %s0 = inlined_call_operand.vmem [shape: f32[512,150], index: 0, kind: input, shape index: {}]
  %s1 = inlined_call_operand.hbm [shape: f32[512,150], index: 1, kind: output, shape index: {}]
  %s2 = sld [smem:[#allocation0]]
  $region14: #{ade20k_segmenter_forward.19} parent=0
    _
  %s4 = ssub.s32 1, %s2
  %s5 = scalar_select 0, %s4, %s2
  $region1: #{ade20k_segmenter_forward.19} parent=0
    #allocation2 [shape = 'u8[524288]{0}', space=vmem, size = 0x80000, scoped, tag = 'output window, operand 0, single buffered']
    #allocation3 [shape = 's32[1]{0}', space=sflag, size = 0x4, scoped, tag = 'scoped memory for ade20k_segmenter_forward.19']
    %6 = vsyncpa [#allocation3], 0
    // Predicated region
    $region2: #{ade20k_segmenter_forward.19} parent=1 // pred_check
      _
    $region3: #{ade20k_segmenter_forward.19} parent=1 // pred_check_branch
      %8 = sbr.rel (0) target = $region5
    $region4: #{ade20k_segmenter_forward.19} parent=1 // pred_region
      _
    $region5: #{ade20k_segmenter_forward.19} parent=1 // pred_fallthru
      _
    %v9 = vld [vmem:[%s0] sm:$0xff]
    %v10 = vld [vmem:[%s0 + $0x8] sm:$0xff]
    %v11 = vld [vmem:[%s0 + $0x10] sm:$0xff]
    %v12 = vld [vmem:[%s0 + $0x18] sm:$0xff]
    %v13 = vld [vmem:[%s0 + $0x20] sm:$0xff]
    %v14 = vld [vmem:[%s0 + $0x28] sm:$0xff]
    %v15 = vld [vmem:[%s0 + $0x30] sm:$0xff]
    %v16 = vld [vmem:[%s0 + $0x38] sm:$0xff]
    %v17 = vld [vmem:[%s0 + $0x40] sm:$0xff]
    %v18 = vld [vmem:[%s0 + $0x48] sm:$0xff]
    %v19 = vld [vmem:[%s0 + $0x50] sm:$0xff]
    %v20 = vld [vmem:[%s0 + $0x58] sm:$0xff]
    %v21 = vld [vmem:[%s0 + $0x60] sm:$0xff]
    %v22 = vld [vmem:[%s0 + $0x68] sm:$0xff]
    %v23 = vld [vmem:[%s0 + $0x70] sm:$0xff]
    %v24 = vld [vmem:[%s0 + $0x78] sm:$0xff]
    %v25 = vld [vmem:[%s0 + $0x80] sm:$0xff]
    %v26 = vld [vmem:[%s0 + $0x88] sm:$0xff]
    %v27 = vld [vmem:[%s0 + $0x90] sm:$0xff]
    %v28 = vld [vmem:[%s0 + $0x98] sm:$0xff]
    %v29 = vld [vmem:[%s0 + $0xa0] sm:$0xff]
    %v30 = vld [vmem:[%s0 + $0xa8] sm:$0xff]
    %v31 = vld [vmem:[%s0 + $0xb0] sm:$0xff]
    %v32 = vld [vmem:[%s0 + $0xb8] sm:$0xff]
    %v33 = vld [vmem:[%s0 + $0xc0] sm:$0xff]
    %v34 = vld [vmem:[%s0 + $0xc8] sm:$0xff]
    %v35 = vld [vmem:[%s0 + $0xd0] sm:$0xff]
    %v36 = vld [vmem:[%s0 + $0xd8] sm:$0xff]
    %v37 = vld [vmem:[%s0 + $0xe0] sm:$0xff]
    %v38 = vld [vmem:[%s0 + $0xe8] sm:$0xff]
    %v39 = vld [vmem:[%s0 + $0xf0] sm:$0xff]
    %v40 = vld [vmem:[%s0 + $0xf8] sm:$0xff]
    %v41 = vld [vmem:[%s0 + $0x100] sm:$0xff]
    %v42 = vld [vmem:[%s0 + $0x108] sm:$0xff]
    %v43 = vld [vmem:[%s0 + $0x110] sm:$0xff]
    %v44 = vld [vmem:[%s0 + $0x118] sm:$0xff]
    %v45 = vld [vmem:[%s0 + $0x120] sm:$0xff]
    %v46 = vld [vmem:[%s0 + $0x128] sm:$0xff]
    %v47 = vld [vmem:[%s0 + $0x130] sm:$0xff]
    %v48 = vld [vmem:[%s0 + $0x138] sm:$0xff]
    %v49 = vld [vmem:[%s0 + $0x140] sm:$0xff]
    %v50 = vld [vmem:[%s0 + $0x148] sm:$0xff]
    %v51 = vld [vmem:[%s0 + $0x150] sm:$0xff]
    %v52 = vld [vmem:[%s0 + $0x158] sm:$0xff]
    %v53 = vld [vmem:[%s0 + $0x160] sm:$0xff]
    %v54 = vld [vmem:[%s0 + $0x168] sm:$0xff]
    %v55 = vld [vmem:[%s0 + $0x170] sm:$0xff]
    %v56 = vld [vmem:[%s0 + $0x178] sm:$0xff]
    %v57 = vld [vmem:[%s0 + $0x180] sm:$0xff]
    %v58 = vld [vmem:[%s0 + $0x188] sm:$0xff]
    %v59 = vld [vmem:[%s0 + $0x190] sm:$0xff]
    %v60 = vld [vmem:[%s0 + $0x198] sm:$0xff]
    %v61 = vld [vmem:[%s0 + $0x1a0] sm:$0xff]
    %v62 = vld [vmem:[%s0 + $0x1a8] sm:$0xff]
    %v63 = vld [vmem:[%s0 + $0x1b0] sm:$0xff]
    %v64 = vld [vmem:[%s0 + $0x1b8] sm:$0xff]
    %v65 = vld [vmem:[%s0 + $0x1c0] sm:$0xff]
    %v66 = vld [vmem:[%s0 + $0x1c8] sm:$0xff]
    %v67 = vld [vmem:[%s0 + $0x1d0] sm:$0xff]
    %v68 = vld [vmem:[%s0 + $0x1d8] sm:$0xff]
    %v69 = vld [vmem:[%s0 + $0x1e0] sm:$0xff]
    %v70 = vld [vmem:[%s0 + $0x1e8] sm:$0xff]
    %v71 = vld [vmem:[%s0 + $0x1f0] sm:$0xff]
    %v72 = vld [vmem:[%s0 + $0x1f8] sm:$0xff]
    %v73 = vld [vmem:[%s0 + $0x200] sm:$0xff]
    %v74 = vld [vmem:[%s0 + $0x208] sm:$0xff]
    %v75 = vld [vmem:[%s0 + $0x210] sm:$0xff]
    %v76 = vld [vmem:[%s0 + $0x218] sm:$0xff]
    %v77 = vld [vmem:[%s0 + $0x220] sm:$0xff]
    %v78 = vld [vmem:[%s0 + $0x228] sm:$0xff]
    %v79 = vld [vmem:[%s0 + $0x230] sm:$0xff]
    %v80 = vld [vmem:[%s0 + $0x238] sm:$0xff]
    %v81 = vld [vmem:[%s0 + $0x240] sm:$0xff]
    %v82 = vld [vmem:[%s0 + $0x248] sm:$0xff]
    %v83 = vld [vmem:[%s0 + $0x250] sm:$0xff]
    %v84 = vld [vmem:[%s0 + $0x258] sm:$0xff]
    %v85 = vld [vmem:[%s0 + $0x260] sm:$0xff]
    %v86 = vld [vmem:[%s0 + $0x268] sm:$0xff]
    %v87 = vld [vmem:[%s0 + $0x270] sm:$0xff]
    %v88 = vld [vmem:[%s0 + $0x278] sm:$0xff]
    %v89 = vld [vmem:[%s0 + $0x280] sm:$0xff]
    %v90 = vld [vmem:[%s0 + $0x288] sm:$0xff]
    %v91 = vld [vmem:[%s0 + $0x290] sm:$0xff]
    %v92 = vld [vmem:[%s0 + $0x298] sm:$0xff]
    %v93 = vld [vmem:[%s0 + $0x2a0] sm:$0xff]
    %v94 = vld [vmem:[%s0 + $0x2a8] sm:$0xff]
    %v95 = vld [vmem:[%s0 + $0x2b0] sm:$0xff]
    %v96 = vld [vmem:[%s0 + $0x2b8] sm:$0xff]
    %v97 = vld [vmem:[%s0 + $0x2c0] sm:$0xff]
    %v98 = vld [vmem:[%s0 + $0x2c8] sm:$0xff]
    %v99 = vld [vmem:[%s0 + $0x2d0] sm:$0xff]
    %v100 = vld [vmem:[%s0 + $0x2d8] sm:$0xff]
    %v101 = vld [vmem:[%s0 + $0x2e0] sm:$0xff]
    %v102 = vld [vmem:[%s0 + $0x2e8] sm:$0xff]
    %v103 = vld [vmem:[%s0 + $0x2f0] sm:$0xff]
    %v104 = vld [vmem:[%s0 + $0x2f8] sm:$0xff]
    %v105 = vld [vmem:[%s0 + $0x300] sm:$0xff]
    %v106 = vld [vmem:[%s0 + $0x308] sm:$0xff]
    %v107 = vld [vmem:[%s0 + $0x310] sm:$0xff]
    %v108 = vld [vmem:[%s0 + $0x318] sm:$0xff]
    %v109 = vld [vmem:[%s0 + $0x320] sm:$0xff]
    %v110 = vld [vmem:[%s0 + $0x328] sm:$0xff]
    %v111 = vld [vmem:[%s0 + $0x330] sm:$0xff]
    %v112 = vld [vmem:[%s0 + $0x338] sm:$0xff]
    %v113 = vld [vmem:[%s0 + $0x340] sm:$0xff]
    %v114 = vld [vmem:[%s0 + $0x348] sm:$0xff]
    %v115 = vld [vmem:[%s0 + $0x350] sm:$0xff]
    %v116 = vld [vmem:[%s0 + $0x358] sm:$0xff]
    %v117 = vld [vmem:[%s0 + $0x360] sm:$0xff]
    %v118 = vld [vmem:[%s0 + $0x368] sm:$0xff]
    %v119 = vld [vmem:[%s0 + $0x370] sm:$0xff]
    %v120 = vld [vmem:[%s0 + $0x378] sm:$0xff]
    %v121 = vld [vmem:[%s0 + $0x380] sm:$0xff]
    %v122 = vld [vmem:[%s0 + $0x388] sm:$0xff]
    %v123 = vld [vmem:[%s0 + $0x390] sm:$0xff]
    %v124 = vld [vmem:[%s0 + $0x398] sm:$0xff]
    %v125 = vld [vmem:[%s0 + $0x3a0] sm:$0xff]
    %v126 = vld [vmem:[%s0 + $0x3a8] sm:$0xff]
    %v127 = vld [vmem:[%s0 + $0x3b0] sm:$0xff]
    %v128 = vld [vmem:[%s0 + $0x3b8] sm:$0xff]
    %v129 = vld [vmem:[%s0 + $0x3c0] sm:$0xff]
    %v130 = vld [vmem:[%s0 + $0x3c8] sm:$0xff]
    %v131 = vld [vmem:[%s0 + $0x3d0] sm:$0xff]
    %v132 = vld [vmem:[%s0 + $0x3d8] sm:$0xff]
    %v133 = vld [vmem:[%s0 + $0x3e0] sm:$0xff]
    %v134 = vld [vmem:[%s0 + $0x3e8] sm:$0xff]
    %v135 = vld [vmem:[%s0 + $0x3f0] sm:$0xff]
    %v136 = vld [vmem:[%s0 + $0x3f8] sm:$0xff]
    %vm137 = vcmask 179200
    %v138 = vsel %vm137, %v10, -inf
    %v139 = vmax.f32 %v9, %v138
    %140 = vmax.xlane.f32.xlu0 %v139
    %v141 = vpop.xlane.xlu0 %140
    %v142 = vsel %vm137, %v12, -inf
    %v143 = vmax.f32 %v11, %v142
    %144 = vmax.xlane.f32.xlu0 %v143
    %v145 = vpop.xlane.xlu0 %144
    %v146 = vsel %vm137, %v14, -inf
    %v147 = vmax.f32 %v13, %v146
    %148 = vmax.xlane.f32.xlu0 %v147
    %v149 = vpop.xlane.xlu0 %148
    %v150 = vsel %vm137, %v16, -inf
    %v151 = vmax.f32 %v15, %v150
    %152 = vmax.xlane.f32.xlu0 %v151
    %v153 = vpop.xlane.xlu0 %152
    %v154 = vsel %vm137, %v18, -inf
    %v155 = vmax.f32 %v17, %v154
    %156 = vmax.xlane.f32.xlu0 %v155
    %v157 = vpop.xlane.xlu0 %156
    %v158 = vsel %vm137, %v20, -inf
    %v159 = vmax.f32 %v19, %v158
    %160 = vmax.xlane.f32.xlu0 %v159
    %v161 = vpop.xlane.xlu0 %160
    %v162 = vsel %vm137, %v22, -inf
    %v163 = vmax.f32 %v21, %v162
    %164 = vmax.xlane.f32.xlu0 %v163
    %v165 = vpop.xlane.xlu0 %164
    %v166 = vsel %vm137, %v24, -inf
    %v167 = vmax.f32 %v23, %v166
    %168 = vmax.xlane.f32.xlu0 %v167
    %v169 = vpop.xlane.xlu0 %168
    %v170 = vsel %vm137, %v26, -inf
    %v171 = vmax.f32 %v25, %v170
    %172 = vmax.xlane.f32.xlu0 %v171
    %v173 = vpop.xlane.xlu0 %172
    %v174 = vsel %vm137, %v28, -inf
    %v175 = vmax.f32 %v27, %v174
    %176 = vmax.xlane.f32.xlu0 %v175
    %v177 = vpop.xlane.xlu0 %176
    %v178 = vsel %vm137, %v30, -inf
    %v179 = vmax.f32 %v29, %v178
    %180 = vmax.xlane.f32.xlu0 %v179
    %v181 = vpop.xlane.xlu0 %180
    %v182 = vsel %vm137, %v32, -inf
    %v183 = vmax.f32 %v31, %v182
    %184 = vmax.xlane.f32.xlu0 %v183
    %v185 = vpop.xlane.xlu0 %184
    %v186 = vsel %vm137, %v34, -inf
    %v187 = vmax.f32 %v33, %v186
    %188 = vmax.xlane.f32.xlu0 %v187
    %v189 = vpop.xlane.xlu0 %188
    %v190 = vsel %vm137, %v36, -inf
    %v191 = vmax.f32 %v35, %v190
    %192 = vmax.xlane.f32.xlu0 %v191
    %v193 = vpop.xlane.xlu0 %192
    %v194 = vsel %vm137, %v38, -inf
    %v195 = vmax.f32 %v37, %v194
    %196 = vmax.xlane.f32.xlu0 %v195
    %v197 = vpop.xlane.xlu0 %196
    %v198 = vsel %vm137, %v40, -inf
    %v199 = vmax.f32 %v39, %v198
    %200 = vmax.xlane.f32.xlu0 %v199
    %v201 = vpop.xlane.xlu0 %200
    %v202 = vsel %vm137, %v42, -inf
    %v203 = vmax.f32 %v41, %v202
    %204 = vmax.xlane.f32.xlu0 %v203
    %v205 = vpop.xlane.xlu0 %204
    %v206 = vsel %vm137, %v44, -inf
    %v207 = vmax.f32 %v43, %v206
    %208 = vmax.xlane.f32.xlu0 %v207
    %v209 = vpop.xlane.xlu0 %208
    %v210 = vsel %vm137, %v46, -inf
    %v211 = vmax.f32 %v45, %v210
    %212 = vmax.xlane.f32.xlu0 %v211
    %v213 = vpop.xlane.xlu0 %212
    %v214 = vsel %vm137, %v48, -inf
    %v215 = vmax.f32 %v47, %v214
    %216 = vmax.xlane.f32.xlu0 %v215
    %v217 = vpop.xlane.xlu0 %216
    %v218 = vsel %vm137, %v50, -inf
    %v219 = vmax.f32 %v49, %v218
    %220 = vmax.xlane.f32.xlu0 %v219
    %v221 = vpop.xlane.xlu0 %220
    %v222 = vsel %vm137, %v52, -inf
    %v223 = vmax.f32 %v51, %v222
    %224 = vmax.xlane.f32.xlu0 %v223
    %v225 = vpop.xlane.xlu0 %224
    %v226 = vsel %vm137, %v54, -inf
    %v227 = vmax.f32 %v53, %v226
    %228 = vmax.xlane.f32.xlu0 %v227
    %v229 = vpop.xlane.xlu0 %228
    %v230 = vsel %vm137, %v56, -inf
    %v231 = vmax.f32 %v55, %v230
    %232 = vmax.xlane.f32.xlu0 %v231
    %v233 = vpop.xlane.xlu0 %232
    %v234 = vsel %vm137, %v58, -inf
    %v235 = vmax.f32 %v57, %v234
    %236 = vmax.xlane.f32.xlu0 %v235
    %v237 = vpop.xlane.xlu0 %236
    %v238 = vsel %vm137, %v60, -inf
    %v239 = vmax.f32 %v59, %v238
    %240 = vmax.xlane.f32.xlu0 %v239
    %v241 = vpop.xlane.xlu0 %240
    %v242 = vsel %vm137, %v62, -inf
    %v243 = vmax.f32 %v61, %v242
    %244 = vmax.xlane.f32.xlu0 %v243
    %v245 = vpop.xlane.xlu0 %244
    %v246 = vsel %vm137, %v64, -inf
    %v247 = vmax.f32 %v63, %v246
    %248 = vmax.xlane.f32.xlu0 %v247
    %v249 = vpop.xlane.xlu0 %248
    %v250 = vsel %vm137, %v66, -inf
    %v251 = vmax.f32 %v65, %v250
    %252 = vmax.xlane.f32.xlu0 %v251
    %v253 = vpop.xlane.xlu0 %252
    %v254 = vsel %vm137, %v68, -inf
    %v255 = vmax.f32 %v67, %v254
    %256 = vmax.xlane.f32.xlu0 %v255
    %v257 = vpop.xlane.xlu0 %256
    %v258 = vsel %vm137, %v70, -inf
    %v259 = vmax.f32 %v69, %v258
    %260 = vmax.xlane.f32.xlu0 %v259
    %v261 = vpop.xlane.xlu0 %260
    %v262 = vsel %vm137, %v72, -inf
    %v263 = vmax.f32 %v71, %v262
    %264 = vmax.xlane.f32.xlu0 %v263
    %v265 = vpop.xlane.xlu0 %264
    %v266 = vsel %vm137, %v74, -inf
    %v267 = vmax.f32 %v73, %v266
    %268 = vmax.xlane.f32.xlu0 %v267
    %v269 = vpop.xlane.xlu0 %268
    %v270 = vsel %vm137, %v76, -inf
    %v271 = vmax.f32 %v75, %v270
    %272 = vmax.xlane.f32.xlu0 %v271
    %v273 = vpop.xlane.xlu0 %272
    %v274 = vsel %vm137, %v78, -inf
    %v275 = vmax.f32 %v77, %v274
    %276 = vmax.xlane.f32.xlu0 %v275
    %v277 = vpop.xlane.xlu0 %276
    %v278 = vsel %vm137, %v80, -inf
    %v279 = vmax.f32 %v79, %v278
    %280 = vmax.xlane.f32.xlu0 %v279
    %v281 = vpop.xlane.xlu0 %280
    %v282 = vsel %vm137, %v82, -inf
    %v283 = vmax.f32 %v81, %v282
    %284 = vmax.xlane.f32.xlu0 %v283
    %v285 = vpop.xlane.xlu0 %284
    %v286 = vsel %vm137, %v84, -inf
    %v287 = vmax.f32 %v83, %v286
    %288 = vmax.xlane.f32.xlu0 %v287
    %v289 = vpop.xlane.xlu0 %288
    %v290 = vsel %vm137, %v86, -inf
    %v291 = vmax.f32 %v85, %v290
    %292 = vmax.xlane.f32.xlu0 %v291
    %v293 = vpop.xlane.xlu0 %292
    %v294 = vsel %vm137, %v88, -inf
    %v295 = vmax.f32 %v87, %v294
    %296 = vmax.xlane.f32.xlu0 %v295
    %v297 = vpop.xlane.xlu0 %296
    %v298 = vsel %vm137, %v90, -inf
    %v299 = vmax.f32 %v89, %v298
    %300 = vmax.xlane.f32.xlu0 %v299
    %v301 = vpop.xlane.xlu0 %300
    %v302 = vsel %vm137, %v92, -inf
    %v303 = vmax.f32 %v91, %v302
    %304 = vmax.xlane.f32.xlu0 %v303
    %v305 = vpop.xlane.xlu0 %304
    %v306 = vsel %vm137, %v94, -inf
    %v307 = vmax.f32 %v93, %v306
    %308 = vmax.xlane.f32.xlu0 %v307
    %v309 = vpop.xlane.xlu0 %308
    %v310 = vsel %vm137, %v96, -inf
    %v311 = vmax.f32 %v95, %v310
    %312 = vmax.xlane.f32.xlu0 %v311
    %v313 = vpop.xlane.xlu0 %312
    %v314 = vsel %vm137, %v98, -inf
    %v315 = vmax.f32 %v97, %v314
    %316 = vmax.xlane.f32.xlu0 %v315
    %v317 = vpop.xlane.xlu0 %316
    %v318 = vsel %vm137, %v100, -inf
    %v319 = vmax.f32 %v99, %v318
    %320 = vmax.xlane.f32.xlu0 %v319
    %v321 = vpop.xlane.xlu0 %320
    %v322 = vsel %vm137, %v102, -inf
    %v323 = vmax.f32 %v101, %v322
    %324 = vmax.xlane.f32.xlu0 %v323
    %v325 = vpop.xlane.xlu0 %324
    %v326 = vsel %vm137, %v104, -inf
    %v327 = vmax.f32 %v103, %v326
    %328 = vmax.xlane.f32.xlu0 %v327
    %v329 = vpop.xlane.xlu0 %328
    %v330 = vsel %vm137, %v106, -inf
    %v331 = vmax.f32 %v105, %v330
    %332 = vmax.xlane.f32.xlu0 %v331
    %v333 = vpop.xlane.xlu0 %332
    %v334 = vsel %vm137, %v108, -inf
    %v335 = vmax.f32 %v107, %v334
    %336 = vmax.xlane.f32.xlu0 %v335
    %v337 = vpop.xlane.xlu0 %336
    %v338 = vsel %vm137, %v110, -inf
    %v339 = vmax.f32 %v109, %v338
    %340 = vmax.xlane.f32.xlu0 %v339
    %v341 = vpop.xlane.xlu0 %340
    %v342 = vsel %vm137, %v112, -inf
    %v343 = vmax.f32 %v111, %v342
    %344 = vmax.xlane.f32.xlu0 %v343
    %v345 = vpop.xlane.xlu0 %344
    %v346 = vsel %vm137, %v114, -inf
    %v347 = vmax.f32 %v113, %v346
    %348 = vmax.xlane.f32.xlu0 %v347
    %v349 = vpop.xlane.xlu0 %348
    %v350 = vsel %vm137, %v116, -inf
    %v351 = vmax.f32 %v115, %v350
    %352 = vmax.xlane.f32.xlu0 %v351
    %v353 = vpop.xlane.xlu0 %352
    %v354 = vsel %vm137, %v118, -inf
    %v355 = vmax.f32 %v117, %v354
    %356 = vmax.xlane.f32.xlu0 %v355
    %v357 = vpop.xlane.xlu0 %356
    %v358 = vsel %vm137, %v120, -inf
    %v359 = vmax.f32 %v119, %v358
    %360 = vmax.xlane.f32.xlu0 %v359
    %v361 = vpop.xlane.xlu0 %360
    %v362 = vsel %vm137, %v122, -inf
    %v363 = vmax.f32 %v121, %v362
    %364 = vmax.xlane.f32.xlu0 %v363
    %v365 = vpop.xlane.xlu0 %364
    %v366 = vsel %vm137, %v124, -inf
    %v367 = vmax.f32 %v123, %v366
    %368 = vmax.xlane.f32.xlu0 %v367
    %v369 = vpop.xlane.xlu0 %368
    %v370 = vsel %vm137, %v126, -inf
    %v371 = vmax.f32 %v125, %v370
    %372 = vmax.xlane.f32.xlu0 %v371
    %v373 = vpop.xlane.xlu0 %372
    %v374 = vsel %vm137, %v128, -inf
    %v375 = vmax.f32 %v127, %v374
    %376 = vmax.xlane.f32.xlu0 %v375
    %v377 = vpop.xlane.xlu0 %376
    %v378 = vsel %vm137, %v130, -inf
    %v379 = vmax.f32 %v129, %v378
    %380 = vmax.xlane.f32.xlu0 %v379
    %v381 = vpop.xlane.xlu0 %380
    %v382 = vsel %vm137, %v132, -inf
    %v383 = vmax.f32 %v131, %v382
    %384 = vmax.xlane.f32.xlu0 %v383
    %v385 = vpop.xlane.xlu0 %384
    %v386 = vsel %vm137, %v134, -inf
    %v387 = vmax.f32 %v133, %v386
    %388 = vmax.xlane.f32.xlu0 %v387
    %v389 = vpop.xlane.xlu0 %388
    %v390 = vsel %vm137, %v136, -inf
    %v391 = vmax.f32 %v135, %v390
    %392 = vmax.xlane.f32.xlu0 %v391
    %v393 = vpop.xlane.xlu0 %392
    %v394 = vsub.f32 %v9, %v141
    %v395 = vsub.f32 %v10, %v141
    %v396 = vsub.f32 %v11, %v145
    %v397 = vsub.f32 %v12, %v145
    %v398 = vsub.f32 %v13, %v149
    %v399 = vsub.f32 %v14, %v149
    %v400 = vsub.f32 %v15, %v153
    %v401 = vsub.f32 %v16, %v153
    %v402 = vsub.f32 %v17, %v157
    %v403 = vsub.f32 %v18, %v157
    %v404 = vsub.f32 %v19, %v161
    %v405 = vsub.f32 %v20, %v161
    %v406 = vsub.f32 %v21, %v165
    %v407 = vsub.f32 %v22, %v165
    %v408 = vsub.f32 %v23, %v169
    %v409 = vsub.f32 %v24, %v169
    %v410 = vsub.f32 %v25, %v173
    %v411 = vsub.f32 %v26, %v173
    %v412 = vsub.f32 %v27, %v177
    %v413 = vsub.f32 %v28, %v177
    %v414 = vsub.f32 %v29, %v181
    %v415 = vsub.f32 %v30, %v181
    %v416 = vsub.f32 %v31, %v185
    %v417 = vsub.f32 %v32, %v185
    %v418 = vsub.f32 %v33, %v189
    %v419 = vsub.f32 %v34, %v189
    %v420 = vsub.f32 %v35, %v193
    %v421 = vsub.f32 %v36, %v193
    %v422 = vsub.f32 %v37, %v197
    %v423 = vsub.f32 %v38, %v197
    %v424 = vsub.f32 %v39, %v201
    %v425 = vsub.f32 %v40, %v201
    %v426 = vsub.f32 %v41, %v205
    %v427 = vsub.f32 %v42, %v205
    %v428 = vsub.f32 %v43, %v209
    %v429 = vsub.f32 %v44, %v209
    %v430 = vsub.f32 %v45, %v213
    %v431 = vsub.f32 %v46, %v213
    %v432 = vsub.f32 %v47, %v217
    %v433 = vsub.f32 %v48, %v217
    %v434 = vsub.f32 %v49, %v221
    %v435 = vsub.f32 %v50, %v221
    %v436 = vsub.f32 %v51, %v225
    %v437 = vsub.f32 %v52, %v225
    %v438 = vsub.f32 %v53, %v229
    %v439 = vsub.f32 %v54, %v229
    %v440 = vsub.f32 %v55, %v233
    %v441 = vsub.f32 %v56, %v233
    %v442 = vsub.f32 %v57, %v237
    %v443 = vsub.f32 %v58, %v237
    %v444 = vsub.f32 %v59, %v241
    %v445 = vsub.f32 %v60, %v241
    %v446 = vsub.f32 %v61, %v245
    %v447 = vsub.f32 %v62, %v245
    %v448 = vsub.f32 %v63, %v249
    %v449 = vsub.f32 %v64, %v249
    %v450 = vsub.f32 %v65, %v253
    %v451 = vsub.f32 %v66, %v253
    %v452 = vsub.f32 %v67, %v257
    %v453 = vsub.f32 %v68, %v257
    %v454 = vsub.f32 %v69, %v261
    %v455 = vsub.f32 %v70, %v261
    %v456 = vsub.f32 %v71, %v265
    %v457 = vsub.f32 %v72, %v265
    %v458 = vsub.f32 %v73, %v269
    %v459 = vsub.f32 %v74, %v269
    %v460 = vsub.f32 %v75, %v273
    %v461 = vsub.f32 %v76, %v273
    %v462 = vsub.f32 %v77, %v277
    %v463 = vsub.f32 %v78, %v277
    %v464 = vsub.f32 %v79, %v281
    %v465 = vsub.f32 %v80, %v281
    %v466 = vsub.f32 %v81, %v285
    %v467 = vsub.f32 %v82, %v285
    %v468 = vsub.f32 %v83, %v289
    %v469 = vsub.f32 %v84, %v289
    %v470 = vsub.f32 %v85, %v293
    %v471 = vsub.f32 %v86, %v293
    %v472 = vsub.f32 %v87, %v297
    %v473 = vsub.f32 %v88, %v297
    %v474 = vsub.f32 %v89, %v301
    %v475 = vsub.f32 %v90, %v301
    %v476 = vsub.f32 %v91, %v305
    %v477 = vsub.f32 %v92, %v305
    %v478 = vsub.f32 %v93, %v309
    %v479 = vsub.f32 %v94, %v309
    %v480 = vsub.f32 %v95, %v313
    %v481 = vsub.f32 %v96, %v313
    %v482 = vsub.f32 %v97, %v317
    %v483 = vsub.f32 %v98, %v317
    %v484 = vsub.f32 %v99, %v321
    %v485 = vsub.f32 %v100, %v321
    %v486 = vsub.f32 %v101, %v325
    %v487 = vsub.f32 %v102, %v325
    %v488 = vsub.f32 %v103, %v329
    %v489 = vsub.f32 %v104, %v329
    %v490 = vsub.f32 %v105, %v333
    %v491 = vsub.f32 %v106, %v333
    %v492 = vsub.f32 %v107, %v337
    %v493 = vsub.f32 %v108, %v337
    %v494 = vsub.f32 %v109, %v341
    %v495 = vsub.f32 %v110, %v341
    %v496 = vsub.f32 %v111, %v345
    %v497 = vsub.f32 %v112, %v345
    %v498 = vsub.f32 %v113, %v349
    %v499 = vsub.f32 %v114, %v349
    %v500 = vsub.f32 %v115, %v353
    %v501 = vsub.f32 %v116, %v353
    %v502 = vsub.f32 %v117, %v357
    %v503 = vsub.f32 %v118, %v357
    %v504 = vsub.f32 %v119, %v361
    %v505 = vsub.f32 %v120, %v361
    %v506 = vsub.f32 %v121, %v365
    %v507 = vsub.f32 %v122, %v365
    %v508 = vsub.f32 %v123, %v369
    %v509 = vsub.f32 %v124, %v369
    %v510 = vsub.f32 %v125, %v373
    %v511 = vsub.f32 %v126, %v373
    %v512 = vsub.f32 %v127, %v377
    %v513 = vsub.f32 %v128, %v377
    %v514 = vsub.f32 %v129, %v381
    %v515 = vsub.f32 %v130, %v381
    %v516 = vsub.f32 %v131, %v385
    %v517 = vsub.f32 %v132, %v385
    %v518 = vsub.f32 %v133, %v389
    %v519 = vsub.f32 %v134, %v389
    %v520 = vsub.f32 %v135, %v393
    %v521 = vsub.f32 %v136, %v393
    %v522 = vmul.f32 %v394, 1.442695
    %v523 = vpow.pop %v522
    %v524 = vmul.f32 %v395, 1.442695
    %v525 = vpow.pop %v524
    %v526 = vmul.f32 %v396, 1.442695
    %v527 = vpow.pop %v526
    %v528 = vmul.f32 %v397, 1.442695
    %v529 = vpow.pop %v528
    %v530 = vmul.f32 %v398, 1.442695
    %v531 = vpow.pop %v530
    %v532 = vmul.f32 %v399, 1.442695
    %v533 = vpow.pop %v532
    %v534 = vmul.f32 %v400, 1.442695
    %v535 = vpow.pop %v534
    %v536 = vmul.f32 %v401, 1.442695
    %v537 = vpow.pop %v536
    %v538 = vmul.f32 %v402, 1.442695
    %v539 = vpow.pop %v538
    %v540 = vmul.f32 %v403, 1.442695
    %v541 = vpow.pop %v540
    %v542 = vmul.f32 %v404, 1.442695
    %v543 = vpow.pop %v542
    %v544 = vmul.f32 %v405, 1.442695
    %v545 = vpow.pop %v544
    %v546 = vmul.f32 %v406, 1.442695
    %v547 = vpow.pop %v546
    %v548 = vmul.f32 %v407, 1.442695
    %v549 = vpow.pop %v548
    %v550 = vmul.f32 %v408, 1.442695
    %v551 = vpow.pop %v550
    %v552 = vmul.f32 %v409, 1.442695
    %v553 = vpow.pop %v552
    %v554 = vmul.f32 %v410, 1.442695
    %v555 = vpow.pop %v554
    %v556 = vmul.f32 %v411, 1.442695
    %v557 = vpow.pop %v556
    %v558 = vmul.f32 %v412, 1.442695
    %v559 = vpow.pop %v558
    %v560 = vmul.f32 %v413, 1.442695
    %v561 = vpow.pop %v560
    %v562 = vmul.f32 %v414, 1.442695
    %v563 = vpow.pop %v562
    %v564 = vmul.f32 %v415, 1.442695
    %v565 = vpow.pop %v564
    %v566 = vmul.f32 %v416, 1.442695
    %v567 = vpow.pop %v566
    %v568 = vmul.f32 %v417, 1.442695
    %v569 = vpow.pop %v568
    %v570 = vmul.f32 %v418, 1.442695
    %v571 = vpow.pop %v570
    %v572 = vmul.f32 %v419, 1.442695
    %v573 = vpow.pop %v572
    %v574 = vmul.f32 %v420, 1.442695
    %v575 = vpow.pop %v574
    %v576 = vmul.f32 %v421, 1.442695
    %v577 = vpow.pop %v576
    %v578 = vmul.f32 %v422, 1.442695
    %v579 = vpow.pop %v578
    %v580 = vmul.f32 %v423, 1.442695
    %v581 = vpow.pop %v580
    %v582 = vmul.f32 %v424, 1.442695
    %v583 = vpow.pop %v582
    %v584 = vmul.f32 %v425, 1.442695
    %v585 = vpow.pop %v584
    %v586 = vmul.f32 %v426, 1.442695
    %v587 = vpow.pop %v586
    %v588 = vmul.f32 %v427, 1.442695
    %v589 = vpow.pop %v588
    %v590 = vmul.f32 %v428, 1.442695
    %v591 = vpow.pop %v590
    %v592 = vmul.f32 %v429, 1.442695
    %v593 = vpow.pop %v592
    %v594 = vmul.f32 %v430, 1.442695
    %v595 = vpow.pop %v594
    %v596 = vmul.f32 %v431, 1.442695
    %v597 = vpow.pop %v596
    %v598 = vmul.f32 %v432, 1.442695
    %v599 = vpow.pop %v598
    %v600 = vmul.f32 %v433, 1.442695
    %v601 = vpow.pop %v600
    %v602 = vmul.f32 %v434, 1.442695
    %v603 = vpow.pop %v602
    %v604 = vmul.f32 %v435, 1.442695
    %v605 = vpow.pop %v604
    %v606 = vmul.f32 %v436, 1.442695
    %v607 = vpow.pop %v606
    %v608 = vmul.f32 %v437, 1.442695
    %v609 = vpow.pop %v608
    %v610 = vmul.f32 %v438, 1.442695
    %v611 = vpow.pop %v610
    %v612 = vmul.f32 %v439, 1.442695
    %v613 = vpow.pop %v612
    %v614 = vmul.f32 %v440, 1.442695
    %v615 = vpow.pop %v614
    %v616 = vmul.f32 %v441, 1.442695
    %v617 = vpow.pop %v616
    %v618 = vmul.f32 %v442, 1.442695
    %v619 = vpow.pop %v618
    %v620 = vmul.f32 %v443, 1.442695
    %v621 = vpow.pop %v620
    %v622 = vmul.f32 %v444, 1.442695
    %v623 = vpow.pop %v622
    %v624 = vmul.f32 %v445, 1.442695
    %v625 = vpow.pop %v624
    %v626 = vmul.f32 %v446, 1.442695
    %v627 = vpow.pop %v626
    %v628 = vmul.f32 %v447, 1.442695
    %v629 = vpow.pop %v628
    %v630 = vmul.f32 %v448, 1.442695
    %v631 = vpow.pop %v630
    %v632 = vmul.f32 %v449, 1.442695
    %v633 = vpow.pop %v632
    %v634 = vmul.f32 %v450, 1.442695
    %v635 = vpow.pop %v634
    %v636 = vmul.f32 %v451, 1.442695
    %v637 = vpow.pop %v636
    %v638 = vmul.f32 %v452, 1.442695
    %v639 = vpow.pop %v638
    %v640 = vmul.f32 %v453, 1.442695
    %v641 = vpow.pop %v640
    %v642 = vmul.f32 %v454, 1.442695
    %v643 = vpow.pop %v642
    %v644 = vmul.f32 %v455, 1.442695
    %v645 = vpow.pop %v644
    %v646 = vmul.f32 %v456, 1.442695
    %v647 = vpow.pop %v646
    %v648 = vmul.f32 %v457, 1.442695
    %v649 = vpow.pop %v648
    %v650 = vmul.f32 %v458, 1.442695
    %v651 = vpow.pop %v650
    %v652 = vmul.f32 %v459, 1.442695
    %v653 = vpow.pop %v652
    %v654 = vmul.f32 %v460, 1.442695
    %v655 = vpow.pop %v654
    %v656 = vmul.f32 %v461, 1.442695
    %v657 = vpow.pop %v656
    %v658 = vmul.f32 %v462, 1.442695
    %v659 = vpow.pop %v658
    %v660 = vmul.f32 %v463, 1.442695
    %v661 = vpow.pop %v660
    %v662 = vmul.f32 %v464, 1.442695
    %v663 = vpow.pop %v662
    %v664 = vmul.f32 %v465, 1.442695
    %v665 = vpow.pop %v664
    %v666 = vmul.f32 %v466, 1.442695
    %v667 = vpow.pop %v666
    %v668 = vmul.f32 %v467, 1.442695
    %v669 = vpow.pop %v668
    %v670 = vmul.f32 %v468, 1.442695
    %v671 = vpow.pop %v670
    %v672 = vmul.f32 %v469, 1.442695
    %v673 = vpow.pop %v672
    %v674 = vmul.f32 %v470, 1.442695
    %v675 = vpow.pop %v674
    %v676 = vmul.f32 %v471, 1.442695
    %v677 = vpow.pop %v676
    %v678 = vmul.f32 %v472, 1.442695
    %v679 = vpow.pop %v678
    %v680 = vmul.f32 %v473, 1.442695
    %v681 = vpow.pop %v680
    %v682 = vmul.f32 %v474, 1.442695
    %v683 = vpow.pop %v682
    %v684 = vmul.f32 %v475, 1.442695
    %v685 = vpow.pop %v684
    %v686 = vmul.f32 %v476, 1.442695
    %v687 = vpow.pop %v686
    %v688 = vmul.f32 %v477, 1.442695
    %v689 = vpow.pop %v688
    %v690 = vmul.f32 %v478, 1.442695
    %v691 = vpow.pop %v690
    %v692 = vmul.f32 %v479, 1.442695
    %v693 = vpow.pop %v692
    %v694 = vmul.f32 %v480, 1.442695
    %v695 = vpow.pop %v694
    %v696 = vmul.f32 %v481, 1.442695
    %v697 = vpow.pop %v696
    %v698 = vmul.f32 %v482, 1.442695
    %v699 = vpow.pop %v698
    %v700 = vmul.f32 %v483, 1.442695
    %v701 = vpow.pop %v700
    %v702 = vmul.f32 %v484, 1.442695
    %v703 = vpow.pop %v702
    %v704 = vmul.f32 %v485, 1.442695
    %v705 = vpow.pop %v704
    %v706 = vmul.f32 %v486, 1.442695
    %v707 = vpow.pop %v706
    %v708 = vmul.f32 %v487, 1.442695
    %v709 = vpow.pop %v708
    %v710 = vmul.f32 %v488, 1.442695
    %v711 = vpow.pop %v710
    %v712 = vmul.f32 %v489, 1.442695
    %v713 = vpow.pop %v712
    %v714 = vmul.f32 %v490, 1.442695
    %v715 = vpow.pop %v714
    %v716 = vmul.f32 %v491, 1.442695
    %v717 = vpow.pop %v716
    %v718 = vmul.f32 %v492, 1.442695
    %v719 = vpow.pop %v718
    %v720 = vmul.f32 %v493, 1.442695
    %v721 = vpow.pop %v720
    %v722 = vmul.f32 %v494, 1.442695
    %v723 = vpow.pop %v722
    %v724 = vmul.f32 %v495, 1.442695
    %v725 = vpow.pop %v724
    %v726 = vmul.f32 %v496, 1.442695
    %v727 = vpow.pop %v726
    %v728 = vmul.f32 %v497, 1.442695
    %v729 = vpow.pop %v728
    %v730 = vmul.f32 %v498, 1.442695
    %v731 = vpow.pop %v730
    %v732 = vmul.f32 %v499, 1.442695
    %v733 = vpow.pop %v732
    %v734 = vmul.f32 %v500, 1.442695
    %v735 = vpow.pop %v734
    %v736 = vmul.f32 %v501, 1.442695
    %v737 = vpow.pop %v736
    %v738 = vmul.f32 %v502, 1.442695
    %v739 = vpow.pop %v738
    %v740 = vmul.f32 %v503, 1.442695
    %v741 = vpow.pop %v740
    %v742 = vmul.f32 %v504, 1.442695
    %v743 = vpow.pop %v742
    %v744 = vmul.f32 %v505, 1.442695
    %v745 = vpow.pop %v744
    %v746 = vmul.f32 %v506, 1.442695
    %v747 = vpow.pop %v746
    %v748 = vmul.f32 %v507, 1.442695
    %v749 = vpow.pop %v748
    %v750 = vmul.f32 %v508, 1.442695
    %v751 = vpow.pop %v750
    %v752 = vmul.f32 %v509, 1.442695
    %v753 = vpow.pop %v752
    %v754 = vmul.f32 %v510, 1.442695
    %v755 = vpow.pop %v754
    %v756 = vmul.f32 %v511, 1.442695
    %v757 = vpow.pop %v756
    %v758 = vmul.f32 %v512, 1.442695
    %v759 = vpow.pop %v758
    %v760 = vmul.f32 %v513, 1.442695
    %v761 = vpow.pop %v760
    %v762 = vmul.f32 %v514, 1.442695
    %v763 = vpow.pop %v762
    %v764 = vmul.f32 %v515, 1.442695
    %v765 = vpow.pop %v764
    %v766 = vmul.f32 %v516, 1.442695
    %v767 = vpow.pop %v766
    %v768 = vmul.f32 %v517, 1.442695
    %v769 = vpow.pop %v768
    %v770 = vmul.f32 %v518, 1.442695
    %v771 = vpow.pop %v770
    %v772 = vmul.f32 %v519, 1.442695
    %v773 = vpow.pop %v772
    %v774 = vmul.f32 %v520, 1.442695
    %v775 = vpow.pop %v774
    %v776 = vmul.f32 %v521, 1.442695
    %v777 = vpow.pop %v776
    %v778 = vsel %vm137, %v525, 0.0
    %v779 = vadd.f32 %v523, %v778
    %780 = vadd.xlane.f32.xlu0 %v779
    %v781 = vpop.xlane.xlu0 %780
    %v782 = vsel %vm137, %v529, 0.0
    %v783 = vadd.f32 %v527, %v782
    %784 = vadd.xlane.f32.xlu0 %v783
    %v785 = vpop.xlane.xlu0 %784
    %v786 = vsel %vm137, %v533, 0.0
    %v787 = vadd.f32 %v531, %v786
    %788 = vadd.xlane.f32.xlu0 %v787
    %v789 = vpop.xlane.xlu0 %788
    %v790 = vsel %vm137, %v537, 0.0
    %v791 = vadd.f32 %v535, %v790
    %792 = vadd.xlane.f32.xlu0 %v791
    %v793 = vpop.xlane.xlu0 %792
    %v794 = vsel %vm137, %v541, 0.0
    %v795 = vadd.f32 %v539, %v794
    %796 = vadd.xlane.f32.xlu0 %v795
    %v797 = vpop.xlane.xlu0 %796
    %v798 = vsel %vm137, %v545, 0.0
    %v799 = vadd.f32 %v543, %v798
    %800 = vadd.xlane.f32.xlu0 %v799
    %v801 = vpop.xlane.xlu0 %800
    %v802 = vsel %vm137, %v549, 0.0
    %v803 = vadd.f32 %v547, %v802
    %804 = vadd.xlane.f32.xlu0 %v803
    %v805 = vpop.xlane.xlu0 %804
    %v806 = vsel %vm137, %v553, 0.0
    %v807 = vadd.f32 %v551, %v806
    %808 = vadd.xlane.f32.xlu0 %v807
    %v809 = vpop.xlane.xlu0 %808
    %v810 = vsel %vm137, %v557, 0.0
    %v811 = vadd.f32 %v555, %v810
    %812 = vadd.xlane.f32.xlu0 %v811
    %v813 = vpop.xlane.xlu0 %812
    %v814 = vsel %vm137, %v561, 0.0
    %v815 = vadd.f32 %v559, %v814
    %816 = vadd.xlane.f32.xlu0 %v815
    %v817 = vpop.xlane.xlu0 %816
    %v818 = vsel %vm137, %v565, 0.0
    %v819 = vadd.f32 %v563, %v818
    %820 = vadd.xlane.f32.xlu0 %v819
    %v821 = vpop.xlane.xlu0 %820
    %v822 = vsel %vm137, %v569, 0.0
    %v823 = vadd.f32 %v567, %v822
    %824 = vadd.xlane.f32.xlu0 %v823
    %v825 = vpop.xlane.xlu0 %824
    %v826 = vsel %vm137, %v573, 0.0
    %v827 = vadd.f32 %v571, %v826
    %828 = vadd.xlane.f32.xlu0 %v827
    %v829 = vpop.xlane.xlu0 %828
    %v830 = vsel %vm137, %v577, 0.0
    %v831 = vadd.f32 %v575, %v830
    %832 = vadd.xlane.f32.xlu0 %v831
    %v833 = vpop.xlane.xlu0 %832
    %v834 = vsel %vm137, %v581, 0.0
    %v835 = vadd.f32 %v579, %v834
    %836 = vadd.xlane.f32.xlu0 %v835
    %v837 = vpop.xlane.xlu0 %836
    %v838 = vsel %vm137, %v585, 0.0
    %v839 = vadd.f32 %v583, %v838
    %840 = vadd.xlane.f32.xlu0 %v839
    %v841 = vpop.xlane.xlu0 %840
    %v842 = vsel %vm137, %v589, 0.0
    %v843 = vadd.f32 %v587, %v842
    %844 = vadd.xlane.f32.xlu0 %v843
    %v845 = vpop.xlane.xlu0 %844
    %v846 = vsel %vm137, %v593, 0.0
    %v847 = vadd.f32 %v591, %v846
    %848 = vadd.xlane.f32.xlu0 %v847
    %v849 = vpop.xlane.xlu0 %848
    %v850 = vsel %vm137, %v597, 0.0
    %v851 = vadd.f32 %v595, %v850
    %852 = vadd.xlane.f32.xlu0 %v851
    %v853 = vpop.xlane.xlu0 %852
    %v854 = vsel %vm137, %v601, 0.0
    %v855 = vadd.f32 %v599, %v854
    %856 = vadd.xlane.f32.xlu0 %v855
    %v857 = vpop.xlane.xlu0 %856
    %v858 = vsel %vm137, %v605, 0.0
    %v859 = vadd.f32 %v603, %v858
    %860 = vadd.xlane.f32.xlu0 %v859
    %v861 = vpop.xlane.xlu0 %860
    %v862 = vsel %vm137, %v609, 0.0
    %v863 = vadd.f32 %v607, %v862
    %864 = vadd.xlane.f32.xlu0 %v863
    %v865 = vpop.xlane.xlu0 %864
    %v866 = vsel %vm137, %v613, 0.0
    %v867 = vadd.f32 %v611, %v866
    %868 = vadd.xlane.f32.xlu0 %v867
    %v869 = vpop.xlane.xlu0 %868
    %v870 = vsel %vm137, %v617, 0.0
    %v871 = vadd.f32 %v615, %v870
    %872 = vadd.xlane.f32.xlu0 %v871
    %v873 = vpop.xlane.xlu0 %872
    %v874 = vsel %vm137, %v621, 0.0
    %v875 = vadd.f32 %v619, %v874
    %876 = vadd.xlane.f32.xlu0 %v875
    %v877 = vpop.xlane.xlu0 %876
    %v878 = vsel %vm137, %v625, 0.0
    %v879 = vadd.f32 %v623, %v878
    %880 = vadd.xlane.f32.xlu0 %v879
    %v881 = vpop.xlane.xlu0 %880
    %v882 = vsel %vm137, %v629, 0.0
    %v883 = vadd.f32 %v627, %v882
    %884 = vadd.xlane.f32.xlu0 %v883
    %v885 = vpop.xlane.xlu0 %884
    %v886 = vsel %vm137, %v633, 0.0
    %v887 = vadd.f32 %v631, %v886
    %888 = vadd.xlane.f32.xlu0 %v887
    %v889 = vpop.xlane.xlu0 %888
    %v890 = vsel %vm137, %v637, 0.0
    %v891 = vadd.f32 %v635, %v890
    %892 = vadd.xlane.f32.xlu0 %v891
    %v893 = vpop.xlane.xlu0 %892
    %v894 = vsel %vm137, %v641, 0.0
    %v895 = vadd.f32 %v639, %v894
    %896 = vadd.xlane.f32.xlu0 %v895
    %v897 = vpop.xlane.xlu0 %896
    %v898 = vsel %vm137, %v645, 0.0
    %v899 = vadd.f32 %v643, %v898
    %900 = vadd.xlane.f32.xlu0 %v899
    %v901 = vpop.xlane.xlu0 %900
    %v902 = vsel %vm137, %v649, 0.0
    %v903 = vadd.f32 %v647, %v902
    %904 = vadd.xlane.f32.xlu0 %v903
    %v905 = vpop.xlane.xlu0 %904
    %v906 = vsel %vm137, %v653, 0.0
    %v907 = vadd.f32 %v651, %v906
    %908 = vadd.xlane.f32.xlu0 %v907
    %v909 = vpop.xlane.xlu0 %908
    %v910 = vsel %vm137, %v657, 0.0
    %v911 = vadd.f32 %v655, %v910
    %912 = vadd.xlane.f32.xlu0 %v911
    %v913 = vpop.xlane.xlu0 %912
    %v914 = vsel %vm137, %v661, 0.0
    %v915 = vadd.f32 %v659, %v914
    %916 = vadd.xlane.f32.xlu0 %v915
    %v917 = vpop.xlane.xlu0 %916
    %v918 = vsel %vm137, %v665, 0.0
    %v919 = vadd.f32 %v663, %v918
    %920 = vadd.xlane.f32.xlu0 %v919
    %v921 = vpop.xlane.xlu0 %920
    %v922 = vsel %vm137, %v669, 0.0
    %v923 = vadd.f32 %v667, %v922
    %924 = vadd.xlane.f32.xlu0 %v923
    %v925 = vpop.xlane.xlu0 %924
    %v926 = vsel %vm137, %v673, 0.0
    %v927 = vadd.f32 %v671, %v926
    %928 = vadd.xlane.f32.xlu0 %v927
    %v929 = vpop.xlane.xlu0 %928
    %v930 = vsel %vm137, %v677, 0.0
    %v931 = vadd.f32 %v675, %v930
    %932 = vadd.xlane.f32.xlu0 %v931
    %v933 = vpop.xlane.xlu0 %932
    %v934 = vsel %vm137, %v681, 0.0
    %v935 = vadd.f32 %v679, %v934
    %936 = vadd.xlane.f32.xlu0 %v935
    %v937 = vpop.xlane.xlu0 %936
    %v938 = vsel %vm137, %v685, 0.0
    %v939 = vadd.f32 %v683, %v938
    %940 = vadd.xlane.f32.xlu0 %v939
    %v941 = vpop.xlane.xlu0 %940
    %v942 = vsel %vm137, %v689, 0.0
    %v943 = vadd.f32 %v687, %v942
    %944 = vadd.xlane.f32.xlu0 %v943
    %v945 = vpop.xlane.xlu0 %944
    %v946 = vsel %vm137, %v693, 0.0
    %v947 = vadd.f32 %v691, %v946
    %948 = vadd.xlane.f32.xlu0 %v947
    %v949 = vpop.xlane.xlu0 %948
    %v950 = vsel %vm137, %v697, 0.0
    %v951 = vadd.f32 %v695, %v950
    %952 = vadd.xlane.f32.xlu0 %v951
    %v953 = vpop.xlane.xlu0 %952
    %v954 = vsel %vm137, %v701, 0.0
    %v955 = vadd.f32 %v699, %v954
    %956 = vadd.xlane.f32.xlu0 %v955
    %v957 = vpop.xlane.xlu0 %956
    %v958 = vsel %vm137, %v705, 0.0
    %v959 = vadd.f32 %v703, %v958
    %960 = vadd.xlane.f32.xlu0 %v959
    %v961 = vpop.xlane.xlu0 %960
    %v962 = vsel %vm137, %v709, 0.0
    %v963 = vadd.f32 %v707, %v962
    %964 = vadd.xlane.f32.xlu0 %v963
    %v965 = vpop.xlane.xlu0 %964
    %v966 = vsel %vm137, %v713, 0.0
    %v967 = vadd.f32 %v711, %v966
    %968 = vadd.xlane.f32.xlu0 %v967
    %v969 = vpop.xlane.xlu0 %968
    %v970 = vsel %vm137, %v717, 0.0
    %v971 = vadd.f32 %v715, %v970
    %972 = vadd.xlane.f32.xlu0 %v971
    %v973 = vpop.xlane.xlu0 %972
    %v974 = vsel %vm137, %v721, 0.0
    %v975 = vadd.f32 %v719, %v974
    %976 = vadd.xlane.f32.xlu0 %v975
    %v977 = vpop.xlane.xlu0 %976
    %v978 = vsel %vm137, %v725, 0.0
    %v979 = vadd.f32 %v723, %v978
    %980 = vadd.xlane.f32.xlu0 %v979
    %v981 = vpop.xlane.xlu0 %980
    %v982 = vsel %vm137, %v729, 0.0
    %v983 = vadd.f32 %v727, %v982
    %984 = vadd.xlane.f32.xlu0 %v983
    %v985 = vpop.xlane.xlu0 %984
    %v986 = vsel %vm137, %v733, 0.0
    %v987 = vadd.f32 %v731, %v986
    %988 = vadd.xlane.f32.xlu0 %v987
    %v989 = vpop.xlane.xlu0 %988
    %v990 = vsel %vm137, %v737, 0.0
    %v991 = vadd.f32 %v735, %v990
    %992 = vadd.xlane.f32.xlu0 %v991
    %v993 = vpop.xlane.xlu0 %992
    %v994 = vsel %vm137, %v741, 0.0
    %v995 = vadd.f32 %v739, %v994
    %996 = vadd.xlane.f32.xlu0 %v995
    %v997 = vpop.xlane.xlu0 %996
    %v998 = vsel %vm137, %v745, 0.0
    %v999 = vadd.f32 %v743, %v998
    %1000 = vadd.xlane.f32.xlu0 %v999
    %v1001 = vpop.xlane.xlu0 %1000
    %v1002 = vsel %vm137, %v749, 0.0
    %v1003 = vadd.f32 %v747, %v1002
    %1004 = vadd.xlane.f32.xlu0 %v1003
    %v1005 = vpop.xlane.xlu0 %1004
    %v1006 = vsel %vm137, %v753, 0.0
    %v1007 = vadd.f32 %v751, %v1006
    %1008 = vadd.xlane.f32.xlu0 %v1007
    %v1009 = vpop.xlane.xlu0 %1008
    %v1010 = vsel %vm137, %v757, 0.0
    %v1011 = vadd.f32 %v755, %v1010
    %1012 = vadd.xlane.f32.xlu0 %v1011
    %v1013 = vpop.xlane.xlu0 %1012
    %v1014 = vsel %vm137, %v761, 0.0
    %v1015 = vadd.f32 %v759, %v1014
    %1016 = vadd.xlane.f32.xlu0 %v1015
    %v1017 = vpop.xlane.xlu0 %1016
    %v1018 = vsel %vm137, %v765, 0.0
    %v1019 = vadd.f32 %v763, %v1018
    %1020 = vadd.xlane.f32.xlu0 %v1019
    %v1021 = vpop.xlane.xlu0 %1020
    %v1022 = vsel %vm137, %v769, 0.0
    %v1023 = vadd.f32 %v767, %v1022
    %1024 = vadd.xlane.f32.xlu0 %v1023
    %v1025 = vpop.xlane.xlu0 %1024
    %v1026 = vsel %vm137, %v773, 0.0
    %v1027 = vadd.f32 %v771, %v1026
    %1028 = vadd.xlane.f32.xlu0 %v1027
    %v1029 = vpop.xlane.xlu0 %1028
    %v1030 = vsel %vm137, %v777, 0.0
    %v1031 = vadd.f32 %v775, %v1030
    %1032 = vadd.xlane.f32.xlu0 %v1031
    %v1033 = vpop.xlane.xlu0 %1032
    %v1034 = vrcp.pop %v781
    %v1035 = vrcp.pop %v785
    %v1036 = vrcp.pop %v789
    %v1037 = vrcp.pop %v793
    %v1038 = vrcp.pop %v797
    %v1039 = vrcp.pop %v801
    %v1040 = vrcp.pop %v805
    %v1041 = vrcp.pop %v809
    %v1042 = vrcp.pop %v813
    %v1043 = vrcp.pop %v817
    %v1044 = vrcp.pop %v821
    %v1045 = vrcp.pop %v825
    %v1046 = vrcp.pop %v829
    %v1047 = vrcp.pop %v833
    %v1048 = vrcp.pop %v837
    %v1049 = vrcp.pop %v841
    %v1050 = vrcp.pop %v845
    %v1051 = vrcp.pop %v849
    %v1052 = vrcp.pop %v853
    %v1053 = vrcp.pop %v857
    %v1054 = vrcp.pop %v861
    %v1055 = vrcp.pop %v865
    %v1056 = vrcp.pop %v869
    %v1057 = vrcp.pop %v873
    %v1058 = vrcp.pop %v877
    %v1059 = vrcp.pop %v881
    %v1060 = vrcp.pop %v885
    %v1061 = vrcp.pop %v889
    %v1062 = vrcp.pop %v893
    %v1063 = vrcp.pop %v897
    %v1064 = vrcp.pop %v901
    %v1065 = vrcp.pop %v905
    %v1066 = vrcp.pop %v909
    %v1067 = vrcp.pop %v913
    %v1068 = vrcp.pop %v917
    %v1069 = vrcp.pop %v921
    %v1070 = vrcp.pop %v925
    %v1071 = vrcp.pop %v929
    %v1072 = vrcp.pop %v933
    %v1073 = vrcp.pop %v937
    %v1074 = vrcp.pop %v941
    %v1075 = vrcp.pop %v945
    %v1076 = vrcp.pop %v949
    %v1077 = vrcp.pop %v953
    %v1078 = vrcp.pop %v957
    %v1079 = vrcp.pop %v961
    %v1080 = vrcp.pop %v965
    %v1081 = vrcp.pop %v969
    %v1082 = vrcp.pop %v973
    %v1083 = vrcp.pop %v977
    %v1084 = vrcp.pop %v981
    %v1085 = vrcp.pop %v985
    %v1086 = vrcp.pop %v989
    %v1087 = vrcp.pop %v993
    %v1088 = vrcp.pop %v997
    %v1089 = vrcp.pop %v1001
    %v1090 = vrcp.pop %v1005
    %v1091 = vrcp.pop %v1009
    %v1092 = vrcp.pop %v1013
    %v1093 = vrcp.pop %v1017
    %v1094 = vrcp.pop %v1021
    %v1095 = vrcp.pop %v1025
    %v1096 = vrcp.pop %v1029
    %v1097 = vrcp.pop %v1033
    %v1098 = vmul.f32 %v781, %v1034
    %v1099 = vmul.f32 %v785, %v1035
    %v1100 = vmul.f32 %v789, %v1036
    %v1101 = vmul.f32 %v793, %v1037
    %v1102 = vmul.f32 %v797, %v1038
    %v1103 = vmul.f32 %v801, %v1039
    %v1104 = vmul.f32 %v805, %v1040
    %v1105 = vmul.f32 %v809, %v1041
    %v1106 = vmul.f32 %v813, %v1042
    %v1107 = vmul.f32 %v817, %v1043
    %v1108 = vmul.f32 %v821, %v1044
    %v1109 = vmul.f32 %v825, %v1045
    %v1110 = vmul.f32 %v829, %v1046
    %v1111 = vmul.f32 %v833, %v1047
    %v1112 = vmul.f32 %v837, %v1048
    %v1113 = vmul.f32 %v841, %v1049
    %v1114 = vmul.f32 %v845, %v1050
    %v1115 = vmul.f32 %v849, %v1051
    %v1116 = vmul.f32 %v853, %v1052
    %v1117 = vmul.f32 %v857, %v1053
    %v1118 = vmul.f32 %v861, %v1054
    %v1119 = vmul.f32 %v865, %v1055
    %v1120 = vmul.f32 %v869, %v1056
    %v1121 = vmul.f32 %v873, %v1057
    %v1122 = vmul.f32 %v877, %v1058
    %v1123 = vmul.f32 %v881, %v1059
    %v1124 = vmul.f32 %v885, %v1060
    %v1125 = vmul.f32 %v889, %v1061
    %v1126 = vmul.f32 %v893, %v1062
    %v1127 = vmul.f32 %v897, %v1063
    %v1128 = vmul.f32 %v901, %v1064
    %v1129 = vmul.f32 %v905, %v1065
    %v1130 = vmul.f32 %v909, %v1066
    %v1131 = vmul.f32 %v913, %v1067
    %v1132 = vmul.f32 %v917, %v1068
    %v1133 = vmul.f32 %v921, %v1069
    %v1134 = vmul.f32 %v925, %v1070
    %v1135 = vmul.f32 %v929, %v1071
    %v1136 = vmul.f32 %v933, %v1072
    %v1137 = vmul.f32 %v937, %v1073
    %v1138 = vmul.f32 %v941, %v1074
    %v1139 = vmul.f32 %v945, %v1075
    %v1140 = vmul.f32 %v949, %v1076
    %v1141 = vmul.f32 %v953, %v1077
    %v1142 = vmul.f32 %v957, %v1078
    %v1143 = vmul.f32 %v961, %v1079
    %v1144 = vmul.f32 %v965, %v1080
    %v1145 = vmul.f32 %v969, %v1081
    %v1146 = vmul.f32 %v973, %v1082
    %v1147 = vmul.f32 %v977, %v1083
    %v1148 = vmul.f32 %v981, %v1084
    %v1149 = vmul.f32 %v985, %v1085
    %v1150 = vmul.f32 %v989, %v1086
    %v1151 = vmul.f32 %v993, %v1087
    %v1152 = vmul.f32 %v997, %v1088
    %v1153 = vmul.f32 %v1001, %v1089
    %v1154 = vmul.f32 %v1005, %v1090
    %v1155 = vmul.f32 %v1009, %v1091
    %v1156 = vmul.f32 %v1013, %v1092
    %v1157 = vmul.f32 %v1017, %v1093
    %v1158 = vmul.f32 %v1021, %v1094
    %v1159 = vmul.f32 %v1025, %v1095
    %v1160 = vmul.f32 %v1029, %v1096
    %v1161 = vmul.f32 %v1033, %v1097
    %v1162 = vsub.f32 2.0, %v1098
    %v1163 = vsub.f32 2.0, %v1099
    %v1164 = vsub.f32 2.0, %v1100
    %v1165 = vsub.f32 2.0, %v1101
    %v1166 = vsub.f32 2.0, %v1102
    %v1167 = vsub.f32 2.0, %v1103
    %v1168 = vsub.f32 2.0, %v1104
    %v1169 = vsub.f32 2.0, %v1105
    %v1170 = vsub.f32 2.0, %v1106
    %v1171 = vsub.f32 2.0, %v1107
    %v1172 = vsub.f32 2.0, %v1108
    %v1173 = vsub.f32 2.0, %v1109
    %v1174 = vsub.f32 2.0, %v1110
    %v1175 = vsub.f32 2.0, %v1111
    %v1176 = vsub.f32 2.0, %v1112
    %v1177 = vsub.f32 2.0, %v1113
    %v1178 = vsub.f32 2.0, %v1114
    %v1179 = vsub.f32 2.0, %v1115
    %v1180 = vsub.f32 2.0, %v1116
    %v1181 = vsub.f32 2.0, %v1117
    %v1182 = vsub.f32 2.0, %v1118
    %v1183 = vsub.f32 2.0, %v1119
    %v1184 = vsub.f32 2.0, %v1120
    %v1185 = vsub.f32 2.0, %v1121
    %v1186 = vsub.f32 2.0, %v1122
    %v1187 = vsub.f32 2.0, %v1123
    %v1188 = vsub.f32 2.0, %v1124
    %v1189 = vsub.f32 2.0, %v1125
    %v1190 = vsub.f32 2.0, %v1126
    %v1191 = vsub.f32 2.0, %v1127
    %v1192 = vsub.f32 2.0, %v1128
    %v1193 = vsub.f32 2.0, %v1129
    %v1194 = vsub.f32 2.0, %v1130
    %v1195 = vsub.f32 2.0, %v1131
    %v1196 = vsub.f32 2.0, %v1132
    %v1197 = vsub.f32 2.0, %v1133
    %v1198 = vsub.f32 2.0, %v1134
    %v1199 = vsub.f32 2.0, %v1135
    %v1200 = vsub.f32 2.0, %v1136
    %v1201 = vsub.f32 2.0, %v1137
    %v1202 = vsub.f32 2.0, %v1138
    %v1203 = vsub.f32 2.0, %v1139
    %v1204 = vsub.f32 2.0, %v1140
    %v1205 = vsub.f32 2.0, %v1141
    %v1206 = vsub.f32 2.0, %v1142
    %v1207 = vsub.f32 2.0, %v1143
    %v1208 = vsub.f32 2.0, %v1144
    %v1209 = vsub.f32 2.0, %v1145
    %v1210 = vsub.f32 2.0, %v1146
    %v1211 = vsub.f32 2.0, %v1147
    %v1212 = vsub.f32 2.0, %v1148
    %v1213 = vsub.f32 2.0, %v1149
    %v1214 = vsub.f32 2.0, %v1150
    %v1215 = vsub.f32 2.0, %v1151
    %v1216 = vsub.f32 2.0, %v1152
    %v1217 = vsub.f32 2.0, %v1153
    %v1218 = vsub.f32 2.0, %v1154
    %v1219 = vsub.f32 2.0, %v1155
    %v1220 = vsub.f32 2.0, %v1156
    %v1221 = vsub.f32 2.0, %v1157
    %v1222 = vsub.f32 2.0, %v1158
    %v1223 = vsub.f32 2.0, %v1159
    %v1224 = vsub.f32 2.0, %v1160
    %v1225 = vsub.f32 2.0, %v1161
    %v1226 = vmul.f32 %v1034, %v1162
    %v1227 = vmul.f32 %v1035, %v1163
    %v1228 = vmul.f32 %v1036, %v1164
    %v1229 = vmul.f32 %v1037, %v1165
    %v1230 = vmul.f32 %v1038, %v1166
    %v1231 = vmul.f32 %v1039, %v1167
    %v1232 = vmul.f32 %v1040, %v1168
    %v1233 = vmul.f32 %v1041, %v1169
    %v1234 = vmul.f32 %v1042, %v1170
    %v1235 = vmul.f32 %v1043, %v1171
    %v1236 = vmul.f32 %v1044, %v1172
    %v1237 = vmul.f32 %v1045, %v1173
    %v1238 = vmul.f32 %v1046, %v1174
    %v1239 = vmul.f32 %v1047, %v1175
    %v1240 = vmul.f32 %v1048, %v1176
    %v1241 = vmul.f32 %v1049, %v1177
    %v1242 = vmul.f32 %v1050, %v1178
    %v1243 = vmul.f32 %v1051, %v1179
    %v1244 = vmul.f32 %v1052, %v1180
    %v1245 = vmul.f32 %v1053, %v1181
    %v1246 = vmul.f32 %v1054, %v1182
    %v1247 = vmul.f32 %v1055, %v1183
    %v1248 = vmul.f32 %v1056, %v1184
    %v1249 = vmul.f32 %v1057, %v1185
    %v1250 = vmul.f32 %v1058, %v1186
    %v1251 = vmul.f32 %v1059, %v1187
    %v1252 = vmul.f32 %v1060, %v1188
    %v1253 = vmul.f32 %v1061, %v1189
    %v1254 = vmul.f32 %v1062, %v1190
    %v1255 = vmul.f32 %v1063, %v1191
    %v1256 = vmul.f32 %v1064, %v1192
    %v1257 = vmul.f32 %v1065, %v1193
    %v1258 = vmul.f32 %v1066, %v1194
    %v1259 = vmul.f32 %v1067, %v1195
    %v1260 = vmul.f32 %v1068, %v1196
    %v1261 = vmul.f32 %v1069, %v1197
    %v1262 = vmul.f32 %v1070, %v1198
    %v1263 = vmul.f32 %v1071, %v1199
    %v1264 = vmul.f32 %v1072, %v1200
    %v1265 = vmul.f32 %v1073, %v1201
    %v1266 = vmul.f32 %v1074, %v1202
    %v1267 = vmul.f32 %v1075, %v1203
    %v1268 = vmul.f32 %v1076, %v1204
    %v1269 = vmul.f32 %v1077, %v1205
    %v1270 = vmul.f32 %v1078, %v1206
    %v1271 = vmul.f32 %v1079, %v1207
    %v1272 = vmul.f32 %v1080, %v1208
    %v1273 = vmul.f32 %v1081, %v1209
    %v1274 = vmul.f32 %v1082, %v1210
    %v1275 = vmul.f32 %v1083, %v1211
    %v1276 = vmul.f32 %v1084, %v1212
    %v1277 = vmul.f32 %v1085, %v1213
    %v1278 = vmul.f32 %v1086, %v1214
    %v1279 = vmul.f32 %v1087, %v1215
    %v1280 = vmul.f32 %v1088, %v1216
    %v1281 = vmul.f32 %v1089, %v1217
    %v1282 = vmul.f32 %v1090, %v1218
    %v1283 = vmul.f32 %v1091, %v1219
    %v1284 = vmul.f32 %v1092, %v1220
    %v1285 = vmul.f32 %v1093, %v1221
    %v1286 = vmul.f32 %v1094, %v1222
    %v1287 = vmul.f32 %v1095, %v1223
    %v1288 = vmul.f32 %v1096, %v1224
    %v1289 = vmul.f32 %v1097, %v1225
    %v1290 = vmul.f32 %v523, %v1226
    %v1291 = vmul.f32 %v525, %v1226
    %v1292 = vmul.f32 %v527, %v1227
    %v1293 = vmul.f32 %v529, %v1227
    %v1294 = vmul.f32 %v531, %v1228
    %v1295 = vmul.f32 %v533, %v1228
    %v1296 = vmul.f32 %v535, %v1229
    %v1297 = vmul.f32 %v537, %v1229
    %v1298 = vmul.f32 %v539, %v1230
    %v1299 = vmul.f32 %v541, %v1230
    %v1300 = vmul.f32 %v543, %v1231
    %v1301 = vmul.f32 %v545, %v1231
    %v1302 = vmul.f32 %v547, %v1232
    %v1303 = vmul.f32 %v549, %v1232
    %v1304 = vmul.f32 %v551, %v1233
    %v1305 = vmul.f32 %v553, %v1233
    %v1306 = vmul.f32 %v555, %v1234
    %v1307 = vmul.f32 %v557, %v1234
    %v1308 = vmul.f32 %v559, %v1235
    %v1309 = vmul.f32 %v561, %v1235
    %v1310 = vmul.f32 %v563, %v1236
    %v1311 = vmul.f32 %v565, %v1236
    %v1312 = vmul.f32 %v567, %v1237
    %v1313 = vmul.f32 %v569, %v1237
    %v1314 = vmul.f32 %v571, %v1238
    %v1315 = vmul.f32 %v573, %v1238
    %v1316 = vmul.f32 %v575, %v1239
    %v1317 = vmul.f32 %v577, %v1239
    %v1318 = vmul.f32 %v579, %v1240
    %v1319 = vmul.f32 %v581, %v1240
    %v1320 = vmul.f32 %v583, %v1241
    %v1321 = vmul.f32 %v585, %v1241
    %v1322 = vmul.f32 %v587, %v1242
    %v1323 = vmul.f32 %v589, %v1242
    %v1324 = vmul.f32 %v591, %v1243
    %v1325 = vmul.f32 %v593, %v1243
    %v1326 = vmul.f32 %v595, %v1244
    %v1327 = vmul.f32 %v597, %v1244
    %v1328 = vmul.f32 %v599, %v1245
    %v1329 = vmul.f32 %v601, %v1245
    %v1330 = vmul.f32 %v603, %v1246
    %v1331 = vmul.f32 %v605, %v1246
    %v1332 = vmul.f32 %v607, %v1247
    %v1333 = vmul.f32 %v609, %v1247
    %v1334 = vmul.f32 %v611, %v1248
    %v1335 = vmul.f32 %v613, %v1248
    %v1336 = vmul.f32 %v615, %v1249
    %v1337 = vmul.f32 %v617, %v1249
    %v1338 = vmul.f32 %v619, %v1250
    %v1339 = vmul.f32 %v621, %v1250
    %v1340 = vmul.f32 %v623, %v1251
    %v1341 = vmul.f32 %v625, %v1251
    %v1342 = vmul.f32 %v627, %v1252
    %v1343 = vmul.f32 %v629, %v1252
    %v1344 = vmul.f32 %v631, %v1253
    %v1345 = vmul.f32 %v633, %v1253
    %v1346 = vmul.f32 %v635, %v1254
    %v1347 = vmul.f32 %v637, %v1254
    %v1348 = vmul.f32 %v639, %v1255
    %v1349 = vmul.f32 %v641, %v1255
    %v1350 = vmul.f32 %v643, %v1256
    %v1351 = vmul.f32 %v645, %v1256
    %v1352 = vmul.f32 %v647, %v1257
    %v1353 = vmul.f32 %v649, %v1257
    %v1354 = vmul.f32 %v651, %v1258
    %v1355 = vmul.f32 %v653, %v1258
    %v1356 = vmul.f32 %v655, %v1259
    %v1357 = vmul.f32 %v657, %v1259
    %v1358 = vmul.f32 %v659, %v1260
    %v1359 = vmul.f32 %v661, %v1260
    %v1360 = vmul.f32 %v663, %v1261
    %v1361 = vmul.f32 %v665, %v1261
    %v1362 = vmul.f32 %v667, %v1262
    %v1363 = vmul.f32 %v669, %v1262
    %v1364 = vmul.f32 %v671, %v1263
    %v1365 = vmul.f32 %v673, %v1263
    %v1366 = vmul.f32 %v675, %v1264
    %v1367 = vmul.f32 %v677, %v1264
    %v1368 = vmul.f32 %v679, %v1265
    %v1369 = vmul.f32 %v681, %v1265
    %v1370 = vmul.f32 %v683, %v1266
    %v1371 = vmul.f32 %v685, %v1266
    %v1372 = vmul.f32 %v687, %v1267
    %v1373 = vmul.f32 %v689, %v1267
    %v1374 = vmul.f32 %v691, %v1268
    %v1375 = vmul.f32 %v693, %v1268
    %v1376 = vmul.f32 %v695, %v1269
    %v1377 = vmul.f32 %v697, %v1269
    %v1378 = vmul.f32 %v699, %v1270
    %v1379 = vmul.f32 %v701, %v1270
    %v1380 = vmul.f32 %v703, %v1271
    %v1381 = vmul.f32 %v705, %v1271
    %v1382 = vmul.f32 %v707, %v1272
    %v1383 = vmul.f32 %v709, %v1272
    %v1384 = vmul.f32 %v711, %v1273
    %v1385 = vmul.f32 %v713, %v1273
    %v1386 = vmul.f32 %v715, %v1274
    %v1387 = vmul.f32 %v717, %v1274
    %v1388 = vmul.f32 %v719, %v1275
    %v1389 = vmul.f32 %v721, %v1275
    %v1390 = vmul.f32 %v723, %v1276
    %v1391 = vmul.f32 %v725, %v1276
    %v1392 = vmul.f32 %v727, %v1277
    %v1393 = vmul.f32 %v729, %v1277
    %v1394 = vmul.f32 %v731, %v1278
    %v1395 = vmul.f32 %v733, %v1278
    %v1396 = vmul.f32 %v735, %v1279
    %v1397 = vmul.f32 %v737, %v1279
    %v1398 = vmul.f32 %v739, %v1280
    %v1399 = vmul.f32 %v741, %v1280
    %v1400 = vmul.f32 %v743, %v1281
    %v1401 = vmul.f32 %v745, %v1281
    %v1402 = vmul.f32 %v747, %v1282
    %v1403 = vmul.f32 %v749, %v1282
    %v1404 = vmul.f32 %v751, %v1283
    %v1405 = vmul.f32 %v753, %v1283
    %v1406 = vmul.f32 %v755, %v1284
    %v1407 = vmul.f32 %v757, %v1284
    %v1408 = vmul.f32 %v759, %v1285
    %v1409 = vmul.f32 %v761, %v1285
    %v1410 = vmul.f32 %v763, %v1286
    %v1411 = vmul.f32 %v765, %v1286
    %v1412 = vmul.f32 %v767, %v1287
    %v1413 = vmul.f32 %v769, %v1287
    %v1414 = vmul.f32 %v771, %v1288
    %v1415 = vmul.f32 %v773, %v1288
    %v1416 = vmul.f32 %v775, %v1289
    %v1417 = vmul.f32 %v777, %v1289
    %1418 = vst [vmem:[#allocation2] sm:$0xff] %v1290
    %1419 = vst.msk [vmem:[#allocation2 + $0x8] sm:$0xff] %vm137, %v1291
    %1420 = vst [vmem:[#allocation2 + $0x10] sm:$0xff] %v1292
    %1421 = vst.msk [vmem:[#allocation2 + $0x18] sm:$0xff] %vm137, %v1293
    %1422 = vst [vmem:[#allocation2 + $0x20] sm:$0xff] %v1294
    %1423 = vst.msk [vmem:[#allocation2 + $0x28] sm:$0xff] %vm137, %v1295
    %1424 = vst [vmem:[#allocation2 + $0x30] sm:$0xff] %v1296
    %1425 = vst.msk [vmem:[#allocation2 + $0x38] sm:$0xff] %vm137, %v1297
    %1426 = vst [vmem:[#allocation2 + $0x40] sm:$0xff] %v1298
    %1427 = vst.msk [vmem:[#allocation2 + $0x48] sm:$0xff] %vm137, %v1299
    %1428 = vst [vmem:[#allocation2 + $0x50] sm:$0xff] %v1300
    %1429 = vst.msk [vmem:[#allocation2 + $0x58] sm:$0xff] %vm137, %v1301
    %1430 = vst [vmem:[#allocation2 + $0x60] sm:$0xff] %v1302
    %1431 = vst.msk [vmem:[#allocation2 + $0x68] sm:$0xff] %vm137, %v1303
    %1432 = vst [vmem:[#allocation2 + $0x70] sm:$0xff] %v1304
    %1433 = vst.msk [vmem:[#allocation2 + $0x78] sm:$0xff] %vm137, %v1305
    %1434 = vst [vmem:[#allocation2 + $0x80] sm:$0xff] %v1306
    %1435 = vst.msk [vmem:[#allocation2 + $0x88] sm:$0xff] %vm137, %v1307
    %1436 = vst [vmem:[#allocation2 + $0x90] sm:$0xff] %v1308
    %1437 = vst.msk [vmem:[#allocation2 + $0x98] sm:$0xff] %vm137, %v1309
    %1438 = vst [vmem:[#allocation2 + $0xa0] sm:$0xff] %v1310
    %1439 = vst.msk [vmem:[#allocation2 + $0xa8] sm:$0xff] %vm137, %v1311
    %1440 = vst [vmem:[#allocation2 + $0xb0] sm:$0xff] %v1312
    %1441 = vst.msk [vmem:[#allocation2 + $0xb8] sm:$0xff] %vm137, %v1313
    %1442 = vst [vmem:[#allocation2 + $0xc0] sm:$0xff] %v1314
    %1443 = vst.msk [vmem:[#allocation2 + $0xc8] sm:$0xff] %vm137, %v1315
    %1444 = vst [vmem:[#allocation2 + $0xd0] sm:$0xff] %v1316
    %1445 = vst.msk [vmem:[#allocation2 + $0xd8] sm:$0xff] %vm137, %v1317
    %1446 = vst [vmem:[#allocation2 + $0xe0] sm:$0xff] %v1318
    %1447 = vst.msk [vmem:[#allocation2 + $0xe8] sm:$0xff] %vm137, %v1319
    %1448 = vst [vmem:[#allocation2 + $0xf0] sm:$0xff] %v1320
    %1449 = vst.msk [vmem:[#allocation2 + $0xf8] sm:$0xff] %vm137, %v1321
    %1450 = vst [vmem:[#allocation2 + $0x100] sm:$0xff] %v1322
    %1451 = vst.msk [vmem:[#allocation2 + $0x108] sm:$0xff] %vm137, %v1323
    %1452 = vst [vmem:[#allocation2 + $0x110] sm:$0xff] %v1324
    %1453 = vst.msk [vmem:[#allocation2 + $0x118] sm:$0xff] %vm137, %v1325
    %1454 = vst [vmem:[#allocation2 + $0x120] sm:$0xff] %v1326
    %1455 = vst.msk [vmem:[#allocation2 + $0x128] sm:$0xff] %vm137, %v1327
    %1456 = vst [vmem:[#allocation2 + $0x130] sm:$0xff] %v1328
    %1457 = vst.msk [vmem:[#allocation2 + $0x138] sm:$0xff] %vm137, %v1329
    %1458 = vst [vmem:[#allocation2 + $0x140] sm:$0xff] %v1330
    %1459 = vst.msk [vmem:[#allocation2 + $0x148] sm:$0xff] %vm137, %v1331
    %1460 = vst [vmem:[#allocation2 + $0x150] sm:$0xff] %v1332
    %1461 = vst.msk [vmem:[#allocation2 + $0x158] sm:$0xff] %vm137, %v1333
    %1462 = vst [vmem:[#allocation2 + $0x160] sm:$0xff] %v1334
    %1463 = vst.msk [vmem:[#allocation2 + $0x168] sm:$0xff] %vm137, %v1335
    %1464 = vst [vmem:[#allocation2 + $0x170] sm:$0xff] %v1336
    %1465 = vst.msk [vmem:[#allocation2 + $0x178] sm:$0xff] %vm137, %v1337
    %1466 = vst [vmem:[#allocation2 + $0x180] sm:$0xff] %v1338
    %1467 = vst.msk [vmem:[#allocation2 + $0x188] sm:$0xff] %vm137, %v1339
    %1468 = vst [vmem:[#allocation2 + $0x190] sm:$0xff] %v1340
    %1469 = vst.msk [vmem:[#allocation2 + $0x198] sm:$0xff] %vm137, %v1341
    %1470 = vst [vmem:[#allocation2 + $0x1a0] sm:$0xff] %v1342
    %1471 = vst.msk [vmem:[#allocation2 + $0x1a8] sm:$0xff] %vm137, %v1343
    %1472 = vst [vmem:[#allocation2 + $0x1b0] sm:$0xff] %v1344
    %1473 = vst.msk [vmem:[#allocation2 + $0x1b8] sm:$0xff] %vm137, %v1345
    %1474 = vst [vmem:[#allocation2 + $0x1c0] sm:$0xff] %v1346
    %1475 = vst.msk [vmem:[#allocation2 + $0x1c8] sm:$0xff] %vm137, %v1347
    %1476 = vst [vmem:[#allocation2 + $0x1d0] sm:$0xff] %v1348
    %1477 = vst.msk [vmem:[#allocation2 + $0x1d8] sm:$0xff] %vm137, %v1349
    %1478 = vst [vmem:[#allocation2 + $0x1e0] sm:$0xff] %v1350
    %1479 = vst.msk [vmem:[#allocation2 + $0x1e8] sm:$0xff] %vm137, %v1351
    %1480 = vst [vmem:[#allocation2 + $0x1f0] sm:$0xff] %v1352
    %1481 = vst.msk [vmem:[#allocation2 + $0x1f8] sm:$0xff] %vm137, %v1353
    %1482 = vst [vmem:[#allocation2 + $0x200] sm:$0xff] %v1354
    %1483 = vst.msk [vmem:[#allocation2 + $0x208] sm:$0xff] %vm137, %v1355
    %1484 = vst [vmem:[#allocation2 + $0x210] sm:$0xff] %v1356
    %1485 = vst.msk [vmem:[#allocation2 + $0x218] sm:$0xff] %vm137, %v1357
    %1486 = vst [vmem:[#allocation2 + $0x220] sm:$0xff] %v1358
    %1487 = vst.msk [vmem:[#allocation2 + $0x228] sm:$0xff] %vm137, %v1359
    %1488 = vst [vmem:[#allocation2 + $0x230] sm:$0xff] %v1360
    %1489 = vst.msk [vmem:[#allocation2 + $0x238] sm:$0xff] %vm137, %v1361
    %1490 = vst [vmem:[#allocation2 + $0x240] sm:$0xff] %v1362
    %1491 = vst.msk [vmem:[#allocation2 + $0x248] sm:$0xff] %vm137, %v1363
    %1492 = vst [vmem:[#allocation2 + $0x250] sm:$0xff] %v1364
    %1493 = vst.msk [vmem:[#allocation2 + $0x258] sm:$0xff] %vm137, %v1365
    %1494 = vst [vmem:[#allocation2 + $0x260] sm:$0xff] %v1366
    %1495 = vst.msk [vmem:[#allocation2 + $0x268] sm:$0xff] %vm137, %v1367
    %1496 = vst [vmem:[#allocation2 + $0x270] sm:$0xff] %v1368
    %1497 = vst.msk [vmem:[#allocation2 + $0x278] sm:$0xff] %vm137, %v1369
    %1498 = vst [vmem:[#allocation2 + $0x280] sm:$0xff] %v1370
    %1499 = vst.msk [vmem:[#allocation2 + $0x288] sm:$0xff] %vm137, %v1371
    %1500 = vst [vmem:[#allocation2 + $0x290] sm:$0xff] %v1372
    %1501 = vst.msk [vmem:[#allocation2 + $0x298] sm:$0xff] %vm137, %v1373
    %1502 = vst [vmem:[#allocation2 + $0x2a0] sm:$0xff] %v1374
    %1503 = vst.msk [vmem:[#allocation2 + $0x2a8] sm:$0xff] %vm137, %v1375
    %1504 = vst [vmem:[#allocation2 + $0x2b0] sm:$0xff] %v1376
    %1505 = vst.msk [vmem:[#allocation2 + $0x2b8] sm:$0xff] %vm137, %v1377
    %1506 = vst [vmem:[#allocation2 + $0x2c0] sm:$0xff] %v1378
    %1507 = vst.msk [vmem:[#allocation2 + $0x2c8] sm:$0xff] %vm137, %v1379
    %1508 = vst [vmem:[#allocation2 + $0x2d0] sm:$0xff] %v1380
    %1509 = vst.msk [vmem:[#allocation2 + $0x2d8] sm:$0xff] %vm137, %v1381
    %1510 = vst [vmem:[#allocation2 + $0x2e0] sm:$0xff] %v1382
    %1511 = vst.msk [vmem:[#allocation2 + $0x2e8] sm:$0xff] %vm137, %v1383
    %1512 = vst [vmem:[#allocation2 + $0x2f0] sm:$0xff] %v1384
    %1513 = vst.msk [vmem:[#allocation2 + $0x2f8] sm:$0xff] %vm137, %v1385
    %1514 = vst [vmem:[#allocation2 + $0x300] sm:$0xff] %v1386
    %1515 = vst.msk [vmem:[#allocation2 + $0x308] sm:$0xff] %vm137, %v1387
    %1516 = vst [vmem:[#allocation2 + $0x310] sm:$0xff] %v1388
    %1517 = vst.msk [vmem:[#allocation2 + $0x318] sm:$0xff] %vm137, %v1389
    %1518 = vst [vmem:[#allocation2 + $0x320] sm:$0xff] %v1390
    %1519 = vst.msk [vmem:[#allocation2 + $0x328] sm:$0xff] %vm137, %v1391
    %1520 = vst [vmem:[#allocation2 + $0x330] sm:$0xff] %v1392
    %1521 = vst.msk [vmem:[#allocation2 + $0x338] sm:$0xff] %vm137, %v1393
    %1522 = vst [vmem:[#allocation2 + $0x340] sm:$0xff] %v1394
    %1523 = vst.msk [vmem:[#allocation2 + $0x348] sm:$0xff] %vm137, %v1395
    %1524 = vst [vmem:[#allocation2 + $0x350] sm:$0xff] %v1396
    %1525 = vst.msk [vmem:[#allocation2 + $0x358] sm:$0xff] %vm137, %v1397
    %1526 = vst [vmem:[#allocation2 + $0x360] sm:$0xff] %v1398
    %1527 = vst.msk [vmem:[#allocation2 + $0x368] sm:$0xff] %vm137, %v1399
    %1528 = vst [vmem:[#allocation2 + $0x370] sm:$0xff] %v1400
    %1529 = vst.msk [vmem:[#allocation2 + $0x378] sm:$0xff] %vm137, %v1401
    %1530 = vst [vmem:[#allocation2 + $0x380] sm:$0xff] %v1402
    %1531 = vst.msk [vmem:[#allocation2 + $0x388] sm:$0xff] %vm137, %v1403
    %1532 = vst [vmem:[#allocation2 + $0x390] sm:$0xff] %v1404
    %1533 = vst.msk [vmem:[#allocation2 + $0x398] sm:$0xff] %vm137, %v1405
    %1534 = vst [vmem:[#allocation2 + $0x3a0] sm:$0xff] %v1406
    %1535 = vst.msk [vmem:[#allocation2 + $0x3a8] sm:$0xff] %vm137, %v1407
    %1536 = vst [vmem:[#allocation2 + $0x3b0] sm:$0xff] %v1408
    %1537 = vst.msk [vmem:[#allocation2 + $0x3b8] sm:$0xff] %vm137, %v1409
    %1538 = vst [vmem:[#allocation2 + $0x3c0] sm:$0xff] %v1410
    %1539 = vst.msk [vmem:[#allocation2 + $0x3c8] sm:$0xff] %vm137, %v1411
    %1540 = vst [vmem:[#allocation2 + $0x3d0] sm:$0xff] %v1412
    %1541 = vst.msk [vmem:[#allocation2 + $0x3d8] sm:$0xff] %vm137, %v1413
    %1542 = vst [vmem:[#allocation2 + $0x3e0] sm:$0xff] %v1414
    %1543 = vst.msk [vmem:[#allocation2 + $0x3e8] sm:$0xff] %vm137, %v1415
    %1544 = vst [vmem:[#allocation2 + $0x3f0] sm:$0xff] %v1416
    %1545 = vst.msk [vmem:[#allocation2 + $0x3f8] sm:$0xff] %vm137, %v1417
    // Predicated region
    $region6: #{ade20k_segmenter_forward.19} parent=1 // pred_check
      _
    $region7: #{ade20k_segmenter_forward.19} parent=1 // pred_check_branch
      %1547 = sbr.rel (0) target = $region9
    $region8: #{ade20k_segmenter_forward.19} parent=1 // pred_region
      %s1549 = ssub.s32 16384, 16384
      %1550 = vsyncadd [#allocation3], %s1549
      %s1551 = sshll.u32 [#allocation2], 4
      %s1552 = int_to_ptr.vmem [resolvable:$true] %s1551
      %1557 = dma.vmem_to_hbm [thread:$0]  %s1552, 16384, %s1, [#allocation3], 256, 256, 16
    $region9: #{ade20k_segmenter_forward.19} parent=1 // pred_fallthru
      _
    // Predicated region
    $region10: #{ade20k_segmenter_forward.19} parent=1 // pred_check
      _
    $region11: #{ade20k_segmenter_forward.19} parent=1 // pred_check_branch
      %1559 = sbr.rel (0) target = $region13
    $region12: #{ade20k_segmenter_forward.19} parent=1 // pred_region
      %1560 = dma.done [#allocation3], 16384
    $region13: #{ade20k_segmenter_forward.19} parent=1 // pred_fallthru
      _
    %1561 = vsyncpa [#allocation3], 1

</llo_original>
